<compile_context>
chip_gen: v6e
topology: v6e:2x2x1
jax: 0.10.0
libtpu: 0.0.40
codegen_flags: <defaults>
</compile_context>

<pallas_src>
import functools
import math

import jax
import jax.numpy as jnp
from jax import lax
from jax.experimental import pallas as pl
from jax.experimental.pallas import tpu as pltpu


# --------------------- hoisted parameter preparation (runs once) ---------------------

_ATTN_LEN = 8
_LN_LEN = 2
_DENSE_LEN = 2
_ENC_LAYER_LEN = _ATTN_LEN + _LN_LEN + 2 * _DENSE_LEN + _LN_LEN                 # 16
_DEC_LAYER_LEN = 2 * _ATTN_LEN + 3 * _LN_LEN + 2 * _DENSE_LEN                   # 26


def _prep_dense(p):
    n = p["w"].shape[1]
    return [p["w"].astype(jnp.bfloat16), p["b"].reshape(1, n).astype(jnp.float32)]


def _prep_ln(p):
    d = p["g"].shape[0]
    return [p["g"].reshape(1, d).astype(jnp.float32),
            p["b"].reshape(1, d).astype(jnp.float32)]


def _prep_attn(p, n_heads, d_k):
    d_model = p["wq"]["w"].shape[0]

    def head_major_w(w):      # (D, H*Dk) -> (H, D, Dk) bf16
        return jnp.transpose(w.reshape(d_model, n_heads, d_k), (1, 0, 2)).astype(jnp.bfloat16)

    def head_major_b(b):      # (H*Dk,) -> (H, 1, Dk) f32
        return b.reshape(n_heads, 1, d_k).astype(jnp.float32)

    return [head_major_w(p["wq"]["w"]), head_major_b(p["wq"]["b"]),
            head_major_w(p["wk"]["w"]), head_major_b(p["wk"]["b"]),
            head_major_w(p["wv"]["w"]), head_major_b(p["wv"]["b"]),
            p["wo"]["w"].reshape(n_heads, d_k, d_model).astype(jnp.bfloat16),
            p["wo"]["b"].reshape(1, d_model).astype(jnp.float32)]


def prepare_params(params, *, n_heads, d_k):
    """Cast weights to bf16, reshape attention weights head-major, reshape biases — once."""
    d_model = params["enc_emb"]["w"].shape[1]
    flat = []
    flat += _prep_dense(params["enc_emb"])
    flat += _prep_dense(params["dec_emb"])
    flat += [params["final"]["w"].reshape(1, d_model).astype(jnp.float32),   # row of (D,1) column
             params["final"]["b"].reshape(1, 1).astype(jnp.float32)]
    for lp in params["transformer"]["enc_layers"]:
        flat += _prep_attn(lp["self"], n_heads, d_k)
        flat += _prep_ln(lp["ln1"])
        flat += _prep_dense(lp["ff1"])
        flat += _prep_dense(lp["ff2"])
        flat += _prep_ln(lp["ln2"])
    for lp in params["transformer"]["dec_layers"]:
        flat += _prep_attn(lp["self"], n_heads, d_k)
        flat += _prep_ln(lp["ln1"])
        flat += _prep_attn(lp["cross"], n_heads, d_k)
        flat += _prep_ln(lp["ln2"])
        flat += _prep_dense(lp["ff1"])
        flat += _prep_dense(lp["ff2"])
        flat += _prep_ln(lp["ln3"])
    return flat


# ---------------------------- fully fused forward kernel -----------------------------


def _forward_kernel(*refs, n_layers, n_heads, d_k, pred_len, eps):
    it = iter(refs)
    enc_in_ref = next(it)                       # (1, S_enc, F_enc) f32
    dec_in_ref = next(it)                       # (1, S_dec, F_dec) f32
    y_ref = next(it)                            # (1, pred_len, 1) f32
    enc_emb_w, enc_emb_b = next(it), next(it)
    dec_emb_w, dec_emb_b = next(it), next(it)
    final_w_ref, final_b_ref = next(it), next(it)
    enc_layers = [[next(it) for _ in range(_ENC_LAYER_LEN)] for _ in range(n_layers)]
    dec_layers = [[next(it) for _ in range(_DEC_LAYER_LEN)] for _ in range(n_layers)]
    o_ref = next(it)                            # (1, pred_len, 1) f32
    sq_ref = next(it)                           # (1, 1, 1) f32

    scale = 1.0 / math.sqrt(d_k)

    def dense(x, w_ref, b_ref, relu=False):
        y = jnp.dot(x.astype(jnp.bfloat16), w_ref[...],
                    preferred_element_type=jnp.float32) + b_ref[...]
        return jnp.maximum(y, 0.0) if relu else y

    def layer_norm(y, g_ref, b_ref):
        mu = jnp.mean(y, axis=-1, keepdims=True)
        var = jnp.mean((y - mu) * (y - mu), axis=-1, keepdims=True)
        return (y - mu) * lax.rsqrt(var + eps) * g_ref[...] + b_ref[...]

    def head_proj(x, w_ref, b_ref):
        # x: (S, D) f32 -> (H, S, Dk) f32. One batched bf16 MXU matmul over all heads,
        # no per-head lane slicing, no transposes in-kernel (weights are head-major already).
        xb = jnp.broadcast_to(x.astype(jnp.bfloat16)[None], (n_heads,) + x.shape)
        return jnp.einsum("hsd,hdk->hsk", xb, w_ref[...],
                          preferred_element_type=jnp.float32) + b_ref[...]

    def attention(xq, xkv, prm, causal):
        wq, bq, wk, bk, wv, bv, wo, bo = prm
        q = head_proj(xq, wq, bq)               # (H, Sq, Dk)
        k = head_proj(xkv, wk, bk)              # (H, Skv, Dk)
        v = head_proj(xkv, wv, bv)              # (H, Skv, Dk)
        s = jnp.einsum("hqd,hkd->hqk", q.astype(jnp.bfloat16), k.astype(jnp.bfloat16),
                       preferred_element_type=jnp.float32) * scale     # (H, Sq, Skv)
        if causal:
            row = lax.broadcasted_iota(jnp.int32, s.shape, 1)
            col = lax.broadcasted_iota(jnp.int32, s.shape, 2)
            s = jnp.where(col <= row, s, -1e9)
        s = s - jnp.max(s, axis=-1, keepdims=True)
        p = jnp.exp(s)
        p = p * pl.reciprocal(jnp.sum(p, axis=-1, keepdims=True), approx=True)
        ctx = jnp.einsum("hqk,hkd->hqd", p.astype(jnp.bfloat16), v.astype(jnp.bfloat16),
                         preferred_element_type=jnp.float32)            # (H, Sq, Dk)
        # concat(heads) @ Wo == sum_h head_h @ Wo_h : one batched matmul + reduce over heads.
        o_heads = jnp.einsum("hqd,hdm->hqm", ctx.astype(jnp.bfloat16), wo[...],
                             preferred_element_type=jnp.float32)        # (H, Sq, D)
        return jnp.sum(o_heads, axis=0) + bo[...]                       # (Sq, D)

    def encoder_layer(x, prm):
        attn_p = prm[0:8]
        ln1_g, ln1_b = prm[8:10]
        ff1_w, ff1_b = prm[10:12]
        ff2_w, ff2_b = prm[12:14]
        ln2_g, ln2_b = prm[14:16]
        x = layer_norm(x + attention(x, x, attn_p, causal=False), ln1_g, ln1_b)
        h = dense(x, ff1_w, ff1_b, relu=True)
        return layer_norm(x + dense(h, ff2_w, ff2_b), ln2_g, ln2_b)

    def decoder_layer(x, mem, prm):
        self_p = prm[0:8]
        ln1_g, ln1_b = prm[8:10]
        cross_p = prm[10:18]
        ln2_g, ln2_b = prm[18:20]
        ff1_w, ff1_b = prm[20:22]
        ff2_w, ff2_b = prm[22:24]
        ln3_g, ln3_b = prm[24:26]
        x = layer_norm(x + attention(x, x, self_p, causal=True), ln1_g, ln1_b)
        x = layer_norm(x + attention(x, mem, cross_p, causal=False), ln2_g, ln2_b)
        h = dense(x, ff1_w, ff1_b, relu=True)
        return layer_norm(x + dense(h, ff2_w, ff2_b), ln3_g, ln3_b)

    # --- whole forward for this batch element, entirely in VMEM / vregs ---
    enc = dense(enc_in_ref[0], enc_emb_w, enc_emb_b)        # (S_enc, D)
    dec = dense(dec_in_ref[0], dec_emb_w, dec_emb_b)        # (S_dec, D)
    for prm in enc_layers:
        enc = encoder_layer(enc, prm)
    for prm in dec_layers:
        dec = decoder_layer(dec, enc, prm)

    # final_projection(dec_out[:, -pred_len:, :]) : (D,1) weight applied as a VPU weighted row-sum.
    tail = dec[dec.shape[0] - pred_len:, :]                                  # (pred_len, D)
    out = jnp.sum(tail * final_w_ref[...], axis=-1, keepdims=True) + final_b_ref[...]
    o_ref[0] = out.astype(o_ref.dtype)

    # per-batch squared-error partial (MSE finalized in the wrapper with a 2-element sum)
    d = y_ref[0].astype(jnp.float32) - out
    sq_ref[...] = jnp.zeros_like(sq_ref)
    sq_ref[...] += jnp.sum(d * d)


# ----------------------------------- forward wrapper ----------------------------------


def forecast_denoising_forward(prepared, lam, enc_inputs, dec_inputs, y_true, *,
                               pred_len, n_heads, d_k, n_layers, eps=1e-5):
    B, s_enc, f_enc = enc_inputs.shape
    _, s_dec, f_dec = dec_inputs.shape
    y_in = y_true if y_true is not None else jnp.zeros((B, pred_len, 1), jnp.float32)

    per_batch_specs = [
        pl.BlockSpec((1, s_enc, f_enc), lambda b: (b, 0, 0)),
        pl.BlockSpec((1, s_dec, f_dec), lambda b: (b, 0, 0)),
        pl.BlockSpec((1, pred_len, 1), lambda b: (b, 0, 0)),
    ]
    # Weights: full-array blocks, constant index_map -> DMA'd once (index unchanged across grid).
    shared_specs = [pl.BlockSpec(p.shape, (lambda nd: (lambda b: (0,) * nd))(p.ndim))
                    for p in prepared]

    kernel = functools.partial(_forward_kernel, n_layers=n_layers, n_heads=n_heads,
                               d_k=d_k, pred_len=pred_len, eps=eps)

    final_outputs, sqerr = pl.pallas_call(
        kernel,
        out_shape=(jax.ShapeDtypeStruct((B, pred_len, 1), jnp.float32),
                   jax.ShapeDtypeStruct((B, 1, 1), jnp.float32)),
        grid_spec=pltpu.PrefetchScalarGridSpec(
            num_scalar_prefetch=0,
            grid=(B,),
            in_specs=per_batch_specs + shared_specs,
            out_specs=[pl.BlockSpec((1, pred_len, 1), lambda b: (b, 0, 0)),
                       pl.BlockSpec((1, 1, 1), lambda b: (b, 0, 0))],
        ),
        compiler_params=pltpu.CompilerParams(dimension_semantics=("parallel",)),
    )(enc_inputs.astype(jnp.float32), dec_inputs.astype(jnp.float32),
      y_in.astype(jnp.float32), *prepared)

    if y_true is not None:
        mse_loss = jnp.sum(sqerr) / y_in.size
        mll_error = 0.0   # denoise=False / gp=False branch
        loss = mse_loss + jnp.clip(lam[0], 0.0, 0.005) * mll_error
    else:
        mse_loss = jnp.float32(0.0)
        loss = jnp.float32(0.0)
    return final_outputs, loss, mse_loss


# ------------------------------------- params init ------------------------------------


def init_params(key, *, src_in, tgt_in, d_model, n_heads, d_k, n_layers):
    d_ff = d_model * 4
    keys = iter(jax.random.split(key, 256))

    def dense(i, o):
        return {"w": 0.05 * jax.random.normal(next(keys), (i, o), jnp.float32),
                "b": jnp.zeros((o,), jnp.float32)}

    def ln():
        return {"g": jnp.ones((d_model,), jnp.float32), "b": jnp.zeros((d_model,), jnp.float32)}

    def attn_block():
        return {"wq": dense(d_model, n_heads * d_k), "wk": dense(d_model, n_heads * d_k),
                "wv": dense(d_model, n_heads * d_k), "wo": dense(n_heads * d_k, d_model)}

    def enc_layer():
        return {"self": attn_block(), "ln1": ln(), "ln2": ln(),
                "ff1": dense(d_model, d_ff), "ff2": dense(d_ff, d_model)}

    def dec_layer():
        return {"self": attn_block(), "cross": attn_block(),
                "ln1": ln(), "ln2": ln(), "ln3": ln(),
                "ff1": dense(d_model, d_ff), "ff2": dense(d_ff, d_model)}

    return {
        "enc_emb": dense(src_in, d_model),
        "dec_emb": dense(tgt_in, d_model),
        "final": dense(d_model, 1),
        "lam": jax.random.normal(next(keys), (1,), jnp.float32),
        "transformer": {
            "enc_layers": [enc_layer() for _ in range(n_layers)],
            "dec_layers": [dec_layer() for _ in range(n_layers)],
        },
    }


# ----------------------------------------- main ----------------------------------------


if __name__ == "__main__":
    # config = (src_input_size, tgt_input_size, d_model, n_heads, d_k, stack_size)
    SRC_IN, TGT_IN, D_MODEL, N_HEADS, D_K, N_LAYERS = 4, 4, 32, 4, 8, 1
    B, S_ENC, S_DEC, PRED_LEN = 2, 8, 8, 4

    key = jax.random.PRNGKey(0)
    k_p, k_e, k_d, k_y = jax.random.split(key, 4)
    params = init_params(k_p, src_in=SRC_IN, tgt_in=TGT_IN, d_model=D_MODEL,
                         n_heads=N_HEADS, d_k=D_K, n_layers=N_LAYERS)
    prepared = prepare_params(params, n_heads=N_HEADS, d_k=D_K)   # hoisted once

    enc_inputs = jax.random.normal(k_e, (B, S_ENC, SRC_IN), jnp.float32)
    dec_inputs = jax.random.normal(k_d, (B, S_DEC, TGT_IN), jnp.float32)
    y_true = jax.random.normal(k_y, (B, PRED_LEN, 1), jnp.float32)

    fwd = jax.jit(functools.partial(forecast_denoising_forward,
                                    pred_len=PRED_LEN, n_heads=N_HEADS,
                                    d_k=D_K, n_layers=N_LAYERS))
    final_outputs, loss, mse_loss = fwd(prepared, params["lam"], enc_inputs, dec_inputs, y_true)
    jax.block_until_ready((final_outputs, loss, mse_loss))

    assert final_outputs.shape == (B, PRED_LEN, 1)
    assert bool(jnp.isfinite(loss)) and bool(jnp.isfinite(mse_loss))
    # internal consistency: kernel-computed MSE matches MSE of kernel outputs
    ref_mse = jnp.mean((y_true - final_outputs) ** 2)
    assert abs(float(mse_loss) - float(ref_mse)) < 1e-4
    print("KERNEL_OK")
</pallas_src>

<mosaic_0001>
module attributes {stable_mosaic.version = 11 : i64} {
  func.func @_forward_kernel(%arg0: i32, %arg1: memref<1x8x4xf32, #tpu.memory_space<vmem>>, %arg2: memref<1x8x4xf32, #tpu.memory_space<vmem>>, %arg3: memref<1x4x1xf32, #tpu.memory_space<vmem>>, %arg4: memref<4x32xbf16, #tpu.memory_space<vmem>>, %arg5: memref<1x32xf32, #tpu.memory_space<vmem>>, %arg6: memref<4x32xbf16, #tpu.memory_space<vmem>>, %arg7: memref<1x32xf32, #tpu.memory_space<vmem>>, %arg8: memref<1x32xf32, #tpu.memory_space<vmem>>, %arg9: memref<1x1xf32, #tpu.memory_space<vmem>>, %arg10: memref<4x32x8xbf16, #tpu.memory_space<vmem>>, %arg11: memref<4x1x8xf32, #tpu.memory_space<vmem>>, %arg12: memref<4x32x8xbf16, #tpu.memory_space<vmem>>, %arg13: memref<4x1x8xf32, #tpu.memory_space<vmem>>, %arg14: memref<4x32x8xbf16, #tpu.memory_space<vmem>>, %arg15: memref<4x1x8xf32, #tpu.memory_space<vmem>>, %arg16: memref<4x8x32xbf16, #tpu.memory_space<vmem>>, %arg17: memref<1x32xf32, #tpu.memory_space<vmem>>, %arg18: memref<1x32xf32, #tpu.memory_space<vmem>>, %arg19: memref<1x32xf32, #tpu.memory_space<vmem>>, %arg20: memref<32x128xbf16, #tpu.memory_space<vmem>>, %arg21: memref<1x128xf32, #tpu.memory_space<vmem>>, %arg22: memref<128x32xbf16, #tpu.memory_space<vmem>>, %arg23: memref<1x32xf32, #tpu.memory_space<vmem>>, %arg24: memref<1x32xf32, #tpu.memory_space<vmem>>, %arg25: memref<1x32xf32, #tpu.memory_space<vmem>>, %arg26: memref<4x32x8xbf16, #tpu.memory_space<vmem>>, %arg27: memref<4x1x8xf32, #tpu.memory_space<vmem>>, %arg28: memref<4x32x8xbf16, #tpu.memory_space<vmem>>, %arg29: memref<4x1x8xf32, #tpu.memory_space<vmem>>, %arg30: memref<4x32x8xbf16, #tpu.memory_space<vmem>>, %arg31: memref<4x1x8xf32, #tpu.memory_space<vmem>>, %arg32: memref<4x8x32xbf16, #tpu.memory_space<vmem>>, %arg33: memref<1x32xf32, #tpu.memory_space<vmem>>, %arg34: memref<1x32xf32, #tpu.memory_space<vmem>>, %arg35: memref<1x32xf32, #tpu.memory_space<vmem>>, %arg36: memref<4x32x8xbf16, #tpu.memory_space<vmem>>, %arg37: memref<4x1x8xf32, #tpu.memory_space<vmem>>, %arg38: memref<4x32x8xbf16, #tpu.memory_space<vmem>>, %arg39: memref<4x1x8xf32, #tpu.memory_space<vmem>>, %arg40: memref<4x32x8xbf16, #tpu.memory_space<vmem>>, %arg41: memref<4x1x8xf32, #tpu.memory_space<vmem>>, %arg42: memref<4x8x32xbf16, #tpu.memory_space<vmem>>, %arg43: memref<1x32xf32, #tpu.memory_space<vmem>>, %arg44: memref<1x32xf32, #tpu.memory_space<vmem>>, %arg45: memref<1x32xf32, #tpu.memory_space<vmem>>, %arg46: memref<32x128xbf16, #tpu.memory_space<vmem>>, %arg47: memref<1x128xf32, #tpu.memory_space<vmem>>, %arg48: memref<128x32xbf16, #tpu.memory_space<vmem>>, %arg49: memref<1x32xf32, #tpu.memory_space<vmem>>, %arg50: memref<1x32xf32, #tpu.memory_space<vmem>>, %arg51: memref<1x32xf32, #tpu.memory_space<vmem>>, %arg52: memref<1x4x1xf32, #tpu.memory_space<vmem>>, %arg53: memref<1x1x1xf32, #tpu.memory_space<vmem>>) attributes {dimension_semantics = [#tpu.dimension_semantics<parallel>], iteration_bounds = array<i64: 2>, scalar_prefetch = 0 : i64, scratch_operands = 0 : i64, tpu.core_type = #tpu.core_type<tc>, window_params = [{transform_indices = @transform_0, window_bounds = array<i64: 1, 8, 4>}, {transform_indices = @transform_1, window_bounds = array<i64: 1, 8, 4>}, {transform_indices = @transform_2, window_bounds = array<i64: 1, 4, 1>}, {pipeline_mode = #tpu.pipeline_mode<synchronous>, transform_indices = @transform_3, window_bounds = array<i64: 4, 32>}, {pipeline_mode = #tpu.pipeline_mode<synchronous>, transform_indices = @transform_4, window_bounds = array<i64: 1, 32>}, {pipeline_mode = #tpu.pipeline_mode<synchronous>, transform_indices = @transform_5, window_bounds = array<i64: 4, 32>}, {pipeline_mode = #tpu.pipeline_mode<synchronous>, transform_indices = @transform_6, window_bounds = array<i64: 1, 32>}, {pipeline_mode = #tpu.pipeline_mode<synchronous>, transform_indices = @transform_7, window_bounds = array<i64: 1, 32>}, {pipeline_mode = #tpu.pipeline_mode<synchronous>, transform_indices = @transform_8, window_bounds = array<i64: 1, 1>}, {pipeline_mode = #tpu.pipeline_mode<synchronous>, transform_indices = @transform_9, window_bounds = array<i64: 4, 32, 8>}, {pipeline_mode = #tpu.pipeline_mode<synchronous>, transform_indices = @transform_10, window_bounds = array<i64: 4, 1, 8>}, {pipeline_mode = #tpu.pipeline_mode<synchronous>, transform_indices = @transform_11, window_bounds = array<i64: 4, 32, 8>}, {pipeline_mode = #tpu.pipeline_mode<synchronous>, transform_indices = @transform_12, window_bounds = array<i64: 4, 1, 8>}, {pipeline_mode = #tpu.pipeline_mode<synchronous>, transform_indices = @transform_13, window_bounds = array<i64: 4, 32, 8>}, {pipeline_mode = #tpu.pipeline_mode<synchronous>, transform_indices = @transform_14, window_bounds = array<i64: 4, 1, 8>}, {pipeline_mode = #tpu.pipeline_mode<synchronous>, transform_indices = @transform_15, window_bounds = array<i64: 4, 8, 32>}, {pipeline_mode = #tpu.pipeline_mode<synchronous>, transform_indices = @transform_16, window_bounds = array<i64: 1, 32>}, {pipeline_mode = #tpu.pipeline_mode<synchronous>, transform_indices = @transform_17, window_bounds = array<i64: 1, 32>}, {pipeline_mode = #tpu.pipeline_mode<synchronous>, transform_indices = @transform_18, window_bounds = array<i64: 1, 32>}, {pipeline_mode = #tpu.pipeline_mode<synchronous>, transform_indices = @transform_19, window_bounds = array<i64: 32, 128>}, {pipeline_mode = #tpu.pipeline_mode<synchronous>, transform_indices = @transform_20, window_bounds = array<i64: 1, 128>}, {pipeline_mode = #tpu.pipeline_mode<synchronous>, transform_indices = @transform_21, window_bounds = array<i64: 128, 32>}, {pipeline_mode = #tpu.pipeline_mode<synchronous>, transform_indices = @transform_22, window_bounds = array<i64: 1, 32>}, {pipeline_mode = #tpu.pipeline_mode<synchronous>, transform_indices = @transform_23, window_bounds = array<i64: 1, 32>}, {pipeline_mode = #tpu.pipeline_mode<synchronous>, transform_indices = @transform_24, window_bounds = array<i64: 1, 32>}, {pipeline_mode = #tpu.pipeline_mode<synchronous>, transform_indices = @transform_25, window_bounds = array<i64: 4, 32, 8>}, {pipeline_mode = #tpu.pipeline_mode<synchronous>, transform_indices = @transform_26, window_bounds = array<i64: 4, 1, 8>}, {pipeline_mode = #tpu.pipeline_mode<synchronous>, transform_indices = @transform_27, window_bounds = array<i64: 4, 32, 8>}, {pipeline_mode = #tpu.pipeline_mode<synchronous>, transform_indices = @transform_28, window_bounds = array<i64: 4, 1, 8>}, {pipeline_mode = #tpu.pipeline_mode<synchronous>, transform_indices = @transform_29, window_bounds = array<i64: 4, 32, 8>}, {pipeline_mode = #tpu.pipeline_mode<synchronous>, transform_indices = @transform_30, window_bounds = array<i64: 4, 1, 8>}, {pipeline_mode = #tpu.pipeline_mode<synchronous>, transform_indices = @transform_31, window_bounds = array<i64: 4, 8, 32>}, {pipeline_mode = #tpu.pipeline_mode<synchronous>, transform_indices = @transform_32, window_bounds = array<i64: 1, 32>}, {pipeline_mode = #tpu.pipeline_mode<synchronous>, transform_indices = @transform_33, window_bounds = array<i64: 1, 32>}, {pipeline_mode = #tpu.pipeline_mode<synchronous>, transform_indices = @transform_34, window_bounds = array<i64: 1, 32>}, {pipeline_mode = #tpu.pipeline_mode<synchronous>, transform_indices = @transform_35, window_bounds = array<i64: 4, 32, 8>}, {pipeline_mode = #tpu.pipeline_mode<synchronous>, transform_indices = @transform_36, window_bounds = array<i64: 4, 1, 8>}, {pipeline_mode = #tpu.pipeline_mode<synchronous>, transform_indices = @transform_37, window_bounds = array<i64: 4, 32, 8>}, {pipeline_mode = #tpu.pipeline_mode<synchronous>, transform_indices = @transform_38, window_bounds = array<i64: 4, 1, 8>}, {pipeline_mode = #tpu.pipeline_mode<synchronous>, transform_indices = @transform_39, window_bounds = array<i64: 4, 32, 8>}, {pipeline_mode = #tpu.pipeline_mode<synchronous>, transform_indices = @transform_40, window_bounds = array<i64: 4, 1, 8>}, {pipeline_mode = #tpu.pipeline_mode<synchronous>, transform_indices = @transform_41, window_bounds = array<i64: 4, 8, 32>}, {pipeline_mode = #tpu.pipeline_mode<synchronous>, transform_indices = @transform_42, window_bounds = array<i64: 1, 32>}, {pipeline_mode = #tpu.pipeline_mode<synchronous>, transform_indices = @transform_43, window_bounds = array<i64: 1, 32>}, {pipeline_mode = #tpu.pipeline_mode<synchronous>, transform_indices = @transform_44, window_bounds = array<i64: 1, 32>}, {pipeline_mode = #tpu.pipeline_mode<synchronous>, transform_indices = @transform_45, window_bounds = array<i64: 32, 128>}, {pipeline_mode = #tpu.pipeline_mode<synchronous>, transform_indices = @transform_46, window_bounds = array<i64: 1, 128>}, {pipeline_mode = #tpu.pipeline_mode<synchronous>, transform_indices = @transform_47, window_bounds = array<i64: 128, 32>}, {pipeline_mode = #tpu.pipeline_mode<synchronous>, transform_indices = @transform_48, window_bounds = array<i64: 1, 32>}, {pipeline_mode = #tpu.pipeline_mode<synchronous>, transform_indices = @transform_49, window_bounds = array<i64: 1, 32>}, {pipeline_mode = #tpu.pipeline_mode<synchronous>, transform_indices = @transform_50, window_bounds = array<i64: 1, 32>}, {transform_indices = @transform_51, window_bounds = array<i64: 1, 4, 1>}, {transform_indices = @transform_52, window_bounds = array<i64: 1, 1, 1>}]} {
    %c0 = arith.constant 0 : index
    %c0_0 = arith.constant 0 : index
    %c0_1 = arith.constant 0 : index
    %0 = vector.load %arg1[%c0, %c0_0, %c0_1] : memref<1x8x4xf32, #tpu.memory_space<vmem>>, vector<1x8x4xf32>
    %1 = vector.shape_cast %0 : vector<1x8x4xf32> to vector<8x4xf32>
    %2 = arith.truncf %1 : vector<8x4xf32> to vector<8x4xbf16>
    %c0_2 = arith.constant 0 : index
    %c0_3 = arith.constant 0 : index
    %3 = vector.load %arg4[%c0_2, %c0_3] : memref<4x32xbf16, #tpu.memory_space<vmem>>, vector<4x32xbf16>
    %cst = arith.constant dense<0.000000e+00> : vector<8x32xf32>
    %4 = tpu.matmul %2, %3, %cst {dimension_numbers = #tpu.dot_dimension_numbers<[1], [0], [0], [1], [0, 0, 1, 1], [], []>} : vector<8x4xbf16>, vector<4x32xbf16>, vector<8x32xf32> -> vector<8x32xf32>
    %c0_4 = arith.constant 0 : index
    %c0_5 = arith.constant 0 : index
    %5 = vector.load %arg5[%c0_4, %c0_5] : memref<1x32xf32, #tpu.memory_space<vmem>>, vector<1x32xf32>
    %6 = vector.broadcast %5 : vector<1x32xf32> to vector<8x32xf32>
    %7 = arith.addf %4, %6 : vector<8x32xf32>
    %c0_6 = arith.constant 0 : index
    %c0_7 = arith.constant 0 : index
    %c0_8 = arith.constant 0 : index
    %8 = vector.load %arg2[%c0_6, %c0_7, %c0_8] : memref<1x8x4xf32, #tpu.memory_space<vmem>>, vector<1x8x4xf32>
    %9 = vector.shape_cast %8 : vector<1x8x4xf32> to vector<8x4xf32>
    %10 = arith.truncf %9 : vector<8x4xf32> to vector<8x4xbf16>
    %c0_9 = arith.constant 0 : index
    %c0_10 = arith.constant 0 : index
    %11 = vector.load %arg6[%c0_9, %c0_10] : memref<4x32xbf16, #tpu.memory_space<vmem>>, vector<4x32xbf16>
    %cst_11 = arith.constant dense<0.000000e+00> : vector<8x32xf32>
    %12 = tpu.matmul %10, %11, %cst_11 {dimension_numbers = #tpu.dot_dimension_numbers<[1], [0], [0], [1], [0, 0, 1, 1], [], []>} : vector<8x4xbf16>, vector<4x32xbf16>, vector<8x32xf32> -> vector<8x32xf32>
    %c0_12 = arith.constant 0 : index
    %c0_13 = arith.constant 0 : index
    %13 = vector.load %arg7[%c0_12, %c0_13] : memref<1x32xf32, #tpu.memory_space<vmem>>, vector<1x32xf32>
    %14 = vector.broadcast %13 : vector<1x32xf32> to vector<8x32xf32>
    %15 = arith.addf %12, %14 : vector<8x32xf32>
    %16 = arith.truncf %7 : vector<8x32xf32> to vector<8x32xbf16>
    %17 = vector.shape_cast %16 : vector<8x32xbf16> to vector<1x8x32xbf16>
    %18 = vector.shape_cast %17 : vector<1x8x32xbf16> to vector<1x8x32xbf16>
    %19 = vector.broadcast %18 : vector<1x8x32xbf16> to vector<4x8x32xbf16>
    %c0_14 = arith.constant 0 : index
    %c0_15 = arith.constant 0 : index
    %c0_16 = arith.constant 0 : index
    %20 = vector.load %arg10[%c0_14, %c0_15, %c0_16] : memref<4x32x8xbf16, #tpu.memory_space<vmem>>, vector<4x32x8xbf16>
    "tpu.trace_start"() <{level = 10 : i32, message = "hsd,hdk->hsk"}> : () -> ()
    %cst_17 = arith.constant dense<0.000000e+00> : vector<4x8x8xf32>
    %21 = tpu.matmul %19, %20, %cst_17 {dimension_numbers = #tpu.dot_dimension_numbers<[2], [1], [1], [2], [0, 0, 0, 1, 1, 2], [0], [0]>} : vector<4x8x32xbf16>, vector<4x32x8xbf16>, vector<4x8x8xf32> -> vector<4x8x8xf32>
    "tpu.trace_stop"() : () -> ()
    %c0_18 = arith.constant 0 : index
    %c0_19 = arith.constant 0 : index
    %c0_20 = arith.constant 0 : index
    %22 = vector.load %arg11[%c0_18, %c0_19, %c0_20] : memref<4x1x8xf32, #tpu.memory_space<vmem>>, vector<4x1x8xf32>
    %23 = vector.broadcast %22 : vector<4x1x8xf32> to vector<4x8x8xf32>
    %24 = arith.addf %21, %23 : vector<4x8x8xf32>
    %25 = arith.truncf %7 : vector<8x32xf32> to vector<8x32xbf16>
    %26 = vector.shape_cast %25 : vector<8x32xbf16> to vector<1x8x32xbf16>
    %27 = vector.shape_cast %26 : vector<1x8x32xbf16> to vector<1x8x32xbf16>
    %28 = vector.broadcast %27 : vector<1x8x32xbf16> to vector<4x8x32xbf16>
    %c0_21 = arith.constant 0 : index
    %c0_22 = arith.constant 0 : index
    %c0_23 = arith.constant 0 : index
    %29 = vector.load %arg12[%c0_21, %c0_22, %c0_23] : memref<4x32x8xbf16, #tpu.memory_space<vmem>>, vector<4x32x8xbf16>
    "tpu.trace_start"() <{level = 10 : i32, message = "hsd,hdk->hsk"}> : () -> ()
    %cst_24 = arith.constant dense<0.000000e+00> : vector<4x8x8xf32>
    %30 = tpu.matmul %28, %29, %cst_24 {dimension_numbers = #tpu.dot_dimension_numbers<[2], [1], [1], [2], [0, 0, 0, 1, 1, 2], [0], [0]>} : vector<4x8x32xbf16>, vector<4x32x8xbf16>, vector<4x8x8xf32> -> vector<4x8x8xf32>
    "tpu.trace_stop"() : () -> ()
    %c0_25 = arith.constant 0 : index
    %c0_26 = arith.constant 0 : index
    %c0_27 = arith.constant 0 : index
    %31 = vector.load %arg13[%c0_25, %c0_26, %c0_27] : memref<4x1x8xf32, #tpu.memory_space<vmem>>, vector<4x1x8xf32>
    %32 = vector.broadcast %31 : vector<4x1x8xf32> to vector<4x8x8xf32>
    %33 = arith.addf %30, %32 : vector<4x8x8xf32>
    %34 = arith.truncf %7 : vector<8x32xf32> to vector<8x32xbf16>
    %35 = vector.shape_cast %34 : vector<8x32xbf16> to vector<1x8x32xbf16>
    %36 = vector.shape_cast %35 : vector<1x8x32xbf16> to vector<1x8x32xbf16>
    %37 = vector.broadcast %36 : vector<1x8x32xbf16> to vector<4x8x32xbf16>
    %c0_28 = arith.constant 0 : index
    %c0_29 = arith.constant 0 : index
    %c0_30 = arith.constant 0 : index
    %38 = vector.load %arg14[%c0_28, %c0_29, %c0_30] : memref<4x32x8xbf16, #tpu.memory_space<vmem>>, vector<4x32x8xbf16>
    "tpu.trace_start"() <{level = 10 : i32, message = "hsd,hdk->hsk"}> : () -> ()
    %cst_31 = arith.constant dense<0.000000e+00> : vector<4x8x8xf32>
    %39 = tpu.matmul %37, %38, %cst_31 {dimension_numbers = #tpu.dot_dimension_numbers<[2], [1], [1], [2], [0, 0, 0, 1, 1, 2], [0], [0]>} : vector<4x8x32xbf16>, vector<4x32x8xbf16>, vector<4x8x8xf32> -> vector<4x8x8xf32>
    "tpu.trace_stop"() : () -> ()
    %c0_32 = arith.constant 0 : index
    %c0_33 = arith.constant 0 : index
    %c0_34 = arith.constant 0 : index
    %40 = vector.load %arg15[%c0_32, %c0_33, %c0_34] : memref<4x1x8xf32, #tpu.memory_space<vmem>>, vector<4x1x8xf32>
    %41 = vector.broadcast %40 : vector<4x1x8xf32> to vector<4x8x8xf32>
    %42 = arith.addf %39, %41 : vector<4x8x8xf32>
    %43 = arith.truncf %24 : vector<4x8x8xf32> to vector<4x8x8xbf16>
    %44 = arith.truncf %33 : vector<4x8x8xf32> to vector<4x8x8xbf16>
    "tpu.trace_start"() <{level = 10 : i32, message = "hqd,hkd->hqk"}> : () -> ()
    %cst_35 = arith.constant dense<0.000000e+00> : vector<4x8x8xf32>
    %45 = tpu.matmul %43, %44, %cst_35 {dimension_numbers = #tpu.dot_dimension_numbers<[2], [2], [1], [1], [0, 0, 0, 1, 1, 1], [0], [0]>} : vector<4x8x8xbf16>, vector<4x8x8xbf16>, vector<4x8x8xf32> -> vector<4x8x8xf32>
    "tpu.trace_stop"() : () -> ()
    %cst_36 = arith.constant 0.353553385 : f32
    %46 = vector.broadcast %cst_36 : f32 to vector<4x8x8xf32>
    %47 = arith.mulf %45, %46 : vector<4x8x8xf32>
    %cst_37 = arith.constant dense<0xFF800000> : vector<4x8xf32>
    %48 = vector.multi_reduction <maximumf>, %47, %cst_37 [2] : vector<4x8x8xf32> to vector<4x8xf32>
    %49 = vector.shape_cast %48 : vector<4x8xf32> to vector<4x8x1xf32>
    %50 = vector.broadcast %49 : vector<4x8x1xf32> to vector<4x8x8xf32>
    %51 = arith.subf %47, %50 : vector<4x8x8xf32>
    %52 = math.exp %51 : vector<4x8x8xf32>
    %cst_38 = arith.constant dense<0.000000e+00> : vector<4x8xf32>
    %53 = vector.multi_reduction <add>, %52, %cst_38 [2] : vector<4x8x8xf32> to vector<4x8xf32>
    %54 = vector.shape_cast %53 : vector<4x8xf32> to vector<4x8x1xf32>
    %55 = tpu.reciprocal %54 {approx = true} : vector<4x8x1xf32> -> vector<4x8x1xf32>
    %56 = vector.broadcast %55 : vector<4x8x1xf32> to vector<4x8x8xf32>
    %57 = arith.mulf %52, %56 : vector<4x8x8xf32>
    %58 = arith.truncf %57 : vector<4x8x8xf32> to vector<4x8x8xbf16>
    %59 = arith.truncf %42 : vector<4x8x8xf32> to vector<4x8x8xbf16>
    "tpu.trace_start"() <{level = 10 : i32, message = "hqk,hkd->hqd"}> : () -> ()
    %cst_39 = arith.constant dense<0.000000e+00> : vector<4x8x8xf32>
    %60 = tpu.matmul %58, %59, %cst_39 {dimension_numbers = #tpu.dot_dimension_numbers<[2], [1], [1], [2], [0, 0, 0, 1, 1, 2], [0], [0]>} : vector<4x8x8xbf16>, vector<4x8x8xbf16>, vector<4x8x8xf32> -> vector<4x8x8xf32>
    "tpu.trace_stop"() : () -> ()
    %61 = arith.truncf %60 : vector<4x8x8xf32> to vector<4x8x8xbf16>
    %c0_40 = arith.constant 0 : index
    %c0_41 = arith.constant 0 : index
    %c0_42 = arith.constant 0 : index
    %62 = vector.load %arg16[%c0_40, %c0_41, %c0_42] : memref<4x8x32xbf16, #tpu.memory_space<vmem>>, vector<4x8x32xbf16>
    "tpu.trace_start"() <{level = 10 : i32, message = "hqd,hdm->hqm"}> : () -> ()
    %cst_43 = arith.constant dense<0.000000e+00> : vector<4x8x32xf32>
    %63 = tpu.matmul %61, %62, %cst_43 {dimension_numbers = #tpu.dot_dimension_numbers<[2], [1], [1], [2], [0, 0, 0, 1, 1, 2], [0], [0]>} : vector<4x8x8xbf16>, vector<4x8x32xbf16>, vector<4x8x32xf32> -> vector<4x8x32xf32>
    "tpu.trace_stop"() : () -> ()
    %cst_44 = arith.constant dense<0.000000e+00> : vector<8x32xf32>
    %64 = vector.multi_reduction <add>, %63, %cst_44 [0] : vector<4x8x32xf32> to vector<8x32xf32>
    %c0_45 = arith.constant 0 : index
    %c0_46 = arith.constant 0 : index
    %65 = vector.load %arg17[%c0_45, %c0_46] : memref<1x32xf32, #tpu.memory_space<vmem>>, vector<1x32xf32>
    %66 = vector.broadcast %65 : vector<1x32xf32> to vector<8x32xf32>
    %67 = arith.addf %64, %66 : vector<8x32xf32>
    %68 = arith.addf %7, %67 : vector<8x32xf32>
    %cst_47 = arith.constant dense<0.000000e+00> : vector<8xf32>
    %69 = vector.multi_reduction <add>, %68, %cst_47 [1] : vector<8x32xf32> to vector<8xf32>
    %70 = vector.shape_cast %69 : vector<8xf32> to vector<8x1xf32>
    %cst_48 = arith.constant 3.200000e+01 : f32
    %71 = vector.broadcast %cst_48 : f32 to vector<8x1xf32>
    %72 = arith.divf %70, %71 : vector<8x1xf32>
    %73 = vector.broadcast %72 : vector<8x1xf32> to vector<8x32xf32>
    %74 = arith.subf %68, %73 : vector<8x32xf32>
    %75 = vector.broadcast %72 : vector<8x1xf32> to vector<8x32xf32>
    %76 = arith.subf %68, %75 : vector<8x32xf32>
    %77 = arith.mulf %74, %76 : vector<8x32xf32>
    %cst_49 = arith.constant dense<0.000000e+00> : vector<8xf32>
    %78 = vector.multi_reduction <add>, %77, %cst_49 [1] : vector<8x32xf32> to vector<8xf32>
    %79 = vector.shape_cast %78 : vector<8xf32> to vector<8x1xf32>
    %cst_50 = arith.constant 3.200000e+01 : f32
    %80 = vector.broadcast %cst_50 : f32 to vector<8x1xf32>
    %81 = arith.divf %79, %80 : vector<8x1xf32>
    %82 = vector.broadcast %72 : vector<8x1xf32> to vector<8x32xf32>
    %83 = arith.subf %68, %82 : vector<8x32xf32>
    %cst_51 = arith.constant 9.99999974E-6 : f32
    %84 = vector.broadcast %cst_51 : f32 to vector<8x1xf32>
    %85 = arith.addf %81, %84 : vector<8x1xf32>
    %86 = math.rsqrt %85 : vector<8x1xf32>
    %87 = vector.broadcast %86 : vector<8x1xf32> to vector<8x32xf32>
    %88 = arith.mulf %83, %87 : vector<8x32xf32>
    %c0_52 = arith.constant 0 : index
    %c0_53 = arith.constant 0 : index
    %89 = vector.load %arg18[%c0_52, %c0_53] : memref<1x32xf32, #tpu.memory_space<vmem>>, vector<1x32xf32>
    %90 = vector.broadcast %89 : vector<1x32xf32> to vector<8x32xf32>
    %91 = arith.mulf %88, %90 : vector<8x32xf32>
    %c0_54 = arith.constant 0 : index
    %c0_55 = arith.constant 0 : index
    %92 = vector.load %arg19[%c0_54, %c0_55] : memref<1x32xf32, #tpu.memory_space<vmem>>, vector<1x32xf32>
    %93 = vector.broadcast %92 : vector<1x32xf32> to vector<8x32xf32>
    %94 = arith.addf %91, %93 : vector<8x32xf32>
    %95 = arith.truncf %94 : vector<8x32xf32> to vector<8x32xbf16>
    %c0_56 = arith.constant 0 : index
    %c0_57 = arith.constant 0 : index
    %96 = vector.load %arg20[%c0_56, %c0_57] : memref<32x128xbf16, #tpu.memory_space<vmem>>, vector<32x128xbf16>
    %cst_58 = arith.constant dense<0.000000e+00> : vector<8x128xf32>
    %97 = tpu.matmul %95, %96, %cst_58 {dimension_numbers = #tpu.dot_dimension_numbers<[1], [0], [0], [1], [0, 0, 1, 1], [], []>} : vector<8x32xbf16>, vector<32x128xbf16>, vector<8x128xf32> -> vector<8x128xf32>
    %c0_59 = arith.constant 0 : index
    %c0_60 = arith.constant 0 : index
    %98 = vector.load %arg21[%c0_59, %c0_60] : memref<1x128xf32, #tpu.memory_space<vmem>>, vector<1x128xf32>
    %99 = vector.broadcast %98 : vector<1x128xf32> to vector<8x128xf32>
    %100 = arith.addf %97, %99 : vector<8x128xf32>
    %cst_61 = arith.constant 0.000000e+00 : f32
    %101 = vector.broadcast %cst_61 : f32 to vector<8x128xf32>
    %102 = arith.maximumf %100, %101 : vector<8x128xf32>
    %103 = arith.truncf %102 : vector<8x128xf32> to vector<8x128xbf16>
    %c0_62 = arith.constant 0 : index
    %c0_63 = arith.constant 0 : index
    %104 = vector.load %arg22[%c0_62, %c0_63] : memref<128x32xbf16, #tpu.memory_space<vmem>>, vector<128x32xbf16>
    %cst_64 = arith.constant dense<0.000000e+00> : vector<8x32xf32>
    %105 = tpu.matmul %103, %104, %cst_64 {dimension_numbers = #tpu.dot_dimension_numbers<[1], [0], [0], [1], [0, 0, 1, 1], [], []>} : vector<8x128xbf16>, vector<128x32xbf16>, vector<8x32xf32> -> vector<8x32xf32>
    %c0_65 = arith.constant 0 : index
    %c0_66 = arith.constant 0 : index
    %106 = vector.load %arg23[%c0_65, %c0_66] : memref<1x32xf32, #tpu.memory_space<vmem>>, vector<1x32xf32>
    %107 = vector.broadcast %106 : vector<1x32xf32> to vector<8x32xf32>
    %108 = arith.addf %105, %107 : vector<8x32xf32>
    %109 = arith.addf %94, %108 : vector<8x32xf32>
    %cst_67 = arith.constant dense<0.000000e+00> : vector<8xf32>
    %110 = vector.multi_reduction <add>, %109, %cst_67 [1] : vector<8x32xf32> to vector<8xf32>
    %111 = vector.shape_cast %110 : vector<8xf32> to vector<8x1xf32>
    %cst_68 = arith.constant 3.200000e+01 : f32
    %112 = vector.broadcast %cst_68 : f32 to vector<8x1xf32>
    %113 = arith.divf %111, %112 : vector<8x1xf32>
    %114 = vector.broadcast %113 : vector<8x1xf32> to vector<8x32xf32>
    %115 = arith.subf %109, %114 : vector<8x32xf32>
    %116 = vector.broadcast %113 : vector<8x1xf32> to vector<8x32xf32>
    %117 = arith.subf %109, %116 : vector<8x32xf32>
    %118 = arith.mulf %115, %117 : vector<8x32xf32>
    %cst_69 = arith.constant dense<0.000000e+00> : vector<8xf32>
    %119 = vector.multi_reduction <add>, %118, %cst_69 [1] : vector<8x32xf32> to vector<8xf32>
    %120 = vector.shape_cast %119 : vector<8xf32> to vector<8x1xf32>
    %cst_70 = arith.constant 3.200000e+01 : f32
    %121 = vector.broadcast %cst_70 : f32 to vector<8x1xf32>
    %122 = arith.divf %120, %121 : vector<8x1xf32>
    %123 = vector.broadcast %113 : vector<8x1xf32> to vector<8x32xf32>
    %124 = arith.subf %109, %123 : vector<8x32xf32>
    %cst_71 = arith.constant 9.99999974E-6 : f32
    %125 = vector.broadcast %cst_71 : f32 to vector<8x1xf32>
    %126 = arith.addf %122, %125 : vector<8x1xf32>
    %127 = math.rsqrt %126 : vector<8x1xf32>
    %128 = vector.broadcast %127 : vector<8x1xf32> to vector<8x32xf32>
    %129 = arith.mulf %124, %128 : vector<8x32xf32>
    %c0_72 = arith.constant 0 : index
    %c0_73 = arith.constant 0 : index
    %130 = vector.load %arg24[%c0_72, %c0_73] : memref<1x32xf32, #tpu.memory_space<vmem>>, vector<1x32xf32>
    %131 = vector.broadcast %130 : vector<1x32xf32> to vector<8x32xf32>
    %132 = arith.mulf %129, %131 : vector<8x32xf32>
    %c0_74 = arith.constant 0 : index
    %c0_75 = arith.constant 0 : index
    %133 = vector.load %arg25[%c0_74, %c0_75] : memref<1x32xf32, #tpu.memory_space<vmem>>, vector<1x32xf32>
    %134 = vector.broadcast %133 : vector<1x32xf32> to vector<8x32xf32>
    %135 = arith.addf %132, %134 : vector<8x32xf32>
    %136 = arith.truncf %15 : vector<8x32xf32> to vector<8x32xbf16>
    %137 = vector.shape_cast %136 : vector<8x32xbf16> to vector<1x8x32xbf16>
    %138 = vector.shape_cast %137 : vector<1x8x32xbf16> to vector<1x8x32xbf16>
    %139 = vector.broadcast %138 : vector<1x8x32xbf16> to vector<4x8x32xbf16>
    %c0_76 = arith.constant 0 : index
    %c0_77 = arith.constant 0 : index
    %c0_78 = arith.constant 0 : index
    %140 = vector.load %arg26[%c0_76, %c0_77, %c0_78] : memref<4x32x8xbf16, #tpu.memory_space<vmem>>, vector<4x32x8xbf16>
    "tpu.trace_start"() <{level = 10 : i32, message = "hsd,hdk->hsk"}> : () -> ()
    %cst_79 = arith.constant dense<0.000000e+00> : vector<4x8x8xf32>
    %141 = tpu.matmul %139, %140, %cst_79 {dimension_numbers = #tpu.dot_dimension_numbers<[2], [1], [1], [2], [0, 0, 0, 1, 1, 2], [0], [0]>} : vector<4x8x32xbf16>, vector<4x32x8xbf16>, vector<4x8x8xf32> -> vector<4x8x8xf32>
    "tpu.trace_stop"() : () -> ()
    %c0_80 = arith.constant 0 : index
    %c0_81 = arith.constant 0 : index
    %c0_82 = arith.constant 0 : index
    %142 = vector.load %arg27[%c0_80, %c0_81, %c0_82] : memref<4x1x8xf32, #tpu.memory_space<vmem>>, vector<4x1x8xf32>
    %143 = vector.broadcast %142 : vector<4x1x8xf32> to vector<4x8x8xf32>
    %144 = arith.addf %141, %143 : vector<4x8x8xf32>
    %145 = arith.truncf %15 : vector<8x32xf32> to vector<8x32xbf16>
    %146 = vector.shape_cast %145 : vector<8x32xbf16> to vector<1x8x32xbf16>
    %147 = vector.shape_cast %146 : vector<1x8x32xbf16> to vector<1x8x32xbf16>
    %148 = vector.broadcast %147 : vector<1x8x32xbf16> to vector<4x8x32xbf16>
    %c0_83 = arith.constant 0 : index
    %c0_84 = arith.constant 0 : index
    %c0_85 = arith.constant 0 : index
    %149 = vector.load %arg28[%c0_83, %c0_84, %c0_85] : memref<4x32x8xbf16, #tpu.memory_space<vmem>>, vector<4x32x8xbf16>
    "tpu.trace_start"() <{level = 10 : i32, message = "hsd,hdk->hsk"}> : () -> ()
    %cst_86 = arith.constant dense<0.000000e+00> : vector<4x8x8xf32>
    %150 = tpu.matmul %148, %149, %cst_86 {dimension_numbers = #tpu.dot_dimension_numbers<[2], [1], [1], [2], [0, 0, 0, 1, 1, 2], [0], [0]>} : vector<4x8x32xbf16>, vector<4x32x8xbf16>, vector<4x8x8xf32> -> vector<4x8x8xf32>
    "tpu.trace_stop"() : () -> ()
    %c0_87 = arith.constant 0 : index
    %c0_88 = arith.constant 0 : index
    %c0_89 = arith.constant 0 : index
    %151 = vector.load %arg29[%c0_87, %c0_88, %c0_89] : memref<4x1x8xf32, #tpu.memory_space<vmem>>, vector<4x1x8xf32>
    %152 = vector.broadcast %151 : vector<4x1x8xf32> to vector<4x8x8xf32>
    %153 = arith.addf %150, %152 : vector<4x8x8xf32>
    %154 = arith.truncf %15 : vector<8x32xf32> to vector<8x32xbf16>
    %155 = vector.shape_cast %154 : vector<8x32xbf16> to vector<1x8x32xbf16>
    %156 = vector.shape_cast %155 : vector<1x8x32xbf16> to vector<1x8x32xbf16>
    %157 = vector.broadcast %156 : vector<1x8x32xbf16> to vector<4x8x32xbf16>
    %c0_90 = arith.constant 0 : index
    %c0_91 = arith.constant 0 : index
    %c0_92 = arith.constant 0 : index
    %158 = vector.load %arg30[%c0_90, %c0_91, %c0_92] : memref<4x32x8xbf16, #tpu.memory_space<vmem>>, vector<4x32x8xbf16>
    "tpu.trace_start"() <{level = 10 : i32, message = "hsd,hdk->hsk"}> : () -> ()
    %cst_93 = arith.constant dense<0.000000e+00> : vector<4x8x8xf32>
    %159 = tpu.matmul %157, %158, %cst_93 {dimension_numbers = #tpu.dot_dimension_numbers<[2], [1], [1], [2], [0, 0, 0, 1, 1, 2], [0], [0]>} : vector<4x8x32xbf16>, vector<4x32x8xbf16>, vector<4x8x8xf32> -> vector<4x8x8xf32>
    "tpu.trace_stop"() : () -> ()
    %c0_94 = arith.constant 0 : index
    %c0_95 = arith.constant 0 : index
    %c0_96 = arith.constant 0 : index
    %160 = vector.load %arg31[%c0_94, %c0_95, %c0_96] : memref<4x1x8xf32, #tpu.memory_space<vmem>>, vector<4x1x8xf32>
    %161 = vector.broadcast %160 : vector<4x1x8xf32> to vector<4x8x8xf32>
    %162 = arith.addf %159, %161 : vector<4x8x8xf32>
    %163 = arith.truncf %144 : vector<4x8x8xf32> to vector<4x8x8xbf16>
    %164 = arith.truncf %153 : vector<4x8x8xf32> to vector<4x8x8xbf16>
    "tpu.trace_start"() <{level = 10 : i32, message = "hqd,hkd->hqk"}> : () -> ()
    %cst_97 = arith.constant dense<0.000000e+00> : vector<4x8x8xf32>
    %165 = tpu.matmul %163, %164, %cst_97 {dimension_numbers = #tpu.dot_dimension_numbers<[2], [2], [1], [1], [0, 0, 0, 1, 1, 1], [0], [0]>} : vector<4x8x8xbf16>, vector<4x8x8xbf16>, vector<4x8x8xf32> -> vector<4x8x8xf32>
    "tpu.trace_stop"() : () -> ()
    %cst_98 = arith.constant 0.353553385 : f32
    %166 = vector.broadcast %cst_98 : f32 to vector<4x8x8xf32>
    %167 = arith.mulf %165, %166 : vector<4x8x8xf32>
    %168 = tpu.iota {dimensions = array<i32: 1>} : vector<4x8x8xi32>
    %169 = tpu.iota {dimensions = array<i32: 2>} : vector<4x8x8xi32>
    %170 = arith.cmpi sle, %169, %168 : vector<4x8x8xi32>
    %cst_99 = arith.constant -1.000000e+09 : f32
    %171 = vector.broadcast %cst_99 : f32 to vector<4x8x8xf32>
    %172 = arith.select %170, %167, %171 : vector<4x8x8xi1>, vector<4x8x8xf32>
    %cst_100 = arith.constant dense<0xFF800000> : vector<4x8xf32>
    %173 = vector.multi_reduction <maximumf>, %172, %cst_100 [2] : vector<4x8x8xf32> to vector<4x8xf32>
    %174 = vector.shape_cast %173 : vector<4x8xf32> to vector<4x8x1xf32>
    %175 = vector.broadcast %174 : vector<4x8x1xf32> to vector<4x8x8xf32>
    %176 = arith.subf %172, %175 : vector<4x8x8xf32>
    %177 = math.exp %176 : vector<4x8x8xf32>
    %cst_101 = arith.constant dense<0.000000e+00> : vector<4x8xf32>
    %178 = vector.multi_reduction <add>, %177, %cst_101 [2] : vector<4x8x8xf32> to vector<4x8xf32>
    %179 = vector.shape_cast %178 : vector<4x8xf32> to vector<4x8x1xf32>
    %180 = tpu.reciprocal %179 {approx = true} : vector<4x8x1xf32> -> vector<4x8x1xf32>
    %181 = vector.broadcast %180 : vector<4x8x1xf32> to vector<4x8x8xf32>
    %182 = arith.mulf %177, %181 : vector<4x8x8xf32>
    %183 = arith.truncf %182 : vector<4x8x8xf32> to vector<4x8x8xbf16>
    %184 = arith.truncf %162 : vector<4x8x8xf32> to vector<4x8x8xbf16>
    "tpu.trace_start"() <{level = 10 : i32, message = "hqk,hkd->hqd"}> : () -> ()
    %cst_102 = arith.constant dense<0.000000e+00> : vector<4x8x8xf32>
    %185 = tpu.matmul %183, %184, %cst_102 {dimension_numbers = #tpu.dot_dimension_numbers<[2], [1], [1], [2], [0, 0, 0, 1, 1, 2], [0], [0]>} : vector<4x8x8xbf16>, vector<4x8x8xbf16>, vector<4x8x8xf32> -> vector<4x8x8xf32>
    "tpu.trace_stop"() : () -> ()
    %186 = arith.truncf %185 : vector<4x8x8xf32> to vector<4x8x8xbf16>
    %c0_103 = arith.constant 0 : index
    %c0_104 = arith.constant 0 : index
    %c0_105 = arith.constant 0 : index
    %187 = vector.load %arg32[%c0_103, %c0_104, %c0_105] : memref<4x8x32xbf16, #tpu.memory_space<vmem>>, vector<4x8x32xbf16>
    "tpu.trace_start"() <{level = 10 : i32, message = "hqd,hdm->hqm"}> : () -> ()
    %cst_106 = arith.constant dense<0.000000e+00> : vector<4x8x32xf32>
    %188 = tpu.matmul %186, %187, %cst_106 {dimension_numbers = #tpu.dot_dimension_numbers<[2], [1], [1], [2], [0, 0, 0, 1, 1, 2], [0], [0]>} : vector<4x8x8xbf16>, vector<4x8x32xbf16>, vector<4x8x32xf32> -> vector<4x8x32xf32>
    "tpu.trace_stop"() : () -> ()
    %cst_107 = arith.constant dense<0.000000e+00> : vector<8x32xf32>
    %189 = vector.multi_reduction <add>, %188, %cst_107 [0] : vector<4x8x32xf32> to vector<8x32xf32>
    %c0_108 = arith.constant 0 : index
    %c0_109 = arith.constant 0 : index
    %190 = vector.load %arg33[%c0_108, %c0_109] : memref<1x32xf32, #tpu.memory_space<vmem>>, vector<1x32xf32>
    %191 = vector.broadcast %190 : vector<1x32xf32> to vector<8x32xf32>
    %192 = arith.addf %189, %191 : vector<8x32xf32>
    %193 = arith.addf %15, %192 : vector<8x32xf32>
    %cst_110 = arith.constant dense<0.000000e+00> : vector<8xf32>
    %194 = vector.multi_reduction <add>, %193, %cst_110 [1] : vector<8x32xf32> to vector<8xf32>
    %195 = vector.shape_cast %194 : vector<8xf32> to vector<8x1xf32>
    %cst_111 = arith.constant 3.200000e+01 : f32
    %196 = vector.broadcast %cst_111 : f32 to vector<8x1xf32>
    %197 = arith.divf %195, %196 : vector<8x1xf32>
    %198 = vector.broadcast %197 : vector<8x1xf32> to vector<8x32xf32>
    %199 = arith.subf %193, %198 : vector<8x32xf32>
    %200 = vector.broadcast %197 : vector<8x1xf32> to vector<8x32xf32>
    %201 = arith.subf %193, %200 : vector<8x32xf32>
    %202 = arith.mulf %199, %201 : vector<8x32xf32>
    %cst_112 = arith.constant dense<0.000000e+00> : vector<8xf32>
    %203 = vector.multi_reduction <add>, %202, %cst_112 [1] : vector<8x32xf32> to vector<8xf32>
    %204 = vector.shape_cast %203 : vector<8xf32> to vector<8x1xf32>
    %cst_113 = arith.constant 3.200000e+01 : f32
    %205 = vector.broadcast %cst_113 : f32 to vector<8x1xf32>
    %206 = arith.divf %204, %205 : vector<8x1xf32>
    %207 = vector.broadcast %197 : vector<8x1xf32> to vector<8x32xf32>
    %208 = arith.subf %193, %207 : vector<8x32xf32>
    %cst_114 = arith.constant 9.99999974E-6 : f32
    %209 = vector.broadcast %cst_114 : f32 to vector<8x1xf32>
    %210 = arith.addf %206, %209 : vector<8x1xf32>
    %211 = math.rsqrt %210 : vector<8x1xf32>
    %212 = vector.broadcast %211 : vector<8x1xf32> to vector<8x32xf32>
    %213 = arith.mulf %208, %212 : vector<8x32xf32>
    %c0_115 = arith.constant 0 : index
    %c0_116 = arith.constant 0 : index
    %214 = vector.load %arg34[%c0_115, %c0_116] : memref<1x32xf32, #tpu.memory_space<vmem>>, vector<1x32xf32>
    %215 = vector.broadcast %214 : vector<1x32xf32> to vector<8x32xf32>
    %216 = arith.mulf %213, %215 : vector<8x32xf32>
    %c0_117 = arith.constant 0 : index
    %c0_118 = arith.constant 0 : index
    %217 = vector.load %arg35[%c0_117, %c0_118] : memref<1x32xf32, #tpu.memory_space<vmem>>, vector<1x32xf32>
    %218 = vector.broadcast %217 : vector<1x32xf32> to vector<8x32xf32>
    %219 = arith.addf %216, %218 : vector<8x32xf32>
    %220 = arith.truncf %219 : vector<8x32xf32> to vector<8x32xbf16>
    %221 = vector.shape_cast %220 : vector<8x32xbf16> to vector<1x8x32xbf16>
    %222 = vector.shape_cast %221 : vector<1x8x32xbf16> to vector<1x8x32xbf16>
    %223 = vector.broadcast %222 : vector<1x8x32xbf16> to vector<4x8x32xbf16>
    %c0_119 = arith.constant 0 : index
    %c0_120 = arith.constant 0 : index
    %c0_121 = arith.constant 0 : index
    %224 = vector.load %arg36[%c0_119, %c0_120, %c0_121] : memref<4x32x8xbf16, #tpu.memory_space<vmem>>, vector<4x32x8xbf16>
    "tpu.trace_start"() <{level = 10 : i32, message = "hsd,hdk->hsk"}> : () -> ()
    %cst_122 = arith.constant dense<0.000000e+00> : vector<4x8x8xf32>
    %225 = tpu.matmul %223, %224, %cst_122 {dimension_numbers = #tpu.dot_dimension_numbers<[2], [1], [1], [2], [0, 0, 0, 1, 1, 2], [0], [0]>} : vector<4x8x32xbf16>, vector<4x32x8xbf16>, vector<4x8x8xf32> -> vector<4x8x8xf32>
    "tpu.trace_stop"() : () -> ()
    %c0_123 = arith.constant 0 : index
    %c0_124 = arith.constant 0 : index
    %c0_125 = arith.constant 0 : index
    %226 = vector.load %arg37[%c0_123, %c0_124, %c0_125] : memref<4x1x8xf32, #tpu.memory_space<vmem>>, vector<4x1x8xf32>
    %227 = vector.broadcast %226 : vector<4x1x8xf32> to vector<4x8x8xf32>
    %228 = arith.addf %225, %227 : vector<4x8x8xf32>
    %229 = arith.truncf %135 : vector<8x32xf32> to vector<8x32xbf16>
    %230 = vector.shape_cast %229 : vector<8x32xbf16> to vector<1x8x32xbf16>
    %231 = vector.shape_cast %230 : vector<1x8x32xbf16> to vector<1x8x32xbf16>
    %232 = vector.broadcast %231 : vector<1x8x32xbf16> to vector<4x8x32xbf16>
    %c0_126 = arith.constant 0 : index
    %c0_127 = arith.constant 0 : index
    %c0_128 = arith.constant 0 : index
    %233 = vector.load %arg38[%c0_126, %c0_127, %c0_128] : memref<4x32x8xbf16, #tpu.memory_space<vmem>>, vector<4x32x8xbf16>
    "tpu.trace_start"() <{level = 10 : i32, message = "hsd,hdk->hsk"}> : () -> ()
    %cst_129 = arith.constant dense<0.000000e+00> : vector<4x8x8xf32>
    %234 = tpu.matmul %232, %233, %cst_129 {dimension_numbers = #tpu.dot_dimension_numbers<[2], [1], [1], [2], [0, 0, 0, 1, 1, 2], [0], [0]>} : vector<4x8x32xbf16>, vector<4x32x8xbf16>, vector<4x8x8xf32> -> vector<4x8x8xf32>
    "tpu.trace_stop"() : () -> ()
    %c0_130 = arith.constant 0 : index
    %c0_131 = arith.constant 0 : index
    %c0_132 = arith.constant 0 : index
    %235 = vector.load %arg39[%c0_130, %c0_131, %c0_132] : memref<4x1x8xf32, #tpu.memory_space<vmem>>, vector<4x1x8xf32>
    %236 = vector.broadcast %235 : vector<4x1x8xf32> to vector<4x8x8xf32>
    %237 = arith.addf %234, %236 : vector<4x8x8xf32>
    %238 = arith.truncf %135 : vector<8x32xf32> to vector<8x32xbf16>
    %239 = vector.shape_cast %238 : vector<8x32xbf16> to vector<1x8x32xbf16>
    %240 = vector.shape_cast %239 : vector<1x8x32xbf16> to vector<1x8x32xbf16>
    %241 = vector.broadcast %240 : vector<1x8x32xbf16> to vector<4x8x32xbf16>
    %c0_133 = arith.constant 0 : index
    %c0_134 = arith.constant 0 : index
    %c0_135 = arith.constant 0 : index
    %242 = vector.load %arg40[%c0_133, %c0_134, %c0_135] : memref<4x32x8xbf16, #tpu.memory_space<vmem>>, vector<4x32x8xbf16>
    "tpu.trace_start"() <{level = 10 : i32, message = "hsd,hdk->hsk"}> : () -> ()
    %cst_136 = arith.constant dense<0.000000e+00> : vector<4x8x8xf32>
    %243 = tpu.matmul %241, %242, %cst_136 {dimension_numbers = #tpu.dot_dimension_numbers<[2], [1], [1], [2], [0, 0, 0, 1, 1, 2], [0], [0]>} : vector<4x8x32xbf16>, vector<4x32x8xbf16>, vector<4x8x8xf32> -> vector<4x8x8xf32>
    "tpu.trace_stop"() : () -> ()
    %c0_137 = arith.constant 0 : index
    %c0_138 = arith.constant 0 : index
    %c0_139 = arith.constant 0 : index
    %244 = vector.load %arg41[%c0_137, %c0_138, %c0_139] : memref<4x1x8xf32, #tpu.memory_space<vmem>>, vector<4x1x8xf32>
    %245 = vector.broadcast %244 : vector<4x1x8xf32> to vector<4x8x8xf32>
    %246 = arith.addf %243, %245 : vector<4x8x8xf32>
    %247 = arith.truncf %228 : vector<4x8x8xf32> to vector<4x8x8xbf16>
    %248 = arith.truncf %237 : vector<4x8x8xf32> to vector<4x8x8xbf16>
    "tpu.trace_start"() <{level = 10 : i32, message = "hqd,hkd->hqk"}> : () -> ()
    %cst_140 = arith.constant dense<0.000000e+00> : vector<4x8x8xf32>
    %249 = tpu.matmul %247, %248, %cst_140 {dimension_numbers = #tpu.dot_dimension_numbers<[2], [2], [1], [1], [0, 0, 0, 1, 1, 1], [0], [0]>} : vector<4x8x8xbf16>, vector<4x8x8xbf16>, vector<4x8x8xf32> -> vector<4x8x8xf32>
    "tpu.trace_stop"() : () -> ()
    %cst_141 = arith.constant 0.353553385 : f32
    %250 = vector.broadcast %cst_141 : f32 to vector<4x8x8xf32>
    %251 = arith.mulf %249, %250 : vector<4x8x8xf32>
    %cst_142 = arith.constant dense<0xFF800000> : vector<4x8xf32>
    %252 = vector.multi_reduction <maximumf>, %251, %cst_142 [2] : vector<4x8x8xf32> to vector<4x8xf32>
    %253 = vector.shape_cast %252 : vector<4x8xf32> to vector<4x8x1xf32>
    %254 = vector.broadcast %253 : vector<4x8x1xf32> to vector<4x8x8xf32>
    %255 = arith.subf %251, %254 : vector<4x8x8xf32>
    %256 = math.exp %255 : vector<4x8x8xf32>
    %cst_143 = arith.constant dense<0.000000e+00> : vector<4x8xf32>
    %257 = vector.multi_reduction <add>, %256, %cst_143 [2] : vector<4x8x8xf32> to vector<4x8xf32>
    %258 = vector.shape_cast %257 : vector<4x8xf32> to vector<4x8x1xf32>
    %259 = tpu.reciprocal %258 {approx = true} : vector<4x8x1xf32> -> vector<4x8x1xf32>
    %260 = vector.broadcast %259 : vector<4x8x1xf32> to vector<4x8x8xf32>
    %261 = arith.mulf %256, %260 : vector<4x8x8xf32>
    %262 = arith.truncf %261 : vector<4x8x8xf32> to vector<4x8x8xbf16>
    %263 = arith.truncf %246 : vector<4x8x8xf32> to vector<4x8x8xbf16>
    "tpu.trace_start"() <{level = 10 : i32, message = "hqk,hkd->hqd"}> : () -> ()
    %cst_144 = arith.constant dense<0.000000e+00> : vector<4x8x8xf32>
    %264 = tpu.matmul %262, %263, %cst_144 {dimension_numbers = #tpu.dot_dimension_numbers<[2], [1], [1], [2], [0, 0, 0, 1, 1, 2], [0], [0]>} : vector<4x8x8xbf16>, vector<4x8x8xbf16>, vector<4x8x8xf32> -> vector<4x8x8xf32>
    "tpu.trace_stop"() : () -> ()
    %265 = arith.truncf %264 : vector<4x8x8xf32> to vector<4x8x8xbf16>
    %c0_145 = arith.constant 0 : index
    %c0_146 = arith.constant 0 : index
    %c0_147 = arith.constant 0 : index
    %266 = vector.load %arg42[%c0_145, %c0_146, %c0_147] : memref<4x8x32xbf16, #tpu.memory_space<vmem>>, vector<4x8x32xbf16>
    "tpu.trace_start"() <{level = 10 : i32, message = "hqd,hdm->hqm"}> : () -> ()
    %cst_148 = arith.constant dense<0.000000e+00> : vector<4x8x32xf32>
    %267 = tpu.matmul %265, %266, %cst_148 {dimension_numbers = #tpu.dot_dimension_numbers<[2], [1], [1], [2], [0, 0, 0, 1, 1, 2], [0], [0]>} : vector<4x8x8xbf16>, vector<4x8x32xbf16>, vector<4x8x32xf32> -> vector<4x8x32xf32>
    "tpu.trace_stop"() : () -> ()
    %cst_149 = arith.constant dense<0.000000e+00> : vector<8x32xf32>
    %268 = vector.multi_reduction <add>, %267, %cst_149 [0] : vector<4x8x32xf32> to vector<8x32xf32>
    %c0_150 = arith.constant 0 : index
    %c0_151 = arith.constant 0 : index
    %269 = vector.load %arg43[%c0_150, %c0_151] : memref<1x32xf32, #tpu.memory_space<vmem>>, vector<1x32xf32>
    %270 = vector.broadcast %269 : vector<1x32xf32> to vector<8x32xf32>
    %271 = arith.addf %268, %270 : vector<8x32xf32>
    %272 = arith.addf %219, %271 : vector<8x32xf32>
    %cst_152 = arith.constant dense<0.000000e+00> : vector<8xf32>
    %273 = vector.multi_reduction <add>, %272, %cst_152 [1] : vector<8x32xf32> to vector<8xf32>
    %274 = vector.shape_cast %273 : vector<8xf32> to vector<8x1xf32>
    %cst_153 = arith.constant 3.200000e+01 : f32
    %275 = vector.broadcast %cst_153 : f32 to vector<8x1xf32>
    %276 = arith.divf %274, %275 : vector<8x1xf32>
    %277 = vector.broadcast %276 : vector<8x1xf32> to vector<8x32xf32>
    %278 = arith.subf %272, %277 : vector<8x32xf32>
    %279 = vector.broadcast %276 : vector<8x1xf32> to vector<8x32xf32>
    %280 = arith.subf %272, %279 : vector<8x32xf32>
    %281 = arith.mulf %278, %280 : vector<8x32xf32>
    %cst_154 = arith.constant dense<0.000000e+00> : vector<8xf32>
    %282 = vector.multi_reduction <add>, %281, %cst_154 [1] : vector<8x32xf32> to vector<8xf32>
    %283 = vector.shape_cast %282 : vector<8xf32> to vector<8x1xf32>
    %cst_155 = arith.constant 3.200000e+01 : f32
    %284 = vector.broadcast %cst_155 : f32 to vector<8x1xf32>
    %285 = arith.divf %283, %284 : vector<8x1xf32>
    %286 = vector.broadcast %276 : vector<8x1xf32> to vector<8x32xf32>
    %287 = arith.subf %272, %286 : vector<8x32xf32>
    %cst_156 = arith.constant 9.99999974E-6 : f32
    %288 = vector.broadcast %cst_156 : f32 to vector<8x1xf32>
    %289 = arith.addf %285, %288 : vector<8x1xf32>
    %290 = math.rsqrt %289 : vector<8x1xf32>
    %291 = vector.broadcast %290 : vector<8x1xf32> to vector<8x32xf32>
    %292 = arith.mulf %287, %291 : vector<8x32xf32>
    %c0_157 = arith.constant 0 : index
    %c0_158 = arith.constant 0 : index
    %293 = vector.load %arg44[%c0_157, %c0_158] : memref<1x32xf32, #tpu.memory_space<vmem>>, vector<1x32xf32>
    %294 = vector.broadcast %293 : vector<1x32xf32> to vector<8x32xf32>
    %295 = arith.mulf %292, %294 : vector<8x32xf32>
    %c0_159 = arith.constant 0 : index
    %c0_160 = arith.constant 0 : index
    %296 = vector.load %arg45[%c0_159, %c0_160] : memref<1x32xf32, #tpu.memory_space<vmem>>, vector<1x32xf32>
    %297 = vector.broadcast %296 : vector<1x32xf32> to vector<8x32xf32>
    %298 = arith.addf %295, %297 : vector<8x32xf32>
    %299 = arith.truncf %298 : vector<8x32xf32> to vector<8x32xbf16>
    %c0_161 = arith.constant 0 : index
    %c0_162 = arith.constant 0 : index
    %300 = vector.load %arg46[%c0_161, %c0_162] : memref<32x128xbf16, #tpu.memory_space<vmem>>, vector<32x128xbf16>
    %cst_163 = arith.constant dense<0.000000e+00> : vector<8x128xf32>
    %301 = tpu.matmul %299, %300, %cst_163 {dimension_numbers = #tpu.dot_dimension_numbers<[1], [0], [0], [1], [0, 0, 1, 1], [], []>} : vector<8x32xbf16>, vector<32x128xbf16>, vector<8x128xf32> -> vector<8x128xf32>
    %c0_164 = arith.constant 0 : index
    %c0_165 = arith.constant 0 : index
    %302 = vector.load %arg47[%c0_164, %c0_165] : memref<1x128xf32, #tpu.memory_space<vmem>>, vector<1x128xf32>
    %303 = vector.broadcast %302 : vector<1x128xf32> to vector<8x128xf32>
    %304 = arith.addf %301, %303 : vector<8x128xf32>
    %cst_166 = arith.constant 0.000000e+00 : f32
    %305 = vector.broadcast %cst_166 : f32 to vector<8x128xf32>
    %306 = arith.maximumf %304, %305 : vector<8x128xf32>
    %307 = arith.truncf %306 : vector<8x128xf32> to vector<8x128xbf16>
    %c0_167 = arith.constant 0 : index
    %c0_168 = arith.constant 0 : index
    %308 = vector.load %arg48[%c0_167, %c0_168] : memref<128x32xbf16, #tpu.memory_space<vmem>>, vector<128x32xbf16>
    %cst_169 = arith.constant dense<0.000000e+00> : vector<8x32xf32>
    %309 = tpu.matmul %307, %308, %cst_169 {dimension_numbers = #tpu.dot_dimension_numbers<[1], [0], [0], [1], [0, 0, 1, 1], [], []>} : vector<8x128xbf16>, vector<128x32xbf16>, vector<8x32xf32> -> vector<8x32xf32>
    %c0_170 = arith.constant 0 : index
    %c0_171 = arith.constant 0 : index
    %310 = vector.load %arg49[%c0_170, %c0_171] : memref<1x32xf32, #tpu.memory_space<vmem>>, vector<1x32xf32>
    %311 = vector.broadcast %310 : vector<1x32xf32> to vector<8x32xf32>
    %312 = arith.addf %309, %311 : vector<8x32xf32>
    %313 = arith.addf %298, %312 : vector<8x32xf32>
    %cst_172 = arith.constant dense<0.000000e+00> : vector<8xf32>
    %314 = vector.multi_reduction <add>, %313, %cst_172 [1] : vector<8x32xf32> to vector<8xf32>
    %315 = vector.shape_cast %314 : vector<8xf32> to vector<8x1xf32>
    %cst_173 = arith.constant 3.200000e+01 : f32
    %316 = vector.broadcast %cst_173 : f32 to vector<8x1xf32>
    %317 = arith.divf %315, %316 : vector<8x1xf32>
    %318 = vector.broadcast %317 : vector<8x1xf32> to vector<8x32xf32>
    %319 = arith.subf %313, %318 : vector<8x32xf32>
    %320 = vector.broadcast %317 : vector<8x1xf32> to vector<8x32xf32>
    %321 = arith.subf %313, %320 : vector<8x32xf32>
    %322 = arith.mulf %319, %321 : vector<8x32xf32>
    %cst_174 = arith.constant dense<0.000000e+00> : vector<8xf32>
    %323 = vector.multi_reduction <add>, %322, %cst_174 [1] : vector<8x32xf32> to vector<8xf32>
    %324 = vector.shape_cast %323 : vector<8xf32> to vector<8x1xf32>
    %cst_175 = arith.constant 3.200000e+01 : f32
    %325 = vector.broadcast %cst_175 : f32 to vector<8x1xf32>
    %326 = arith.divf %324, %325 : vector<8x1xf32>
    %327 = vector.broadcast %317 : vector<8x1xf32> to vector<8x32xf32>
    %328 = arith.subf %313, %327 : vector<8x32xf32>
    %cst_176 = arith.constant 9.99999974E-6 : f32
    %329 = vector.broadcast %cst_176 : f32 to vector<8x1xf32>
    %330 = arith.addf %326, %329 : vector<8x1xf32>
    %331 = math.rsqrt %330 : vector<8x1xf32>
    %332 = vector.broadcast %331 : vector<8x1xf32> to vector<8x32xf32>
    %333 = arith.mulf %328, %332 : vector<8x32xf32>
    %c0_177 = arith.constant 0 : index
    %c0_178 = arith.constant 0 : index
    %334 = vector.load %arg50[%c0_177, %c0_178] : memref<1x32xf32, #tpu.memory_space<vmem>>, vector<1x32xf32>
    %335 = vector.broadcast %334 : vector<1x32xf32> to vector<8x32xf32>
    %336 = arith.mulf %333, %335 : vector<8x32xf32>
    %c0_179 = arith.constant 0 : index
    %c0_180 = arith.constant 0 : index
    %337 = vector.load %arg51[%c0_179, %c0_180] : memref<1x32xf32, #tpu.memory_space<vmem>>, vector<1x32xf32>
    %338 = vector.broadcast %337 : vector<1x32xf32> to vector<8x32xf32>
    %339 = arith.addf %336, %338 : vector<8x32xf32>
    %340 = vector.extract_strided_slice %339 {offsets = [4, 0], sizes = [4, 32], strides = [1, 1]} : vector<8x32xf32> to vector<4x32xf32>
    %c0_181 = arith.constant 0 : index
    %c0_182 = arith.constant 0 : index
    %341 = vector.load %arg8[%c0_181, %c0_182] : memref<1x32xf32, #tpu.memory_space<vmem>>, vector<1x32xf32>
    %342 = vector.broadcast %341 : vector<1x32xf32> to vector<4x32xf32>
    %343 = arith.mulf %340, %342 : vector<4x32xf32>
    %cst_183 = arith.constant dense<0.000000e+00> : vector<4xf32>
    %344 = vector.multi_reduction <add>, %343, %cst_183 [1] : vector<4x32xf32> to vector<4xf32>
    %345 = vector.shape_cast %344 : vector<4xf32> to vector<4x1xf32>
    %c0_184 = arith.constant 0 : index
    %c0_185 = arith.constant 0 : index
    %346 = vector.load %arg9[%c0_184, %c0_185] : memref<1x1xf32, #tpu.memory_space<vmem>>, vector<1x1xf32>
    %347 = vector.broadcast %346 : vector<1x1xf32> to vector<4x1xf32>
    %348 = arith.addf %345, %347 : vector<4x1xf32>
    %c0_186 = arith.constant 0 : index
    %c0_187 = arith.constant 0 : index
    %c0_188 = arith.constant 0 : index
    %349 = vector.load %arg52[%c0_186, %c0_187, %c0_188] : memref<1x4x1xf32, #tpu.memory_space<vmem>>, vector<1x4x1xf32>
    %350 = vector.shape_cast %349 : vector<1x4x1xf32> to vector<4x1xf32>
    %351 = vector.shape_cast %348 : vector<4x1xf32> to vector<1x4x1xf32>
    tpu.vector_store %arg52[%c0_186, %c0_187, %c0_188], %351 {strides = array<i32>} : memref<1x4x1xf32, #tpu.memory_space<vmem>>, vector<1x4x1xf32>,
    %c0_189 = arith.constant 0 : index
    %c0_190 = arith.constant 0 : index
    %c0_191 = arith.constant 0 : index
    %352 = vector.load %arg3[%c0_189, %c0_190, %c0_191] : memref<1x4x1xf32, #tpu.memory_space<vmem>>, vector<1x4x1xf32>
    %353 = vector.shape_cast %352 : vector<1x4x1xf32> to vector<4x1xf32>
    %354 = arith.subf %353, %348 : vector<4x1xf32>
    %cst_192 = arith.constant 0.000000e+00 : f32
    %355 = vector.broadcast %cst_192 : f32 to vector<1x1x1xf32>
    %c0_193 = arith.constant 0 : index
    %c0_194 = arith.constant 0 : index
    %c0_195 = arith.constant 0 : index
    %356 = vector.load %arg53[%c0_193, %c0_194, %c0_195] : memref<1x1x1xf32, #tpu.memory_space<vmem>>, vector<1x1x1xf32>
    tpu.vector_store %arg53[%c0_193, %c0_194, %c0_195], %355 {strides = array<i32>} : memref<1x1x1xf32, #tpu.memory_space<vmem>>, vector<1x1x1xf32>,
    %c0_196 = arith.constant 0 : index
    %c0_197 = arith.constant 0 : index
    %c0_198 = arith.constant 0 : index
    %357 = vector.load %arg53[%c0_196, %c0_197, %c0_198] : memref<1x1x1xf32, #tpu.memory_space<vmem>>, vector<1x1x1xf32>
    %358 = arith.mulf %354, %354 : vector<4x1xf32>
    %359 = vector.shape_cast %358 : vector<4x1xf32> to vector<1x4x1xf32>
    %cst_199 = arith.constant dense<0.000000e+00> : vector<1xf32>
    %360 = vector.multi_reduction <add>, %359, %cst_199 [1, 2] : vector<1x4x1xf32> to vector<1xf32>
    %361 = vector.shape_cast %360 : vector<1xf32> to vector<1x1x1xf32>
    %362 = vector.extract %361[0, 0, 0] : f32 from vector<1x1x1xf32>
    %363 = vector.broadcast %362 : f32 to vector<1x1x1xf32>
    %364 = arith.addf %357, %363 : vector<1x1x1xf32>
    %c0_200 = arith.constant 0 : index
    %c0_201 = arith.constant 0 : index
    %c0_202 = arith.constant 0 : index
    %365 = vector.load %arg53[%c0_200, %c0_201, %c0_202] : memref<1x1x1xf32, #tpu.memory_space<vmem>>, vector<1x1x1xf32>
    tpu.vector_store %arg53[%c0_200, %c0_201, %c0_202], %364 {strides = array<i32>} : memref<1x1x1xf32, #tpu.memory_space<vmem>>, vector<1x1x1xf32>,
    return
  }
  func.func @transform_0(%arg0: i32) -> (i32, i32, i32) {
    %c0_i32 = arith.constant 0 : i32
    %c0_i32_0 = arith.constant 0 : i32
    %c0_i32_1 = arith.constant 0 : i32
    return %arg0, %c0_i32, %c0_i32_0 : i32, i32, i32
  }
  func.func @transform_1(%arg0: i32) -> (i32, i32, i32) {
    %c0_i32 = arith.constant 0 : i32
    %c0_i32_0 = arith.constant 0 : i32
    %c0_i32_1 = arith.constant 0 : i32
    return %arg0, %c0_i32, %c0_i32_0 : i32, i32, i32
  }
  func.func @transform_2(%arg0: i32) -> (i32, i32, i32) {
    %c0_i32 = arith.constant 0 : i32
    %c0_i32_0 = arith.constant 0 : i32
    %c0_i32_1 = arith.constant 0 : i32
    return %arg0, %c0_i32, %c0_i32_0 : i32, i32, i32
  }
  func.func @transform_3(%arg0: i32) -> (i32, i32) {
    %c0_i32 = arith.constant 0 : i32
    %c0_i32_0 = arith.constant 0 : i32
    %c0_i32_1 = arith.constant 0 : i32
    return %c0_i32, %c0_i32_0 : i32, i32
  }
  func.func @transform_4(%arg0: i32) -> (i32, i32) {
    %c0_i32 = arith.constant 0 : i32
    %c0_i32_0 = arith.constant 0 : i32
    %c0_i32_1 = arith.constant 0 : i32
    return %c0_i32, %c0_i32_0 : i32, i32
  }
  func.func @transform_5(%arg0: i32) -> (i32, i32) {
    %c0_i32 = arith.constant 0 : i32
    %c0_i32_0 = arith.constant 0 : i32
    %c0_i32_1 = arith.constant 0 : i32
    return %c0_i32, %c0_i32_0 : i32, i32
  }
  func.func @transform_6(%arg0: i32) -> (i32, i32) {
    %c0_i32 = arith.constant 0 : i32
    %c0_i32_0 = arith.constant 0 : i32
    %c0_i32_1 = arith.constant 0 : i32
    return %c0_i32, %c0_i32_0 : i32, i32
  }
  func.func @transform_7(%arg0: i32) -> (i32, i32) {
    %c0_i32 = arith.constant 0 : i32
    %c0_i32_0 = arith.constant 0 : i32
    %c0_i32_1 = arith.constant 0 : i32
    return %c0_i32, %c0_i32_0 : i32, i32
  }
  func.func @transform_8(%arg0: i32) -> (i32, i32) {
    %c0_i32 = arith.constant 0 : i32
    %c0_i32_0 = arith.constant 0 : i32
    %c0_i32_1 = arith.constant 0 : i32
    return %c0_i32, %c0_i32_0 : i32, i32
  }
  func.func @transform_9(%arg0: i32) -> (i32, i32, i32) {
    %c0_i32 = arith.constant 0 : i32
    %c0_i32_0 = arith.constant 0 : i32
    %c0_i32_1 = arith.constant 0 : i32
    %c0_i32_2 = arith.constant 0 : i32
    return %c0_i32, %c0_i32_0, %c0_i32_1 : i32, i32, i32
  }
  func.func @transform_10(%arg0: i32) -> (i32, i32, i32) {
    %c0_i32 = arith.constant 0 : i32
    %c0_i32_0 = arith.constant 0 : i32
    %c0_i32_1 = arith.constant 0 : i32
    %c0_i32_2 = arith.constant 0 : i32
    return %c0_i32, %c0_i32_0, %c0_i32_1 : i32, i32, i32
  }
  func.func @transform_11(%arg0: i32) -> (i32, i32, i32) {
    %c0_i32 = arith.constant 0 : i32
    %c0_i32_0 = arith.constant 0 : i32
    %c0_i32_1 = arith.constant 0 : i32
    %c0_i32_2 = arith.constant 0 : i32
    return %c0_i32, %c0_i32_0, %c0_i32_1 : i32, i32, i32
  }
  func.func @transform_12(%arg0: i32) -> (i32, i32, i32) {
    %c0_i32 = arith.constant 0 : i32
    %c0_i32_0 = arith.constant 0 : i32
    %c0_i32_1 = arith.constant 0 : i32
    %c0_i32_2 = arith.constant 0 : i32
    return %c0_i32, %c0_i32_0, %c0_i32_1 : i32, i32, i32
  }
  func.func @transform_13(%arg0: i32) -> (i32, i32, i32) {
    %c0_i32 = arith.constant 0 : i32
    %c0_i32_0 = arith.constant 0 : i32
    %c0_i32_1 = arith.constant 0 : i32
    %c0_i32_2 = arith.constant 0 : i32
    return %c0_i32, %c0_i32_0, %c0_i32_1 : i32, i32, i32
  }
  func.func @transform_14(%arg0: i32) -> (i32, i32, i32) {
    %c0_i32 = arith.constant 0 : i32
    %c0_i32_0 = arith.constant 0 : i32
    %c0_i32_1 = arith.constant 0 : i32
    %c0_i32_2 = arith.constant 0 : i32
    return %c0_i32, %c0_i32_0, %c0_i32_1 : i32, i32, i32
  }
  func.func @transform_15(%arg0: i32) -> (i32, i32, i32) {
    %c0_i32 = arith.constant 0 : i32
    %c0_i32_0 = arith.constant 0 : i32
    %c0_i32_1 = arith.constant 0 : i32
    %c0_i32_2 = arith.constant 0 : i32
    return %c0_i32, %c0_i32_0, %c0_i32_1 : i32, i32, i32
  }
  func.func @transform_16(%arg0: i32) -> (i32, i32) {
    %c0_i32 = arith.constant 0 : i32
    %c0_i32_0 = arith.constant 0 : i32
    %c0_i32_1 = arith.constant 0 : i32
    return %c0_i32, %c0_i32_0 : i32, i32
  }
  func.func @transform_17(%arg0: i32) -> (i32, i32) {
    %c0_i32 = arith.constant 0 : i32
    %c0_i32_0 = arith.constant 0 : i32
    %c0_i32_1 = arith.constant 0 : i32
    return %c0_i32, %c0_i32_0 : i32, i32
  }
  func.func @transform_18(%arg0: i32) -> (i32, i32) {
    %c0_i32 = arith.constant 0 : i32
    %c0_i32_0 = arith.constant 0 : i32
    %c0_i32_1 = arith.constant 0 : i32
    return %c0_i32, %c0_i32_0 : i32, i32
  }
  func.func @transform_19(%arg0: i32) -> (i32, i32) {
    %c0_i32 = arith.constant 0 : i32
    %c0_i32_0 = arith.constant 0 : i32
    %c0_i32_1 = arith.constant 0 : i32
    return %c0_i32, %c0_i32_0 : i32, i32
  }
  func.func @transform_20(%arg0: i32) -> (i32, i32) {
    %c0_i32 = arith.constant 0 : i32
    %c0_i32_0 = arith.constant 0 : i32
    %c0_i32_1 = arith.constant 0 : i32
    return %c0_i32, %c0_i32_0 : i32, i32
  }
  func.func @transform_21(%arg0: i32) -> (i32, i32) {
    %c0_i32 = arith.constant 0 : i32
    %c0_i32_0 = arith.constant 0 : i32
    %c0_i32_1 = arith.constant 0 : i32
    return %c0_i32, %c0_i32_0 : i32, i32
  }
  func.func @transform_22(%arg0: i32) -> (i32, i32) {
    %c0_i32 = arith.constant 0 : i32
    %c0_i32_0 = arith.constant 0 : i32
    %c0_i32_1 = arith.constant 0 : i32
    return %c0_i32, %c0_i32_0 : i32, i32
  }
  func.func @transform_23(%arg0: i32) -> (i32, i32) {
    %c0_i32 = arith.constant 0 : i32
    %c0_i32_0 = arith.constant 0 : i32
    %c0_i32_1 = arith.constant 0 : i32
    return %c0_i32, %c0_i32_0 : i32, i32
  }
  func.func @transform_24(%arg0: i32) -> (i32, i32) {
    %c0_i32 = arith.constant 0 : i32
    %c0_i32_0 = arith.constant 0 : i32
    %c0_i32_1 = arith.constant 0 : i32
    return %c0_i32, %c0_i32_0 : i32, i32
  }
  func.func @transform_25(%arg0: i32) -> (i32, i32, i32) {
    %c0_i32 = arith.constant 0 : i32
    %c0_i32_0 = arith.constant 0 : i32
    %c0_i32_1 = arith.constant 0 : i32
    %c0_i32_2 = arith.constant 0 : i32
    return %c0_i32, %c0_i32_0, %c0_i32_1 : i32, i32, i32
  }
  func.func @transform_26(%arg0: i32) -> (i32, i32, i32) {
    %c0_i32 = arith.constant 0 : i32
    %c0_i32_0 = arith.constant 0 : i32
    %c0_i32_1 = arith.constant 0 : i32
    %c0_i32_2 = arith.constant 0 : i32
    return %c0_i32, %c0_i32_0, %c0_i32_1 : i32, i32, i32
  }
  func.func @transform_27(%arg0: i32) -> (i32, i32, i32) {
    %c0_i32 = arith.constant 0 : i32
    %c0_i32_0 = arith.constant 0 : i32
    %c0_i32_1 = arith.constant 0 : i32
    %c0_i32_2 = arith.constant 0 : i32
    return %c0_i32, %c0_i32_0, %c0_i32_1 : i32, i32, i32
  }
  func.func @transform_28(%arg0: i32) -> (i32, i32, i32) {
    %c0_i32 = arith.constant 0 : i32
    %c0_i32_0 = arith.constant 0 : i32
    %c0_i32_1 = arith.constant 0 : i32
    %c0_i32_2 = arith.constant 0 : i32
    return %c0_i32, %c0_i32_0, %c0_i32_1 : i32, i32, i32
  }
  func.func @transform_29(%arg0: i32) -> (i32, i32, i32) {
    %c0_i32 = arith.constant 0 : i32
    %c0_i32_0 = arith.constant 0 : i32
    %c0_i32_1 = arith.constant 0 : i32
    %c0_i32_2 = arith.constant 0 : i32
    return %c0_i32, %c0_i32_0, %c0_i32_1 : i32, i32, i32
  }
  func.func @transform_30(%arg0: i32) -> (i32, i32, i32) {
    %c0_i32 = arith.constant 0 : i32
    %c0_i32_0 = arith.constant 0 : i32
    %c0_i32_1 = arith.constant 0 : i32
    %c0_i32_2 = arith.constant 0 : i32
    return %c0_i32, %c0_i32_0, %c0_i32_1 : i32, i32, i32
  }
  func.func @transform_31(%arg0: i32) -> (i32, i32, i32) {
    %c0_i32 = arith.constant 0 : i32
    %c0_i32_0 = arith.constant 0 : i32
    %c0_i32_1 = arith.constant 0 : i32
    %c0_i32_2 = arith.constant 0 : i32
    return %c0_i32, %c0_i32_0, %c0_i32_1 : i32, i32, i32
  }
  func.func @transform_32(%arg0: i32) -> (i32, i32) {
    %c0_i32 = arith.constant 0 : i32
    %c0_i32_0 = arith.constant 0 : i32
    %c0_i32_1 = arith.constant 0 : i32
    return %c0_i32, %c0_i32_0 : i32, i32
  }
  func.func @transform_33(%arg0: i32) -> (i32, i32) {
    %c0_i32 = arith.constant 0 : i32
    %c0_i32_0 = arith.constant 0 : i32
    %c0_i32_1 = arith.constant 0 : i32
    return %c0_i32, %c0_i32_0 : i32, i32
  }
  func.func @transform_34(%arg0: i32) -> (i32, i32) {
    %c0_i32 = arith.constant 0 : i32
    %c0_i32_0 = arith.constant 0 : i32
    %c0_i32_1 = arith.constant 0 : i32
    return %c0_i32, %c0_i32_0 : i32, i32
  }
  func.func @transform_35(%arg0: i32) -> (i32, i32, i32) {
    %c0_i32 = arith.constant 0 : i32
    %c0_i32_0 = arith.constant 0 : i32
    %c0_i32_1 = arith.constant 0 : i32
    %c0_i32_2 = arith.constant 0 : i32
    return %c0_i32, %c0_i32_0, %c0_i32_1 : i32, i32, i32
  }
  func.func @transform_36(%arg0: i32) -> (i32, i32, i32) {
    %c0_i32 = arith.constant 0 : i32
    %c0_i32_0 = arith.constant 0 : i32
    %c0_i32_1 = arith.constant 0 : i32
    %c0_i32_2 = arith.constant 0 : i32
    return %c0_i32, %c0_i32_0, %c0_i32_1 : i32, i32, i32
  }
  func.func @transform_37(%arg0: i32) -> (i32, i32, i32) {
    %c0_i32 = arith.constant 0 : i32
    %c0_i32_0 = arith.constant 0 : i32
    %c0_i32_1 = arith.constant 0 : i32
    %c0_i32_2 = arith.constant 0 : i32
    return %c0_i32, %c0_i32_0, %c0_i32_1 : i32, i32, i32
  }
  func.func @transform_38(%arg0: i32) -> (i32, i32, i32) {
    %c0_i32 = arith.constant 0 : i32
    %c0_i32_0 = arith.constant 0 : i32
    %c0_i32_1 = arith.constant 0 : i32
    %c0_i32_2 = arith.constant 0 : i32
    return %c0_i32, %c0_i32_0, %c0_i32_1 : i32, i32, i32
  }
  func.func @transform_39(%arg0: i32) -> (i32, i32, i32) {
    %c0_i32 = arith.constant 0 : i32
    %c0_i32_0 = arith.constant 0 : i32
    %c0_i32_1 = arith.constant 0 : i32
    %c0_i32_2 = arith.constant 0 : i32
    return %c0_i32, %c0_i32_0, %c0_i32_1 : i32, i32, i32
  }
  func.func @transform_40(%arg0: i32) -> (i32, i32, i32) {
    %c0_i32 = arith.constant 0 : i32
    %c0_i32_0 = arith.constant 0 : i32
    %c0_i32_1 = arith.constant 0 : i32
    %c0_i32_2 = arith.constant 0 : i32
    return %c0_i32, %c0_i32_0, %c0_i32_1 : i32, i32, i32
  }
  func.func @transform_41(%arg0: i32) -> (i32, i32, i32) {
    %c0_i32 = arith.constant 0 : i32
    %c0_i32_0 = arith.constant 0 : i32
    %c0_i32_1 = arith.constant 0 : i32
    %c0_i32_2 = arith.constant 0 : i32
    return %c0_i32, %c0_i32_0, %c0_i32_1 : i32, i32, i32
  }
  func.func @transform_42(%arg0: i32) -> (i32, i32) {
    %c0_i32 = arith.constant 0 : i32
    %c0_i32_0 = arith.constant 0 : i32
    %c0_i32_1 = arith.constant 0 : i32
    return %c0_i32, %c0_i32_0 : i32, i32
  }
  func.func @transform_43(%arg0: i32) -> (i32, i32) {
    %c0_i32 = arith.constant 0 : i32
    %c0_i32_0 = arith.constant 0 : i32
    %c0_i32_1 = arith.constant 0 : i32
    return %c0_i32, %c0_i32_0 : i32, i32
  }
  func.func @transform_44(%arg0: i32) -> (i32, i32) {
    %c0_i32 = arith.constant 0 : i32
    %c0_i32_0 = arith.constant 0 : i32
    %c0_i32_1 = arith.constant 0 : i32
    return %c0_i32, %c0_i32_0 : i32, i32
  }
  func.func @transform_45(%arg0: i32) -> (i32, i32) {
    %c0_i32 = arith.constant 0 : i32
    %c0_i32_0 = arith.constant 0 : i32
    %c0_i32_1 = arith.constant 0 : i32
    return %c0_i32, %c0_i32_0 : i32, i32
  }
  func.func @transform_46(%arg0: i32) -> (i32, i32) {
    %c0_i32 = arith.constant 0 : i32
    %c0_i32_0 = arith.constant 0 : i32
    %c0_i32_1 = arith.constant 0 : i32
    return %c0_i32, %c0_i32_0 : i32, i32
  }
  func.func @transform_47(%arg0: i32) -> (i32, i32) {
    %c0_i32 = arith.constant 0 : i32
    %c0_i32_0 = arith.constant 0 : i32
    %c0_i32_1 = arith.constant 0 : i32
    return %c0_i32, %c0_i32_0 : i32, i32
  }
  func.func @transform_48(%arg0: i32) -> (i32, i32) {
    %c0_i32 = arith.constant 0 : i32
    %c0_i32_0 = arith.constant 0 : i32
    %c0_i32_1 = arith.constant 0 : i32
    return %c0_i32, %c0_i32_0 : i32, i32
  }
  func.func @transform_49(%arg0: i32) -> (i32, i32) {
    %c0_i32 = arith.constant 0 : i32
    %c0_i32_0 = arith.constant 0 : i32
    %c0_i32_1 = arith.constant 0 : i32
    return %c0_i32, %c0_i32_0 : i32, i32
  }
  func.func @transform_50(%arg0: i32) -> (i32, i32) {
    %c0_i32 = arith.constant 0 : i32
    %c0_i32_0 = arith.constant 0 : i32
    %c0_i32_1 = arith.constant 0 : i32
    return %c0_i32, %c0_i32_0 : i32, i32
  }
  func.func @transform_51(%arg0: i32) -> (i32, i32, i32) {
    %c0_i32 = arith.constant 0 : i32
    %c0_i32_0 = arith.constant 0 : i32
    %c0_i32_1 = arith.constant 0 : i32
    return %arg0, %c0_i32, %c0_i32_0 : i32, i32, i32
  }
  func.func @transform_52(%arg0: i32) -> (i32, i32, i32) {
    %c0_i32 = arith.constant 0 : i32
    %c0_i32_0 = arith.constant 0 : i32
    %c0_i32_1 = arith.constant 0 : i32
    return %arg0, %c0_i32, %c0_i32_0 : i32, i32, i32
  }
}

</mosaic_0001>

<llo_original>
// kernel: forecast_denoising_forward.1
$region0: #{forecast_denoising_forward.1}
  #allocation0 [shape = 'u32[]', space=smem, size = 0x4, offset = 0x4, fixed_abs, tag = 'smem constant byte address 0x4 - core index']
  #allocation1 [shape = 'u32[144,128]{1,0:T(1,128)}', space=vmem, size = 0x12000, scoped, tag = 'internal scratch']
  #allocation2 [shape = 'f32[1,1]{1,0:T(1,128)S(1)}', space=vmem, size = 0x200, scoped, tag = 'scoped memory for forecast_denoising_forward.1']
  %s0 = inlined_call_operand.smem [shape: u32[53], index: -1, kind: input, shape index: {}]
  %s1 = sld [smem:[%s0]]
  %s2 = scalar_lea.smem %s0, 1
  %s3 = sld [smem:[%s2]]
  %s4 = scalar_lea.smem %s0, 2
  %s5 = sld [smem:[%s4]]
  %s6 = scalar_lea.smem %s0, 3
  %s7 = sld [smem:[%s6]]
  %s8 = scalar_lea.smem %s0, 4
  %s9 = sld [smem:[%s8]]
  %s10 = scalar_lea.smem %s0, 5
  %s11 = sld [smem:[%s10]]
  %s12 = scalar_lea.smem %s0, 6
  %s13 = sld [smem:[%s12]]
  %s14 = scalar_lea.smem %s0, 7
  %s15 = sld [smem:[%s14]]
  %s16 = scalar_lea.smem %s0, 8
  %s17 = sld [smem:[%s16]]
  %s18 = scalar_lea.smem %s0, 9
  %s19 = sld [smem:[%s18]]
  %s20 = scalar_lea.smem %s0, 10
  %s21 = sld [smem:[%s20]]
  %s22 = scalar_lea.smem %s0, 11
  %s23 = sld [smem:[%s22]]
  %s24 = scalar_lea.smem %s0, 12
  %s25 = sld [smem:[%s24]]
  %s26 = scalar_lea.smem %s0, 13
  %s27 = sld [smem:[%s26]]
  %s28 = scalar_lea.smem %s0, 14
  %s29 = sld [smem:[%s28]]
  %s30 = scalar_lea.smem %s0, 15
  %s31 = sld [smem:[%s30]]
  %s32 = scalar_lea.smem %s0, 16
  %s33 = sld [smem:[%s32]]
  %s34 = scalar_lea.smem %s0, 17
  %s35 = sld [smem:[%s34]]
  %s36 = scalar_lea.smem %s0, 18
  %s37 = sld [smem:[%s36]]
  %s38 = scalar_lea.smem %s0, 19
  %s39 = sld [smem:[%s38]]
  %s40 = scalar_lea.smem %s0, 20
  %s41 = sld [smem:[%s40]]
  %s42 = scalar_lea.smem %s0, 21
  %s43 = sld [smem:[%s42]]
  %s44 = scalar_lea.smem %s0, 22
  %s45 = sld [smem:[%s44]]
  %s46 = scalar_lea.smem %s0, 23
  %s47 = sld [smem:[%s46]]
  %s48 = scalar_lea.smem %s0, 24
  %s49 = sld [smem:[%s48]]
  %s50 = scalar_lea.smem %s0, 25
  %s51 = sld [smem:[%s50]]
  %s52 = scalar_lea.smem %s0, 26
  %s53 = sld [smem:[%s52]]
  %s54 = scalar_lea.smem %s0, 27
  %s55 = sld [smem:[%s54]]
  %s56 = scalar_lea.smem %s0, 28
  %s57 = sld [smem:[%s56]]
  %s58 = scalar_lea.smem %s0, 29
  %s59 = sld [smem:[%s58]]
  %s60 = scalar_lea.smem %s0, 30
  %s61 = sld [smem:[%s60]]
  %s62 = scalar_lea.smem %s0, 31
  %s63 = sld [smem:[%s62]]
  %s64 = scalar_lea.smem %s0, 32
  %s65 = sld [smem:[%s64]]
  %s66 = scalar_lea.smem %s0, 33
  %s67 = sld [smem:[%s66]]
  %s68 = scalar_lea.smem %s0, 34
  %s69 = sld [smem:[%s68]]
  %s70 = scalar_lea.smem %s0, 35
  %s71 = sld [smem:[%s70]]
  %s72 = scalar_lea.smem %s0, 36
  %s73 = sld [smem:[%s72]]
  %s74 = scalar_lea.smem %s0, 37
  %s75 = sld [smem:[%s74]]
  %s76 = scalar_lea.smem %s0, 38
  %s77 = sld [smem:[%s76]]
  %s78 = scalar_lea.smem %s0, 39
  %s79 = sld [smem:[%s78]]
  %s80 = scalar_lea.smem %s0, 40
  %s81 = sld [smem:[%s80]]
  %s82 = scalar_lea.smem %s0, 41
  %s83 = sld [smem:[%s82]]
  %s84 = scalar_lea.smem %s0, 42
  %s85 = sld [smem:[%s84]]
  %s86 = scalar_lea.smem %s0, 43
  %s87 = sld [smem:[%s86]]
  %s88 = scalar_lea.smem %s0, 44
  %s89 = sld [smem:[%s88]]
  %s90 = scalar_lea.smem %s0, 45
  %s91 = sld [smem:[%s90]]
  %s92 = scalar_lea.smem %s0, 46
  %s93 = sld [smem:[%s92]]
  %s94 = scalar_lea.smem %s0, 47
  %s95 = sld [smem:[%s94]]
  %s96 = scalar_lea.smem %s0, 48
  %s97 = sld [smem:[%s96]]
  %s98 = scalar_lea.smem %s0, 49
  %s99 = sld [smem:[%s98]]
  %s100 = scalar_lea.smem %s0, 50
  %s101 = sld [smem:[%s100]]
  %s102 = scalar_lea.smem %s0, 51
  %s103 = sld [smem:[%s102]]
  %s104 = scalar_lea.smem %s0, 52
  %s105 = sld [smem:[%s104]]
  %106 = xla_tuple %s103, %s105
  %s107 = sld [smem:[#allocation0]]
  $region253: #{forecast_denoising_forward.1} parent=0
    _
  %s109 = ssub.s32 1, %s107
  %s110 = scalar_select 0, %s109, %s107
  %v111 = vstv %s17
  %112 = vst [vmem:[#allocation2] sm:$0x1] %v111
  $region1: #{forecast_denoising_forward.1} parent=0
    #allocation3 [shape = 'u8[512]{0}', space=vmem, size = 0x400, scoped, tag = 'input window, operand 49, single buffered']
    #allocation4 [shape = 's32[2]{0}', space=sflag, size = 0x8, scoped, tag = 'scoped memory for forecast_denoising_forward.1']
    #allocation5 [shape = 'u8[512]{0}', space=vmem, size = 0x400, scoped, tag = 'input window, operand 50, single buffered']
    #allocation6 [shape = 's32[1]{0}', space=sflag, size = 0x4, scoped, tag = 'scoped memory for forecast_denoising_forward.1']
    %113 = vsyncpa [#allocation4], 0
    %114 = vsyncpa [#allocation6], 0
    loop: start=0, step=1, limit=4
    $region2: #{forecast_denoising_forward.1} parent=1 // loop_pre_header
      _
    $region3: #{forecast_denoising_forward.1} parent=1 // loop_header
      %s116 = sphi 0, %s120
      %p117 = scmp.ge.s32.totalorder %s116, 4
      %s126 = sphi 0, %s128
      %s129 = sphi 0, %s126
      %s130 = sphi 0, %s129
      %s146 = sphi 0, %s130
      %s152 = sphi 0, %s154
      %s155 = sphi 0, %s152
      %s156 = sphi 0, %s155
      %s172 = sphi 0, %s156
      %s178 = sphi 0, %s180
      %s181 = sphi 0, %s178
      %s182 = sphi 0, %s181
      %s198 = sphi 0, %s182
      %s202 = sphi 0, %s202
      %s204 = sphi 0, %s202
      %s205 = sphi 0, %s204
      %s219 = sphi 0, %s205
      %s223 = sphi 0, %s223
      %s225 = sphi 0, %s223
      %s226 = sphi 0, %s225
      %s240 = sphi 0, %s226
      %s244 = sphi 0, %s244
      %s246 = sphi 0, %s244
      %s247 = sphi 0, %s246
      %s261 = sphi 0, %s247
      %s265 = sphi 0, %s265
      %s267 = sphi 0, %s265
      %s268 = sphi 0, %s267
      %s282 = sphi 0, %s268
      %s286 = sphi 0, %s286
      %s288 = sphi 0, %s286
      %s289 = sphi 0, %s288
      %s303 = sphi 0, %s289
      %s307 = sphi 0, %s307
      %s309 = sphi 0, %s307
      %s310 = sphi 0, %s309
      %s324 = sphi 0, %s310
      %s328 = sphi 0, %s328
      %s330 = sphi 0, %s328
      %s331 = sphi 0, %s330
      %s345 = sphi 0, %s331
      %s349 = sphi 0, %s349
      %s351 = sphi 0, %s349
      %s352 = sphi 0, %s351
      %s366 = sphi 0, %s352
      %s370 = sphi 0, %s370
      %s372 = sphi 0, %s370
      %s373 = sphi 0, %s372
      %s387 = sphi 0, %s373
      %s391 = sphi 0, %s391
      %s393 = sphi 0, %s391
      %s394 = sphi 0, %s393
      %s408 = sphi 0, %s394
      %s412 = sphi 0, %s412
      %s414 = sphi 0, %s412
      %s415 = sphi 0, %s414
      %s429 = sphi 0, %s415
      %s433 = sphi 0, %s433
      %s435 = sphi 0, %s433
      %s436 = sphi 0, %s435
      %s450 = sphi 0, %s436
      %s454 = sphi 0, %s454
      %s456 = sphi 0, %s454
      %s457 = sphi 0, %s456
      %s471 = sphi 0, %s457
      %s475 = sphi 0, %s475
      %s477 = sphi 0, %s475
      %s478 = sphi 0, %s477
      %s492 = sphi 0, %s478
      %s496 = sphi 0, %s496
      %s498 = sphi 0, %s496
      %s499 = sphi 0, %s498
      %s513 = sphi 0, %s499
      %s517 = sphi 0, %s517
      %s519 = sphi 0, %s517
      %s520 = sphi 0, %s519
      %s534 = sphi 0, %s520
      %s538 = sphi 0, %s538
      %s540 = sphi 0, %s538
      %s541 = sphi 0, %s540
      %s555 = sphi 0, %s541
      %s559 = sphi 0, %s559
      %s561 = sphi 0, %s559
      %s562 = sphi 0, %s561
      %s576 = sphi 0, %s562
      %s580 = sphi 0, %s580
      %s582 = sphi 0, %s580
      %s583 = sphi 0, %s582
      %s597 = sphi 0, %s583
      %s601 = sphi 0, %s601
      %s603 = sphi 0, %s601
      %s604 = sphi 0, %s603
      %s618 = sphi 0, %s604
      %s622 = sphi 0, %s622
      %s624 = sphi 0, %s622
      %s625 = sphi 0, %s624
      %s639 = sphi 0, %s625
      %s643 = sphi 0, %s643
      %s645 = sphi 0, %s643
      %s646 = sphi 0, %s645
      %s660 = sphi 0, %s646
      %s664 = sphi 0, %s664
      %s666 = sphi 0, %s664
      %s667 = sphi 0, %s666
      %s681 = sphi 0, %s667
      %s685 = sphi 0, %s685
      %s687 = sphi 0, %s685
      %s688 = sphi 0, %s687
      %s702 = sphi 0, %s688
      %s706 = sphi 0, %s706
      %s708 = sphi 0, %s706
      %s709 = sphi 0, %s708
      %s723 = sphi 0, %s709
      %s727 = sphi 0, %s727
      %s729 = sphi 0, %s727
      %s730 = sphi 0, %s729
      %s744 = sphi 0, %s730
      %s748 = sphi 0, %s748
      %s750 = sphi 0, %s748
      %s751 = sphi 0, %s750
      %s765 = sphi 0, %s751
      %s769 = sphi 0, %s769
      %s771 = sphi 0, %s769
      %s772 = sphi 0, %s771
      %s786 = sphi 0, %s772
      %s790 = sphi 0, %s790
      %s792 = sphi 0, %s790
      %s793 = sphi 0, %s792
      %s807 = sphi 0, %s793
      %s811 = sphi 0, %s811
      %s813 = sphi 0, %s811
      %s814 = sphi 0, %s813
      %s828 = sphi 0, %s814
      %s832 = sphi 0, %s832
      %s834 = sphi 0, %s832
      %s835 = sphi 0, %s834
      %s849 = sphi 0, %s835
      %s853 = sphi 0, %s853
      %s855 = sphi 0, %s853
      %s856 = sphi 0, %s855
      %s870 = sphi 0, %s856
      %s874 = sphi 0, %s874
      %s876 = sphi 0, %s874
      %s877 = sphi 0, %s876
      %s891 = sphi 0, %s877
      %s895 = sphi 0, %s895
      %s897 = sphi 0, %s895
      %s898 = sphi 0, %s897
      %s912 = sphi 0, %s898
      %s916 = sphi 0, %s916
      %s918 = sphi 0, %s916
      %s919 = sphi 0, %s918
      %s933 = sphi 0, %s919
      %s937 = sphi 0, %s937
      %s939 = sphi 0, %s937
      %s940 = sphi 0, %s939
      %s954 = sphi 0, %s940
      %s958 = sphi 0, %s958
      %s960 = sphi 0, %s958
      %s961 = sphi 0, %s960
      %s975 = sphi 0, %s961
      %s979 = sphi 0, %s979
      %s981 = sphi 0, %s979
      %s982 = sphi 0, %s981
      %s996 = sphi 0, %s982
      %s1000 = sphi 0, %s1000
      %s1002 = sphi 0, %s1000
      %s1003 = sphi 0, %s1002
      %s1017 = sphi 0, %s1003
      %s1021 = sphi 0, %s1021
      %s1023 = sphi 0, %s1021
      %s1024 = sphi 0, %s1023
      %s1038 = sphi 0, %s1024
      %s1042 = sphi 0, %s1042
      %s1044 = sphi 0, %s1042
      %s1045 = sphi 0, %s1044
      %s1059 = sphi 0, %s1045
      %s1063 = sphi 0, %s1063
      %s1065 = sphi 0, %s1063
      %s1066 = sphi 0, %s1065
      %s1080 = sphi 0, %s1066
      %s1084 = sphi 0, %s1084
      %s1086 = sphi 0, %s1084
      %s1087 = sphi 0, %s1086
      %s1101 = sphi 0, %s1087
      %s1105 = sphi 0, %s1105
      %s1107 = sphi 0, %s1105
      %s1108 = sphi 0, %s1107
      %s1122 = sphi 0, %s1108
      %s1126 = sphi 0, %s1126
      %s1128 = sphi 0, %s1126
      %s1129 = sphi 0, %s1128
      %s1143 = sphi 0, %s1129
      %s1147 = sphi 0, %s1147
      %s1149 = sphi 0, %s1147
      %s1150 = sphi 0, %s1149
      %s1164 = sphi 0, %s1150
      %s1168 = sphi 0, %s1168
      %s1170 = sphi 0, %s1168
      %s1171 = sphi 0, %s1170
      %s1185 = sphi 0, %s1171
      %s1189 = sphi 0, %s1189
      %s1191 = sphi 0, %s1189
      %s1192 = sphi 0, %s1191
      %s1206 = sphi 0, %s1192
      %s1212 = sphi 0, %s1214
      %s1215 = sphi 0, %s1212
      %s1216 = sphi 0, %s1215
      %s1232 = sphi 0, %s1216
      %s1238 = sphi 0, %s1240
      %s1241 = sphi 0, %s1238
      %s1242 = sphi 0, %s1241
      %s1258 = sphi 0, %s1242
    $region4: #{forecast_denoising_forward.1} parent=1 // loop_header_branch
      %119 = sbr.rel (%p117) target = $region8
    $region5: #{forecast_denoising_forward.1} parent=1 // loop_body
      %s121 = ssub.s32 %s116, 1
      %s122 = ssub.s32 %s116, 2
      %s123 = sadd.s32 %s116, 1
      %s124 = ssub.s32 %s116, %s123
      %p125 = scmp.eq.s32.totalorder %s124, 0
      %s127 = sadd.s32 %s126, 1
      %s128 = scalar_select %p125, %s126, %s127
      %p131 = pneg %p125
      %p132 = scmp.eq.s32.totalorder %s116, 1
      %p133 = por %p131, %p132
      %p134 = scmp.ne.s32.totalorder %s126, %s129
      %p135 = scmp.eq.s32.totalorder %s116, 0
      %p136 = por %p134, %p135
      %p137 = scmp.ne.s32.totalorder %s126, %s129
      %p138 = scmp.eq.s32.totalorder %s121, 1
      %p139 = por %p137, %p138
      %p140 = scmp.ne.s32.totalorder %s129, %s130
      %p141 = scmp.eq.s32.totalorder %s121, 0
      %p142 = por %p140, %p141
      %p143 = scmp.ne.s32.totalorder %s129, %s130
      %p144 = scmp.eq.s32.totalorder %s122, 1
      %p145 = por %p143, %p144
      %p147 = scmp.ne.s32.totalorder %s130, %s146
      %p148 = scmp.eq.s32.totalorder %s122, 0
      %p149 = por %p147, %p148
      %s150 = ssub.s32 %s116, %s123
      %p151 = scmp.eq.s32.totalorder %s150, 0
      %s153 = sadd.s32 %s152, 1
      %s154 = scalar_select %p151, %s152, %s153
      %p157 = pneg %p151
      %p158 = scmp.eq.s32.totalorder %s116, 1
      %p159 = por %p157, %p158
      %p160 = scmp.ne.s32.totalorder %s152, %s155
      %p161 = scmp.eq.s32.totalorder %s116, 0
      %p162 = por %p160, %p161
      %p163 = scmp.ne.s32.totalorder %s152, %s155
      %p164 = scmp.eq.s32.totalorder %s121, 1
      %p165 = por %p163, %p164
      %p166 = scmp.ne.s32.totalorder %s155, %s156
      %p167 = scmp.eq.s32.totalorder %s121, 0
      %p168 = por %p166, %p167
      %p169 = scmp.ne.s32.totalorder %s155, %s156
      %p170 = scmp.eq.s32.totalorder %s122, 1
      %p171 = por %p169, %p170
      %p173 = scmp.ne.s32.totalorder %s156, %s172
      %p174 = scmp.eq.s32.totalorder %s122, 0
      %p175 = por %p173, %p174
      %s176 = ssub.s32 %s116, %s123
      %p177 = scmp.eq.s32.totalorder %s176, 0
      %s179 = sadd.s32 %s178, 1
      %s180 = scalar_select %p177, %s178, %s179
      %p183 = pneg %p177
      %p184 = scmp.eq.s32.totalorder %s116, 1
      %p185 = por %p183, %p184
      %p186 = scmp.ne.s32.totalorder %s178, %s181
      %p187 = scmp.eq.s32.totalorder %s116, 0
      %p188 = por %p186, %p187
      %p189 = scmp.ne.s32.totalorder %s178, %s181
      %p190 = scmp.eq.s32.totalorder %s121, 1
      %p191 = por %p189, %p190
      %p192 = scmp.ne.s32.totalorder %s181, %s182
      %p193 = scmp.eq.s32.totalorder %s121, 0
      %p194 = por %p192, %p193
      %p195 = scmp.ne.s32.totalorder %s181, %s182
      %p196 = scmp.eq.s32.totalorder %s122, 1
      %p197 = por %p195, %p196
      %p199 = scmp.ne.s32.totalorder %s182, %s198
      %p200 = scmp.eq.s32.totalorder %s122, 0
      %p201 = por %p199, %p200
      %s203 = sadd.s32 %s202, 1
      %p206 = scmp.eq.s32.totalorder %s116, 1
      %p207 = scmp.ne.s32.totalorder %s202, %s204
      %p208 = scmp.eq.s32.totalorder %s116, 0
      %p209 = por %p207, %p208
      %p210 = scmp.ne.s32.totalorder %s202, %s204
      %p211 = scmp.eq.s32.totalorder %s121, 1
      %p212 = por %p210, %p211
      %p213 = scmp.ne.s32.totalorder %s204, %s205
      %p214 = scmp.eq.s32.totalorder %s121, 0
      %p215 = por %p213, %p214
      %p216 = scmp.ne.s32.totalorder %s204, %s205
      %p217 = scmp.eq.s32.totalorder %s122, 1
      %p218 = por %p216, %p217
      %p220 = scmp.ne.s32.totalorder %s205, %s219
      %p221 = scmp.eq.s32.totalorder %s122, 0
      %p222 = por %p220, %p221
      %s224 = sadd.s32 %s223, 1
      %p227 = scmp.eq.s32.totalorder %s116, 1
      %p228 = scmp.ne.s32.totalorder %s223, %s225
      %p229 = scmp.eq.s32.totalorder %s116, 0
      %p230 = por %p228, %p229
      %p231 = scmp.ne.s32.totalorder %s223, %s225
      %p232 = scmp.eq.s32.totalorder %s121, 1
      %p233 = por %p231, %p232
      %p234 = scmp.ne.s32.totalorder %s225, %s226
      %p235 = scmp.eq.s32.totalorder %s121, 0
      %p236 = por %p234, %p235
      %p237 = scmp.ne.s32.totalorder %s225, %s226
      %p238 = scmp.eq.s32.totalorder %s122, 1
      %p239 = por %p237, %p238
      %p241 = scmp.ne.s32.totalorder %s226, %s240
      %p242 = scmp.eq.s32.totalorder %s122, 0
      %p243 = por %p241, %p242
      %s245 = sadd.s32 %s244, 1
      %p248 = scmp.eq.s32.totalorder %s116, 1
      %p249 = scmp.ne.s32.totalorder %s244, %s246
      %p250 = scmp.eq.s32.totalorder %s116, 0
      %p251 = por %p249, %p250
      %p252 = scmp.ne.s32.totalorder %s244, %s246
      %p253 = scmp.eq.s32.totalorder %s121, 1
      %p254 = por %p252, %p253
      %p255 = scmp.ne.s32.totalorder %s246, %s247
      %p256 = scmp.eq.s32.totalorder %s121, 0
      %p257 = por %p255, %p256
      %p258 = scmp.ne.s32.totalorder %s246, %s247
      %p259 = scmp.eq.s32.totalorder %s122, 1
      %p260 = por %p258, %p259
      %p262 = scmp.ne.s32.totalorder %s247, %s261
      %p263 = scmp.eq.s32.totalorder %s122, 0
      %p264 = por %p262, %p263
      %s266 = sadd.s32 %s265, 1
      %p269 = scmp.eq.s32.totalorder %s116, 1
      %p270 = scmp.ne.s32.totalorder %s265, %s267
      %p271 = scmp.eq.s32.totalorder %s116, 0
      %p272 = por %p270, %p271
      %p273 = scmp.ne.s32.totalorder %s265, %s267
      %p274 = scmp.eq.s32.totalorder %s121, 1
      %p275 = por %p273, %p274
      %p276 = scmp.ne.s32.totalorder %s267, %s268
      %p277 = scmp.eq.s32.totalorder %s121, 0
      %p278 = por %p276, %p277
      %p279 = scmp.ne.s32.totalorder %s267, %s268
      %p280 = scmp.eq.s32.totalorder %s122, 1
      %p281 = por %p279, %p280
      %p283 = scmp.ne.s32.totalorder %s268, %s282
      %p284 = scmp.eq.s32.totalorder %s122, 0
      %p285 = por %p283, %p284
      %s287 = sadd.s32 %s286, 1
      %p290 = scmp.eq.s32.totalorder %s116, 1
      %p291 = scmp.ne.s32.totalorder %s286, %s288
      %p292 = scmp.eq.s32.totalorder %s116, 0
      %p293 = por %p291, %p292
      %p294 = scmp.ne.s32.totalorder %s286, %s288
      %p295 = scmp.eq.s32.totalorder %s121, 1
      %p296 = por %p294, %p295
      %p297 = scmp.ne.s32.totalorder %s288, %s289
      %p298 = scmp.eq.s32.totalorder %s121, 0
      %p299 = por %p297, %p298
      %p300 = scmp.ne.s32.totalorder %s288, %s289
      %p301 = scmp.eq.s32.totalorder %s122, 1
      %p302 = por %p300, %p301
      %p304 = scmp.ne.s32.totalorder %s289, %s303
      %p305 = scmp.eq.s32.totalorder %s122, 0
      %p306 = por %p304, %p305
      %s308 = sadd.s32 %s307, 1
      %p311 = scmp.eq.s32.totalorder %s116, 1
      %p312 = scmp.ne.s32.totalorder %s307, %s309
      %p313 = scmp.eq.s32.totalorder %s116, 0
      %p314 = por %p312, %p313
      %p315 = scmp.ne.s32.totalorder %s307, %s309
      %p316 = scmp.eq.s32.totalorder %s121, 1
      %p317 = por %p315, %p316
      %p318 = scmp.ne.s32.totalorder %s309, %s310
      %p319 = scmp.eq.s32.totalorder %s121, 0
      %p320 = por %p318, %p319
      %p321 = scmp.ne.s32.totalorder %s309, %s310
      %p322 = scmp.eq.s32.totalorder %s122, 1
      %p323 = por %p321, %p322
      %p325 = scmp.ne.s32.totalorder %s310, %s324
      %p326 = scmp.eq.s32.totalorder %s122, 0
      %p327 = por %p325, %p326
      %s329 = sadd.s32 %s328, 1
      %p332 = scmp.eq.s32.totalorder %s116, 1
      %p333 = scmp.ne.s32.totalorder %s328, %s330
      %p334 = scmp.eq.s32.totalorder %s116, 0
      %p335 = por %p333, %p334
      %p336 = scmp.ne.s32.totalorder %s328, %s330
      %p337 = scmp.eq.s32.totalorder %s121, 1
      %p338 = por %p336, %p337
      %p339 = scmp.ne.s32.totalorder %s330, %s331
      %p340 = scmp.eq.s32.totalorder %s121, 0
      %p341 = por %p339, %p340
      %p342 = scmp.ne.s32.totalorder %s330, %s331
      %p343 = scmp.eq.s32.totalorder %s122, 1
      %p344 = por %p342, %p343
      %p346 = scmp.ne.s32.totalorder %s331, %s345
      %p347 = scmp.eq.s32.totalorder %s122, 0
      %p348 = por %p346, %p347
      %s350 = sadd.s32 %s349, 1
      %p353 = scmp.eq.s32.totalorder %s116, 1
      %p354 = scmp.ne.s32.totalorder %s349, %s351
      %p355 = scmp.eq.s32.totalorder %s116, 0
      %p356 = por %p354, %p355
      %p357 = scmp.ne.s32.totalorder %s349, %s351
      %p358 = scmp.eq.s32.totalorder %s121, 1
      %p359 = por %p357, %p358
      %p360 = scmp.ne.s32.totalorder %s351, %s352
      %p361 = scmp.eq.s32.totalorder %s121, 0
      %p362 = por %p360, %p361
      %p363 = scmp.ne.s32.totalorder %s351, %s352
      %p364 = scmp.eq.s32.totalorder %s122, 1
      %p365 = por %p363, %p364
      %p367 = scmp.ne.s32.totalorder %s352, %s366
      %p368 = scmp.eq.s32.totalorder %s122, 0
      %p369 = por %p367, %p368
      %s371 = sadd.s32 %s370, 1
      %p374 = scmp.eq.s32.totalorder %s116, 1
      %p375 = scmp.ne.s32.totalorder %s370, %s372
      %p376 = scmp.eq.s32.totalorder %s116, 0
      %p377 = por %p375, %p376
      %p378 = scmp.ne.s32.totalorder %s370, %s372
      %p379 = scmp.eq.s32.totalorder %s121, 1
      %p380 = por %p378, %p379
      %p381 = scmp.ne.s32.totalorder %s372, %s373
      %p382 = scmp.eq.s32.totalorder %s121, 0
      %p383 = por %p381, %p382
      %p384 = scmp.ne.s32.totalorder %s372, %s373
      %p385 = scmp.eq.s32.totalorder %s122, 1
      %p386 = por %p384, %p385
      %p388 = scmp.ne.s32.totalorder %s373, %s387
      %p389 = scmp.eq.s32.totalorder %s122, 0
      %p390 = por %p388, %p389
      %s392 = sadd.s32 %s391, 1
      %p395 = scmp.eq.s32.totalorder %s116, 1
      %p396 = scmp.ne.s32.totalorder %s391, %s393
      %p397 = scmp.eq.s32.totalorder %s116, 0
      %p398 = por %p396, %p397
      %p399 = scmp.ne.s32.totalorder %s391, %s393
      %p400 = scmp.eq.s32.totalorder %s121, 1
      %p401 = por %p399, %p400
      %p402 = scmp.ne.s32.totalorder %s393, %s394
      %p403 = scmp.eq.s32.totalorder %s121, 0
      %p404 = por %p402, %p403
      %p405 = scmp.ne.s32.totalorder %s393, %s394
      %p406 = scmp.eq.s32.totalorder %s122, 1
      %p407 = por %p405, %p406
      %p409 = scmp.ne.s32.totalorder %s394, %s408
      %p410 = scmp.eq.s32.totalorder %s122, 0
      %p411 = por %p409, %p410
      %s413 = sadd.s32 %s412, 1
      %p416 = scmp.eq.s32.totalorder %s116, 1
      %p417 = scmp.ne.s32.totalorder %s412, %s414
      %p418 = scmp.eq.s32.totalorder %s116, 0
      %p419 = por %p417, %p418
      %p420 = scmp.ne.s32.totalorder %s412, %s414
      %p421 = scmp.eq.s32.totalorder %s121, 1
      %p422 = por %p420, %p421
      %p423 = scmp.ne.s32.totalorder %s414, %s415
      %p424 = scmp.eq.s32.totalorder %s121, 0
      %p425 = por %p423, %p424
      %p426 = scmp.ne.s32.totalorder %s414, %s415
      %p427 = scmp.eq.s32.totalorder %s122, 1
      %p428 = por %p426, %p427
      %p430 = scmp.ne.s32.totalorder %s415, %s429
      %p431 = scmp.eq.s32.totalorder %s122, 0
      %p432 = por %p430, %p431
      %s434 = sadd.s32 %s433, 1
      %p437 = scmp.eq.s32.totalorder %s116, 1
      %p438 = scmp.ne.s32.totalorder %s433, %s435
      %p439 = scmp.eq.s32.totalorder %s116, 0
      %p440 = por %p438, %p439
      %p441 = scmp.ne.s32.totalorder %s433, %s435
      %p442 = scmp.eq.s32.totalorder %s121, 1
      %p443 = por %p441, %p442
      %p444 = scmp.ne.s32.totalorder %s435, %s436
      %p445 = scmp.eq.s32.totalorder %s121, 0
      %p446 = por %p444, %p445
      %p447 = scmp.ne.s32.totalorder %s435, %s436
      %p448 = scmp.eq.s32.totalorder %s122, 1
      %p449 = por %p447, %p448
      %p451 = scmp.ne.s32.totalorder %s436, %s450
      %p452 = scmp.eq.s32.totalorder %s122, 0
      %p453 = por %p451, %p452
      %s455 = sadd.s32 %s454, 1
      %p458 = scmp.eq.s32.totalorder %s116, 1
      %p459 = scmp.ne.s32.totalorder %s454, %s456
      %p460 = scmp.eq.s32.totalorder %s116, 0
      %p461 = por %p459, %p460
      %p462 = scmp.ne.s32.totalorder %s454, %s456
      %p463 = scmp.eq.s32.totalorder %s121, 1
      %p464 = por %p462, %p463
      %p465 = scmp.ne.s32.totalorder %s456, %s457
      %p466 = scmp.eq.s32.totalorder %s121, 0
      %p467 = por %p465, %p466
      %p468 = scmp.ne.s32.totalorder %s456, %s457
      %p469 = scmp.eq.s32.totalorder %s122, 1
      %p470 = por %p468, %p469
      %p472 = scmp.ne.s32.totalorder %s457, %s471
      %p473 = scmp.eq.s32.totalorder %s122, 0
      %p474 = por %p472, %p473
      %s476 = sadd.s32 %s475, 1
      %p479 = scmp.eq.s32.totalorder %s116, 1
      %p480 = scmp.ne.s32.totalorder %s475, %s477
      %p481 = scmp.eq.s32.totalorder %s116, 0
      %p482 = por %p480, %p481
      %p483 = scmp.ne.s32.totalorder %s475, %s477
      %p484 = scmp.eq.s32.totalorder %s121, 1
      %p485 = por %p483, %p484
      %p486 = scmp.ne.s32.totalorder %s477, %s478
      %p487 = scmp.eq.s32.totalorder %s121, 0
      %p488 = por %p486, %p487
      %p489 = scmp.ne.s32.totalorder %s477, %s478
      %p490 = scmp.eq.s32.totalorder %s122, 1
      %p491 = por %p489, %p490
      %p493 = scmp.ne.s32.totalorder %s478, %s492
      %p494 = scmp.eq.s32.totalorder %s122, 0
      %p495 = por %p493, %p494
      %s497 = sadd.s32 %s496, 1
      %p500 = scmp.eq.s32.totalorder %s116, 1
      %p501 = scmp.ne.s32.totalorder %s496, %s498
      %p502 = scmp.eq.s32.totalorder %s116, 0
      %p503 = por %p501, %p502
      %p504 = scmp.ne.s32.totalorder %s496, %s498
      %p505 = scmp.eq.s32.totalorder %s121, 1
      %p506 = por %p504, %p505
      %p507 = scmp.ne.s32.totalorder %s498, %s499
      %p508 = scmp.eq.s32.totalorder %s121, 0
      %p509 = por %p507, %p508
      %p510 = scmp.ne.s32.totalorder %s498, %s499
      %p511 = scmp.eq.s32.totalorder %s122, 1
      %p512 = por %p510, %p511
      %p514 = scmp.ne.s32.totalorder %s499, %s513
      %p515 = scmp.eq.s32.totalorder %s122, 0
      %p516 = por %p514, %p515
      %s518 = sadd.s32 %s517, 1
      %p521 = scmp.eq.s32.totalorder %s116, 1
      %p522 = scmp.ne.s32.totalorder %s517, %s519
      %p523 = scmp.eq.s32.totalorder %s116, 0
      %p524 = por %p522, %p523
      %p525 = scmp.ne.s32.totalorder %s517, %s519
      %p526 = scmp.eq.s32.totalorder %s121, 1
      %p527 = por %p525, %p526
      %p528 = scmp.ne.s32.totalorder %s519, %s520
      %p529 = scmp.eq.s32.totalorder %s121, 0
      %p530 = por %p528, %p529
      %p531 = scmp.ne.s32.totalorder %s519, %s520
      %p532 = scmp.eq.s32.totalorder %s122, 1
      %p533 = por %p531, %p532
      %p535 = scmp.ne.s32.totalorder %s520, %s534
      %p536 = scmp.eq.s32.totalorder %s122, 0
      %p537 = por %p535, %p536
      %s539 = sadd.s32 %s538, 1
      %p542 = scmp.eq.s32.totalorder %s116, 1
      %p543 = scmp.ne.s32.totalorder %s538, %s540
      %p544 = scmp.eq.s32.totalorder %s116, 0
      %p545 = por %p543, %p544
      %p546 = scmp.ne.s32.totalorder %s538, %s540
      %p547 = scmp.eq.s32.totalorder %s121, 1
      %p548 = por %p546, %p547
      %p549 = scmp.ne.s32.totalorder %s540, %s541
      %p550 = scmp.eq.s32.totalorder %s121, 0
      %p551 = por %p549, %p550
      %p552 = scmp.ne.s32.totalorder %s540, %s541
      %p553 = scmp.eq.s32.totalorder %s122, 1
      %p554 = por %p552, %p553
      %p556 = scmp.ne.s32.totalorder %s541, %s555
      %p557 = scmp.eq.s32.totalorder %s122, 0
      %p558 = por %p556, %p557
      %s560 = sadd.s32 %s559, 1
      %p563 = scmp.eq.s32.totalorder %s116, 1
      %p564 = scmp.ne.s32.totalorder %s559, %s561
      %p565 = scmp.eq.s32.totalorder %s116, 0
      %p566 = por %p564, %p565
      %p567 = scmp.ne.s32.totalorder %s559, %s561
      %p568 = scmp.eq.s32.totalorder %s121, 1
      %p569 = por %p567, %p568
      %p570 = scmp.ne.s32.totalorder %s561, %s562
      %p571 = scmp.eq.s32.totalorder %s121, 0
      %p572 = por %p570, %p571
      %p573 = scmp.ne.s32.totalorder %s561, %s562
      %p574 = scmp.eq.s32.totalorder %s122, 1
      %p575 = por %p573, %p574
      %p577 = scmp.ne.s32.totalorder %s562, %s576
      %p578 = scmp.eq.s32.totalorder %s122, 0
      %p579 = por %p577, %p578
      %s581 = sadd.s32 %s580, 1
      %p584 = scmp.eq.s32.totalorder %s116, 1
      %p585 = scmp.ne.s32.totalorder %s580, %s582
      %p586 = scmp.eq.s32.totalorder %s116, 0
      %p587 = por %p585, %p586
      %p588 = scmp.ne.s32.totalorder %s580, %s582
      %p589 = scmp.eq.s32.totalorder %s121, 1
      %p590 = por %p588, %p589
      %p591 = scmp.ne.s32.totalorder %s582, %s583
      %p592 = scmp.eq.s32.totalorder %s121, 0
      %p593 = por %p591, %p592
      %p594 = scmp.ne.s32.totalorder %s582, %s583
      %p595 = scmp.eq.s32.totalorder %s122, 1
      %p596 = por %p594, %p595
      %p598 = scmp.ne.s32.totalorder %s583, %s597
      %p599 = scmp.eq.s32.totalorder %s122, 0
      %p600 = por %p598, %p599
      %s602 = sadd.s32 %s601, 1
      %p605 = scmp.eq.s32.totalorder %s116, 1
      %p606 = scmp.ne.s32.totalorder %s601, %s603
      %p607 = scmp.eq.s32.totalorder %s116, 0
      %p608 = por %p606, %p607
      %p609 = scmp.ne.s32.totalorder %s601, %s603
      %p610 = scmp.eq.s32.totalorder %s121, 1
      %p611 = por %p609, %p610
      %p612 = scmp.ne.s32.totalorder %s603, %s604
      %p613 = scmp.eq.s32.totalorder %s121, 0
      %p614 = por %p612, %p613
      %p615 = scmp.ne.s32.totalorder %s603, %s604
      %p616 = scmp.eq.s32.totalorder %s122, 1
      %p617 = por %p615, %p616
      %p619 = scmp.ne.s32.totalorder %s604, %s618
      %p620 = scmp.eq.s32.totalorder %s122, 0
      %p621 = por %p619, %p620
      %s623 = sadd.s32 %s622, 1
      %p626 = scmp.eq.s32.totalorder %s116, 1
      %p627 = scmp.ne.s32.totalorder %s622, %s624
      %p628 = scmp.eq.s32.totalorder %s116, 0
      %p629 = por %p627, %p628
      %p630 = scmp.ne.s32.totalorder %s622, %s624
      %p631 = scmp.eq.s32.totalorder %s121, 1
      %p632 = por %p630, %p631
      %p633 = scmp.ne.s32.totalorder %s624, %s625
      %p634 = scmp.eq.s32.totalorder %s121, 0
      %p635 = por %p633, %p634
      %p636 = scmp.ne.s32.totalorder %s624, %s625
      %p637 = scmp.eq.s32.totalorder %s122, 1
      %p638 = por %p636, %p637
      %p640 = scmp.ne.s32.totalorder %s625, %s639
      %p641 = scmp.eq.s32.totalorder %s122, 0
      %p642 = por %p640, %p641
      %s644 = sadd.s32 %s643, 1
      %p647 = scmp.eq.s32.totalorder %s116, 1
      %p648 = scmp.ne.s32.totalorder %s643, %s645
      %p649 = scmp.eq.s32.totalorder %s116, 0
      %p650 = por %p648, %p649
      %p651 = scmp.ne.s32.totalorder %s643, %s645
      %p652 = scmp.eq.s32.totalorder %s121, 1
      %p653 = por %p651, %p652
      %p654 = scmp.ne.s32.totalorder %s645, %s646
      %p655 = scmp.eq.s32.totalorder %s121, 0
      %p656 = por %p654, %p655
      %p657 = scmp.ne.s32.totalorder %s645, %s646
      %p658 = scmp.eq.s32.totalorder %s122, 1
      %p659 = por %p657, %p658
      %p661 = scmp.ne.s32.totalorder %s646, %s660
      %p662 = scmp.eq.s32.totalorder %s122, 0
      %p663 = por %p661, %p662
      %s665 = sadd.s32 %s664, 1
      %p668 = scmp.eq.s32.totalorder %s116, 1
      %p669 = scmp.ne.s32.totalorder %s664, %s666
      %p670 = scmp.eq.s32.totalorder %s116, 0
      %p671 = por %p669, %p670
      %p672 = scmp.ne.s32.totalorder %s664, %s666
      %p673 = scmp.eq.s32.totalorder %s121, 1
      %p674 = por %p672, %p673
      %p675 = scmp.ne.s32.totalorder %s666, %s667
      %p676 = scmp.eq.s32.totalorder %s121, 0
      %p677 = por %p675, %p676
      %p678 = scmp.ne.s32.totalorder %s666, %s667
      %p679 = scmp.eq.s32.totalorder %s122, 1
      %p680 = por %p678, %p679
      %p682 = scmp.ne.s32.totalorder %s667, %s681
      %p683 = scmp.eq.s32.totalorder %s122, 0
      %p684 = por %p682, %p683
      %s686 = sadd.s32 %s685, 1
      %p689 = scmp.eq.s32.totalorder %s116, 1
      %p690 = scmp.ne.s32.totalorder %s685, %s687
      %p691 = scmp.eq.s32.totalorder %s116, 0
      %p692 = por %p690, %p691
      %p693 = scmp.ne.s32.totalorder %s685, %s687
      %p694 = scmp.eq.s32.totalorder %s121, 1
      %p695 = por %p693, %p694
      %p696 = scmp.ne.s32.totalorder %s687, %s688
      %p697 = scmp.eq.s32.totalorder %s121, 0
      %p698 = por %p696, %p697
      %p699 = scmp.ne.s32.totalorder %s687, %s688
      %p700 = scmp.eq.s32.totalorder %s122, 1
      %p701 = por %p699, %p700
      %p703 = scmp.ne.s32.totalorder %s688, %s702
      %p704 = scmp.eq.s32.totalorder %s122, 0
      %p705 = por %p703, %p704
      %s707 = sadd.s32 %s706, 1
      %p710 = scmp.eq.s32.totalorder %s116, 1
      %p711 = scmp.ne.s32.totalorder %s706, %s708
      %p712 = scmp.eq.s32.totalorder %s116, 0
      %p713 = por %p711, %p712
      %p714 = scmp.ne.s32.totalorder %s706, %s708
      %p715 = scmp.eq.s32.totalorder %s121, 1
      %p716 = por %p714, %p715
      %p717 = scmp.ne.s32.totalorder %s708, %s709
      %p718 = scmp.eq.s32.totalorder %s121, 0
      %p719 = por %p717, %p718
      %p720 = scmp.ne.s32.totalorder %s708, %s709
      %p721 = scmp.eq.s32.totalorder %s122, 1
      %p722 = por %p720, %p721
      %p724 = scmp.ne.s32.totalorder %s709, %s723
      %p725 = scmp.eq.s32.totalorder %s122, 0
      %p726 = por %p724, %p725
      %s728 = sadd.s32 %s727, 1
      %p731 = scmp.eq.s32.totalorder %s116, 1
      %p732 = scmp.ne.s32.totalorder %s727, %s729
      %p733 = scmp.eq.s32.totalorder %s116, 0
      %p734 = por %p732, %p733
      %p735 = scmp.ne.s32.totalorder %s727, %s729
      %p736 = scmp.eq.s32.totalorder %s121, 1
      %p737 = por %p735, %p736
      %p738 = scmp.ne.s32.totalorder %s729, %s730
      %p739 = scmp.eq.s32.totalorder %s121, 0
      %p740 = por %p738, %p739
      %p741 = scmp.ne.s32.totalorder %s729, %s730
      %p742 = scmp.eq.s32.totalorder %s122, 1
      %p743 = por %p741, %p742
      %p745 = scmp.ne.s32.totalorder %s730, %s744
      %p746 = scmp.eq.s32.totalorder %s122, 0
      %p747 = por %p745, %p746
      %s749 = sadd.s32 %s748, 1
      %p752 = scmp.eq.s32.totalorder %s116, 1
      %p753 = scmp.ne.s32.totalorder %s748, %s750
      %p754 = scmp.eq.s32.totalorder %s116, 0
      %p755 = por %p753, %p754
      %p756 = scmp.ne.s32.totalorder %s748, %s750
      %p757 = scmp.eq.s32.totalorder %s121, 1
      %p758 = por %p756, %p757
      %p759 = scmp.ne.s32.totalorder %s750, %s751
      %p760 = scmp.eq.s32.totalorder %s121, 0
      %p761 = por %p759, %p760
      %p762 = scmp.ne.s32.totalorder %s750, %s751
      %p763 = scmp.eq.s32.totalorder %s122, 1
      %p764 = por %p762, %p763
      %p766 = scmp.ne.s32.totalorder %s751, %s765
      %p767 = scmp.eq.s32.totalorder %s122, 0
      %p768 = por %p766, %p767
      %s770 = sadd.s32 %s769, 1
      %p773 = scmp.eq.s32.totalorder %s116, 1
      %p774 = scmp.ne.s32.totalorder %s769, %s771
      %p775 = scmp.eq.s32.totalorder %s116, 0
      %p776 = por %p774, %p775
      %p777 = scmp.ne.s32.totalorder %s769, %s771
      %p778 = scmp.eq.s32.totalorder %s121, 1
      %p779 = por %p777, %p778
      %p780 = scmp.ne.s32.totalorder %s771, %s772
      %p781 = scmp.eq.s32.totalorder %s121, 0
      %p782 = por %p780, %p781
      %p783 = scmp.ne.s32.totalorder %s771, %s772
      %p784 = scmp.eq.s32.totalorder %s122, 1
      %p785 = por %p783, %p784
      %p787 = scmp.ne.s32.totalorder %s772, %s786
      %p788 = scmp.eq.s32.totalorder %s122, 0
      %p789 = por %p787, %p788
      %s791 = sadd.s32 %s790, 1
      %p794 = scmp.eq.s32.totalorder %s116, 1
      %p795 = scmp.ne.s32.totalorder %s790, %s792
      %p796 = scmp.eq.s32.totalorder %s116, 0
      %p797 = por %p795, %p796
      %p798 = scmp.ne.s32.totalorder %s790, %s792
      %p799 = scmp.eq.s32.totalorder %s121, 1
      %p800 = por %p798, %p799
      %p801 = scmp.ne.s32.totalorder %s792, %s793
      %p802 = scmp.eq.s32.totalorder %s121, 0
      %p803 = por %p801, %p802
      %p804 = scmp.ne.s32.totalorder %s792, %s793
      %p805 = scmp.eq.s32.totalorder %s122, 1
      %p806 = por %p804, %p805
      %p808 = scmp.ne.s32.totalorder %s793, %s807
      %p809 = scmp.eq.s32.totalorder %s122, 0
      %p810 = por %p808, %p809
      %s812 = sadd.s32 %s811, 1
      %p815 = scmp.eq.s32.totalorder %s116, 1
      %p816 = scmp.ne.s32.totalorder %s811, %s813
      %p817 = scmp.eq.s32.totalorder %s116, 0
      %p818 = por %p816, %p817
      %p819 = scmp.ne.s32.totalorder %s811, %s813
      %p820 = scmp.eq.s32.totalorder %s121, 1
      %p821 = por %p819, %p820
      %p822 = scmp.ne.s32.totalorder %s813, %s814
      %p823 = scmp.eq.s32.totalorder %s121, 0
      %p824 = por %p822, %p823
      %p825 = scmp.ne.s32.totalorder %s813, %s814
      %p826 = scmp.eq.s32.totalorder %s122, 1
      %p827 = por %p825, %p826
      %p829 = scmp.ne.s32.totalorder %s814, %s828
      %p830 = scmp.eq.s32.totalorder %s122, 0
      %p831 = por %p829, %p830
      %s833 = sadd.s32 %s832, 1
      %p836 = scmp.eq.s32.totalorder %s116, 1
      %p837 = scmp.ne.s32.totalorder %s832, %s834
      %p838 = scmp.eq.s32.totalorder %s116, 0
      %p839 = por %p837, %p838
      %p840 = scmp.ne.s32.totalorder %s832, %s834
      %p841 = scmp.eq.s32.totalorder %s121, 1
      %p842 = por %p840, %p841
      %p843 = scmp.ne.s32.totalorder %s834, %s835
      %p844 = scmp.eq.s32.totalorder %s121, 0
      %p845 = por %p843, %p844
      %p846 = scmp.ne.s32.totalorder %s834, %s835
      %p847 = scmp.eq.s32.totalorder %s122, 1
      %p848 = por %p846, %p847
      %p850 = scmp.ne.s32.totalorder %s835, %s849
      %p851 = scmp.eq.s32.totalorder %s122, 0
      %p852 = por %p850, %p851
      %s854 = sadd.s32 %s853, 1
      %p857 = scmp.eq.s32.totalorder %s116, 1
      %p858 = scmp.ne.s32.totalorder %s853, %s855
      %p859 = scmp.eq.s32.totalorder %s116, 0
      %p860 = por %p858, %p859
      %p861 = scmp.ne.s32.totalorder %s853, %s855
      %p862 = scmp.eq.s32.totalorder %s121, 1
      %p863 = por %p861, %p862
      %p864 = scmp.ne.s32.totalorder %s855, %s856
      %p865 = scmp.eq.s32.totalorder %s121, 0
      %p866 = por %p864, %p865
      %p867 = scmp.ne.s32.totalorder %s855, %s856
      %p868 = scmp.eq.s32.totalorder %s122, 1
      %p869 = por %p867, %p868
      %p871 = scmp.ne.s32.totalorder %s856, %s870
      %p872 = scmp.eq.s32.totalorder %s122, 0
      %p873 = por %p871, %p872
      %s875 = sadd.s32 %s874, 1
      %p878 = scmp.eq.s32.totalorder %s116, 1
      %p879 = scmp.ne.s32.totalorder %s874, %s876
      %p880 = scmp.eq.s32.totalorder %s116, 0
      %p881 = por %p879, %p880
      %p882 = scmp.ne.s32.totalorder %s874, %s876
      %p883 = scmp.eq.s32.totalorder %s121, 1
      %p884 = por %p882, %p883
      %p885 = scmp.ne.s32.totalorder %s876, %s877
      %p886 = scmp.eq.s32.totalorder %s121, 0
      %p887 = por %p885, %p886
      %p888 = scmp.ne.s32.totalorder %s876, %s877
      %p889 = scmp.eq.s32.totalorder %s122, 1
      %p890 = por %p888, %p889
      %p892 = scmp.ne.s32.totalorder %s877, %s891
      %p893 = scmp.eq.s32.totalorder %s122, 0
      %p894 = por %p892, %p893
      %s896 = sadd.s32 %s895, 1
      %p899 = scmp.eq.s32.totalorder %s116, 1
      %p900 = scmp.ne.s32.totalorder %s895, %s897
      %p901 = scmp.eq.s32.totalorder %s116, 0
      %p902 = por %p900, %p901
      %p903 = scmp.ne.s32.totalorder %s895, %s897
      %p904 = scmp.eq.s32.totalorder %s121, 1
      %p905 = por %p903, %p904
      %p906 = scmp.ne.s32.totalorder %s897, %s898
      %p907 = scmp.eq.s32.totalorder %s121, 0
      %p908 = por %p906, %p907
      %p909 = scmp.ne.s32.totalorder %s897, %s898
      %p910 = scmp.eq.s32.totalorder %s122, 1
      %p911 = por %p909, %p910
      %p913 = scmp.ne.s32.totalorder %s898, %s912
      %p914 = scmp.eq.s32.totalorder %s122, 0
      %p915 = por %p913, %p914
      %s917 = sadd.s32 %s916, 1
      %p920 = scmp.eq.s32.totalorder %s116, 1
      %p921 = scmp.ne.s32.totalorder %s916, %s918
      %p922 = scmp.eq.s32.totalorder %s116, 0
      %p923 = por %p921, %p922
      %p924 = scmp.ne.s32.totalorder %s916, %s918
      %p925 = scmp.eq.s32.totalorder %s121, 1
      %p926 = por %p924, %p925
      %p927 = scmp.ne.s32.totalorder %s918, %s919
      %p928 = scmp.eq.s32.totalorder %s121, 0
      %p929 = por %p927, %p928
      %p930 = scmp.ne.s32.totalorder %s918, %s919
      %p931 = scmp.eq.s32.totalorder %s122, 1
      %p932 = por %p930, %p931
      %p934 = scmp.ne.s32.totalorder %s919, %s933
      %p935 = scmp.eq.s32.totalorder %s122, 0
      %p936 = por %p934, %p935
      %s938 = sadd.s32 %s937, 1
      %p941 = scmp.eq.s32.totalorder %s116, 1
      %p942 = scmp.ne.s32.totalorder %s937, %s939
      %p943 = scmp.eq.s32.totalorder %s116, 0
      %p944 = por %p942, %p943
      %p945 = scmp.ne.s32.totalorder %s937, %s939
      %p946 = scmp.eq.s32.totalorder %s121, 1
      %p947 = por %p945, %p946
      %p948 = scmp.ne.s32.totalorder %s939, %s940
      %p949 = scmp.eq.s32.totalorder %s121, 0
      %p950 = por %p948, %p949
      %p951 = scmp.ne.s32.totalorder %s939, %s940
      %p952 = scmp.eq.s32.totalorder %s122, 1
      %p953 = por %p951, %p952
      %p955 = scmp.ne.s32.totalorder %s940, %s954
      %p956 = scmp.eq.s32.totalorder %s122, 0
      %p957 = por %p955, %p956
      %s959 = sadd.s32 %s958, 1
      %p962 = scmp.eq.s32.totalorder %s116, 1
      %p963 = scmp.ne.s32.totalorder %s958, %s960
      %p964 = scmp.eq.s32.totalorder %s116, 0
      %p965 = por %p963, %p964
      %p966 = scmp.ne.s32.totalorder %s958, %s960
      %p967 = scmp.eq.s32.totalorder %s121, 1
      %p968 = por %p966, %p967
      %p969 = scmp.ne.s32.totalorder %s960, %s961
      %p970 = scmp.eq.s32.totalorder %s121, 0
      %p971 = por %p969, %p970
      %p972 = scmp.ne.s32.totalorder %s960, %s961
      %p973 = scmp.eq.s32.totalorder %s122, 1
      %p974 = por %p972, %p973
      %p976 = scmp.ne.s32.totalorder %s961, %s975
      %p977 = scmp.eq.s32.totalorder %s122, 0
      %p978 = por %p976, %p977
      %s980 = sadd.s32 %s979, 1
      %p983 = scmp.eq.s32.totalorder %s116, 1
      %p984 = scmp.ne.s32.totalorder %s979, %s981
      %p985 = scmp.eq.s32.totalorder %s116, 0
      %p986 = por %p984, %p985
      %p987 = scmp.ne.s32.totalorder %s979, %s981
      %p988 = scmp.eq.s32.totalorder %s121, 1
      %p989 = por %p987, %p988
      %p990 = scmp.ne.s32.totalorder %s981, %s982
      %p991 = scmp.eq.s32.totalorder %s121, 0
      %p992 = por %p990, %p991
      %p993 = scmp.ne.s32.totalorder %s981, %s982
      %p994 = scmp.eq.s32.totalorder %s122, 1
      %p995 = por %p993, %p994
      %p997 = scmp.ne.s32.totalorder %s982, %s996
      %p998 = scmp.eq.s32.totalorder %s122, 0
      %p999 = por %p997, %p998
      %s1001 = sadd.s32 %s1000, 1
      %p1004 = scmp.eq.s32.totalorder %s116, 1
      %p1005 = scmp.ne.s32.totalorder %s1000, %s1002
      %p1006 = scmp.eq.s32.totalorder %s116, 0
      %p1007 = por %p1005, %p1006
      %p1008 = scmp.ne.s32.totalorder %s1000, %s1002
      %p1009 = scmp.eq.s32.totalorder %s121, 1
      %p1010 = por %p1008, %p1009
      %p1011 = scmp.ne.s32.totalorder %s1002, %s1003
      %p1012 = scmp.eq.s32.totalorder %s121, 0
      %p1013 = por %p1011, %p1012
      %p1014 = scmp.ne.s32.totalorder %s1002, %s1003
      %p1015 = scmp.eq.s32.totalorder %s122, 1
      %p1016 = por %p1014, %p1015
      %p1018 = scmp.ne.s32.totalorder %s1003, %s1017
      %p1019 = scmp.eq.s32.totalorder %s122, 0
      %p1020 = por %p1018, %p1019
      %s1022 = sadd.s32 %s1021, 1
      %p1025 = scmp.eq.s32.totalorder %s116, 1
      %p1026 = scmp.ne.s32.totalorder %s1021, %s1023
      %p1027 = scmp.eq.s32.totalorder %s116, 0
      %p1028 = por %p1026, %p1027
      %p1029 = scmp.ne.s32.totalorder %s1021, %s1023
      %p1030 = scmp.eq.s32.totalorder %s121, 1
      %p1031 = por %p1029, %p1030
      %p1032 = scmp.ne.s32.totalorder %s1023, %s1024
      %p1033 = scmp.eq.s32.totalorder %s121, 0
      %p1034 = por %p1032, %p1033
      %p1035 = scmp.ne.s32.totalorder %s1023, %s1024
      %p1036 = scmp.eq.s32.totalorder %s122, 1
      %p1037 = por %p1035, %p1036
      %p1039 = scmp.ne.s32.totalorder %s1024, %s1038
      %p1040 = scmp.eq.s32.totalorder %s122, 0
      %p1041 = por %p1039, %p1040
      %s1043 = sadd.s32 %s1042, 1
      %p1046 = scmp.eq.s32.totalorder %s116, 1
      %p1047 = scmp.ne.s32.totalorder %s1042, %s1044
      %p1048 = scmp.eq.s32.totalorder %s116, 0
      %p1049 = por %p1047, %p1048
      %p1050 = scmp.ne.s32.totalorder %s1042, %s1044
      %p1051 = scmp.eq.s32.totalorder %s121, 1
      %p1052 = por %p1050, %p1051
      %p1053 = scmp.ne.s32.totalorder %s1044, %s1045
      %p1054 = scmp.eq.s32.totalorder %s121, 0
      %p1055 = por %p1053, %p1054
      %p1056 = scmp.ne.s32.totalorder %s1044, %s1045
      %p1057 = scmp.eq.s32.totalorder %s122, 1
      %p1058 = por %p1056, %p1057
      %p1060 = scmp.ne.s32.totalorder %s1045, %s1059
      %p1061 = scmp.eq.s32.totalorder %s122, 0
      %p1062 = por %p1060, %p1061
      %s1064 = sadd.s32 %s1063, 1
      %p1067 = scmp.eq.s32.totalorder %s116, 1
      %p1068 = scmp.ne.s32.totalorder %s1063, %s1065
      %p1069 = scmp.eq.s32.totalorder %s116, 0
      %p1070 = por %p1068, %p1069
      %p1071 = scmp.ne.s32.totalorder %s1063, %s1065
      %p1072 = scmp.eq.s32.totalorder %s121, 1
      %p1073 = por %p1071, %p1072
      %p1074 = scmp.ne.s32.totalorder %s1065, %s1066
      %p1075 = scmp.eq.s32.totalorder %s121, 0
      %p1076 = por %p1074, %p1075
      %p1077 = scmp.ne.s32.totalorder %s1065, %s1066
      %p1078 = scmp.eq.s32.totalorder %s122, 1
      %p1079 = por %p1077, %p1078
      %p1081 = scmp.ne.s32.totalorder %s1066, %s1080
      %p1082 = scmp.eq.s32.totalorder %s122, 0
      %p1083 = por %p1081, %p1082
      %s1085 = sadd.s32 %s1084, 1
      %p1088 = scmp.eq.s32.totalorder %s116, 1
      %p1089 = scmp.ne.s32.totalorder %s1084, %s1086
      %p1090 = scmp.eq.s32.totalorder %s116, 0
      %p1091 = por %p1089, %p1090
      %p1092 = scmp.ne.s32.totalorder %s1084, %s1086
      %p1093 = scmp.eq.s32.totalorder %s121, 1
      %p1094 = por %p1092, %p1093
      %p1095 = scmp.ne.s32.totalorder %s1086, %s1087
      %p1096 = scmp.eq.s32.totalorder %s121, 0
      %p1097 = por %p1095, %p1096
      %p1098 = scmp.ne.s32.totalorder %s1086, %s1087
      %p1099 = scmp.eq.s32.totalorder %s122, 1
      %p1100 = por %p1098, %p1099
      %p1102 = scmp.ne.s32.totalorder %s1087, %s1101
      %p1103 = scmp.eq.s32.totalorder %s122, 0
      %p1104 = por %p1102, %p1103
      %s1106 = sadd.s32 %s1105, 1
      %p1109 = scmp.eq.s32.totalorder %s116, 1
      %p1110 = scmp.ne.s32.totalorder %s1105, %s1107
      %p1111 = scmp.eq.s32.totalorder %s116, 0
      %p1112 = por %p1110, %p1111
      %p1113 = scmp.ne.s32.totalorder %s1105, %s1107
      %p1114 = scmp.eq.s32.totalorder %s121, 1
      %p1115 = por %p1113, %p1114
      %p1116 = scmp.ne.s32.totalorder %s1107, %s1108
      %p1117 = scmp.eq.s32.totalorder %s121, 0
      %p1118 = por %p1116, %p1117
      %p1119 = scmp.ne.s32.totalorder %s1107, %s1108
      %p1120 = scmp.eq.s32.totalorder %s122, 1
      %p1121 = por %p1119, %p1120
      %p1123 = scmp.ne.s32.totalorder %s1108, %s1122
      %p1124 = scmp.eq.s32.totalorder %s122, 0
      %p1125 = por %p1123, %p1124
      %s1127 = sadd.s32 %s1126, 1
      %p1130 = scmp.eq.s32.totalorder %s116, 1
      %p1131 = scmp.ne.s32.totalorder %s1126, %s1128
      %p1132 = scmp.eq.s32.totalorder %s116, 0
      %p1133 = por %p1131, %p1132
      %p1134 = scmp.ne.s32.totalorder %s1126, %s1128
      %p1135 = scmp.eq.s32.totalorder %s121, 1
      %p1136 = por %p1134, %p1135
      %p1137 = scmp.ne.s32.totalorder %s1128, %s1129
      %p1138 = scmp.eq.s32.totalorder %s121, 0
      %p1139 = por %p1137, %p1138
      %p1140 = scmp.ne.s32.totalorder %s1128, %s1129
      %p1141 = scmp.eq.s32.totalorder %s122, 1
      %p1142 = por %p1140, %p1141
      %p1144 = scmp.ne.s32.totalorder %s1129, %s1143
      %p1145 = scmp.eq.s32.totalorder %s122, 0
      %p1146 = por %p1144, %p1145
      %s1148 = sadd.s32 %s1147, 1
      %p1151 = scmp.eq.s32.totalorder %s116, 1
      %p1152 = scmp.ne.s32.totalorder %s1147, %s1149
      %p1153 = scmp.eq.s32.totalorder %s116, 0
      %p1154 = por %p1152, %p1153
      %p1155 = scmp.ne.s32.totalorder %s1147, %s1149
      %p1156 = scmp.eq.s32.totalorder %s121, 1
      %p1157 = por %p1155, %p1156
      %p1158 = scmp.ne.s32.totalorder %s1149, %s1150
      %p1159 = scmp.eq.s32.totalorder %s121, 0
      %p1160 = por %p1158, %p1159
      %p1161 = scmp.ne.s32.totalorder %s1149, %s1150
      %p1162 = scmp.eq.s32.totalorder %s122, 1
      %p1163 = por %p1161, %p1162
      %p1165 = scmp.ne.s32.totalorder %s1150, %s1164
      %p1166 = scmp.eq.s32.totalorder %s122, 0
      %p1167 = por %p1165, %p1166
      %s1169 = sadd.s32 %s1168, 1
      %p1172 = scmp.eq.s32.totalorder %s116, 1
      %p1173 = scmp.ne.s32.totalorder %s1168, %s1170
      %p1174 = scmp.eq.s32.totalorder %s116, 0
      %p1175 = por %p1173, %p1174
      %p1176 = scmp.ne.s32.totalorder %s1168, %s1170
      %p1177 = scmp.eq.s32.totalorder %s121, 1
      %p1178 = por %p1176, %p1177
      %p1179 = scmp.ne.s32.totalorder %s1170, %s1171
      %p1180 = scmp.eq.s32.totalorder %s121, 0
      %p1181 = por %p1179, %p1180
      %p1182 = scmp.ne.s32.totalorder %s1170, %s1171
      %p1183 = scmp.eq.s32.totalorder %s122, 1
      %p1184 = por %p1182, %p1183
      %p1186 = scmp.ne.s32.totalorder %s1171, %s1185
      %p1187 = scmp.eq.s32.totalorder %s122, 0
      %p1188 = por %p1186, %p1187
      %s1190 = sadd.s32 %s1189, 1
      %p1193 = scmp.eq.s32.totalorder %s116, 1
      %p1194 = scmp.ne.s32.totalorder %s1189, %s1191
      %p1195 = scmp.eq.s32.totalorder %s116, 0
      %p1196 = por %p1194, %p1195
      %p1197 = scmp.ne.s32.totalorder %s1189, %s1191
      %p1198 = scmp.eq.s32.totalorder %s121, 1
      %p1199 = por %p1197, %p1198
      %p1200 = scmp.ne.s32.totalorder %s1191, %s1192
      %p1201 = scmp.eq.s32.totalorder %s121, 0
      %p1202 = por %p1200, %p1201
      %p1203 = scmp.ne.s32.totalorder %s1191, %s1192
      %p1204 = scmp.eq.s32.totalorder %s122, 1
      %p1205 = por %p1203, %p1204
      %p1207 = scmp.ne.s32.totalorder %s1192, %s1206
      %p1208 = scmp.eq.s32.totalorder %s122, 0
      %p1209 = por %p1207, %p1208
      %s1210 = ssub.s32 %s116, %s123
      %p1211 = scmp.eq.s32.totalorder %s1210, 0
      %s1213 = sadd.s32 %s1212, 1
      %s1214 = scalar_select %p1211, %s1212, %s1213
      %p1217 = pneg %p1211
      %p1218 = scmp.eq.s32.totalorder %s116, 1
      %p1219 = por %p1217, %p1218
      %p1220 = scmp.ne.s32.totalorder %s1212, %s1215
      %p1221 = scmp.eq.s32.totalorder %s116, 0
      %p1222 = por %p1220, %p1221
      %p1223 = scmp.ne.s32.totalorder %s1212, %s1215
      %p1224 = scmp.eq.s32.totalorder %s121, 1
      %p1225 = por %p1223, %p1224
      %p1226 = scmp.ne.s32.totalorder %s1215, %s1216
      %p1227 = scmp.eq.s32.totalorder %s121, 0
      %p1228 = por %p1226, %p1227
      %p1229 = scmp.ne.s32.totalorder %s1215, %s1216
      %p1230 = scmp.eq.s32.totalorder %s122, 1
      %p1231 = por %p1229, %p1230
      %p1233 = scmp.ne.s32.totalorder %s1216, %s1232
      %p1234 = scmp.eq.s32.totalorder %s122, 0
      %p1235 = por %p1233, %p1234
      %s1236 = ssub.s32 %s116, %s123
      %p1237 = scmp.eq.s32.totalorder %s1236, 0
      %s1239 = sadd.s32 %s1238, 1
      %s1240 = scalar_select %p1237, %s1238, %s1239
      %p1243 = pneg %p1237
      %p1244 = scmp.eq.s32.totalorder %s116, 1
      %p1245 = por %p1243, %p1244
      %p1246 = scmp.ne.s32.totalorder %s1238, %s1241
      %p1247 = scmp.eq.s32.totalorder %s116, 0
      %p1248 = por %p1246, %p1247
      %p1249 = scmp.ne.s32.totalorder %s1238, %s1241
      %p1250 = scmp.eq.s32.totalorder %s121, 1
      %p1251 = por %p1249, %p1250
      %p1252 = scmp.ne.s32.totalorder %s1241, %s1242
      %p1253 = scmp.eq.s32.totalorder %s121, 0
      %p1254 = por %p1252, %p1253
      %p1255 = scmp.ne.s32.totalorder %s1241, %s1242
      %p1256 = scmp.eq.s32.totalorder %s122, 1
      %p1257 = por %p1255, %p1256
      %p1259 = scmp.ne.s32.totalorder %s1242, %s1258
      %p1260 = scmp.eq.s32.totalorder %s122, 0
      %p1261 = por %p1259, %p1260
      %p1262 = scmp.le.s32.totalorder 1, %s116
      %p1263 = scmp.lt.s32.totalorder %s116, 3
      %p1264 = pnand %p1262, %p1263
      %p1265 = pneg %p1264
      // Predicated region
      $region9: #{forecast_denoising_forward.1} parent=5 // pred_check
        _
      $region10: #{forecast_denoising_forward.1} parent=5 // pred_check_branch
        %1267 = sbr.rel (%p1264) target = $region12
      $region11: #{forecast_denoising_forward.1} parent=5 // pred_region
        %s1268 = ssub.s32 %s116, 1
        // Predicated region
        $region13: #{forecast_denoising_forward.1} parent=11 // pred_check
          %p1269 = pneg %p215
        $region14: #{forecast_denoising_forward.1} parent=11 // pred_check_branch
          %1271 = sbr.rel (%p1269) target = $region16
        $region15: #{forecast_denoising_forward.1} parent=11 // pred_region
          _
        $region16: #{forecast_denoising_forward.1} parent=11 // pred_fallthru
          _
        // Predicated region
        $region17: #{forecast_denoising_forward.1} parent=11 // pred_check
          %p1272 = pneg %p236
        $region18: #{forecast_denoising_forward.1} parent=11 // pred_check_branch
          %1274 = sbr.rel (%p1272) target = $region20
        $region19: #{forecast_denoising_forward.1} parent=11 // pred_region
          _
        $region20: #{forecast_denoising_forward.1} parent=11 // pred_fallthru
          _
        // Predicated region
        $region21: #{forecast_denoising_forward.1} parent=11 // pred_check
          %p1275 = pneg %p257
        $region22: #{forecast_denoising_forward.1} parent=11 // pred_check_branch
          %1277 = sbr.rel (%p1275) target = $region24
        $region23: #{forecast_denoising_forward.1} parent=11 // pred_region
          _
        $region24: #{forecast_denoising_forward.1} parent=11 // pred_fallthru
          _
        // Predicated region
        $region25: #{forecast_denoising_forward.1} parent=11 // pred_check
          %p1278 = pneg %p278
        $region26: #{forecast_denoising_forward.1} parent=11 // pred_check_branch
          %1280 = sbr.rel (%p1278) target = $region28
        $region27: #{forecast_denoising_forward.1} parent=11 // pred_region
          _
        $region28: #{forecast_denoising_forward.1} parent=11 // pred_fallthru
          _
        // Predicated region
        $region29: #{forecast_denoising_forward.1} parent=11 // pred_check
          %p1281 = pneg %p299
        $region30: #{forecast_denoising_forward.1} parent=11 // pred_check_branch
          %1283 = sbr.rel (%p1281) target = $region32
        $region31: #{forecast_denoising_forward.1} parent=11 // pred_region
          _
        $region32: #{forecast_denoising_forward.1} parent=11 // pred_fallthru
          _
        // Predicated region
        $region33: #{forecast_denoising_forward.1} parent=11 // pred_check
          %p1284 = pneg %p320
        $region34: #{forecast_denoising_forward.1} parent=11 // pred_check_branch
          %1286 = sbr.rel (%p1284) target = $region36
        $region35: #{forecast_denoising_forward.1} parent=11 // pred_region
          _
        $region36: #{forecast_denoising_forward.1} parent=11 // pred_fallthru
          _
        // Predicated region
        $region37: #{forecast_denoising_forward.1} parent=11 // pred_check
          %p1287 = pneg %p341
        $region38: #{forecast_denoising_forward.1} parent=11 // pred_check_branch
          %1289 = sbr.rel (%p1287) target = $region40
        $region39: #{forecast_denoising_forward.1} parent=11 // pred_region
          _
        $region40: #{forecast_denoising_forward.1} parent=11 // pred_fallthru
          _
        // Predicated region
        $region41: #{forecast_denoising_forward.1} parent=11 // pred_check
          %p1290 = pneg %p362
        $region42: #{forecast_denoising_forward.1} parent=11 // pred_check_branch
          %1292 = sbr.rel (%p1290) target = $region44
        $region43: #{forecast_denoising_forward.1} parent=11 // pred_region
          _
        $region44: #{forecast_denoising_forward.1} parent=11 // pred_fallthru
          _
        // Predicated region
        $region45: #{forecast_denoising_forward.1} parent=11 // pred_check
          %p1293 = pneg %p383
        $region46: #{forecast_denoising_forward.1} parent=11 // pred_check_branch
          %1295 = sbr.rel (%p1293) target = $region48
        $region47: #{forecast_denoising_forward.1} parent=11 // pred_region
          _
        $region48: #{forecast_denoising_forward.1} parent=11 // pred_fallthru
          _
        // Predicated region
        $region49: #{forecast_denoising_forward.1} parent=11 // pred_check
          %p1296 = pneg %p404
        $region50: #{forecast_denoising_forward.1} parent=11 // pred_check_branch
          %1298 = sbr.rel (%p1296) target = $region52
        $region51: #{forecast_denoising_forward.1} parent=11 // pred_region
          _
        $region52: #{forecast_denoising_forward.1} parent=11 // pred_fallthru
          _
        // Predicated region
        $region53: #{forecast_denoising_forward.1} parent=11 // pred_check
          %p1299 = pneg %p425
        $region54: #{forecast_denoising_forward.1} parent=11 // pred_check_branch
          %1301 = sbr.rel (%p1299) target = $region56
        $region55: #{forecast_denoising_forward.1} parent=11 // pred_region
          _
        $region56: #{forecast_denoising_forward.1} parent=11 // pred_fallthru
          _
        // Predicated region
        $region57: #{forecast_denoising_forward.1} parent=11 // pred_check
          %p1302 = pneg %p446
        $region58: #{forecast_denoising_forward.1} parent=11 // pred_check_branch
          %1304 = sbr.rel (%p1302) target = $region60
        $region59: #{forecast_denoising_forward.1} parent=11 // pred_region
          _
        $region60: #{forecast_denoising_forward.1} parent=11 // pred_fallthru
          _
        // Predicated region
        $region61: #{forecast_denoising_forward.1} parent=11 // pred_check
          %p1305 = pneg %p467
        $region62: #{forecast_denoising_forward.1} parent=11 // pred_check_branch
          %1307 = sbr.rel (%p1305) target = $region64
        $region63: #{forecast_denoising_forward.1} parent=11 // pred_region
          _
        $region64: #{forecast_denoising_forward.1} parent=11 // pred_fallthru
          _
        // Predicated region
        $region65: #{forecast_denoising_forward.1} parent=11 // pred_check
          %p1308 = pneg %p488
        $region66: #{forecast_denoising_forward.1} parent=11 // pred_check_branch
          %1310 = sbr.rel (%p1308) target = $region68
        $region67: #{forecast_denoising_forward.1} parent=11 // pred_region
          _
        $region68: #{forecast_denoising_forward.1} parent=11 // pred_fallthru
          _
        // Predicated region
        $region69: #{forecast_denoising_forward.1} parent=11 // pred_check
          %p1311 = pneg %p509
        $region70: #{forecast_denoising_forward.1} parent=11 // pred_check_branch
          %1313 = sbr.rel (%p1311) target = $region72
        $region71: #{forecast_denoising_forward.1} parent=11 // pred_region
          _
        $region72: #{forecast_denoising_forward.1} parent=11 // pred_fallthru
          _
        // Predicated region
        $region73: #{forecast_denoising_forward.1} parent=11 // pred_check
          %p1314 = pneg %p530
        $region74: #{forecast_denoising_forward.1} parent=11 // pred_check_branch
          %1316 = sbr.rel (%p1314) target = $region76
        $region75: #{forecast_denoising_forward.1} parent=11 // pred_region
          _
        $region76: #{forecast_denoising_forward.1} parent=11 // pred_fallthru
          _
        // Predicated region
        $region77: #{forecast_denoising_forward.1} parent=11 // pred_check
          %p1317 = pneg %p551
        $region78: #{forecast_denoising_forward.1} parent=11 // pred_check_branch
          %1319 = sbr.rel (%p1317) target = $region80
        $region79: #{forecast_denoising_forward.1} parent=11 // pred_region
          _
        $region80: #{forecast_denoising_forward.1} parent=11 // pred_fallthru
          _
        // Predicated region
        $region81: #{forecast_denoising_forward.1} parent=11 // pred_check
          %p1320 = pneg %p572
        $region82: #{forecast_denoising_forward.1} parent=11 // pred_check_branch
          %1322 = sbr.rel (%p1320) target = $region84
        $region83: #{forecast_denoising_forward.1} parent=11 // pred_region
          _
        $region84: #{forecast_denoising_forward.1} parent=11 // pred_fallthru
          _
        // Predicated region
        $region85: #{forecast_denoising_forward.1} parent=11 // pred_check
          %p1323 = pneg %p593
        $region86: #{forecast_denoising_forward.1} parent=11 // pred_check_branch
          %1325 = sbr.rel (%p1323) target = $region88
        $region87: #{forecast_denoising_forward.1} parent=11 // pred_region
          _
        $region88: #{forecast_denoising_forward.1} parent=11 // pred_fallthru
          _
        // Predicated region
        $region89: #{forecast_denoising_forward.1} parent=11 // pred_check
          %p1326 = pneg %p614
        $region90: #{forecast_denoising_forward.1} parent=11 // pred_check_branch
          %1328 = sbr.rel (%p1326) target = $region92
        $region91: #{forecast_denoising_forward.1} parent=11 // pred_region
          _
        $region92: #{forecast_denoising_forward.1} parent=11 // pred_fallthru
          _
        // Predicated region
        $region93: #{forecast_denoising_forward.1} parent=11 // pred_check
          %p1329 = pneg %p635
        $region94: #{forecast_denoising_forward.1} parent=11 // pred_check_branch
          %1331 = sbr.rel (%p1329) target = $region96
        $region95: #{forecast_denoising_forward.1} parent=11 // pred_region
          _
        $region96: #{forecast_denoising_forward.1} parent=11 // pred_fallthru
          _
        // Predicated region
        $region97: #{forecast_denoising_forward.1} parent=11 // pred_check
          %p1332 = pneg %p656
        $region98: #{forecast_denoising_forward.1} parent=11 // pred_check_branch
          %1334 = sbr.rel (%p1332) target = $region100
        $region99: #{forecast_denoising_forward.1} parent=11 // pred_region
          _
        $region100: #{forecast_denoising_forward.1} parent=11 // pred_fallthru
          _
        // Predicated region
        $region101: #{forecast_denoising_forward.1} parent=11 // pred_check
          %p1335 = pneg %p677
        $region102: #{forecast_denoising_forward.1} parent=11 // pred_check_branch
          %1337 = sbr.rel (%p1335) target = $region104
        $region103: #{forecast_denoising_forward.1} parent=11 // pred_region
          _
        $region104: #{forecast_denoising_forward.1} parent=11 // pred_fallthru
          _
        // Predicated region
        $region105: #{forecast_denoising_forward.1} parent=11 // pred_check
          %p1338 = pneg %p698
        $region106: #{forecast_denoising_forward.1} parent=11 // pred_check_branch
          %1340 = sbr.rel (%p1338) target = $region108
        $region107: #{forecast_denoising_forward.1} parent=11 // pred_region
          _
        $region108: #{forecast_denoising_forward.1} parent=11 // pred_fallthru
          _
        // Predicated region
        $region109: #{forecast_denoising_forward.1} parent=11 // pred_check
          %p1341 = pneg %p719
        $region110: #{forecast_denoising_forward.1} parent=11 // pred_check_branch
          %1343 = sbr.rel (%p1341) target = $region112
        $region111: #{forecast_denoising_forward.1} parent=11 // pred_region
          _
        $region112: #{forecast_denoising_forward.1} parent=11 // pred_fallthru
          _
        // Predicated region
        $region113: #{forecast_denoising_forward.1} parent=11 // pred_check
          %p1344 = pneg %p740
        $region114: #{forecast_denoising_forward.1} parent=11 // pred_check_branch
          %1346 = sbr.rel (%p1344) target = $region116
        $region115: #{forecast_denoising_forward.1} parent=11 // pred_region
          _
        $region116: #{forecast_denoising_forward.1} parent=11 // pred_fallthru
          _
        // Predicated region
        $region117: #{forecast_denoising_forward.1} parent=11 // pred_check
          %p1347 = pneg %p761
        $region118: #{forecast_denoising_forward.1} parent=11 // pred_check_branch
          %1349 = sbr.rel (%p1347) target = $region120
        $region119: #{forecast_denoising_forward.1} parent=11 // pred_region
          _
        $region120: #{forecast_denoising_forward.1} parent=11 // pred_fallthru
          _
        // Predicated region
        $region121: #{forecast_denoising_forward.1} parent=11 // pred_check
          %p1350 = pneg %p782
        $region122: #{forecast_denoising_forward.1} parent=11 // pred_check_branch
          %1352 = sbr.rel (%p1350) target = $region124
        $region123: #{forecast_denoising_forward.1} parent=11 // pred_region
          _
        $region124: #{forecast_denoising_forward.1} parent=11 // pred_fallthru
          _
        // Predicated region
        $region125: #{forecast_denoising_forward.1} parent=11 // pred_check
          %p1353 = pneg %p803
        $region126: #{forecast_denoising_forward.1} parent=11 // pred_check_branch
          %1355 = sbr.rel (%p1353) target = $region128
        $region127: #{forecast_denoising_forward.1} parent=11 // pred_region
          _
        $region128: #{forecast_denoising_forward.1} parent=11 // pred_fallthru
          _
        // Predicated region
        $region129: #{forecast_denoising_forward.1} parent=11 // pred_check
          %p1356 = pneg %p824
        $region130: #{forecast_denoising_forward.1} parent=11 // pred_check_branch
          %1358 = sbr.rel (%p1356) target = $region132
        $region131: #{forecast_denoising_forward.1} parent=11 // pred_region
          _
        $region132: #{forecast_denoising_forward.1} parent=11 // pred_fallthru
          _
        // Predicated region
        $region133: #{forecast_denoising_forward.1} parent=11 // pred_check
          %p1359 = pneg %p845
        $region134: #{forecast_denoising_forward.1} parent=11 // pred_check_branch
          %1361 = sbr.rel (%p1359) target = $region136
        $region135: #{forecast_denoising_forward.1} parent=11 // pred_region
          _
        $region136: #{forecast_denoising_forward.1} parent=11 // pred_fallthru
          _
        // Predicated region
        $region137: #{forecast_denoising_forward.1} parent=11 // pred_check
          %p1362 = pneg %p866
        $region138: #{forecast_denoising_forward.1} parent=11 // pred_check_branch
          %1364 = sbr.rel (%p1362) target = $region140
        $region139: #{forecast_denoising_forward.1} parent=11 // pred_region
          _
        $region140: #{forecast_denoising_forward.1} parent=11 // pred_fallthru
          _
        // Predicated region
        $region141: #{forecast_denoising_forward.1} parent=11 // pred_check
          %p1365 = pneg %p887
        $region142: #{forecast_denoising_forward.1} parent=11 // pred_check_branch
          %1367 = sbr.rel (%p1365) target = $region144
        $region143: #{forecast_denoising_forward.1} parent=11 // pred_region
          _
        $region144: #{forecast_denoising_forward.1} parent=11 // pred_fallthru
          _
        // Predicated region
        $region145: #{forecast_denoising_forward.1} parent=11 // pred_check
          %p1368 = pneg %p908
        $region146: #{forecast_denoising_forward.1} parent=11 // pred_check_branch
          %1370 = sbr.rel (%p1368) target = $region148
        $region147: #{forecast_denoising_forward.1} parent=11 // pred_region
          _
        $region148: #{forecast_denoising_forward.1} parent=11 // pred_fallthru
          _
        // Predicated region
        $region149: #{forecast_denoising_forward.1} parent=11 // pred_check
          %p1371 = pneg %p929
        $region150: #{forecast_denoising_forward.1} parent=11 // pred_check_branch
          %1373 = sbr.rel (%p1371) target = $region152
        $region151: #{forecast_denoising_forward.1} parent=11 // pred_region
          _
        $region152: #{forecast_denoising_forward.1} parent=11 // pred_fallthru
          _
        // Predicated region
        $region153: #{forecast_denoising_forward.1} parent=11 // pred_check
          %p1374 = pneg %p950
        $region154: #{forecast_denoising_forward.1} parent=11 // pred_check_branch
          %1376 = sbr.rel (%p1374) target = $region156
        $region155: #{forecast_denoising_forward.1} parent=11 // pred_region
          _
        $region156: #{forecast_denoising_forward.1} parent=11 // pred_fallthru
          _
        // Predicated region
        $region157: #{forecast_denoising_forward.1} parent=11 // pred_check
          %p1377 = pneg %p971
        $region158: #{forecast_denoising_forward.1} parent=11 // pred_check_branch
          %1379 = sbr.rel (%p1377) target = $region160
        $region159: #{forecast_denoising_forward.1} parent=11 // pred_region
          _
        $region160: #{forecast_denoising_forward.1} parent=11 // pred_fallthru
          _
        // Predicated region
        $region161: #{forecast_denoising_forward.1} parent=11 // pred_check
          %p1380 = pneg %p992
        $region162: #{forecast_denoising_forward.1} parent=11 // pred_check_branch
          %1382 = sbr.rel (%p1380) target = $region164
        $region163: #{forecast_denoising_forward.1} parent=11 // pred_region
          _
        $region164: #{forecast_denoising_forward.1} parent=11 // pred_fallthru
          _
        // Predicated region
        $region165: #{forecast_denoising_forward.1} parent=11 // pred_check
          %p1383 = pneg %p1013
        $region166: #{forecast_denoising_forward.1} parent=11 // pred_check_branch
          %1385 = sbr.rel (%p1383) target = $region168
        $region167: #{forecast_denoising_forward.1} parent=11 // pred_region
          _
        $region168: #{forecast_denoising_forward.1} parent=11 // pred_fallthru
          _
        // Predicated region
        $region169: #{forecast_denoising_forward.1} parent=11 // pred_check
          %p1386 = pneg %p1034
        $region170: #{forecast_denoising_forward.1} parent=11 // pred_check_branch
          %1388 = sbr.rel (%p1386) target = $region172
        $region171: #{forecast_denoising_forward.1} parent=11 // pred_region
          _
        $region172: #{forecast_denoising_forward.1} parent=11 // pred_fallthru
          _
        // Predicated region
        $region173: #{forecast_denoising_forward.1} parent=11 // pred_check
          %p1389 = pneg %p1055
        $region174: #{forecast_denoising_forward.1} parent=11 // pred_check_branch
          %1391 = sbr.rel (%p1389) target = $region176
        $region175: #{forecast_denoising_forward.1} parent=11 // pred_region
          _
        $region176: #{forecast_denoising_forward.1} parent=11 // pred_fallthru
          _
        // Predicated region
        $region177: #{forecast_denoising_forward.1} parent=11 // pred_check
          %p1392 = pneg %p1076
        $region178: #{forecast_denoising_forward.1} parent=11 // pred_check_branch
          %1394 = sbr.rel (%p1392) target = $region180
        $region179: #{forecast_denoising_forward.1} parent=11 // pred_region
          _
        $region180: #{forecast_denoising_forward.1} parent=11 // pred_fallthru
          _
        // Predicated region
        $region181: #{forecast_denoising_forward.1} parent=11 // pred_check
          %p1395 = pneg %p1097
        $region182: #{forecast_denoising_forward.1} parent=11 // pred_check_branch
          %1397 = sbr.rel (%p1395) target = $region184
        $region183: #{forecast_denoising_forward.1} parent=11 // pred_region
          _
        $region184: #{forecast_denoising_forward.1} parent=11 // pred_fallthru
          _
        // Predicated region
        $region185: #{forecast_denoising_forward.1} parent=11 // pred_check
          %p1398 = pneg %p1118
        $region186: #{forecast_denoising_forward.1} parent=11 // pred_check_branch
          %1400 = sbr.rel (%p1398) target = $region188
        $region187: #{forecast_denoising_forward.1} parent=11 // pred_region
          _
        $region188: #{forecast_denoising_forward.1} parent=11 // pred_fallthru
          _
        // Predicated region
        $region189: #{forecast_denoising_forward.1} parent=11 // pred_check
          %p1401 = pneg %p1139
        $region190: #{forecast_denoising_forward.1} parent=11 // pred_check_branch
          %1403 = sbr.rel (%p1401) target = $region192
        $region191: #{forecast_denoising_forward.1} parent=11 // pred_region
          _
        $region192: #{forecast_denoising_forward.1} parent=11 // pred_fallthru
          _
        // Predicated region
        $region193: #{forecast_denoising_forward.1} parent=11 // pred_check
          %p1404 = pneg %p1160
        $region194: #{forecast_denoising_forward.1} parent=11 // pred_check_branch
          %1406 = sbr.rel (%p1404) target = $region196
        $region195: #{forecast_denoising_forward.1} parent=11 // pred_region
          _
        $region196: #{forecast_denoising_forward.1} parent=11 // pred_fallthru
          _
        // Predicated region
        $region197: #{forecast_denoising_forward.1} parent=11 // pred_check
          %p1407 = pneg %p1181
        $region198: #{forecast_denoising_forward.1} parent=11 // pred_check_branch
          %1409 = sbr.rel (%p1407) target = $region200
        $region199: #{forecast_denoising_forward.1} parent=11 // pred_region
          %s1411 = ssub.s32 16, 16
          %1412 = vsyncadd [#allocation4], %s1411
          %s1414 = sshll.u32 [#allocation3], 4
          %s1415 = int_to_ptr.vmem [resolvable:$true] %s1414
          %1417 = dma.hbm_to_vmem [thread:$0]  %s99, 16, %s1415, [#allocation4]
        $region200: #{forecast_denoising_forward.1} parent=11 // pred_fallthru
          _
        // Predicated region
        $region201: #{forecast_denoising_forward.1} parent=11 // pred_check
          %p1418 = pneg %p1202
        $region202: #{forecast_denoising_forward.1} parent=11 // pred_check_branch
          %1420 = sbr.rel (%p1418) target = $region204
        $region203: #{forecast_denoising_forward.1} parent=11 // pred_region
          %s1422 = ssub.s32 16, 16
          %1423 = vsyncadd [#allocation6], %s1422
          %s1425 = sshll.u32 [#allocation5], 4
          %s1426 = int_to_ptr.vmem [resolvable:$true] %s1425
          %1428 = dma.hbm_to_vmem [thread:$0]  %s101, 16, %s1426, [#allocation6]
        $region204: #{forecast_denoising_forward.1} parent=11 // pred_fallthru
          _
      $region12: #{forecast_denoising_forward.1} parent=5 // pred_fallthru
        _
      %p1429 = scmp.lt.s32.totalorder %s116, 2
      // Predicated region
      $region205: #{forecast_denoising_forward.1} parent=5 // pred_check
        %p1430 = pneg %p1429
      $region206: #{forecast_denoising_forward.1} parent=5 // pred_check_branch
        %1432 = sbr.rel (%p1430) target = $region208
      $region207: #{forecast_denoising_forward.1} parent=5 // pred_region
        // Predicated region
        $region209: #{forecast_denoising_forward.1} parent=207 // pred_check
          %p1433 = pneg %p136
        $region210: #{forecast_denoising_forward.1} parent=207 // pred_check_branch
          %1435 = sbr.rel (%p1433) target = $region212
        $region211: #{forecast_denoising_forward.1} parent=207 // pred_region
          %p1436 = scmp.lt.s32.totalorder %s116, 1
          %s1437 = scalar_select %p1436, %s116, 1
          %s1438 = smul.addr %s1437, 8
          %s1439 = scalar_lea.vmem %s1, %s1438
        $region212: #{forecast_denoising_forward.1} parent=207 // pred_fallthru
          _
        // Predicated region
        $region213: #{forecast_denoising_forward.1} parent=207 // pred_check
          %p1440 = pneg %p162
        $region214: #{forecast_denoising_forward.1} parent=207 // pred_check_branch
          %1442 = sbr.rel (%p1440) target = $region216
        $region215: #{forecast_denoising_forward.1} parent=207 // pred_region
          %p1443 = scmp.lt.s32.totalorder %s116, 1
          %s1444 = scalar_select %p1443, %s116, 1
          %s1445 = smul.addr %s1444, 8
          %s1446 = scalar_lea.vmem %s3, %s1445
        $region216: #{forecast_denoising_forward.1} parent=207 // pred_fallthru
          _
        // Predicated region
        $region217: #{forecast_denoising_forward.1} parent=207 // pred_check
          %p1447 = pneg %p188
        $region218: #{forecast_denoising_forward.1} parent=207 // pred_check_branch
          %1449 = sbr.rel (%p1447) target = $region220
        $region219: #{forecast_denoising_forward.1} parent=207 // pred_region
          %p1450 = scmp.lt.s32.totalorder %s116, 1
          %s1451 = scalar_select %p1450, %s116, 1
          %s1452 = smul.addr %s1451, 4
          %s1453 = scalar_lea.vmem %s5, %s1452
        $region220: #{forecast_denoising_forward.1} parent=207 // pred_fallthru
          _
      $region208: #{forecast_denoising_forward.1} parent=5 // pred_fallthru
        _
      %p1454 = scmp.le.s32.totalorder 1, %s116
      %p1455 = scmp.lt.s32.totalorder %s116, 3
      %p1456 = pnand %p1454, %p1455
      %p1457 = pneg %p1456
      // Predicated region
      $region221: #{forecast_denoising_forward.1} parent=5 // pred_check
        _
      $region222: #{forecast_denoising_forward.1} parent=5 // pred_check_branch
        %1459 = sbr.rel (%p1456) target = $region224
      $region223: #{forecast_denoising_forward.1} parent=5 // pred_region
        %s1460 = ssub.s32 %s116, 1
        // Predicated region
        $region225: #{forecast_denoising_forward.1} parent=223 // pred_check
          %p1461 = pneg %p1181
        $region226: #{forecast_denoising_forward.1} parent=223 // pred_check_branch
          %1463 = sbr.rel (%p1461) target = $region228
        $region227: #{forecast_denoising_forward.1} parent=223 // pred_region
          %1464 = dma.done [#allocation4], 16
        $region228: #{forecast_denoising_forward.1} parent=223 // pred_fallthru
          _
        // Predicated region
        $region229: #{forecast_denoising_forward.1} parent=223 // pred_check
          %p1465 = pneg %p1202
        $region230: #{forecast_denoising_forward.1} parent=223 // pred_check_branch
          %1467 = sbr.rel (%p1465) target = $region232
        $region231: #{forecast_denoising_forward.1} parent=223 // pred_region
          %1468 = dma.done [#allocation6], 16
        $region232: #{forecast_denoising_forward.1} parent=223 // pred_fallthru
          _
        %p1469 = scmp.lt.s32.totalorder %s121, 1
        %s1470 = scalar_select %p1469, %s121, 1
        %s1471 = smul.addr %s1470, 8
        %s1472 = scalar_lea.vmem %s1, %s1471
        %p1473 = pneg %p142
        %p1474 = pneg %p139
        %p1475 = scmp.lt.s32.totalorder %s121, 1
        %s1476 = scalar_select %p1475, %s121, 1
        %s1477 = smul.addr %s1476, 8
        %s1478 = scalar_lea.vmem %s3, %s1477
        %p1479 = pneg %p168
        %p1480 = pneg %p165
        %p1481 = scmp.lt.s32.totalorder %s121, 1
        %s1482 = scalar_select %p1481, %s121, 1
        %s1483 = smul.addr %s1482, 4
        %s1484 = scalar_lea.vmem %s5, %s1483
        %p1485 = pneg %p194
        %p1486 = pneg %p191
        %p1487 = pneg %p215
        %p1488 = pneg %p212
        %p1489 = pneg %p236
        %p1490 = pneg %p233
        %p1491 = pneg %p257
        %p1492 = pneg %p254
        %p1493 = pneg %p278
        %p1494 = pneg %p275
        %p1495 = pneg %p299
        %p1496 = pneg %p296
        %p1497 = pneg %p320
        %p1498 = pneg %p317
        %p1499 = pneg %p341
        %p1500 = pneg %p338
        %p1501 = pneg %p362
        %p1502 = pneg %p359
        %p1503 = pneg %p383
        %p1504 = pneg %p380
        %p1505 = pneg %p404
        %p1506 = pneg %p401
        %p1507 = pneg %p425
        %p1508 = pneg %p422
        %p1509 = pneg %p446
        %p1510 = pneg %p443
        %p1511 = pneg %p467
        %p1512 = pneg %p464
        %p1513 = pneg %p488
        %p1514 = pneg %p485
        %p1515 = pneg %p509
        %p1516 = pneg %p506
        %p1517 = pneg %p530
        %p1518 = pneg %p527
        %p1519 = pneg %p551
        %p1520 = pneg %p548
        %p1521 = pneg %p572
        %p1522 = pneg %p569
        %p1523 = pneg %p593
        %p1524 = pneg %p590
        %p1525 = pneg %p614
        %p1526 = pneg %p611
        %p1527 = pneg %p635
        %p1528 = pneg %p632
        %p1529 = pneg %p656
        %p1530 = pneg %p653
        %p1531 = pneg %p677
        %p1532 = pneg %p674
        %p1533 = pneg %p698
        %p1534 = pneg %p695
        %p1535 = pneg %p719
        %p1536 = pneg %p716
        %p1537 = pneg %p740
        %p1538 = pneg %p737
        %p1539 = pneg %p761
        %p1540 = pneg %p758
        %p1541 = pneg %p782
        %p1542 = pneg %p779
        %p1543 = pneg %p803
        %p1544 = pneg %p800
        %p1545 = pneg %p824
        %p1546 = pneg %p821
        %p1547 = pneg %p845
        %p1548 = pneg %p842
        %p1549 = pneg %p866
        %p1550 = pneg %p863
        %p1551 = pneg %p887
        %p1552 = pneg %p884
        %p1553 = pneg %p908
        %p1554 = pneg %p905
        %p1555 = pneg %p929
        %p1556 = pneg %p926
        %p1557 = pneg %p950
        %p1558 = pneg %p947
        %p1559 = pneg %p971
        %p1560 = pneg %p968
        %p1561 = pneg %p992
        %p1562 = pneg %p989
        %p1563 = pneg %p1013
        %p1564 = pneg %p1010
        %p1565 = pneg %p1034
        %p1566 = pneg %p1031
        %p1567 = pneg %p1055
        %p1568 = pneg %p1052
        %p1569 = pneg %p1076
        %p1570 = pneg %p1073
        %p1571 = pneg %p1097
        %p1572 = pneg %p1094
        %p1573 = pneg %p1118
        %p1574 = pneg %p1115
        %p1575 = pneg %p1139
        %p1576 = pneg %p1136
        %p1577 = pneg %p1160
        %p1578 = pneg %p1157
        %p1579 = pneg %p1181
        %p1580 = pneg %p1178
        %p1581 = pneg %p1202
        %p1582 = pneg %p1199
        %p1583 = pneg %p1228
        %p1584 = pneg %p1225
        %p1585 = scmp.lt.s32.totalorder %s121, 1
        %s1586 = scalar_select %p1585, %s121, 1
        %s1587 = smul.addr %s1586, 4
        %s1588 = scalar_lea.vmem %s103, %s1587
        %p1589 = pneg %p1254
        %p1590 = pneg %p1251
        %p1591 = scmp.lt.s32.totalorder %s121, 1
        %s1592 = scalar_select %p1591, %s121, 1
        %s1593 = scalar_lea.vmem %s105, %s1592
        %p1594 = scmp.lt.s32.totalorder %s121, 1
        %s1595 = scalar_select %p1594, %s121, 1
        %s1596 = smul.addr %s1595, 8
        %s1597 = scalar_lea.vmem %s1, %s1596
        %p1598 = scmp.lt.s32.totalorder %s121, 1
        %s1599 = scalar_select %p1598, %s121, 1
        %s1600 = smul.addr %s1599, 8
        %s1601 = scalar_lea.vmem %s3, %s1600
        %p1602 = scmp.lt.s32.totalorder %s121, 1
        %s1603 = scalar_select %p1602, %s121, 1
        %s1604 = smul.addr %s1603, 4
        %s1605 = scalar_lea.vmem %s5, %s1604
        %p1606 = scmp.lt.s32.totalorder %s121, 1
        %s1607 = scalar_select %p1606, %s121, 1
        %s1608 = smul.addr %s1607, 4
        %s1609 = scalar_lea.vmem %s103, %s1608
        %p1610 = scmp.lt.s32.totalorder %s121, 1
        %s1611 = scalar_select %p1610, %s121, 1
        %s1612 = scalar_lea.vmem %s105, %s1611
        %v1614 = vld [vmem:[%s1597] sm:$0xff]
        %v1615 = vpack.c.bf16 %v1614, %v1614
        %v1616 = vld [vmem:[%s7] sm:$0x3]
        %v1617 = vld [vmem:[%s9] sm:$0x1]
        %v1619 = vlaneseq
        %v1620 = vshrl.u32 %v1619, 7
        %v1621 = vsub.s32 0, %v1620
        %v1622 = vrot.slane %v1617, %v1621
        %vm1624 = vcmask 31744
        %v1626 = vsel %vm1624, %v1615, 0
        %vm1628 = vcmask 1041408
        %v1630 = vsel %vm1628, %v1616, 0
        %1632 = vmatprep.subr.bf16.mxu0 0
        %1633 = vmatpush1.bf16.msra.mxu0 0
        %1634 = vmatprep.subr.bf16.mxu0 0
        %1635 = vmatpush1.bf16.msra.mxu0 0
        %1636 = vmatprep.subr.bf16.mxu0 0
        %1637 = vmatpush1.bf16.msra.mxu0 0
        %1638 = vmatprep.subr.bf16.mxu0 0
        %1639 = vmatpush1.bf16.msra.mxu0 0
        %1640 = vmatprep.subr.bf16.mxu0 0
        %1641 = vmatpush1.bf16.msra.mxu0 0
        %1642 = vmatprep.subr.bf16.mxu0 0
        %1643 = vmatpush1.bf16.msra.mxu0 0
        %1644 = vmatprep.subr.bf16.mxu0 0
        %1645 = vmatpush1.bf16.msra.mxu0 0
        %1646 = vmatprep.subr.bf16.mxu0 0
        %1647 = vmatpush1.bf16.msra.mxu0 %v1630
        %1648 = vmatprep.subr.bf16.mxu0 0
        %1649 = vmatpush2.bf16.msra.mxu0 0
        %1650 = vmatprep.subr.bf16.mxu0 0
        %1651 = vmatpush2.bf16.msra.mxu0 0
        %1652 = vmatprep.subr.bf16.mxu0 0
        %1653 = vmatpush2.bf16.msra.mxu0 0
        %1654 = vmatprep.subr.bf16.mxu0 0
        %1655 = vmatpush2.bf16.msra.mxu0 0
        %1656 = vmatprep.subr.bf16.mxu0 0
        %1657 = vmatpush2.bf16.msra.mxu0 0
        %1658 = vmatprep.subr.bf16.mxu0 0
        %1659 = vmatpush2.bf16.msra.mxu0 0
        %1660 = vmatprep.subr.bf16.mxu0 0
        %1661 = vmatpush2.bf16.msra.mxu0 0
        %1662 = vmatprep.subr.bf16.mxu0 0
        %1663 = vmatpush2.bf16.msra.mxu0 0
        %1664 = vmatprep.mubr.bf16.mxu0 0
        %1665 = vmatmul.mubr.bf16.gmra.mxu0 %v1626
        %v1666 = vpop.f32.mrf.mxu0
        %v1667 = vadd.f32 %v1622, %v1666
        %v1668 = vpop.f32.mrf.mxu0
        %v1669 = vpop.f32.mrf.mxu0
        %v1670 = vpop.f32.mrf.mxu0
        %1671 = vdwg.mxu0
        %v1672 = vld [vmem:[%s1601] sm:$0xff]
        %v1673 = vpack.c.bf16 %v1672, %v1672
        %v1674 = vld [vmem:[%s11] sm:$0x3]
        %v1675 = vld [vmem:[%s13] sm:$0x1]
        %v1677 = vlaneseq
        %v1678 = vshrl.u32 %v1677, 7
        %v1679 = vsub.s32 0, %v1678
        %v1680 = vrot.slane %v1675, %v1679
        %v1683 = vsel %vm1624, %v1673, 0
        %v1686 = vsel %vm1628, %v1674, 0
        %1688 = vmatprep.subr.bf16.mxu0 0
        %1689 = vmatpush1.bf16.msra.mxu0 0
        %1690 = vmatprep.subr.bf16.mxu0 0
        %1691 = vmatpush1.bf16.msra.mxu0 0
        %1692 = vmatprep.subr.bf16.mxu0 0
        %1693 = vmatpush1.bf16.msra.mxu0 0
        %1694 = vmatprep.subr.bf16.mxu0 0
        %1695 = vmatpush1.bf16.msra.mxu0 0
        %1696 = vmatprep.subr.bf16.mxu0 0
        %1697 = vmatpush1.bf16.msra.mxu0 0
        %1698 = vmatprep.subr.bf16.mxu0 0
        %1699 = vmatpush1.bf16.msra.mxu0 0
        %1700 = vmatprep.subr.bf16.mxu0 0
        %1701 = vmatpush1.bf16.msra.mxu0 0
        %1702 = vmatprep.subr.bf16.mxu0 0
        %1703 = vmatpush1.bf16.msra.mxu0 %v1686
        %1704 = vmatprep.subr.bf16.mxu0 0
        %1705 = vmatpush2.bf16.msra.mxu0 0
        %1706 = vmatprep.subr.bf16.mxu0 0
        %1707 = vmatpush2.bf16.msra.mxu0 0
        %1708 = vmatprep.subr.bf16.mxu0 0
        %1709 = vmatpush2.bf16.msra.mxu0 0
        %1710 = vmatprep.subr.bf16.mxu0 0
        %1711 = vmatpush2.bf16.msra.mxu0 0
        %1712 = vmatprep.subr.bf16.mxu0 0
        %1713 = vmatpush2.bf16.msra.mxu0 0
        %1714 = vmatprep.subr.bf16.mxu0 0
        %1715 = vmatpush2.bf16.msra.mxu0 0
        %1716 = vmatprep.subr.bf16.mxu0 0
        %1717 = vmatpush2.bf16.msra.mxu0 0
        %1718 = vmatprep.subr.bf16.mxu0 0
        %1719 = vmatpush2.bf16.msra.mxu0 0
        %1720 = vmatprep.mubr.bf16.mxu0 0
        %1721 = vmatmul.mubr.bf16.gmra.mxu0 %v1683
        %v1722 = vpop.f32.mrf.mxu0
        %v1723 = vadd.f32 %v1680, %v1722
        %v1724 = vpop.f32.mrf.mxu0
        %v1725 = vpop.f32.mrf.mxu0
        %v1726 = vpop.f32.mrf.mxu0
        %1727 = vdwg.mxu0
        %v1728 = vpack.c.bf16 %v1667, %v1667
        %v1729 = vld [vmem:[%s19] sm:$0xf]
        %v1730 = vld [vmem:[%s19 + $0x4] sm:$0xf]
        %v1731 = vld [vmem:[%s19 + $0x8] sm:$0xf]
        %v1732 = vld [vmem:[%s19 + $0xc] sm:$0xf]
        %v1733 = vld [vmem:[%s19 + $0x10] sm:$0xf]
        %v1734 = vld [vmem:[%s19 + $0x14] sm:$0xf]
        %v1735 = vld [vmem:[%s19 + $0x18] sm:$0xf]
        %v1736 = vld [vmem:[%s19 + $0x1c] sm:$0xf]
        %v1737 = vld [vmem:[%s19 + $0x20] sm:$0xf]
        %v1738 = vld [vmem:[%s19 + $0x24] sm:$0xf]
        %v1739 = vld [vmem:[%s19 + $0x28] sm:$0xf]
        %v1740 = vld [vmem:[%s19 + $0x2c] sm:$0xf]
        %v1741 = vld [vmem:[%s19 + $0x30] sm:$0xf]
        %v1742 = vld [vmem:[%s19 + $0x34] sm:$0xf]
        %v1743 = vld [vmem:[%s19 + $0x38] sm:$0xf]
        %v1744 = vld [vmem:[%s19 + $0x3c] sm:$0xf]
        %v1745 = vld [vmem:[%s21] sm:$0x1]
        %v1746 = vld [vmem:[%s21 + $0x1] sm:$0x1]
        %v1747 = vld [vmem:[%s21 + $0x2] sm:$0x1]
        %v1748 = vld [vmem:[%s21 + $0x3] sm:$0x1]
        %v1753 = vlaneseq
        %v1754 = vshrl.u32 %v1753, 7
        %v1755 = vsub.s32 0, %v1754
        %v1756 = vrot.slane %v1745, %v1755
        %v1757 = vlaneseq
        %v1758 = vshrl.u32 %v1757, 7
        %v1759 = vsub.s32 0, %v1758
        %v1760 = vrot.slane %v1746, %v1759
        %v1761 = vlaneseq
        %v1762 = vshrl.u32 %v1761, 7
        %v1763 = vsub.s32 0, %v1762
        %v1764 = vrot.slane %v1747, %v1763
        %v1765 = vlaneseq
        %v1766 = vshrl.u32 %v1765, 7
        %v1767 = vsub.s32 0, %v1766
        %v1768 = vrot.slane %v1748, %v1767
        %v1777 = vunpack.c.l.b16 %v1729
        %v1778 = vunpack.c.l.b16 %v1730
        %v1779 = vunpack.c.l.b16 %v1731
        %v1780 = vunpack.c.l.b16 %v1732
        %v1781 = vpack.c.b16 %v1778, %v1777
        %v1782 = vpack.c.b16 %v1780, %v1779
        %vm1785 = vcmask 261120
        %v1787 = vsel %vm1785, %v1728, 0
        %1789 = vmatprep.subr.bf16.mxu0 0
        %1790 = vmatpush1.bf16.msra.mxu0 0
        %1791 = vmatprep.subr.bf16.mxu0 0
        %1792 = vmatpush1.bf16.msra.mxu0 0
        %1793 = vmatprep.subr.bf16.mxu0 0
        %1794 = vmatpush1.bf16.msra.mxu0 0
        %1795 = vmatprep.subr.bf16.mxu0 0
        %1796 = vmatpush1.bf16.msra.mxu0 0
        %1797 = vmatprep.subr.bf16.mxu0 0
        %1798 = vmatpush1.bf16.msra.mxu0 0
        %1799 = vmatprep.subr.bf16.mxu0 0
        %1800 = vmatpush1.bf16.msra.mxu0 0
        %1801 = vmatprep.subr.bf16.mxu0 0
        %1802 = vmatpush1.bf16.msra.mxu0 %v1782
        %1803 = vmatprep.subr.bf16.mxu0 0
        %1804 = vmatpush1.bf16.msra.mxu0 %v1781
        %1805 = vmatprep.subr.bf16.mxu0 0
        %1806 = vmatpush2.bf16.msra.mxu0 0
        %1807 = vmatprep.subr.bf16.mxu0 0
        %1808 = vmatpush2.bf16.msra.mxu0 0
        %1809 = vmatprep.subr.bf16.mxu0 0
        %1810 = vmatpush2.bf16.msra.mxu0 0
        %1811 = vmatprep.subr.bf16.mxu0 0
        %1812 = vmatpush2.bf16.msra.mxu0 0
        %1813 = vmatprep.subr.bf16.mxu0 0
        %1814 = vmatpush2.bf16.msra.mxu0 0
        %1815 = vmatprep.subr.bf16.mxu0 0
        %1816 = vmatpush2.bf16.msra.mxu0 0
        %1817 = vmatprep.subr.bf16.mxu0 0
        %1818 = vmatpush2.bf16.msra.mxu0 0
        %1819 = vmatprep.subr.bf16.mxu0 0
        %1820 = vmatpush2.bf16.msra.mxu0 0
        %1821 = vmatprep.mubr.bf16.mxu0 0
        %1822 = vmatmul.mubr.bf16.gmra.mxu0 %v1787
        %v1823 = vpop.f32.mrf.mxu0
        %v1824 = vadd.f32 %v1756, %v1823
        %v1825 = vpop.f32.mrf.mxu0
        %v1826 = vpop.f32.mrf.mxu0
        %v1827 = vpop.f32.mrf.mxu0
        %1828 = vdwg.mxu0
        %v1833 = vunpack.c.l.b16 %v1733
        %v1834 = vunpack.c.l.b16 %v1734
        %v1835 = vunpack.c.l.b16 %v1735
        %v1836 = vunpack.c.l.b16 %v1736
        %v1837 = vpack.c.b16 %v1834, %v1833
        %v1838 = vpack.c.b16 %v1836, %v1835
        %1841 = vmatprep.subr.bf16.mxu0 0
        %1842 = vmatpush1.bf16.msra.mxu0 0
        %1843 = vmatprep.subr.bf16.mxu0 0
        %1844 = vmatpush1.bf16.msra.mxu0 0
        %1845 = vmatprep.subr.bf16.mxu0 0
        %1846 = vmatpush1.bf16.msra.mxu0 0
        %1847 = vmatprep.subr.bf16.mxu0 0
        %1848 = vmatpush1.bf16.msra.mxu0 0
        %1849 = vmatprep.subr.bf16.mxu0 0
        %1850 = vmatpush1.bf16.msra.mxu0 0
        %1851 = vmatprep.subr.bf16.mxu0 0
        %1852 = vmatpush1.bf16.msra.mxu0 0
        %1853 = vmatprep.subr.bf16.mxu0 0
        %1854 = vmatpush1.bf16.msra.mxu0 %v1838
        %1855 = vmatprep.subr.bf16.mxu0 0
        %1856 = vmatpush1.bf16.msra.mxu0 %v1837
        %1857 = vmatprep.subr.bf16.mxu0 0
        %1858 = vmatpush2.bf16.msra.mxu0 0
        %1859 = vmatprep.subr.bf16.mxu0 0
        %1860 = vmatpush2.bf16.msra.mxu0 0
        %1861 = vmatprep.subr.bf16.mxu0 0
        %1862 = vmatpush2.bf16.msra.mxu0 0
        %1863 = vmatprep.subr.bf16.mxu0 0
        %1864 = vmatpush2.bf16.msra.mxu0 0
        %1865 = vmatprep.subr.bf16.mxu0 0
        %1866 = vmatpush2.bf16.msra.mxu0 0
        %1867 = vmatprep.subr.bf16.mxu0 0
        %1868 = vmatpush2.bf16.msra.mxu0 0
        %1869 = vmatprep.subr.bf16.mxu0 0
        %1870 = vmatpush2.bf16.msra.mxu0 0
        %1871 = vmatprep.subr.bf16.mxu0 0
        %1872 = vmatpush2.bf16.msra.mxu0 0
        %1873 = vmatprep.mubr.bf16.mxu0 0
        %1874 = vmatmul.mubr.bf16.gmra.mxu0 %v1787
        %v1875 = vpop.f32.mrf.mxu0
        %v1876 = vadd.f32 %v1760, %v1875
        %v1877 = vpop.f32.mrf.mxu0
        %v1878 = vpop.f32.mrf.mxu0
        %v1879 = vpop.f32.mrf.mxu0
        %1880 = vdwg.mxu0
        %v1885 = vunpack.c.l.b16 %v1737
        %v1886 = vunpack.c.l.b16 %v1738
        %v1887 = vunpack.c.l.b16 %v1739
        %v1888 = vunpack.c.l.b16 %v1740
        %v1889 = vpack.c.b16 %v1886, %v1885
        %v1890 = vpack.c.b16 %v1888, %v1887
        %1893 = vmatprep.subr.bf16.mxu0 0
        %1894 = vmatpush1.bf16.msra.mxu0 0
        %1895 = vmatprep.subr.bf16.mxu0 0
        %1896 = vmatpush1.bf16.msra.mxu0 0
        %1897 = vmatprep.subr.bf16.mxu0 0
        %1898 = vmatpush1.bf16.msra.mxu0 0
        %1899 = vmatprep.subr.bf16.mxu0 0
        %1900 = vmatpush1.bf16.msra.mxu0 0
        %1901 = vmatprep.subr.bf16.mxu0 0
        %1902 = vmatpush1.bf16.msra.mxu0 0
        %1903 = vmatprep.subr.bf16.mxu0 0
        %1904 = vmatpush1.bf16.msra.mxu0 0
        %1905 = vmatprep.subr.bf16.mxu0 0
        %1906 = vmatpush1.bf16.msra.mxu0 %v1890
        %1907 = vmatprep.subr.bf16.mxu0 0
        %1908 = vmatpush1.bf16.msra.mxu0 %v1889
        %1909 = vmatprep.subr.bf16.mxu0 0
        %1910 = vmatpush2.bf16.msra.mxu0 0
        %1911 = vmatprep.subr.bf16.mxu0 0
        %1912 = vmatpush2.bf16.msra.mxu0 0
        %1913 = vmatprep.subr.bf16.mxu0 0
        %1914 = vmatpush2.bf16.msra.mxu0 0
        %1915 = vmatprep.subr.bf16.mxu0 0
        %1916 = vmatpush2.bf16.msra.mxu0 0
        %1917 = vmatprep.subr.bf16.mxu0 0
        %1918 = vmatpush2.bf16.msra.mxu0 0
        %1919 = vmatprep.subr.bf16.mxu0 0
        %1920 = vmatpush2.bf16.msra.mxu0 0
        %1921 = vmatprep.subr.bf16.mxu0 0
        %1922 = vmatpush2.bf16.msra.mxu0 0
        %1923 = vmatprep.subr.bf16.mxu0 0
        %1924 = vmatpush2.bf16.msra.mxu0 0
        %1925 = vmatprep.mubr.bf16.mxu0 0
        %1926 = vmatmul.mubr.bf16.gmra.mxu0 %v1787
        %v1927 = vpop.f32.mrf.mxu0
        %v1928 = vadd.f32 %v1764, %v1927
        %v1929 = vpop.f32.mrf.mxu0
        %v1930 = vpop.f32.mrf.mxu0
        %v1931 = vpop.f32.mrf.mxu0
        %1932 = vdwg.mxu0
        %v1937 = vunpack.c.l.b16 %v1741
        %v1938 = vunpack.c.l.b16 %v1742
        %v1939 = vunpack.c.l.b16 %v1743
        %v1940 = vunpack.c.l.b16 %v1744
        %v1941 = vpack.c.b16 %v1938, %v1937
        %v1942 = vpack.c.b16 %v1940, %v1939
        %1945 = vmatprep.subr.bf16.mxu0 0
        %1946 = vmatpush1.bf16.msra.mxu0 0
        %1947 = vmatprep.subr.bf16.mxu0 0
        %1948 = vmatpush1.bf16.msra.mxu0 0
        %1949 = vmatprep.subr.bf16.mxu0 0
        %1950 = vmatpush1.bf16.msra.mxu0 0
        %1951 = vmatprep.subr.bf16.mxu0 0
        %1952 = vmatpush1.bf16.msra.mxu0 0
        %1953 = vmatprep.subr.bf16.mxu0 0
        %1954 = vmatpush1.bf16.msra.mxu0 0
        %1955 = vmatprep.subr.bf16.mxu0 0
        %1956 = vmatpush1.bf16.msra.mxu0 0
        %1957 = vmatprep.subr.bf16.mxu0 0
        %1958 = vmatpush1.bf16.msra.mxu0 %v1942
        %1959 = vmatprep.subr.bf16.mxu0 0
        %1960 = vmatpush1.bf16.msra.mxu0 %v1941
        %1961 = vmatprep.subr.bf16.mxu0 0
        %1962 = vmatpush2.bf16.msra.mxu0 0
        %1963 = vmatprep.subr.bf16.mxu0 0
        %1964 = vmatpush2.bf16.msra.mxu0 0
        %1965 = vmatprep.subr.bf16.mxu0 0
        %1966 = vmatpush2.bf16.msra.mxu0 0
        %1967 = vmatprep.subr.bf16.mxu0 0
        %1968 = vmatpush2.bf16.msra.mxu0 0
        %1969 = vmatprep.subr.bf16.mxu0 0
        %1970 = vmatpush2.bf16.msra.mxu0 0
        %1971 = vmatprep.subr.bf16.mxu0 0
        %1972 = vmatpush2.bf16.msra.mxu0 0
        %1973 = vmatprep.subr.bf16.mxu0 0
        %1974 = vmatpush2.bf16.msra.mxu0 0
        %1975 = vmatprep.subr.bf16.mxu0 0
        %1976 = vmatpush2.bf16.msra.mxu0 0
        %1977 = vmatprep.mubr.bf16.mxu0 0
        %1978 = vmatmul.mubr.bf16.gmra.mxu0 %v1787
        %v1979 = vpop.f32.mrf.mxu0
        %v1980 = vadd.f32 %v1768, %v1979
        %v1981 = vpop.f32.mrf.mxu0
        %v1982 = vpop.f32.mrf.mxu0
        %v1983 = vpop.f32.mrf.mxu0
        %1984 = vdwg.mxu0
        %v1985 = vld [vmem:[%s23] sm:$0xf]
        %v1986 = vld [vmem:[%s23 + $0x4] sm:$0xf]
        %v1987 = vld [vmem:[%s23 + $0x8] sm:$0xf]
        %v1988 = vld [vmem:[%s23 + $0xc] sm:$0xf]
        %v1989 = vld [vmem:[%s23 + $0x10] sm:$0xf]
        %v1990 = vld [vmem:[%s23 + $0x14] sm:$0xf]
        %v1991 = vld [vmem:[%s23 + $0x18] sm:$0xf]
        %v1992 = vld [vmem:[%s23 + $0x1c] sm:$0xf]
        %v1993 = vld [vmem:[%s23 + $0x20] sm:$0xf]
        %v1994 = vld [vmem:[%s23 + $0x24] sm:$0xf]
        %v1995 = vld [vmem:[%s23 + $0x28] sm:$0xf]
        %v1996 = vld [vmem:[%s23 + $0x2c] sm:$0xf]
        %v1997 = vld [vmem:[%s23 + $0x30] sm:$0xf]
        %v1998 = vld [vmem:[%s23 + $0x34] sm:$0xf]
        %v1999 = vld [vmem:[%s23 + $0x38] sm:$0xf]
        %v2000 = vld [vmem:[%s23 + $0x3c] sm:$0xf]
        %v2001 = vld [vmem:[%s25] sm:$0x1]
        %v2002 = vld [vmem:[%s25 + $0x1] sm:$0x1]
        %v2003 = vld [vmem:[%s25 + $0x2] sm:$0x1]
        %v2004 = vld [vmem:[%s25 + $0x3] sm:$0x1]
        %v2009 = vlaneseq
        %v2010 = vshrl.u32 %v2009, 7
        %v2011 = vsub.s32 0, %v2010
        %v2012 = vrot.slane %v2001, %v2011
        %v2013 = vlaneseq
        %v2014 = vshrl.u32 %v2013, 7
        %v2015 = vsub.s32 0, %v2014
        %v2016 = vrot.slane %v2002, %v2015
        %v2017 = vlaneseq
        %v2018 = vshrl.u32 %v2017, 7
        %v2019 = vsub.s32 0, %v2018
        %v2020 = vrot.slane %v2003, %v2019
        %v2021 = vlaneseq
        %v2022 = vshrl.u32 %v2021, 7
        %v2023 = vsub.s32 0, %v2022
        %v2024 = vrot.slane %v2004, %v2023
        %v2033 = vunpack.c.l.b16 %v1985
        %v2034 = vunpack.c.l.b16 %v1986
        %v2035 = vunpack.c.l.b16 %v1987
        %v2036 = vunpack.c.l.b16 %v1988
        %v2037 = vpack.c.b16 %v2034, %v2033
        %v2038 = vpack.c.b16 %v2036, %v2035
        %2041 = vmatprep.subr.bf16.mxu0 0
        %2042 = vmatpush1.bf16.msra.mxu0 0
        %2043 = vmatprep.subr.bf16.mxu0 0
        %2044 = vmatpush1.bf16.msra.mxu0 0
        %2045 = vmatprep.subr.bf16.mxu0 0
        %2046 = vmatpush1.bf16.msra.mxu0 0
        %2047 = vmatprep.subr.bf16.mxu0 0
        %2048 = vmatpush1.bf16.msra.mxu0 0
        %2049 = vmatprep.subr.bf16.mxu0 0
        %2050 = vmatpush1.bf16.msra.mxu0 0
        %2051 = vmatprep.subr.bf16.mxu0 0
        %2052 = vmatpush1.bf16.msra.mxu0 0
        %2053 = vmatprep.subr.bf16.mxu0 0
        %2054 = vmatpush1.bf16.msra.mxu0 %v2038
        %2055 = vmatprep.subr.bf16.mxu0 0
        %2056 = vmatpush1.bf16.msra.mxu0 %v2037
        %2057 = vmatprep.subr.bf16.mxu0 0
        %2058 = vmatpush2.bf16.msra.mxu0 0
        %2059 = vmatprep.subr.bf16.mxu0 0
        %2060 = vmatpush2.bf16.msra.mxu0 0
        %2061 = vmatprep.subr.bf16.mxu0 0
        %2062 = vmatpush2.bf16.msra.mxu0 0
        %2063 = vmatprep.subr.bf16.mxu0 0
        %2064 = vmatpush2.bf16.msra.mxu0 0
        %2065 = vmatprep.subr.bf16.mxu0 0
        %2066 = vmatpush2.bf16.msra.mxu0 0
        %2067 = vmatprep.subr.bf16.mxu0 0
        %2068 = vmatpush2.bf16.msra.mxu0 0
        %2069 = vmatprep.subr.bf16.mxu0 0
        %2070 = vmatpush2.bf16.msra.mxu0 0
        %2071 = vmatprep.subr.bf16.mxu0 0
        %2072 = vmatpush2.bf16.msra.mxu0 0
        %2073 = vmatprep.mubr.bf16.mxu0 0
        %2074 = vmatmul.mubr.bf16.gmra.mxu0 %v1787
        %v2075 = vpop.f32.mrf.mxu0
        %v2076 = vadd.f32 %v2012, %v2075
        %v2077 = vpop.f32.mrf.mxu0
        %v2078 = vpop.f32.mrf.mxu0
        %v2079 = vpop.f32.mrf.mxu0
        %2080 = vdwg.mxu0
        %v2085 = vunpack.c.l.b16 %v1989
        %v2086 = vunpack.c.l.b16 %v1990
        %v2087 = vunpack.c.l.b16 %v1991
        %v2088 = vunpack.c.l.b16 %v1992
        %v2089 = vpack.c.b16 %v2086, %v2085
        %v2090 = vpack.c.b16 %v2088, %v2087
        %2093 = vmatprep.subr.bf16.mxu0 0
        %2094 = vmatpush1.bf16.msra.mxu0 0
        %2095 = vmatprep.subr.bf16.mxu0 0
        %2096 = vmatpush1.bf16.msra.mxu0 0
        %2097 = vmatprep.subr.bf16.mxu0 0
        %2098 = vmatpush1.bf16.msra.mxu0 0
        %2099 = vmatprep.subr.bf16.mxu0 0
        %2100 = vmatpush1.bf16.msra.mxu0 0
        %2101 = vmatprep.subr.bf16.mxu0 0
        %2102 = vmatpush1.bf16.msra.mxu0 0
        %2103 = vmatprep.subr.bf16.mxu0 0
        %2104 = vmatpush1.bf16.msra.mxu0 0
        %2105 = vmatprep.subr.bf16.mxu0 0
        %2106 = vmatpush1.bf16.msra.mxu0 %v2090
        %2107 = vmatprep.subr.bf16.mxu0 0
        %2108 = vmatpush1.bf16.msra.mxu0 %v2089
        %2109 = vmatprep.subr.bf16.mxu0 0
        %2110 = vmatpush2.bf16.msra.mxu0 0
        %2111 = vmatprep.subr.bf16.mxu0 0
        %2112 = vmatpush2.bf16.msra.mxu0 0
        %2113 = vmatprep.subr.bf16.mxu0 0
        %2114 = vmatpush2.bf16.msra.mxu0 0
        %2115 = vmatprep.subr.bf16.mxu0 0
        %2116 = vmatpush2.bf16.msra.mxu0 0
        %2117 = vmatprep.subr.bf16.mxu0 0
        %2118 = vmatpush2.bf16.msra.mxu0 0
        %2119 = vmatprep.subr.bf16.mxu0 0
        %2120 = vmatpush2.bf16.msra.mxu0 0
        %2121 = vmatprep.subr.bf16.mxu0 0
        %2122 = vmatpush2.bf16.msra.mxu0 0
        %2123 = vmatprep.subr.bf16.mxu0 0
        %2124 = vmatpush2.bf16.msra.mxu0 0
        %2125 = vmatprep.mubr.bf16.mxu0 0
        %2126 = vmatmul.mubr.bf16.gmra.mxu0 %v1787
        %v2127 = vpop.f32.mrf.mxu0
        %v2128 = vadd.f32 %v2016, %v2127
        %v2129 = vpop.f32.mrf.mxu0
        %v2130 = vpop.f32.mrf.mxu0
        %v2131 = vpop.f32.mrf.mxu0
        %2132 = vdwg.mxu0
        %v2137 = vunpack.c.l.b16 %v1993
        %v2138 = vunpack.c.l.b16 %v1994
        %v2139 = vunpack.c.l.b16 %v1995
        %v2140 = vunpack.c.l.b16 %v1996
        %v2141 = vpack.c.b16 %v2138, %v2137
        %v2142 = vpack.c.b16 %v2140, %v2139
        %2145 = vmatprep.subr.bf16.mxu0 0
        %2146 = vmatpush1.bf16.msra.mxu0 0
        %2147 = vmatprep.subr.bf16.mxu0 0
        %2148 = vmatpush1.bf16.msra.mxu0 0
        %2149 = vmatprep.subr.bf16.mxu0 0
        %2150 = vmatpush1.bf16.msra.mxu0 0
        %2151 = vmatprep.subr.bf16.mxu0 0
        %2152 = vmatpush1.bf16.msra.mxu0 0
        %2153 = vmatprep.subr.bf16.mxu0 0
        %2154 = vmatpush1.bf16.msra.mxu0 0
        %2155 = vmatprep.subr.bf16.mxu0 0
        %2156 = vmatpush1.bf16.msra.mxu0 0
        %2157 = vmatprep.subr.bf16.mxu0 0
        %2158 = vmatpush1.bf16.msra.mxu0 %v2142
        %2159 = vmatprep.subr.bf16.mxu0 0
        %2160 = vmatpush1.bf16.msra.mxu0 %v2141
        %2161 = vmatprep.subr.bf16.mxu0 0
        %2162 = vmatpush2.bf16.msra.mxu0 0
        %2163 = vmatprep.subr.bf16.mxu0 0
        %2164 = vmatpush2.bf16.msra.mxu0 0
        %2165 = vmatprep.subr.bf16.mxu0 0
        %2166 = vmatpush2.bf16.msra.mxu0 0
        %2167 = vmatprep.subr.bf16.mxu0 0
        %2168 = vmatpush2.bf16.msra.mxu0 0
        %2169 = vmatprep.subr.bf16.mxu0 0
        %2170 = vmatpush2.bf16.msra.mxu0 0
        %2171 = vmatprep.subr.bf16.mxu0 0
        %2172 = vmatpush2.bf16.msra.mxu0 0
        %2173 = vmatprep.subr.bf16.mxu0 0
        %2174 = vmatpush2.bf16.msra.mxu0 0
        %2175 = vmatprep.subr.bf16.mxu0 0
        %2176 = vmatpush2.bf16.msra.mxu0 0
        %2177 = vmatprep.mubr.bf16.mxu0 0
        %2178 = vmatmul.mubr.bf16.gmra.mxu0 %v1787
        %v2179 = vpop.f32.mrf.mxu0
        %v2180 = vadd.f32 %v2020, %v2179
        %v2181 = vpop.f32.mrf.mxu0
        %v2182 = vpop.f32.mrf.mxu0
        %v2183 = vpop.f32.mrf.mxu0
        %2184 = vdwg.mxu0
        %v2189 = vunpack.c.l.b16 %v1997
        %v2190 = vunpack.c.l.b16 %v1998
        %v2191 = vunpack.c.l.b16 %v1999
        %v2192 = vunpack.c.l.b16 %v2000
        %v2193 = vpack.c.b16 %v2190, %v2189
        %v2194 = vpack.c.b16 %v2192, %v2191
        %2197 = vmatprep.subr.bf16.mxu0 0
        %2198 = vmatpush1.bf16.msra.mxu0 0
        %2199 = vmatprep.subr.bf16.mxu0 0
        %2200 = vmatpush1.bf16.msra.mxu0 0
        %2201 = vmatprep.subr.bf16.mxu0 0
        %2202 = vmatpush1.bf16.msra.mxu0 0
        %2203 = vmatprep.subr.bf16.mxu0 0
        %2204 = vmatpush1.bf16.msra.mxu0 0
        %2205 = vmatprep.subr.bf16.mxu0 0
        %2206 = vmatpush1.bf16.msra.mxu0 0
        %2207 = vmatprep.subr.bf16.mxu0 0
        %2208 = vmatpush1.bf16.msra.mxu0 0
        %2209 = vmatprep.subr.bf16.mxu0 0
        %2210 = vmatpush1.bf16.msra.mxu0 %v2194
        %2211 = vmatprep.subr.bf16.mxu0 0
        %2212 = vmatpush1.bf16.msra.mxu0 %v2193
        %2213 = vmatprep.subr.bf16.mxu0 0
        %2214 = vmatpush2.bf16.msra.mxu0 0
        %2215 = vmatprep.subr.bf16.mxu0 0
        %2216 = vmatpush2.bf16.msra.mxu0 0
        %2217 = vmatprep.subr.bf16.mxu0 0
        %2218 = vmatpush2.bf16.msra.mxu0 0
        %2219 = vmatprep.subr.bf16.mxu0 0
        %2220 = vmatpush2.bf16.msra.mxu0 0
        %2221 = vmatprep.subr.bf16.mxu0 0
        %2222 = vmatpush2.bf16.msra.mxu0 0
        %2223 = vmatprep.subr.bf16.mxu0 0
        %2224 = vmatpush2.bf16.msra.mxu0 0
        %2225 = vmatprep.subr.bf16.mxu0 0
        %2226 = vmatpush2.bf16.msra.mxu0 0
        %2227 = vmatprep.subr.bf16.mxu0 0
        %2228 = vmatpush2.bf16.msra.mxu0 0
        %2229 = vmatprep.mubr.bf16.mxu0 0
        %2230 = vmatmul.mubr.bf16.gmra.mxu0 %v1787
        %v2231 = vpop.f32.mrf.mxu0
        %v2232 = vadd.f32 %v2024, %v2231
        %v2233 = vpop.f32.mrf.mxu0
        %v2234 = vpop.f32.mrf.mxu0
        %v2235 = vpop.f32.mrf.mxu0
        %2236 = vdwg.mxu0
        %v2237 = vld [vmem:[%s27] sm:$0xf]
        %v2238 = vld [vmem:[%s27 + $0x4] sm:$0xf]
        %v2239 = vld [vmem:[%s27 + $0x8] sm:$0xf]
        %v2240 = vld [vmem:[%s27 + $0xc] sm:$0xf]
        %v2241 = vld [vmem:[%s27 + $0x10] sm:$0xf]
        %v2242 = vld [vmem:[%s27 + $0x14] sm:$0xf]
        %v2243 = vld [vmem:[%s27 + $0x18] sm:$0xf]
        %v2244 = vld [vmem:[%s27 + $0x1c] sm:$0xf]
        %v2245 = vld [vmem:[%s27 + $0x20] sm:$0xf]
        %v2246 = vld [vmem:[%s27 + $0x24] sm:$0xf]
        %v2247 = vld [vmem:[%s27 + $0x28] sm:$0xf]
        %v2248 = vld [vmem:[%s27 + $0x2c] sm:$0xf]
        %v2249 = vld [vmem:[%s27 + $0x30] sm:$0xf]
        %v2250 = vld [vmem:[%s27 + $0x34] sm:$0xf]
        %v2251 = vld [vmem:[%s27 + $0x38] sm:$0xf]
        %v2252 = vld [vmem:[%s27 + $0x3c] sm:$0xf]
        %v2253 = vld [vmem:[%s29] sm:$0x1]
        %v2254 = vld [vmem:[%s29 + $0x1] sm:$0x1]
        %v2255 = vld [vmem:[%s29 + $0x2] sm:$0x1]
        %v2256 = vld [vmem:[%s29 + $0x3] sm:$0x1]
        %v2261 = vlaneseq
        %v2262 = vshrl.u32 %v2261, 7
        %v2263 = vsub.s32 0, %v2262
        %v2264 = vrot.slane %v2253, %v2263
        %v2265 = vlaneseq
        %v2266 = vshrl.u32 %v2265, 7
        %v2267 = vsub.s32 0, %v2266
        %v2268 = vrot.slane %v2254, %v2267
        %v2269 = vlaneseq
        %v2270 = vshrl.u32 %v2269, 7
        %v2271 = vsub.s32 0, %v2270
        %v2272 = vrot.slane %v2255, %v2271
        %v2273 = vlaneseq
        %v2274 = vshrl.u32 %v2273, 7
        %v2275 = vsub.s32 0, %v2274
        %v2276 = vrot.slane %v2256, %v2275
        %v2285 = vunpack.c.l.b16 %v2237
        %v2286 = vunpack.c.l.b16 %v2238
        %v2287 = vunpack.c.l.b16 %v2239
        %v2288 = vunpack.c.l.b16 %v2240
        %v2289 = vpack.c.b16 %v2286, %v2285
        %v2290 = vpack.c.b16 %v2288, %v2287
        %2293 = vmatprep.subr.bf16.mxu0 0
        %2294 = vmatpush1.bf16.msra.mxu0 0
        %2295 = vmatprep.subr.bf16.mxu0 0
        %2296 = vmatpush1.bf16.msra.mxu0 0
        %2297 = vmatprep.subr.bf16.mxu0 0
        %2298 = vmatpush1.bf16.msra.mxu0 0
        %2299 = vmatprep.subr.bf16.mxu0 0
        %2300 = vmatpush1.bf16.msra.mxu0 0
        %2301 = vmatprep.subr.bf16.mxu0 0
        %2302 = vmatpush1.bf16.msra.mxu0 0
        %2303 = vmatprep.subr.bf16.mxu0 0
        %2304 = vmatpush1.bf16.msra.mxu0 0
        %2305 = vmatprep.subr.bf16.mxu0 0
        %2306 = vmatpush1.bf16.msra.mxu0 %v2290
        %2307 = vmatprep.subr.bf16.mxu0 0
        %2308 = vmatpush1.bf16.msra.mxu0 %v2289
        %2309 = vmatprep.subr.bf16.mxu0 0
        %2310 = vmatpush2.bf16.msra.mxu0 0
        %2311 = vmatprep.subr.bf16.mxu0 0
        %2312 = vmatpush2.bf16.msra.mxu0 0
        %2313 = vmatprep.subr.bf16.mxu0 0
        %2314 = vmatpush2.bf16.msra.mxu0 0
        %2315 = vmatprep.subr.bf16.mxu0 0
        %2316 = vmatpush2.bf16.msra.mxu0 0
        %2317 = vmatprep.subr.bf16.mxu0 0
        %2318 = vmatpush2.bf16.msra.mxu0 0
        %2319 = vmatprep.subr.bf16.mxu0 0
        %2320 = vmatpush2.bf16.msra.mxu0 0
        %2321 = vmatprep.subr.bf16.mxu0 0
        %2322 = vmatpush2.bf16.msra.mxu0 0
        %2323 = vmatprep.subr.bf16.mxu0 0
        %2324 = vmatpush2.bf16.msra.mxu0 0
        %2325 = vmatprep.mubr.bf16.mxu0 0
        %2326 = vmatmul.mubr.bf16.gmra.mxu0 %v1787
        %v2327 = vpop.f32.mrf.mxu0
        %v2328 = vadd.f32 %v2264, %v2327
        %v2329 = vpop.f32.mrf.mxu0
        %v2330 = vpop.f32.mrf.mxu0
        %v2331 = vpop.f32.mrf.mxu0
        %2332 = vdwg.mxu0
        %v2337 = vunpack.c.l.b16 %v2241
        %v2338 = vunpack.c.l.b16 %v2242
        %v2339 = vunpack.c.l.b16 %v2243
        %v2340 = vunpack.c.l.b16 %v2244
        %v2341 = vpack.c.b16 %v2338, %v2337
        %v2342 = vpack.c.b16 %v2340, %v2339
        %2345 = vmatprep.subr.bf16.mxu0 0
        %2346 = vmatpush1.bf16.msra.mxu0 0
        %2347 = vmatprep.subr.bf16.mxu0 0
        %2348 = vmatpush1.bf16.msra.mxu0 0
        %2349 = vmatprep.subr.bf16.mxu0 0
        %2350 = vmatpush1.bf16.msra.mxu0 0
        %2351 = vmatprep.subr.bf16.mxu0 0
        %2352 = vmatpush1.bf16.msra.mxu0 0
        %2353 = vmatprep.subr.bf16.mxu0 0
        %2354 = vmatpush1.bf16.msra.mxu0 0
        %2355 = vmatprep.subr.bf16.mxu0 0
        %2356 = vmatpush1.bf16.msra.mxu0 0
        %2357 = vmatprep.subr.bf16.mxu0 0
        %2358 = vmatpush1.bf16.msra.mxu0 %v2342
        %2359 = vmatprep.subr.bf16.mxu0 0
        %2360 = vmatpush1.bf16.msra.mxu0 %v2341
        %2361 = vmatprep.subr.bf16.mxu0 0
        %2362 = vmatpush2.bf16.msra.mxu0 0
        %2363 = vmatprep.subr.bf16.mxu0 0
        %2364 = vmatpush2.bf16.msra.mxu0 0
        %2365 = vmatprep.subr.bf16.mxu0 0
        %2366 = vmatpush2.bf16.msra.mxu0 0
        %2367 = vmatprep.subr.bf16.mxu0 0
        %2368 = vmatpush2.bf16.msra.mxu0 0
        %2369 = vmatprep.subr.bf16.mxu0 0
        %2370 = vmatpush2.bf16.msra.mxu0 0
        %2371 = vmatprep.subr.bf16.mxu0 0
        %2372 = vmatpush2.bf16.msra.mxu0 0
        %2373 = vmatprep.subr.bf16.mxu0 0
        %2374 = vmatpush2.bf16.msra.mxu0 0
        %2375 = vmatprep.subr.bf16.mxu0 0
        %2376 = vmatpush2.bf16.msra.mxu0 0
        %2377 = vmatprep.mubr.bf16.mxu0 0
        %2378 = vmatmul.mubr.bf16.gmra.mxu0 %v1787
        %v2379 = vpop.f32.mrf.mxu0
        %v2380 = vadd.f32 %v2268, %v2379
        %v2381 = vpop.f32.mrf.mxu0
        %v2382 = vpop.f32.mrf.mxu0
        %v2383 = vpop.f32.mrf.mxu0
        %2384 = vdwg.mxu0
        %v2389 = vunpack.c.l.b16 %v2245
        %v2390 = vunpack.c.l.b16 %v2246
        %v2391 = vunpack.c.l.b16 %v2247
        %v2392 = vunpack.c.l.b16 %v2248
        %v2393 = vpack.c.b16 %v2390, %v2389
        %v2394 = vpack.c.b16 %v2392, %v2391
        %2397 = vmatprep.subr.bf16.mxu0 0
        %2398 = vmatpush1.bf16.msra.mxu0 0
        %2399 = vmatprep.subr.bf16.mxu0 0
        %2400 = vmatpush1.bf16.msra.mxu0 0
        %2401 = vmatprep.subr.bf16.mxu0 0
        %2402 = vmatpush1.bf16.msra.mxu0 0
        %2403 = vmatprep.subr.bf16.mxu0 0
        %2404 = vmatpush1.bf16.msra.mxu0 0
        %2405 = vmatprep.subr.bf16.mxu0 0
        %2406 = vmatpush1.bf16.msra.mxu0 0
        %2407 = vmatprep.subr.bf16.mxu0 0
        %2408 = vmatpush1.bf16.msra.mxu0 0
        %2409 = vmatprep.subr.bf16.mxu0 0
        %2410 = vmatpush1.bf16.msra.mxu0 %v2394
        %2411 = vmatprep.subr.bf16.mxu0 0
        %2412 = vmatpush1.bf16.msra.mxu0 %v2393
        %2413 = vmatprep.subr.bf16.mxu0 0
        %2414 = vmatpush2.bf16.msra.mxu0 0
        %2415 = vmatprep.subr.bf16.mxu0 0
        %2416 = vmatpush2.bf16.msra.mxu0 0
        %2417 = vmatprep.subr.bf16.mxu0 0
        %2418 = vmatpush2.bf16.msra.mxu0 0
        %2419 = vmatprep.subr.bf16.mxu0 0
        %2420 = vmatpush2.bf16.msra.mxu0 0
        %2421 = vmatprep.subr.bf16.mxu0 0
        %2422 = vmatpush2.bf16.msra.mxu0 0
        %2423 = vmatprep.subr.bf16.mxu0 0
        %2424 = vmatpush2.bf16.msra.mxu0 0
        %2425 = vmatprep.subr.bf16.mxu0 0
        %2426 = vmatpush2.bf16.msra.mxu0 0
        %2427 = vmatprep.subr.bf16.mxu0 0
        %2428 = vmatpush2.bf16.msra.mxu0 0
        %2429 = vmatprep.mubr.bf16.mxu0 0
        %2430 = vmatmul.mubr.bf16.gmra.mxu0 %v1787
        %v2431 = vpop.f32.mrf.mxu0
        %v2432 = vadd.f32 %v2272, %v2431
        %v2433 = vpop.f32.mrf.mxu0
        %v2434 = vpop.f32.mrf.mxu0
        %v2435 = vpop.f32.mrf.mxu0
        %2436 = vdwg.mxu0
        %v2441 = vunpack.c.l.b16 %v2249
        %v2442 = vunpack.c.l.b16 %v2250
        %v2443 = vunpack.c.l.b16 %v2251
        %v2444 = vunpack.c.l.b16 %v2252
        %v2445 = vpack.c.b16 %v2442, %v2441
        %v2446 = vpack.c.b16 %v2444, %v2443
        %2449 = vmatprep.subr.bf16.mxu0 0
        %2450 = vmatpush1.bf16.msra.mxu0 0
        %2451 = vmatprep.subr.bf16.mxu0 0
        %2452 = vmatpush1.bf16.msra.mxu0 0
        %2453 = vmatprep.subr.bf16.mxu0 0
        %2454 = vmatpush1.bf16.msra.mxu0 0
        %2455 = vmatprep.subr.bf16.mxu0 0
        %2456 = vmatpush1.bf16.msra.mxu0 0
        %2457 = vmatprep.subr.bf16.mxu0 0
        %2458 = vmatpush1.bf16.msra.mxu0 0
        %2459 = vmatprep.subr.bf16.mxu0 0
        %2460 = vmatpush1.bf16.msra.mxu0 0
        %2461 = vmatprep.subr.bf16.mxu0 0
        %2462 = vmatpush1.bf16.msra.mxu0 %v2446
        %2463 = vmatprep.subr.bf16.mxu0 0
        %2464 = vmatpush1.bf16.msra.mxu0 %v2445
        %2465 = vmatprep.subr.bf16.mxu0 0
        %2466 = vmatpush2.bf16.msra.mxu0 0
        %2467 = vmatprep.subr.bf16.mxu0 0
        %2468 = vmatpush2.bf16.msra.mxu0 0
        %2469 = vmatprep.subr.bf16.mxu0 0
        %2470 = vmatpush2.bf16.msra.mxu0 0
        %2471 = vmatprep.subr.bf16.mxu0 0
        %2472 = vmatpush2.bf16.msra.mxu0 0
        %2473 = vmatprep.subr.bf16.mxu0 0
        %2474 = vmatpush2.bf16.msra.mxu0 0
        %2475 = vmatprep.subr.bf16.mxu0 0
        %2476 = vmatpush2.bf16.msra.mxu0 0
        %2477 = vmatprep.subr.bf16.mxu0 0
        %2478 = vmatpush2.bf16.msra.mxu0 0
        %2479 = vmatprep.subr.bf16.mxu0 0
        %2480 = vmatpush2.bf16.msra.mxu0 0
        %2481 = vmatprep.mubr.bf16.mxu0 0
        %2482 = vmatmul.mubr.bf16.gmra.mxu0 %v1787
        %v2483 = vpop.f32.mrf.mxu0
        %v2484 = vadd.f32 %v2276, %v2483
        %v2485 = vpop.f32.mrf.mxu0
        %v2486 = vpop.f32.mrf.mxu0
        %v2487 = vpop.f32.mrf.mxu0
        %2488 = vdwg.mxu0
        %v2489 = vpack.c.bf16 %v1824, %v1824
        %v2490 = vpack.c.bf16 %v1876, %v1876
        %v2491 = vpack.c.bf16 %v1928, %v1928
        %v2492 = vpack.c.bf16 %v1980, %v1980
        %v2493 = vpack.c.bf16 %v2076, %v2076
        %v2494 = vpack.c.bf16 %v2128, %v2128
        %v2495 = vpack.c.bf16 %v2180, %v2180
        %v2496 = vpack.c.bf16 %v2232, %v2232
        %vm2497 = vcmask 64512
        %v2499 = vsel %vm2497, %v2489, 0
        %v2502 = vsel %vm2497, %v2493, 0
        %2504 = vmatprep.subr.bf16.mxu0 0
        %2505 = vmatpush1.bf16.xpose.msra.mxu0 0
        %2506 = vmatprep.subr.bf16.mxu0 0
        %2507 = vmatpush1.bf16.xpose.msra.mxu0 0
        %2508 = vmatprep.subr.bf16.mxu0 0
        %2509 = vmatpush1.bf16.xpose.msra.mxu0 0
        %2510 = vmatprep.subr.bf16.mxu0 0
        %2511 = vmatpush1.bf16.xpose.msra.mxu0 0
        %2512 = vmatprep.subr.bf16.mxu0 0
        %2513 = vmatpush1.bf16.xpose.msra.mxu0 0
        %2514 = vmatprep.subr.bf16.mxu0 0
        %2515 = vmatpush1.bf16.xpose.msra.mxu0 0
        %2516 = vmatprep.subr.bf16.mxu0 0
        %2517 = vmatpush1.bf16.xpose.msra.mxu0 0
        %2518 = vmatprep.subr.bf16.mxu0 0
        %2519 = vmatpush1.bf16.xpose.msra.mxu0 %v2502
        %2520 = vmatprep.subr.bf16.mxu0 0
        %2521 = vmatpush2.bf16.xpose.msra.mxu0 0
        %2522 = vmatprep.subr.bf16.mxu0 0
        %2523 = vmatpush2.bf16.xpose.msra.mxu0 0
        %2524 = vmatprep.subr.bf16.mxu0 0
        %2525 = vmatpush2.bf16.xpose.msra.mxu0 0
        %2526 = vmatprep.subr.bf16.mxu0 0
        %2527 = vmatpush2.bf16.xpose.msra.mxu0 0
        %2528 = vmatprep.subr.bf16.mxu0 0
        %2529 = vmatpush2.bf16.xpose.msra.mxu0 0
        %2530 = vmatprep.subr.bf16.mxu0 0
        %2531 = vmatpush2.bf16.xpose.msra.mxu0 0
        %2532 = vmatprep.subr.bf16.mxu0 0
        %2533 = vmatpush2.bf16.xpose.msra.mxu0 0
        %2534 = vmatprep.subr.bf16.mxu0 0
        %2535 = vmatpush2.bf16.xpose.msra.mxu0 0
        %2536 = vmatprep.mubr.bf16.mxu0 0
        %2537 = vmatmul.mubr.bf16.gmra.mxu0 %v2499
        %v2538 = vpop.f32.mrf.mxu0
        %v2539 = vadd.f32 0.0, %v2538
        %v2540 = vpop.f32.mrf.mxu0
        %v2541 = vpop.f32.mrf.mxu0
        %v2542 = vpop.f32.mrf.mxu0
        %2543 = vdwg.mxu0
        %v2545 = vsel %vm2497, %v2490, 0
        %v2548 = vsel %vm2497, %v2494, 0
        %2550 = vmatprep.subr.bf16.mxu0 0
        %2551 = vmatpush1.bf16.xpose.msra.mxu0 0
        %2552 = vmatprep.subr.bf16.mxu0 0
        %2553 = vmatpush1.bf16.xpose.msra.mxu0 0
        %2554 = vmatprep.subr.bf16.mxu0 0
        %2555 = vmatpush1.bf16.xpose.msra.mxu0 0
        %2556 = vmatprep.subr.bf16.mxu0 0
        %2557 = vmatpush1.bf16.xpose.msra.mxu0 0
        %2558 = vmatprep.subr.bf16.mxu0 0
        %2559 = vmatpush1.bf16.xpose.msra.mxu0 0
        %2560 = vmatprep.subr.bf16.mxu0 0
        %2561 = vmatpush1.bf16.xpose.msra.mxu0 0
        %2562 = vmatprep.subr.bf16.mxu0 0
        %2563 = vmatpush1.bf16.xpose.msra.mxu0 0
        %2564 = vmatprep.subr.bf16.mxu0 0
        %2565 = vmatpush1.bf16.xpose.msra.mxu0 %v2548
        %2566 = vmatprep.subr.bf16.mxu0 0
        %2567 = vmatpush2.bf16.xpose.msra.mxu0 0
        %2568 = vmatprep.subr.bf16.mxu0 0
        %2569 = vmatpush2.bf16.xpose.msra.mxu0 0
        %2570 = vmatprep.subr.bf16.mxu0 0
        %2571 = vmatpush2.bf16.xpose.msra.mxu0 0
        %2572 = vmatprep.subr.bf16.mxu0 0
        %2573 = vmatpush2.bf16.xpose.msra.mxu0 0
        %2574 = vmatprep.subr.bf16.mxu0 0
        %2575 = vmatpush2.bf16.xpose.msra.mxu0 0
        %2576 = vmatprep.subr.bf16.mxu0 0
        %2577 = vmatpush2.bf16.xpose.msra.mxu0 0
        %2578 = vmatprep.subr.bf16.mxu0 0
        %2579 = vmatpush2.bf16.xpose.msra.mxu0 0
        %2580 = vmatprep.subr.bf16.mxu0 0
        %2581 = vmatpush2.bf16.xpose.msra.mxu0 0
        %2582 = vmatprep.mubr.bf16.mxu0 0
        %2583 = vmatmul.mubr.bf16.gmra.mxu0 %v2545
        %v2584 = vpop.f32.mrf.mxu0
        %v2585 = vadd.f32 0.0, %v2584
        %v2586 = vpop.f32.mrf.mxu0
        %v2587 = vpop.f32.mrf.mxu0
        %v2588 = vpop.f32.mrf.mxu0
        %2589 = vdwg.mxu0
        %v2591 = vsel %vm2497, %v2491, 0
        %v2594 = vsel %vm2497, %v2495, 0
        %2596 = vmatprep.subr.bf16.mxu0 0
        %2597 = vmatpush1.bf16.xpose.msra.mxu0 0
        %2598 = vmatprep.subr.bf16.mxu0 0
        %2599 = vmatpush1.bf16.xpose.msra.mxu0 0
        %2600 = vmatprep.subr.bf16.mxu0 0
        %2601 = vmatpush1.bf16.xpose.msra.mxu0 0
        %2602 = vmatprep.subr.bf16.mxu0 0
        %2603 = vmatpush1.bf16.xpose.msra.mxu0 0
        %2604 = vmatprep.subr.bf16.mxu0 0
        %2605 = vmatpush1.bf16.xpose.msra.mxu0 0
        %2606 = vmatprep.subr.bf16.mxu0 0
        %2607 = vmatpush1.bf16.xpose.msra.mxu0 0
        %2608 = vmatprep.subr.bf16.mxu0 0
        %2609 = vmatpush1.bf16.xpose.msra.mxu0 0
        %2610 = vmatprep.subr.bf16.mxu0 0
        %2611 = vmatpush1.bf16.xpose.msra.mxu0 %v2594
        %2612 = vmatprep.subr.bf16.mxu0 0
        %2613 = vmatpush2.bf16.xpose.msra.mxu0 0
        %2614 = vmatprep.subr.bf16.mxu0 0
        %2615 = vmatpush2.bf16.xpose.msra.mxu0 0
        %2616 = vmatprep.subr.bf16.mxu0 0
        %2617 = vmatpush2.bf16.xpose.msra.mxu0 0
        %2618 = vmatprep.subr.bf16.mxu0 0
        %2619 = vmatpush2.bf16.xpose.msra.mxu0 0
        %2620 = vmatprep.subr.bf16.mxu0 0
        %2621 = vmatpush2.bf16.xpose.msra.mxu0 0
        %2622 = vmatprep.subr.bf16.mxu0 0
        %2623 = vmatpush2.bf16.xpose.msra.mxu0 0
        %2624 = vmatprep.subr.bf16.mxu0 0
        %2625 = vmatpush2.bf16.xpose.msra.mxu0 0
        %2626 = vmatprep.subr.bf16.mxu0 0
        %2627 = vmatpush2.bf16.xpose.msra.mxu0 0
        %2628 = vmatprep.mubr.bf16.mxu0 0
        %2629 = vmatmul.mubr.bf16.gmra.mxu0 %v2591
        %v2630 = vpop.f32.mrf.mxu0
        %v2631 = vadd.f32 0.0, %v2630
        %v2632 = vpop.f32.mrf.mxu0
        %v2633 = vpop.f32.mrf.mxu0
        %v2634 = vpop.f32.mrf.mxu0
        %2635 = vdwg.mxu0
        %v2637 = vsel %vm2497, %v2492, 0
        %v2640 = vsel %vm2497, %v2496, 0
        %2642 = vmatprep.subr.bf16.mxu0 0
        %2643 = vmatpush1.bf16.xpose.msra.mxu0 0
        %2644 = vmatprep.subr.bf16.mxu0 0
        %2645 = vmatpush1.bf16.xpose.msra.mxu0 0
        %2646 = vmatprep.subr.bf16.mxu0 0
        %2647 = vmatpush1.bf16.xpose.msra.mxu0 0
        %2648 = vmatprep.subr.bf16.mxu0 0
        %2649 = vmatpush1.bf16.xpose.msra.mxu0 0
        %2650 = vmatprep.subr.bf16.mxu0 0
        %2651 = vmatpush1.bf16.xpose.msra.mxu0 0
        %2652 = vmatprep.subr.bf16.mxu0 0
        %2653 = vmatpush1.bf16.xpose.msra.mxu0 0
        %2654 = vmatprep.subr.bf16.mxu0 0
        %2655 = vmatpush1.bf16.xpose.msra.mxu0 0
        %2656 = vmatprep.subr.bf16.mxu0 0
        %2657 = vmatpush1.bf16.xpose.msra.mxu0 %v2640
        %2658 = vmatprep.subr.bf16.mxu0 0
        %2659 = vmatpush2.bf16.xpose.msra.mxu0 0
        %2660 = vmatprep.subr.bf16.mxu0 0
        %2661 = vmatpush2.bf16.xpose.msra.mxu0 0
        %2662 = vmatprep.subr.bf16.mxu0 0
        %2663 = vmatpush2.bf16.xpose.msra.mxu0 0
        %2664 = vmatprep.subr.bf16.mxu0 0
        %2665 = vmatpush2.bf16.xpose.msra.mxu0 0
        %2666 = vmatprep.subr.bf16.mxu0 0
        %2667 = vmatpush2.bf16.xpose.msra.mxu0 0
        %2668 = vmatprep.subr.bf16.mxu0 0
        %2669 = vmatpush2.bf16.xpose.msra.mxu0 0
        %2670 = vmatprep.subr.bf16.mxu0 0
        %2671 = vmatpush2.bf16.xpose.msra.mxu0 0
        %2672 = vmatprep.subr.bf16.mxu0 0
        %2673 = vmatpush2.bf16.xpose.msra.mxu0 0
        %2674 = vmatprep.mubr.bf16.mxu0 0
        %2675 = vmatmul.mubr.bf16.gmra.mxu0 %v2637
        %v2676 = vpop.f32.mrf.mxu0
        %v2677 = vadd.f32 0.0, %v2676
        %v2678 = vpop.f32.mrf.mxu0
        %v2679 = vpop.f32.mrf.mxu0
        %v2680 = vpop.f32.mrf.mxu0
        %2681 = vdwg.mxu0
        %v2682 = vmul.f32 %v2539, 0.35355338
        %v2683 = vmul.f32 %v2585, 0.35355338
        %v2684 = vmul.f32 %v2631, 0.35355338
        %v2685 = vmul.f32 %v2677, 0.35355338
        %v2686 = vsel %vm2497, %v2682, -inf
        %2687 = vmax.xlane.f32.xlu0 %v2686
        %v2688 = vpop.xlane.xlu0 %2687
        %v2689 = vsel %vm2497, %v2683, -inf
        %2690 = vmax.xlane.f32.xlu0 %v2689
        %v2691 = vpop.xlane.xlu0 %2690
        %v2692 = vsel %vm2497, %v2684, -inf
        %2693 = vmax.xlane.f32.xlu0 %v2692
        %v2694 = vpop.xlane.xlu0 %2693
        %v2695 = vsel %vm2497, %v2685, -inf
        %2696 = vmax.xlane.f32.xlu0 %v2695
        %v2697 = vpop.xlane.xlu0 %2696
        %v2698 = vsub.f32 %v2682, %v2688
        %v2699 = vsub.f32 %v2683, %v2691
        %v2700 = vsub.f32 %v2684, %v2694
        %v2701 = vsub.f32 %v2685, %v2697
        %v2702 = vmul.f32 %v2698, 1.442695
        %v2703 = vpow.pop %v2702
        %v2704 = vmul.f32 %v2699, 1.442695
        %v2705 = vpow.pop %v2704
        %v2706 = vmul.f32 %v2700, 1.442695
        %v2707 = vpow.pop %v2706
        %v2708 = vmul.f32 %v2701, 1.442695
        %v2709 = vpow.pop %v2708
        %v2710 = vsel %vm2497, %v2703, 0.0
        %2711 = vadd.xlane.f32.xlu0 %v2710
        %v2712 = vpop.xlane.xlu0 %2711
        %v2713 = vsel %vm2497, %v2705, 0.0
        %2714 = vadd.xlane.f32.xlu0 %v2713
        %v2715 = vpop.xlane.xlu0 %2714
        %v2716 = vsel %vm2497, %v2707, 0.0
        %2717 = vadd.xlane.f32.xlu0 %v2716
        %v2718 = vpop.xlane.xlu0 %2717
        %v2719 = vsel %vm2497, %v2709, 0.0
        %2720 = vadd.xlane.f32.xlu0 %v2719
        %v2721 = vpop.xlane.xlu0 %2720
        %v2722 = vrcp.pop %v2712
        %v2723 = vrcp.pop %v2715
        %v2724 = vrcp.pop %v2718
        %v2725 = vrcp.pop %v2721
        %v2726 = vmul.f32 %v2703, %v2722
        %v2727 = vmul.f32 %v2705, %v2723
        %v2728 = vmul.f32 %v2707, %v2724
        %v2729 = vmul.f32 %v2709, %v2725
        %v2730 = vpack.c.bf16 %v2726, %v2726
        %v2731 = vpack.c.bf16 %v2727, %v2727
        %v2732 = vpack.c.bf16 %v2728, %v2728
        %v2733 = vpack.c.bf16 %v2729, %v2729
        %v2734 = vpack.c.bf16 %v2328, %v2328
        %v2735 = vpack.c.bf16 %v2380, %v2380
        %v2736 = vpack.c.bf16 %v2432, %v2432
        %v2737 = vpack.c.bf16 %v2484, %v2484
        %v2739 = vsel %vm2497, %v2730, 0
        %vm2741 = vcmask 1043456
        %v2743 = vsel %vm2741, %v2734, 0
        %2745 = vmatprep.subr.bf16.mxu0 0
        %2746 = vmatpush1.bf16.msra.mxu0 0
        %2747 = vmatprep.subr.bf16.mxu0 0
        %2748 = vmatpush1.bf16.msra.mxu0 0
        %2749 = vmatprep.subr.bf16.mxu0 0
        %2750 = vmatpush1.bf16.msra.mxu0 0
        %2751 = vmatprep.subr.bf16.mxu0 0
        %2752 = vmatpush1.bf16.msra.mxu0 0
        %2753 = vmatprep.subr.bf16.mxu0 0
        %2754 = vmatpush1.bf16.msra.mxu0 0
        %2755 = vmatprep.subr.bf16.mxu0 0
        %2756 = vmatpush1.bf16.msra.mxu0 0
        %2757 = vmatprep.subr.bf16.mxu0 0
        %2758 = vmatpush1.bf16.msra.mxu0 0
        %2759 = vmatprep.subr.bf16.mxu0 0
        %2760 = vmatpush1.bf16.msra.mxu0 %v2743
        %2761 = vmatprep.subr.bf16.mxu0 0
        %2762 = vmatpush2.bf16.msra.mxu0 0
        %2763 = vmatprep.subr.bf16.mxu0 0
        %2764 = vmatpush2.bf16.msra.mxu0 0
        %2765 = vmatprep.subr.bf16.mxu0 0
        %2766 = vmatpush2.bf16.msra.mxu0 0
        %2767 = vmatprep.subr.bf16.mxu0 0
        %2768 = vmatpush2.bf16.msra.mxu0 0
        %2769 = vmatprep.subr.bf16.mxu0 0
        %2770 = vmatpush2.bf16.msra.mxu0 0
        %2771 = vmatprep.subr.bf16.mxu0 0
        %2772 = vmatpush2.bf16.msra.mxu0 0
        %2773 = vmatprep.subr.bf16.mxu0 0
        %2774 = vmatpush2.bf16.msra.mxu0 0
        %2775 = vmatprep.subr.bf16.mxu0 0
        %2776 = vmatpush2.bf16.msra.mxu0 0
        %2777 = vmatprep.mubr.bf16.mxu0 0
        %2778 = vmatmul.mubr.bf16.gmra.mxu0 %v2739
        %v2779 = vpop.f32.mrf.mxu0
        %v2780 = vadd.f32 0.0, %v2779
        %v2781 = vpop.f32.mrf.mxu0
        %v2782 = vpop.f32.mrf.mxu0
        %v2783 = vpop.f32.mrf.mxu0
        %2784 = vdwg.mxu0
        %v2786 = vsel %vm2497, %v2731, 0
        %v2789 = vsel %vm2741, %v2735, 0
        %2791 = vmatprep.subr.bf16.mxu0 0
        %2792 = vmatpush1.bf16.msra.mxu0 0
        %2793 = vmatprep.subr.bf16.mxu0 0
        %2794 = vmatpush1.bf16.msra.mxu0 0
        %2795 = vmatprep.subr.bf16.mxu0 0
        %2796 = vmatpush1.bf16.msra.mxu0 0
        %2797 = vmatprep.subr.bf16.mxu0 0
        %2798 = vmatpush1.bf16.msra.mxu0 0
        %2799 = vmatprep.subr.bf16.mxu0 0
        %2800 = vmatpush1.bf16.msra.mxu0 0
        %2801 = vmatprep.subr.bf16.mxu0 0
        %2802 = vmatpush1.bf16.msra.mxu0 0
        %2803 = vmatprep.subr.bf16.mxu0 0
        %2804 = vmatpush1.bf16.msra.mxu0 0
        %2805 = vmatprep.subr.bf16.mxu0 0
        %2806 = vmatpush1.bf16.msra.mxu0 %v2789
        %2807 = vmatprep.subr.bf16.mxu0 0
        %2808 = vmatpush2.bf16.msra.mxu0 0
        %2809 = vmatprep.subr.bf16.mxu0 0
        %2810 = vmatpush2.bf16.msra.mxu0 0
        %2811 = vmatprep.subr.bf16.mxu0 0
        %2812 = vmatpush2.bf16.msra.mxu0 0
        %2813 = vmatprep.subr.bf16.mxu0 0
        %2814 = vmatpush2.bf16.msra.mxu0 0
        %2815 = vmatprep.subr.bf16.mxu0 0
        %2816 = vmatpush2.bf16.msra.mxu0 0
        %2817 = vmatprep.subr.bf16.mxu0 0
        %2818 = vmatpush2.bf16.msra.mxu0 0
        %2819 = vmatprep.subr.bf16.mxu0 0
        %2820 = vmatpush2.bf16.msra.mxu0 0
        %2821 = vmatprep.subr.bf16.mxu0 0
        %2822 = vmatpush2.bf16.msra.mxu0 0
        %2823 = vmatprep.mubr.bf16.mxu0 0
        %2824 = vmatmul.mubr.bf16.gmra.mxu0 %v2786
        %v2825 = vpop.f32.mrf.mxu0
        %v2826 = vadd.f32 0.0, %v2825
        %v2827 = vpop.f32.mrf.mxu0
        %v2828 = vpop.f32.mrf.mxu0
        %v2829 = vpop.f32.mrf.mxu0
        %2830 = vdwg.mxu0
        %v2832 = vsel %vm2497, %v2732, 0
        %v2835 = vsel %vm2741, %v2736, 0
        %2837 = vmatprep.subr.bf16.mxu0 0
        %2838 = vmatpush1.bf16.msra.mxu0 0
        %2839 = vmatprep.subr.bf16.mxu0 0
        %2840 = vmatpush1.bf16.msra.mxu0 0
        %2841 = vmatprep.subr.bf16.mxu0 0
        %2842 = vmatpush1.bf16.msra.mxu0 0
        %2843 = vmatprep.subr.bf16.mxu0 0
        %2844 = vmatpush1.bf16.msra.mxu0 0
        %2845 = vmatprep.subr.bf16.mxu0 0
        %2846 = vmatpush1.bf16.msra.mxu0 0
        %2847 = vmatprep.subr.bf16.mxu0 0
        %2848 = vmatpush1.bf16.msra.mxu0 0
        %2849 = vmatprep.subr.bf16.mxu0 0
        %2850 = vmatpush1.bf16.msra.mxu0 0
        %2851 = vmatprep.subr.bf16.mxu0 0
        %2852 = vmatpush1.bf16.msra.mxu0 %v2835
        %2853 = vmatprep.subr.bf16.mxu0 0
        %2854 = vmatpush2.bf16.msra.mxu0 0
        %2855 = vmatprep.subr.bf16.mxu0 0
        %2856 = vmatpush2.bf16.msra.mxu0 0
        %2857 = vmatprep.subr.bf16.mxu0 0
        %2858 = vmatpush2.bf16.msra.mxu0 0
        %2859 = vmatprep.subr.bf16.mxu0 0
        %2860 = vmatpush2.bf16.msra.mxu0 0
        %2861 = vmatprep.subr.bf16.mxu0 0
        %2862 = vmatpush2.bf16.msra.mxu0 0
        %2863 = vmatprep.subr.bf16.mxu0 0
        %2864 = vmatpush2.bf16.msra.mxu0 0
        %2865 = vmatprep.subr.bf16.mxu0 0
        %2866 = vmatpush2.bf16.msra.mxu0 0
        %2867 = vmatprep.subr.bf16.mxu0 0
        %2868 = vmatpush2.bf16.msra.mxu0 0
        %2869 = vmatprep.mubr.bf16.mxu0 0
        %2870 = vmatmul.mubr.bf16.gmra.mxu0 %v2832
        %v2871 = vpop.f32.mrf.mxu0
        %v2872 = vadd.f32 0.0, %v2871
        %v2873 = vpop.f32.mrf.mxu0
        %v2874 = vpop.f32.mrf.mxu0
        %v2875 = vpop.f32.mrf.mxu0
        %2876 = vdwg.mxu0
        %v2878 = vsel %vm2497, %v2733, 0
        %v2881 = vsel %vm2741, %v2737, 0
        %2883 = vmatprep.subr.bf16.mxu0 0
        %2884 = vmatpush1.bf16.msra.mxu0 0
        %2885 = vmatprep.subr.bf16.mxu0 0
        %2886 = vmatpush1.bf16.msra.mxu0 0
        %2887 = vmatprep.subr.bf16.mxu0 0
        %2888 = vmatpush1.bf16.msra.mxu0 0
        %2889 = vmatprep.subr.bf16.mxu0 0
        %2890 = vmatpush1.bf16.msra.mxu0 0
        %2891 = vmatprep.subr.bf16.mxu0 0
        %2892 = vmatpush1.bf16.msra.mxu0 0
        %2893 = vmatprep.subr.bf16.mxu0 0
        %2894 = vmatpush1.bf16.msra.mxu0 0
        %2895 = vmatprep.subr.bf16.mxu0 0
        %2896 = vmatpush1.bf16.msra.mxu0 0
        %2897 = vmatprep.subr.bf16.mxu0 0
        %2898 = vmatpush1.bf16.msra.mxu0 %v2881
        %2899 = vmatprep.subr.bf16.mxu0 0
        %2900 = vmatpush2.bf16.msra.mxu0 0
        %2901 = vmatprep.subr.bf16.mxu0 0
        %2902 = vmatpush2.bf16.msra.mxu0 0
        %2903 = vmatprep.subr.bf16.mxu0 0
        %2904 = vmatpush2.bf16.msra.mxu0 0
        %2905 = vmatprep.subr.bf16.mxu0 0
        %2906 = vmatpush2.bf16.msra.mxu0 0
        %2907 = vmatprep.subr.bf16.mxu0 0
        %2908 = vmatpush2.bf16.msra.mxu0 0
        %2909 = vmatprep.subr.bf16.mxu0 0
        %2910 = vmatpush2.bf16.msra.mxu0 0
        %2911 = vmatprep.subr.bf16.mxu0 0
        %2912 = vmatpush2.bf16.msra.mxu0 0
        %2913 = vmatprep.subr.bf16.mxu0 0
        %2914 = vmatpush2.bf16.msra.mxu0 0
        %2915 = vmatprep.mubr.bf16.mxu0 0
        %2916 = vmatmul.mubr.bf16.gmra.mxu0 %v2878
        %v2917 = vpop.f32.mrf.mxu0
        %v2918 = vadd.f32 0.0, %v2917
        %v2919 = vpop.f32.mrf.mxu0
        %v2920 = vpop.f32.mrf.mxu0
        %v2921 = vpop.f32.mrf.mxu0
        %2922 = vdwg.mxu0
        %v2923 = vpack.c.bf16 %v2780, %v2780
        %v2924 = vpack.c.bf16 %v2826, %v2826
        %v2925 = vpack.c.bf16 %v2872, %v2872
        %v2926 = vpack.c.bf16 %v2918, %v2918
        %v2927 = vld [vmem:[%s31] sm:$0xf]
        %v2928 = vld [vmem:[%s31 + $0x4] sm:$0xf]
        %v2929 = vld [vmem:[%s31 + $0x8] sm:$0xf]
        %v2930 = vld [vmem:[%s31 + $0xc] sm:$0xf]
        %v2932 = vsel %vm2497, %v2923, 0
        %v2935 = vsel %vm2741, %v2927, 0
        %2937 = vmatprep.subr.bf16.mxu0 0
        %2938 = vmatpush1.bf16.msra.mxu0 0
        %2939 = vmatprep.subr.bf16.mxu0 0
        %2940 = vmatpush1.bf16.msra.mxu0 0
        %2941 = vmatprep.subr.bf16.mxu0 0
        %2942 = vmatpush1.bf16.msra.mxu0 0
        %2943 = vmatprep.subr.bf16.mxu0 0
        %2944 = vmatpush1.bf16.msra.mxu0 0
        %2945 = vmatprep.subr.bf16.mxu0 0
        %2946 = vmatpush1.bf16.msra.mxu0 0
        %2947 = vmatprep.subr.bf16.mxu0 0
        %2948 = vmatpush1.bf16.msra.mxu0 0
        %2949 = vmatprep.subr.bf16.mxu0 0
        %2950 = vmatpush1.bf16.msra.mxu0 0
        %2951 = vmatprep.subr.bf16.mxu0 0
        %2952 = vmatpush1.bf16.msra.mxu0 %v2935
        %2953 = vmatprep.subr.bf16.mxu0 0
        %2954 = vmatpush2.bf16.msra.mxu0 0
        %2955 = vmatprep.subr.bf16.mxu0 0
        %2956 = vmatpush2.bf16.msra.mxu0 0
        %2957 = vmatprep.subr.bf16.mxu0 0
        %2958 = vmatpush2.bf16.msra.mxu0 0
        %2959 = vmatprep.subr.bf16.mxu0 0
        %2960 = vmatpush2.bf16.msra.mxu0 0
        %2961 = vmatprep.subr.bf16.mxu0 0
        %2962 = vmatpush2.bf16.msra.mxu0 0
        %2963 = vmatprep.subr.bf16.mxu0 0
        %2964 = vmatpush2.bf16.msra.mxu0 0
        %2965 = vmatprep.subr.bf16.mxu0 0
        %2966 = vmatpush2.bf16.msra.mxu0 0
        %2967 = vmatprep.subr.bf16.mxu0 0
        %2968 = vmatpush2.bf16.msra.mxu0 0
        %2969 = vmatprep.mubr.bf16.mxu0 0
        %2970 = vmatmul.mubr.bf16.gmra.mxu0 %v2932
        %v2971 = vpop.f32.mrf.mxu0
        %v2972 = vadd.f32 0.0, %v2971
        %v2973 = vpop.f32.mrf.mxu0
        %v2974 = vpop.f32.mrf.mxu0
        %v2975 = vpop.f32.mrf.mxu0
        %2976 = vdwg.mxu0
        %v2978 = vsel %vm2497, %v2924, 0
        %v2981 = vsel %vm2741, %v2928, 0
        %2983 = vmatprep.subr.bf16.mxu0 0
        %2984 = vmatpush1.bf16.msra.mxu0 0
        %2985 = vmatprep.subr.bf16.mxu0 0
        %2986 = vmatpush1.bf16.msra.mxu0 0
        %2987 = vmatprep.subr.bf16.mxu0 0
        %2988 = vmatpush1.bf16.msra.mxu0 0
        %2989 = vmatprep.subr.bf16.mxu0 0
        %2990 = vmatpush1.bf16.msra.mxu0 0
        %2991 = vmatprep.subr.bf16.mxu0 0
        %2992 = vmatpush1.bf16.msra.mxu0 0
        %2993 = vmatprep.subr.bf16.mxu0 0
        %2994 = vmatpush1.bf16.msra.mxu0 0
        %2995 = vmatprep.subr.bf16.mxu0 0
        %2996 = vmatpush1.bf16.msra.mxu0 0
        %2997 = vmatprep.subr.bf16.mxu0 0
        %2998 = vmatpush1.bf16.msra.mxu0 %v2981
        %2999 = vmatprep.subr.bf16.mxu0 0
        %3000 = vmatpush2.bf16.msra.mxu0 0
        %3001 = vmatprep.subr.bf16.mxu0 0
        %3002 = vmatpush2.bf16.msra.mxu0 0
        %3003 = vmatprep.subr.bf16.mxu0 0
        %3004 = vmatpush2.bf16.msra.mxu0 0
        %3005 = vmatprep.subr.bf16.mxu0 0
        %3006 = vmatpush2.bf16.msra.mxu0 0
        %3007 = vmatprep.subr.bf16.mxu0 0
        %3008 = vmatpush2.bf16.msra.mxu0 0
        %3009 = vmatprep.subr.bf16.mxu0 0
        %3010 = vmatpush2.bf16.msra.mxu0 0
        %3011 = vmatprep.subr.bf16.mxu0 0
        %3012 = vmatpush2.bf16.msra.mxu0 0
        %3013 = vmatprep.subr.bf16.mxu0 0
        %3014 = vmatpush2.bf16.msra.mxu0 0
        %3015 = vmatprep.mubr.bf16.mxu0 0
        %3016 = vmatmul.mubr.bf16.gmra.mxu0 %v2978
        %v3017 = vpop.f32.mrf.mxu0
        %v3018 = vadd.f32 0.0, %v3017
        %v3019 = vpop.f32.mrf.mxu0
        %v3020 = vpop.f32.mrf.mxu0
        %v3021 = vpop.f32.mrf.mxu0
        %3022 = vdwg.mxu0
        %v3024 = vsel %vm2497, %v2925, 0
        %v3027 = vsel %vm2741, %v2929, 0
        %3029 = vmatprep.subr.bf16.mxu0 0
        %3030 = vmatpush1.bf16.msra.mxu0 0
        %3031 = vmatprep.subr.bf16.mxu0 0
        %3032 = vmatpush1.bf16.msra.mxu0 0
        %3033 = vmatprep.subr.bf16.mxu0 0
        %3034 = vmatpush1.bf16.msra.mxu0 0
        %3035 = vmatprep.subr.bf16.mxu0 0
        %3036 = vmatpush1.bf16.msra.mxu0 0
        %3037 = vmatprep.subr.bf16.mxu0 0
        %3038 = vmatpush1.bf16.msra.mxu0 0
        %3039 = vmatprep.subr.bf16.mxu0 0
        %3040 = vmatpush1.bf16.msra.mxu0 0
        %3041 = vmatprep.subr.bf16.mxu0 0
        %3042 = vmatpush1.bf16.msra.mxu0 0
        %3043 = vmatprep.subr.bf16.mxu0 0
        %3044 = vmatpush1.bf16.msra.mxu0 %v3027
        %3045 = vmatprep.subr.bf16.mxu0 0
        %3046 = vmatpush2.bf16.msra.mxu0 0
        %3047 = vmatprep.subr.bf16.mxu0 0
        %3048 = vmatpush2.bf16.msra.mxu0 0
        %3049 = vmatprep.subr.bf16.mxu0 0
        %3050 = vmatpush2.bf16.msra.mxu0 0
        %3051 = vmatprep.subr.bf16.mxu0 0
        %3052 = vmatpush2.bf16.msra.mxu0 0
        %3053 = vmatprep.subr.bf16.mxu0 0
        %3054 = vmatpush2.bf16.msra.mxu0 0
        %3055 = vmatprep.subr.bf16.mxu0 0
        %3056 = vmatpush2.bf16.msra.mxu0 0
        %3057 = vmatprep.subr.bf16.mxu0 0
        %3058 = vmatpush2.bf16.msra.mxu0 0
        %3059 = vmatprep.subr.bf16.mxu0 0
        %3060 = vmatpush2.bf16.msra.mxu0 0
        %3061 = vmatprep.mubr.bf16.mxu0 0
        %3062 = vmatmul.mubr.bf16.gmra.mxu0 %v3024
        %v3063 = vpop.f32.mrf.mxu0
        %v3064 = vadd.f32 0.0, %v3063
        %v3065 = vpop.f32.mrf.mxu0
        %v3066 = vpop.f32.mrf.mxu0
        %v3067 = vpop.f32.mrf.mxu0
        %3068 = vdwg.mxu0
        %v3070 = vsel %vm2497, %v2926, 0
        %v3073 = vsel %vm2741, %v2930, 0
        %3075 = vmatprep.subr.bf16.mxu0 0
        %3076 = vmatpush1.bf16.msra.mxu0 0
        %3077 = vmatprep.subr.bf16.mxu0 0
        %3078 = vmatpush1.bf16.msra.mxu0 0
        %3079 = vmatprep.subr.bf16.mxu0 0
        %3080 = vmatpush1.bf16.msra.mxu0 0
        %3081 = vmatprep.subr.bf16.mxu0 0
        %3082 = vmatpush1.bf16.msra.mxu0 0
        %3083 = vmatprep.subr.bf16.mxu0 0
        %3084 = vmatpush1.bf16.msra.mxu0 0
        %3085 = vmatprep.subr.bf16.mxu0 0
        %3086 = vmatpush1.bf16.msra.mxu0 0
        %3087 = vmatprep.subr.bf16.mxu0 0
        %3088 = vmatpush1.bf16.msra.mxu0 0
        %3089 = vmatprep.subr.bf16.mxu0 0
        %3090 = vmatpush1.bf16.msra.mxu0 %v3073
        %3091 = vmatprep.subr.bf16.mxu0 0
        %3092 = vmatpush2.bf16.msra.mxu0 0
        %3093 = vmatprep.subr.bf16.mxu0 0
        %3094 = vmatpush2.bf16.msra.mxu0 0
        %3095 = vmatprep.subr.bf16.mxu0 0
        %3096 = vmatpush2.bf16.msra.mxu0 0
        %3097 = vmatprep.subr.bf16.mxu0 0
        %3098 = vmatpush2.bf16.msra.mxu0 0
        %3099 = vmatprep.subr.bf16.mxu0 0
        %3100 = vmatpush2.bf16.msra.mxu0 0
        %3101 = vmatprep.subr.bf16.mxu0 0
        %3102 = vmatpush2.bf16.msra.mxu0 0
        %3103 = vmatprep.subr.bf16.mxu0 0
        %3104 = vmatpush2.bf16.msra.mxu0 0
        %3105 = vmatprep.subr.bf16.mxu0 0
        %3106 = vmatpush2.bf16.msra.mxu0 0
        %3107 = vmatprep.mubr.bf16.mxu0 0
        %3108 = vmatmul.mubr.bf16.gmra.mxu0 %v3070
        %v3109 = vpop.f32.mrf.mxu0
        %v3110 = vadd.f32 0.0, %v3109
        %v3111 = vpop.f32.mrf.mxu0
        %v3112 = vpop.f32.mrf.mxu0
        %v3113 = vpop.f32.mrf.mxu0
        %3114 = vdwg.mxu0
        %v3115 = vsel %vm1785, %v2972, 0.0
        %v3116 = vsel %vm1785, %v3018, 0.0
        %v3117 = vadd.f32 %v3115, %v3116
        %v3118 = vsel %vm1785, %v3064, 0.0
        %v3119 = vadd.f32 %v3117, %v3118
        %v3120 = vsel %vm1785, %v3110, 0.0
        %v3121 = vadd.f32 %v3119, %v3120
        %v3122 = vld [vmem:[%s33] sm:$0x1]
        %v3124 = vlaneseq
        %v3125 = vshrl.u32 %v3124, 7
        %v3126 = vsub.s32 0, %v3125
        %v3127 = vrot.slane %v3122, %v3126
        %v3129 = vadd.f32 %v3121, %v3127
        %v3130 = vadd.f32 %v1667, %v3129
        %v3131 = vsel %vm1785, %v3130, 0.0
        %3132 = vadd.xlane.f32.xlu0 %v3131
        %v3133 = vpop.xlane.xlu0 %3132
        %v3134 = vrcp.pop 32.0
        %v3135 = vmul.f32 %v3133, %v3134
        %v3136 = vsub.f32 %v3130, %v3135
        %v3137 = vmul.f32 %v3136, %v3136
        %v3138 = vsel %vm1785, %v3137, 0.0
        %3139 = vadd.xlane.f32.xlu0 %v3138
        %v3140 = vpop.xlane.xlu0 %3139
        %v3141 = vmul.f32 %v3140, %v3134
        %v3142 = vadd.f32 %v3141, 1e-05
        %v3143 = vrsqrt.pop %v3142
        %v3144 = vmul.f32 %v3136, %v3143
        %v3145 = vld [vmem:[%s35] sm:$0x1]
        %v3147 = vlaneseq
        %v3148 = vshrl.u32 %v3147, 7
        %v3149 = vsub.s32 0, %v3148
        %v3150 = vrot.slane %v3145, %v3149
        %v3152 = vmul.f32 %v3144, %v3150
        %v3153 = vld [vmem:[%s37] sm:$0x1]
        %v3155 = vlaneseq
        %v3156 = vshrl.u32 %v3155, 7
        %v3157 = vsub.s32 0, %v3156
        %v3158 = vrot.slane %v3153, %v3157
        %v3160 = vadd.f32 %v3152, %v3158
        %v3161 = vpack.c.bf16 %v3160, %v3160
        %v3162 = vld [vmem:[%s39] sm:$0xf]
        %v3163 = vld [vmem:[%s39 + $0x4] sm:$0xf]
        %v3164 = vld [vmem:[%s39 + $0x8] sm:$0xf]
        %v3165 = vld [vmem:[%s39 + $0xc] sm:$0xf]
        %v3166 = vld [vmem:[%s41] sm:$0x1]
        %v3168 = vlaneseq
        %v3169 = vshrl.u32 %v3168, 7
        %v3170 = vsub.s32 0, %v3169
        %v3171 = vrot.slane %v3166, %v3170
        %v3177 = vunpack.c.l.b16 %v3162
        %v3178 = vunpack.c.l.b16 %v3163
        %v3179 = vunpack.c.l.b16 %v3164
        %v3180 = vunpack.c.l.b16 %v3165
        %v3181 = vpack.c.b16 %v3178, %v3177
        %v3182 = vpack.c.b16 %v3180, %v3179
        %v3186 = vsel %vm1785, %v3161, 0
        %3188 = vmatprep.subr.bf16.mxu0 0
        %3189 = vmatpush1.bf16.msra.mxu0 0
        %3190 = vmatprep.subr.bf16.mxu0 0
        %3191 = vmatpush1.bf16.msra.mxu0 0
        %3192 = vmatprep.subr.bf16.mxu0 0
        %3193 = vmatpush1.bf16.msra.mxu0 0
        %3194 = vmatprep.subr.bf16.mxu0 0
        %3195 = vmatpush1.bf16.msra.mxu0 0
        %3196 = vmatprep.subr.bf16.mxu0 0
        %3197 = vmatpush1.bf16.msra.mxu0 0
        %3198 = vmatprep.subr.bf16.mxu0 0
        %3199 = vmatpush1.bf16.msra.mxu0 0
        %3200 = vmatprep.subr.bf16.mxu0 0
        %3201 = vmatpush1.bf16.msra.mxu0 %v3182
        %3202 = vmatprep.subr.bf16.mxu0 0
        %3203 = vmatpush1.bf16.msra.mxu0 %v3181
        %3204 = vmatprep.subr.bf16.mxu0 0
        %3205 = vmatpush2.bf16.msra.mxu0 0
        %3206 = vmatprep.subr.bf16.mxu0 0
        %3207 = vmatpush2.bf16.msra.mxu0 0
        %3208 = vmatprep.subr.bf16.mxu0 0
        %3209 = vmatpush2.bf16.msra.mxu0 0
        %3210 = vmatprep.subr.bf16.mxu0 0
        %3211 = vmatpush2.bf16.msra.mxu0 0
        %3212 = vmatprep.subr.bf16.mxu0 0
        %3213 = vmatpush2.bf16.msra.mxu0 0
        %3214 = vmatprep.subr.bf16.mxu0 0
        %3215 = vmatpush2.bf16.msra.mxu0 0
        %3216 = vmatprep.subr.bf16.mxu0 0
        %3217 = vmatpush2.bf16.msra.mxu0 0
        %3218 = vmatprep.subr.bf16.mxu0 0
        %3219 = vmatpush2.bf16.msra.mxu0 0
        %3220 = vmatprep.mubr.bf16.mxu0 0
        %3221 = vmatmul.mubr.bf16.gmra.mxu0 %v3186
        %v3222 = vpop.f32.mrf.mxu0
        %v3223 = vadd.f32 %v3171, %v3222
        %v3224 = vpop.f32.mrf.mxu0
        %v3225 = vpop.f32.mrf.mxu0
        %v3226 = vpop.f32.mrf.mxu0
        %3227 = vdwg.mxu0
        %v3228 = vmax.f32 %v3223, 0.0
        %v3229 = vpack.c.bf16 %v3228, %v3228
        %v3230 = vld [vmem:[%s43] sm:$0xf]
        %v3231 = vld [vmem:[%s43 + $0x4] sm:$0xf]
        %v3232 = vld [vmem:[%s43 + $0x8] sm:$0xf]
        %v3233 = vld [vmem:[%s43 + $0xc] sm:$0xf]
        %v3234 = vld [vmem:[%s43 + $0x10] sm:$0xf]
        %v3235 = vld [vmem:[%s43 + $0x14] sm:$0xf]
        %v3236 = vld [vmem:[%s43 + $0x18] sm:$0xf]
        %v3237 = vld [vmem:[%s43 + $0x1c] sm:$0xf]
        %v3238 = vld [vmem:[%s43 + $0x20] sm:$0xf]
        %v3239 = vld [vmem:[%s43 + $0x24] sm:$0xf]
        %v3240 = vld [vmem:[%s43 + $0x28] sm:$0xf]
        %v3241 = vld [vmem:[%s43 + $0x2c] sm:$0xf]
        %v3242 = vld [vmem:[%s43 + $0x30] sm:$0xf]
        %v3243 = vld [vmem:[%s43 + $0x34] sm:$0xf]
        %v3244 = vld [vmem:[%s43 + $0x38] sm:$0xf]
        %v3245 = vld [vmem:[%s43 + $0x3c] sm:$0xf]
        %v3246 = vld [vmem:[%s45] sm:$0x1]
        %v3248 = vlaneseq
        %v3249 = vshrl.u32 %v3248, 7
        %v3250 = vsub.s32 0, %v3249
        %v3251 = vrot.slane %v3246, %v3250
        %v3269 = vunpack.c.l.b16 %v3230
        %v3270 = vunpack.c.l.b16 %v3231
        %v3271 = vunpack.c.l.b16 %v3232
        %v3272 = vunpack.c.l.b16 %v3233
        %v3273 = vunpack.c.l.b16 %v3234
        %v3274 = vunpack.c.l.b16 %v3235
        %v3275 = vunpack.c.l.b16 %v3236
        %v3276 = vunpack.c.l.b16 %v3237
        %v3277 = vunpack.c.l.b16 %v3238
        %v3278 = vunpack.c.l.b16 %v3239
        %v3279 = vunpack.c.l.b16 %v3240
        %v3280 = vunpack.c.l.b16 %v3241
        %v3281 = vunpack.c.l.b16 %v3242
        %v3282 = vunpack.c.l.b16 %v3243
        %v3283 = vunpack.c.l.b16 %v3244
        %v3284 = vunpack.c.l.b16 %v3245
        %v3285 = vpack.c.b16 %v3270, %v3269
        %v3286 = vpack.c.b16 %v3272, %v3271
        %v3287 = vpack.c.b16 %v3274, %v3273
        %v3288 = vpack.c.b16 %v3276, %v3275
        %v3289 = vpack.c.b16 %v3278, %v3277
        %v3290 = vpack.c.b16 %v3280, %v3279
        %v3291 = vpack.c.b16 %v3282, %v3281
        %v3292 = vpack.c.b16 %v3284, %v3283
        %3301 = vmatprep.subr.bf16.mxu0 0
        %3302 = vmatpush1.bf16.msra.mxu0 %v3292
        %3303 = vmatprep.subr.bf16.mxu0 0
        %3304 = vmatpush1.bf16.msra.mxu0 %v3291
        %3305 = vmatprep.subr.bf16.mxu0 0
        %3306 = vmatpush1.bf16.msra.mxu0 %v3290
        %3307 = vmatprep.subr.bf16.mxu0 0
        %3308 = vmatpush1.bf16.msra.mxu0 %v3289
        %3309 = vmatprep.subr.bf16.mxu0 0
        %3310 = vmatpush1.bf16.msra.mxu0 %v3288
        %3311 = vmatprep.subr.bf16.mxu0 0
        %3312 = vmatpush1.bf16.msra.mxu0 %v3287
        %3313 = vmatprep.subr.bf16.mxu0 0
        %3314 = vmatpush1.bf16.msra.mxu0 %v3286
        %3315 = vmatprep.subr.bf16.mxu0 0
        %3316 = vmatpush1.bf16.msra.mxu0 %v3285
        %3317 = vmatprep.subr.bf16.mxu0 0
        %3318 = vmatpush2.bf16.msra.mxu0 0
        %3319 = vmatprep.subr.bf16.mxu0 0
        %3320 = vmatpush2.bf16.msra.mxu0 0
        %3321 = vmatprep.subr.bf16.mxu0 0
        %3322 = vmatpush2.bf16.msra.mxu0 0
        %3323 = vmatprep.subr.bf16.mxu0 0
        %3324 = vmatpush2.bf16.msra.mxu0 0
        %3325 = vmatprep.subr.bf16.mxu0 0
        %3326 = vmatpush2.bf16.msra.mxu0 0
        %3327 = vmatprep.subr.bf16.mxu0 0
        %3328 = vmatpush2.bf16.msra.mxu0 0
        %3329 = vmatprep.subr.bf16.mxu0 0
        %3330 = vmatpush2.bf16.msra.mxu0 0
        %3331 = vmatprep.subr.bf16.mxu0 0
        %3332 = vmatpush2.bf16.msra.mxu0 0
        %3333 = vmatprep.mubr.bf16.mxu0 0
        %3334 = vmatmul.mubr.bf16.gmra.mxu0 %v3229
        %v3335 = vpop.f32.mrf.mxu0
        %v3336 = vadd.f32 %v3251, %v3335
        %v3337 = vpop.f32.mrf.mxu0
        %v3338 = vpop.f32.mrf.mxu0
        %v3339 = vpop.f32.mrf.mxu0
        %3340 = vdwg.mxu0
        %v3341 = vadd.f32 %v3160, %v3336
        %v3342 = vsel %vm1785, %v3341, 0.0
        %3343 = vadd.xlane.f32.xlu0 %v3342
        %v3344 = vpop.xlane.xlu0 %3343
        %v3345 = vmul.f32 %v3344, %v3134
        %v3346 = vsub.f32 %v3341, %v3345
        %v3347 = vmul.f32 %v3346, %v3346
        %v3348 = vsel %vm1785, %v3347, 0.0
        %3349 = vadd.xlane.f32.xlu0 %v3348
        %v3350 = vpop.xlane.xlu0 %3349
        %v3351 = vmul.f32 %v3350, %v3134
        %v3352 = vadd.f32 %v3351, 1e-05
        %v3353 = vrsqrt.pop %v3352
        %v3354 = vmul.f32 %v3346, %v3353
        %v3355 = vld [vmem:[%s47] sm:$0x1]
        %v3357 = vlaneseq
        %v3358 = vshrl.u32 %v3357, 7
        %v3359 = vsub.s32 0, %v3358
        %v3360 = vrot.slane %v3355, %v3359
        %v3362 = vmul.f32 %v3354, %v3360
        %v3363 = vld [vmem:[%s49] sm:$0x1]
        %v3365 = vlaneseq
        %v3366 = vshrl.u32 %v3365, 7
        %v3367 = vsub.s32 0, %v3366
        %v3368 = vrot.slane %v3363, %v3367
        %v3370 = vadd.f32 %v3362, %v3368
        %v3371 = vpack.c.bf16 %v1723, %v1723
        %v3372 = vld [vmem:[%s51] sm:$0xf]
        %v3373 = vld [vmem:[%s51 + $0x4] sm:$0xf]
        %v3374 = vld [vmem:[%s51 + $0x8] sm:$0xf]
        %v3375 = vld [vmem:[%s51 + $0xc] sm:$0xf]
        %v3376 = vld [vmem:[%s51 + $0x10] sm:$0xf]
        %v3377 = vld [vmem:[%s51 + $0x14] sm:$0xf]
        %v3378 = vld [vmem:[%s51 + $0x18] sm:$0xf]
        %v3379 = vld [vmem:[%s51 + $0x1c] sm:$0xf]
        %v3380 = vld [vmem:[%s51 + $0x20] sm:$0xf]
        %v3381 = vld [vmem:[%s51 + $0x24] sm:$0xf]
        %v3382 = vld [vmem:[%s51 + $0x28] sm:$0xf]
        %v3383 = vld [vmem:[%s51 + $0x2c] sm:$0xf]
        %v3384 = vld [vmem:[%s51 + $0x30] sm:$0xf]
        %v3385 = vld [vmem:[%s51 + $0x34] sm:$0xf]
        %v3386 = vld [vmem:[%s51 + $0x38] sm:$0xf]
        %v3387 = vld [vmem:[%s51 + $0x3c] sm:$0xf]
        %v3388 = vld [vmem:[%s53] sm:$0x1]
        %v3389 = vld [vmem:[%s53 + $0x1] sm:$0x1]
        %v3390 = vld [vmem:[%s53 + $0x2] sm:$0x1]
        %v3391 = vld [vmem:[%s53 + $0x3] sm:$0x1]
        %v3396 = vlaneseq
        %v3397 = vshrl.u32 %v3396, 7
        %v3398 = vsub.s32 0, %v3397
        %v3399 = vrot.slane %v3388, %v3398
        %v3400 = vlaneseq
        %v3401 = vshrl.u32 %v3400, 7
        %v3402 = vsub.s32 0, %v3401
        %v3403 = vrot.slane %v3389, %v3402
        %v3404 = vlaneseq
        %v3405 = vshrl.u32 %v3404, 7
        %v3406 = vsub.s32 0, %v3405
        %v3407 = vrot.slane %v3390, %v3406
        %v3408 = vlaneseq
        %v3409 = vshrl.u32 %v3408, 7
        %v3410 = vsub.s32 0, %v3409
        %v3411 = vrot.slane %v3391, %v3410
        %v3420 = vunpack.c.l.b16 %v3372
        %v3421 = vunpack.c.l.b16 %v3373
        %v3422 = vunpack.c.l.b16 %v3374
        %v3423 = vunpack.c.l.b16 %v3375
        %v3424 = vpack.c.b16 %v3421, %v3420
        %v3425 = vpack.c.b16 %v3423, %v3422
        %v3429 = vsel %vm1785, %v3371, 0
        %3431 = vmatprep.subr.bf16.mxu0 0
        %3432 = vmatpush1.bf16.msra.mxu0 0
        %3433 = vmatprep.subr.bf16.mxu0 0
        %3434 = vmatpush1.bf16.msra.mxu0 0
        %3435 = vmatprep.subr.bf16.mxu0 0
        %3436 = vmatpush1.bf16.msra.mxu0 0
        %3437 = vmatprep.subr.bf16.mxu0 0
        %3438 = vmatpush1.bf16.msra.mxu0 0
        %3439 = vmatprep.subr.bf16.mxu0 0
        %3440 = vmatpush1.bf16.msra.mxu0 0
        %3441 = vmatprep.subr.bf16.mxu0 0
        %3442 = vmatpush1.bf16.msra.mxu0 0
        %3443 = vmatprep.subr.bf16.mxu0 0
        %3444 = vmatpush1.bf16.msra.mxu0 %v3425
        %3445 = vmatprep.subr.bf16.mxu0 0
        %3446 = vmatpush1.bf16.msra.mxu0 %v3424
        %3447 = vmatprep.subr.bf16.mxu0 0
        %3448 = vmatpush2.bf16.msra.mxu0 0
        %3449 = vmatprep.subr.bf16.mxu0 0
        %3450 = vmatpush2.bf16.msra.mxu0 0
        %3451 = vmatprep.subr.bf16.mxu0 0
        %3452 = vmatpush2.bf16.msra.mxu0 0
        %3453 = vmatprep.subr.bf16.mxu0 0
        %3454 = vmatpush2.bf16.msra.mxu0 0
        %3455 = vmatprep.subr.bf16.mxu0 0
        %3456 = vmatpush2.bf16.msra.mxu0 0
        %3457 = vmatprep.subr.bf16.mxu0 0
        %3458 = vmatpush2.bf16.msra.mxu0 0
        %3459 = vmatprep.subr.bf16.mxu0 0
        %3460 = vmatpush2.bf16.msra.mxu0 0
        %3461 = vmatprep.subr.bf16.mxu0 0
        %3462 = vmatpush2.bf16.msra.mxu0 0
        %3463 = vmatprep.mubr.bf16.mxu0 0
        %3464 = vmatmul.mubr.bf16.gmra.mxu0 %v3429
        %v3465 = vpop.f32.mrf.mxu0
        %v3466 = vadd.f32 %v3399, %v3465
        %v3467 = vpop.f32.mrf.mxu0
        %v3468 = vpop.f32.mrf.mxu0
        %v3469 = vpop.f32.mrf.mxu0
        %3470 = vdwg.mxu0
        %v3475 = vunpack.c.l.b16 %v3376
        %v3476 = vunpack.c.l.b16 %v3377
        %v3477 = vunpack.c.l.b16 %v3378
        %v3478 = vunpack.c.l.b16 %v3379
        %v3479 = vpack.c.b16 %v3476, %v3475
        %v3480 = vpack.c.b16 %v3478, %v3477
        %3483 = vmatprep.subr.bf16.mxu0 0
        %3484 = vmatpush1.bf16.msra.mxu0 0
        %3485 = vmatprep.subr.bf16.mxu0 0
        %3486 = vmatpush1.bf16.msra.mxu0 0
        %3487 = vmatprep.subr.bf16.mxu0 0
        %3488 = vmatpush1.bf16.msra.mxu0 0
        %3489 = vmatprep.subr.bf16.mxu0 0
        %3490 = vmatpush1.bf16.msra.mxu0 0
        %3491 = vmatprep.subr.bf16.mxu0 0
        %3492 = vmatpush1.bf16.msra.mxu0 0
        %3493 = vmatprep.subr.bf16.mxu0 0
        %3494 = vmatpush1.bf16.msra.mxu0 0
        %3495 = vmatprep.subr.bf16.mxu0 0
        %3496 = vmatpush1.bf16.msra.mxu0 %v3480
        %3497 = vmatprep.subr.bf16.mxu0 0
        %3498 = vmatpush1.bf16.msra.mxu0 %v3479
        %3499 = vmatprep.subr.bf16.mxu0 0
        %3500 = vmatpush2.bf16.msra.mxu0 0
        %3501 = vmatprep.subr.bf16.mxu0 0
        %3502 = vmatpush2.bf16.msra.mxu0 0
        %3503 = vmatprep.subr.bf16.mxu0 0
        %3504 = vmatpush2.bf16.msra.mxu0 0
        %3505 = vmatprep.subr.bf16.mxu0 0
        %3506 = vmatpush2.bf16.msra.mxu0 0
        %3507 = vmatprep.subr.bf16.mxu0 0
        %3508 = vmatpush2.bf16.msra.mxu0 0
        %3509 = vmatprep.subr.bf16.mxu0 0
        %3510 = vmatpush2.bf16.msra.mxu0 0
        %3511 = vmatprep.subr.bf16.mxu0 0
        %3512 = vmatpush2.bf16.msra.mxu0 0
        %3513 = vmatprep.subr.bf16.mxu0 0
        %3514 = vmatpush2.bf16.msra.mxu0 0
        %3515 = vmatprep.mubr.bf16.mxu0 0
        %3516 = vmatmul.mubr.bf16.gmra.mxu0 %v3429
        %v3517 = vpop.f32.mrf.mxu0
        %v3518 = vadd.f32 %v3403, %v3517
        %v3519 = vpop.f32.mrf.mxu0
        %v3520 = vpop.f32.mrf.mxu0
        %v3521 = vpop.f32.mrf.mxu0
        %3522 = vdwg.mxu0
        %v3527 = vunpack.c.l.b16 %v3380
        %v3528 = vunpack.c.l.b16 %v3381
        %v3529 = vunpack.c.l.b16 %v3382
        %v3530 = vunpack.c.l.b16 %v3383
        %v3531 = vpack.c.b16 %v3528, %v3527
        %v3532 = vpack.c.b16 %v3530, %v3529
        %3535 = vmatprep.subr.bf16.mxu0 0
        %3536 = vmatpush1.bf16.msra.mxu0 0
        %3537 = vmatprep.subr.bf16.mxu0 0
        %3538 = vmatpush1.bf16.msra.mxu0 0
        %3539 = vmatprep.subr.bf16.mxu0 0
        %3540 = vmatpush1.bf16.msra.mxu0 0
        %3541 = vmatprep.subr.bf16.mxu0 0
        %3542 = vmatpush1.bf16.msra.mxu0 0
        %3543 = vmatprep.subr.bf16.mxu0 0
        %3544 = vmatpush1.bf16.msra.mxu0 0
        %3545 = vmatprep.subr.bf16.mxu0 0
        %3546 = vmatpush1.bf16.msra.mxu0 0
        %3547 = vmatprep.subr.bf16.mxu0 0
        %3548 = vmatpush1.bf16.msra.mxu0 %v3532
        %3549 = vmatprep.subr.bf16.mxu0 0
        %3550 = vmatpush1.bf16.msra.mxu0 %v3531
        %3551 = vmatprep.subr.bf16.mxu0 0
        %3552 = vmatpush2.bf16.msra.mxu0 0
        %3553 = vmatprep.subr.bf16.mxu0 0
        %3554 = vmatpush2.bf16.msra.mxu0 0
        %3555 = vmatprep.subr.bf16.mxu0 0
        %3556 = vmatpush2.bf16.msra.mxu0 0
        %3557 = vmatprep.subr.bf16.mxu0 0
        %3558 = vmatpush2.bf16.msra.mxu0 0
        %3559 = vmatprep.subr.bf16.mxu0 0
        %3560 = vmatpush2.bf16.msra.mxu0 0
        %3561 = vmatprep.subr.bf16.mxu0 0
        %3562 = vmatpush2.bf16.msra.mxu0 0
        %3563 = vmatprep.subr.bf16.mxu0 0
        %3564 = vmatpush2.bf16.msra.mxu0 0
        %3565 = vmatprep.subr.bf16.mxu0 0
        %3566 = vmatpush2.bf16.msra.mxu0 0
        %3567 = vmatprep.mubr.bf16.mxu0 0
        %3568 = vmatmul.mubr.bf16.gmra.mxu0 %v3429
        %v3569 = vpop.f32.mrf.mxu0
        %v3570 = vadd.f32 %v3407, %v3569
        %v3571 = vpop.f32.mrf.mxu0
        %v3572 = vpop.f32.mrf.mxu0
        %v3573 = vpop.f32.mrf.mxu0
        %3574 = vdwg.mxu0
        %v3579 = vunpack.c.l.b16 %v3384
        %v3580 = vunpack.c.l.b16 %v3385
        %v3581 = vunpack.c.l.b16 %v3386
        %v3582 = vunpack.c.l.b16 %v3387
        %v3583 = vpack.c.b16 %v3580, %v3579
        %v3584 = vpack.c.b16 %v3582, %v3581
        %3587 = vmatprep.subr.bf16.mxu0 0
        %3588 = vmatpush1.bf16.msra.mxu0 0
        %3589 = vmatprep.subr.bf16.mxu0 0
        %3590 = vmatpush1.bf16.msra.mxu0 0
        %3591 = vmatprep.subr.bf16.mxu0 0
        %3592 = vmatpush1.bf16.msra.mxu0 0
        %3593 = vmatprep.subr.bf16.mxu0 0
        %3594 = vmatpush1.bf16.msra.mxu0 0
        %3595 = vmatprep.subr.bf16.mxu0 0
        %3596 = vmatpush1.bf16.msra.mxu0 0
        %3597 = vmatprep.subr.bf16.mxu0 0
        %3598 = vmatpush1.bf16.msra.mxu0 0
        %3599 = vmatprep.subr.bf16.mxu0 0
        %3600 = vmatpush1.bf16.msra.mxu0 %v3584
        %3601 = vmatprep.subr.bf16.mxu0 0
        %3602 = vmatpush1.bf16.msra.mxu0 %v3583
        %3603 = vmatprep.subr.bf16.mxu0 0
        %3604 = vmatpush2.bf16.msra.mxu0 0
        %3605 = vmatprep.subr.bf16.mxu0 0
        %3606 = vmatpush2.bf16.msra.mxu0 0
        %3607 = vmatprep.subr.bf16.mxu0 0
        %3608 = vmatpush2.bf16.msra.mxu0 0
        %3609 = vmatprep.subr.bf16.mxu0 0
        %3610 = vmatpush2.bf16.msra.mxu0 0
        %3611 = vmatprep.subr.bf16.mxu0 0
        %3612 = vmatpush2.bf16.msra.mxu0 0
        %3613 = vmatprep.subr.bf16.mxu0 0
        %3614 = vmatpush2.bf16.msra.mxu0 0
        %3615 = vmatprep.subr.bf16.mxu0 0
        %3616 = vmatpush2.bf16.msra.mxu0 0
        %3617 = vmatprep.subr.bf16.mxu0 0
        %3618 = vmatpush2.bf16.msra.mxu0 0
        %3619 = vmatprep.mubr.bf16.mxu0 0
        %3620 = vmatmul.mubr.bf16.gmra.mxu0 %v3429
        %v3621 = vpop.f32.mrf.mxu0
        %v3622 = vadd.f32 %v3411, %v3621
        %v3623 = vpop.f32.mrf.mxu0
        %v3624 = vpop.f32.mrf.mxu0
        %v3625 = vpop.f32.mrf.mxu0
        %3626 = vdwg.mxu0
        %v3627 = vld [vmem:[%s55] sm:$0xf]
        %v3628 = vld [vmem:[%s55 + $0x4] sm:$0xf]
        %v3629 = vld [vmem:[%s55 + $0x8] sm:$0xf]
        %v3630 = vld [vmem:[%s55 + $0xc] sm:$0xf]
        %v3631 = vld [vmem:[%s55 + $0x10] sm:$0xf]
        %v3632 = vld [vmem:[%s55 + $0x14] sm:$0xf]
        %v3633 = vld [vmem:[%s55 + $0x18] sm:$0xf]
        %v3634 = vld [vmem:[%s55 + $0x1c] sm:$0xf]
        %v3635 = vld [vmem:[%s55 + $0x20] sm:$0xf]
        %v3636 = vld [vmem:[%s55 + $0x24] sm:$0xf]
        %v3637 = vld [vmem:[%s55 + $0x28] sm:$0xf]
        %v3638 = vld [vmem:[%s55 + $0x2c] sm:$0xf]
        %v3639 = vld [vmem:[%s55 + $0x30] sm:$0xf]
        %v3640 = vld [vmem:[%s55 + $0x34] sm:$0xf]
        %v3641 = vld [vmem:[%s55 + $0x38] sm:$0xf]
        %v3642 = vld [vmem:[%s55 + $0x3c] sm:$0xf]
        %v3643 = vld [vmem:[%s57] sm:$0x1]
        %v3644 = vld [vmem:[%s57 + $0x1] sm:$0x1]
        %v3645 = vld [vmem:[%s57 + $0x2] sm:$0x1]
        %v3646 = vld [vmem:[%s57 + $0x3] sm:$0x1]
        %v3651 = vlaneseq
        %v3652 = vshrl.u32 %v3651, 7
        %v3653 = vsub.s32 0, %v3652
        %v3654 = vrot.slane %v3643, %v3653
        %v3655 = vlaneseq
        %v3656 = vshrl.u32 %v3655, 7
        %v3657 = vsub.s32 0, %v3656
        %v3658 = vrot.slane %v3644, %v3657
        %v3659 = vlaneseq
        %v3660 = vshrl.u32 %v3659, 7
        %v3661 = vsub.s32 0, %v3660
        %v3662 = vrot.slane %v3645, %v3661
        %v3663 = vlaneseq
        %v3664 = vshrl.u32 %v3663, 7
        %v3665 = vsub.s32 0, %v3664
        %v3666 = vrot.slane %v3646, %v3665
        %v3675 = vunpack.c.l.b16 %v3627
        %v3676 = vunpack.c.l.b16 %v3628
        %v3677 = vunpack.c.l.b16 %v3629
        %v3678 = vunpack.c.l.b16 %v3630
        %v3679 = vpack.c.b16 %v3676, %v3675
        %v3680 = vpack.c.b16 %v3678, %v3677
        %3683 = vmatprep.subr.bf16.mxu0 0
        %3684 = vmatpush1.bf16.msra.mxu0 0
        %3685 = vmatprep.subr.bf16.mxu0 0
        %3686 = vmatpush1.bf16.msra.mxu0 0
        %3687 = vmatprep.subr.bf16.mxu0 0
        %3688 = vmatpush1.bf16.msra.mxu0 0
        %3689 = vmatprep.subr.bf16.mxu0 0
        %3690 = vmatpush1.bf16.msra.mxu0 0
        %3691 = vmatprep.subr.bf16.mxu0 0
        %3692 = vmatpush1.bf16.msra.mxu0 0
        %3693 = vmatprep.subr.bf16.mxu0 0
        %3694 = vmatpush1.bf16.msra.mxu0 0
        %3695 = vmatprep.subr.bf16.mxu0 0
        %3696 = vmatpush1.bf16.msra.mxu0 %v3680
        %3697 = vmatprep.subr.bf16.mxu0 0
        %3698 = vmatpush1.bf16.msra.mxu0 %v3679
        %3699 = vmatprep.subr.bf16.mxu0 0
        %3700 = vmatpush2.bf16.msra.mxu0 0
        %3701 = vmatprep.subr.bf16.mxu0 0
        %3702 = vmatpush2.bf16.msra.mxu0 0
        %3703 = vmatprep.subr.bf16.mxu0 0
        %3704 = vmatpush2.bf16.msra.mxu0 0
        %3705 = vmatprep.subr.bf16.mxu0 0
        %3706 = vmatpush2.bf16.msra.mxu0 0
        %3707 = vmatprep.subr.bf16.mxu0 0
        %3708 = vmatpush2.bf16.msra.mxu0 0
        %3709 = vmatprep.subr.bf16.mxu0 0
        %3710 = vmatpush2.bf16.msra.mxu0 0
        %3711 = vmatprep.subr.bf16.mxu0 0
        %3712 = vmatpush2.bf16.msra.mxu0 0
        %3713 = vmatprep.subr.bf16.mxu0 0
        %3714 = vmatpush2.bf16.msra.mxu0 0
        %3715 = vmatprep.mubr.bf16.mxu0 0
        %3716 = vmatmul.mubr.bf16.gmra.mxu0 %v3429
        %v3717 = vpop.f32.mrf.mxu0
        %v3718 = vadd.f32 %v3654, %v3717
        %v3719 = vpop.f32.mrf.mxu0
        %v3720 = vpop.f32.mrf.mxu0
        %v3721 = vpop.f32.mrf.mxu0
        %3722 = vdwg.mxu0
        %v3727 = vunpack.c.l.b16 %v3631
        %v3728 = vunpack.c.l.b16 %v3632
        %v3729 = vunpack.c.l.b16 %v3633
        %v3730 = vunpack.c.l.b16 %v3634
        %v3731 = vpack.c.b16 %v3728, %v3727
        %v3732 = vpack.c.b16 %v3730, %v3729
        %3735 = vmatprep.subr.bf16.mxu0 0
        %3736 = vmatpush1.bf16.msra.mxu0 0
        %3737 = vmatprep.subr.bf16.mxu0 0
        %3738 = vmatpush1.bf16.msra.mxu0 0
        %3739 = vmatprep.subr.bf16.mxu0 0
        %3740 = vmatpush1.bf16.msra.mxu0 0
        %3741 = vmatprep.subr.bf16.mxu0 0
        %3742 = vmatpush1.bf16.msra.mxu0 0
        %3743 = vmatprep.subr.bf16.mxu0 0
        %3744 = vmatpush1.bf16.msra.mxu0 0
        %3745 = vmatprep.subr.bf16.mxu0 0
        %3746 = vmatpush1.bf16.msra.mxu0 0
        %3747 = vmatprep.subr.bf16.mxu0 0
        %3748 = vmatpush1.bf16.msra.mxu0 %v3732
        %3749 = vmatprep.subr.bf16.mxu0 0
        %3750 = vmatpush1.bf16.msra.mxu0 %v3731
        %3751 = vmatprep.subr.bf16.mxu0 0
        %3752 = vmatpush2.bf16.msra.mxu0 0
        %3753 = vmatprep.subr.bf16.mxu0 0
        %3754 = vmatpush2.bf16.msra.mxu0 0
        %3755 = vmatprep.subr.bf16.mxu0 0
        %3756 = vmatpush2.bf16.msra.mxu0 0
        %3757 = vmatprep.subr.bf16.mxu0 0
        %3758 = vmatpush2.bf16.msra.mxu0 0
        %3759 = vmatprep.subr.bf16.mxu0 0
        %3760 = vmatpush2.bf16.msra.mxu0 0
        %3761 = vmatprep.subr.bf16.mxu0 0
        %3762 = vmatpush2.bf16.msra.mxu0 0
        %3763 = vmatprep.subr.bf16.mxu0 0
        %3764 = vmatpush2.bf16.msra.mxu0 0
        %3765 = vmatprep.subr.bf16.mxu0 0
        %3766 = vmatpush2.bf16.msra.mxu0 0
        %3767 = vmatprep.mubr.bf16.mxu0 0
        %3768 = vmatmul.mubr.bf16.gmra.mxu0 %v3429
        %v3769 = vpop.f32.mrf.mxu0
        %v3770 = vadd.f32 %v3658, %v3769
        %v3771 = vpop.f32.mrf.mxu0
        %v3772 = vpop.f32.mrf.mxu0
        %v3773 = vpop.f32.mrf.mxu0
        %3774 = vdwg.mxu0
        %v3779 = vunpack.c.l.b16 %v3635
        %v3780 = vunpack.c.l.b16 %v3636
        %v3781 = vunpack.c.l.b16 %v3637
        %v3782 = vunpack.c.l.b16 %v3638
        %v3783 = vpack.c.b16 %v3780, %v3779
        %v3784 = vpack.c.b16 %v3782, %v3781
        %3787 = vmatprep.subr.bf16.mxu0 0
        %3788 = vmatpush1.bf16.msra.mxu0 0
        %3789 = vmatprep.subr.bf16.mxu0 0
        %3790 = vmatpush1.bf16.msra.mxu0 0
        %3791 = vmatprep.subr.bf16.mxu0 0
        %3792 = vmatpush1.bf16.msra.mxu0 0
        %3793 = vmatprep.subr.bf16.mxu0 0
        %3794 = vmatpush1.bf16.msra.mxu0 0
        %3795 = vmatprep.subr.bf16.mxu0 0
        %3796 = vmatpush1.bf16.msra.mxu0 0
        %3797 = vmatprep.subr.bf16.mxu0 0
        %3798 = vmatpush1.bf16.msra.mxu0 0
        %3799 = vmatprep.subr.bf16.mxu0 0
        %3800 = vmatpush1.bf16.msra.mxu0 %v3784
        %3801 = vmatprep.subr.bf16.mxu0 0
        %3802 = vmatpush1.bf16.msra.mxu0 %v3783
        %3803 = vmatprep.subr.bf16.mxu0 0
        %3804 = vmatpush2.bf16.msra.mxu0 0
        %3805 = vmatprep.subr.bf16.mxu0 0
        %3806 = vmatpush2.bf16.msra.mxu0 0
        %3807 = vmatprep.subr.bf16.mxu0 0
        %3808 = vmatpush2.bf16.msra.mxu0 0
        %3809 = vmatprep.subr.bf16.mxu0 0
        %3810 = vmatpush2.bf16.msra.mxu0 0
        %3811 = vmatprep.subr.bf16.mxu0 0
        %3812 = vmatpush2.bf16.msra.mxu0 0
        %3813 = vmatprep.subr.bf16.mxu0 0
        %3814 = vmatpush2.bf16.msra.mxu0 0
        %3815 = vmatprep.subr.bf16.mxu0 0
        %3816 = vmatpush2.bf16.msra.mxu0 0
        %3817 = vmatprep.subr.bf16.mxu0 0
        %3818 = vmatpush2.bf16.msra.mxu0 0
        %3819 = vmatprep.mubr.bf16.mxu0 0
        %3820 = vmatmul.mubr.bf16.gmra.mxu0 %v3429
        %v3821 = vpop.f32.mrf.mxu0
        %v3822 = vadd.f32 %v3662, %v3821
        %v3823 = vpop.f32.mrf.mxu0
        %v3824 = vpop.f32.mrf.mxu0
        %v3825 = vpop.f32.mrf.mxu0
        %3826 = vdwg.mxu0
        %v3831 = vunpack.c.l.b16 %v3639
        %v3832 = vunpack.c.l.b16 %v3640
        %v3833 = vunpack.c.l.b16 %v3641
        %v3834 = vunpack.c.l.b16 %v3642
        %v3835 = vpack.c.b16 %v3832, %v3831
        %v3836 = vpack.c.b16 %v3834, %v3833
        %3839 = vmatprep.subr.bf16.mxu0 0
        %3840 = vmatpush1.bf16.msra.mxu0 0
        %3841 = vmatprep.subr.bf16.mxu0 0
        %3842 = vmatpush1.bf16.msra.mxu0 0
        %3843 = vmatprep.subr.bf16.mxu0 0
        %3844 = vmatpush1.bf16.msra.mxu0 0
        %3845 = vmatprep.subr.bf16.mxu0 0
        %3846 = vmatpush1.bf16.msra.mxu0 0
        %3847 = vmatprep.subr.bf16.mxu0 0
        %3848 = vmatpush1.bf16.msra.mxu0 0
        %3849 = vmatprep.subr.bf16.mxu0 0
        %3850 = vmatpush1.bf16.msra.mxu0 0
        %3851 = vmatprep.subr.bf16.mxu0 0
        %3852 = vmatpush1.bf16.msra.mxu0 %v3836
        %3853 = vmatprep.subr.bf16.mxu0 0
        %3854 = vmatpush1.bf16.msra.mxu0 %v3835
        %3855 = vmatprep.subr.bf16.mxu0 0
        %3856 = vmatpush2.bf16.msra.mxu0 0
        %3857 = vmatprep.subr.bf16.mxu0 0
        %3858 = vmatpush2.bf16.msra.mxu0 0
        %3859 = vmatprep.subr.bf16.mxu0 0
        %3860 = vmatpush2.bf16.msra.mxu0 0
        %3861 = vmatprep.subr.bf16.mxu0 0
        %3862 = vmatpush2.bf16.msra.mxu0 0
        %3863 = vmatprep.subr.bf16.mxu0 0
        %3864 = vmatpush2.bf16.msra.mxu0 0
        %3865 = vmatprep.subr.bf16.mxu0 0
        %3866 = vmatpush2.bf16.msra.mxu0 0
        %3867 = vmatprep.subr.bf16.mxu0 0
        %3868 = vmatpush2.bf16.msra.mxu0 0
        %3869 = vmatprep.subr.bf16.mxu0 0
        %3870 = vmatpush2.bf16.msra.mxu0 0
        %3871 = vmatprep.mubr.bf16.mxu0 0
        %3872 = vmatmul.mubr.bf16.gmra.mxu0 %v3429
        %v3873 = vpop.f32.mrf.mxu0
        %v3874 = vadd.f32 %v3666, %v3873
        %v3875 = vpop.f32.mrf.mxu0
        %v3876 = vpop.f32.mrf.mxu0
        %v3877 = vpop.f32.mrf.mxu0
        %3878 = vdwg.mxu0
        %v3879 = vld [vmem:[%s59] sm:$0xf]
        %v3880 = vld [vmem:[%s59 + $0x4] sm:$0xf]
        %v3881 = vld [vmem:[%s59 + $0x8] sm:$0xf]
        %v3882 = vld [vmem:[%s59 + $0xc] sm:$0xf]
        %v3883 = vld [vmem:[%s59 + $0x10] sm:$0xf]
        %v3884 = vld [vmem:[%s59 + $0x14] sm:$0xf]
        %v3885 = vld [vmem:[%s59 + $0x18] sm:$0xf]
        %v3886 = vld [vmem:[%s59 + $0x1c] sm:$0xf]
        %v3887 = vld [vmem:[%s59 + $0x20] sm:$0xf]
        %v3888 = vld [vmem:[%s59 + $0x24] sm:$0xf]
        %v3889 = vld [vmem:[%s59 + $0x28] sm:$0xf]
        %v3890 = vld [vmem:[%s59 + $0x2c] sm:$0xf]
        %v3891 = vld [vmem:[%s59 + $0x30] sm:$0xf]
        %v3892 = vld [vmem:[%s59 + $0x34] sm:$0xf]
        %v3893 = vld [vmem:[%s59 + $0x38] sm:$0xf]
        %v3894 = vld [vmem:[%s59 + $0x3c] sm:$0xf]
        %v3895 = vld [vmem:[%s61] sm:$0x1]
        %v3896 = vld [vmem:[%s61 + $0x1] sm:$0x1]
        %v3897 = vld [vmem:[%s61 + $0x2] sm:$0x1]
        %v3898 = vld [vmem:[%s61 + $0x3] sm:$0x1]
        %v3903 = vlaneseq
        %v3904 = vshrl.u32 %v3903, 7
        %v3905 = vsub.s32 0, %v3904
        %v3906 = vrot.slane %v3895, %v3905
        %v3907 = vlaneseq
        %v3908 = vshrl.u32 %v3907, 7
        %v3909 = vsub.s32 0, %v3908
        %v3910 = vrot.slane %v3896, %v3909
        %v3911 = vlaneseq
        %v3912 = vshrl.u32 %v3911, 7
        %v3913 = vsub.s32 0, %v3912
        %v3914 = vrot.slane %v3897, %v3913
        %v3915 = vlaneseq
        %v3916 = vshrl.u32 %v3915, 7
        %v3917 = vsub.s32 0, %v3916
        %v3918 = vrot.slane %v3898, %v3917
        %v3927 = vunpack.c.l.b16 %v3879
        %v3928 = vunpack.c.l.b16 %v3880
        %v3929 = vunpack.c.l.b16 %v3881
        %v3930 = vunpack.c.l.b16 %v3882
        %v3931 = vpack.c.b16 %v3928, %v3927
        %v3932 = vpack.c.b16 %v3930, %v3929
        %3935 = vmatprep.subr.bf16.mxu0 0
        %3936 = vmatpush1.bf16.msra.mxu0 0
        %3937 = vmatprep.subr.bf16.mxu0 0
        %3938 = vmatpush1.bf16.msra.mxu0 0
        %3939 = vmatprep.subr.bf16.mxu0 0
        %3940 = vmatpush1.bf16.msra.mxu0 0
        %3941 = vmatprep.subr.bf16.mxu0 0
        %3942 = vmatpush1.bf16.msra.mxu0 0
        %3943 = vmatprep.subr.bf16.mxu0 0
        %3944 = vmatpush1.bf16.msra.mxu0 0
        %3945 = vmatprep.subr.bf16.mxu0 0
        %3946 = vmatpush1.bf16.msra.mxu0 0
        %3947 = vmatprep.subr.bf16.mxu0 0
        %3948 = vmatpush1.bf16.msra.mxu0 %v3932
        %3949 = vmatprep.subr.bf16.mxu0 0
        %3950 = vmatpush1.bf16.msra.mxu0 %v3931
        %3951 = vmatprep.subr.bf16.mxu0 0
        %3952 = vmatpush2.bf16.msra.mxu0 0
        %3953 = vmatprep.subr.bf16.mxu0 0
        %3954 = vmatpush2.bf16.msra.mxu0 0
        %3955 = vmatprep.subr.bf16.mxu0 0
        %3956 = vmatpush2.bf16.msra.mxu0 0
        %3957 = vmatprep.subr.bf16.mxu0 0
        %3958 = vmatpush2.bf16.msra.mxu0 0
        %3959 = vmatprep.subr.bf16.mxu0 0
        %3960 = vmatpush2.bf16.msra.mxu0 0
        %3961 = vmatprep.subr.bf16.mxu0 0
        %3962 = vmatpush2.bf16.msra.mxu0 0
        %3963 = vmatprep.subr.bf16.mxu0 0
        %3964 = vmatpush2.bf16.msra.mxu0 0
        %3965 = vmatprep.subr.bf16.mxu0 0
        %3966 = vmatpush2.bf16.msra.mxu0 0
        %3967 = vmatprep.mubr.bf16.mxu0 0
        %3968 = vmatmul.mubr.bf16.gmra.mxu0 %v3429
        %v3969 = vpop.f32.mrf.mxu0
        %v3970 = vadd.f32 %v3906, %v3969
        %v3971 = vpop.f32.mrf.mxu0
        %v3972 = vpop.f32.mrf.mxu0
        %v3973 = vpop.f32.mrf.mxu0
        %3974 = vdwg.mxu0
        %v3979 = vunpack.c.l.b16 %v3883
        %v3980 = vunpack.c.l.b16 %v3884
        %v3981 = vunpack.c.l.b16 %v3885
        %v3982 = vunpack.c.l.b16 %v3886
        %v3983 = vpack.c.b16 %v3980, %v3979
        %v3984 = vpack.c.b16 %v3982, %v3981
        %3987 = vmatprep.subr.bf16.mxu0 0
        %3988 = vmatpush1.bf16.msra.mxu0 0
        %3989 = vmatprep.subr.bf16.mxu0 0
        %3990 = vmatpush1.bf16.msra.mxu0 0
        %3991 = vmatprep.subr.bf16.mxu0 0
        %3992 = vmatpush1.bf16.msra.mxu0 0
        %3993 = vmatprep.subr.bf16.mxu0 0
        %3994 = vmatpush1.bf16.msra.mxu0 0
        %3995 = vmatprep.subr.bf16.mxu0 0
        %3996 = vmatpush1.bf16.msra.mxu0 0
        %3997 = vmatprep.subr.bf16.mxu0 0
        %3998 = vmatpush1.bf16.msra.mxu0 0
        %3999 = vmatprep.subr.bf16.mxu0 0
        %4000 = vmatpush1.bf16.msra.mxu0 %v3984
        %4001 = vmatprep.subr.bf16.mxu0 0
        %4002 = vmatpush1.bf16.msra.mxu0 %v3983
        %4003 = vmatprep.subr.bf16.mxu0 0
        %4004 = vmatpush2.bf16.msra.mxu0 0
        %4005 = vmatprep.subr.bf16.mxu0 0
        %4006 = vmatpush2.bf16.msra.mxu0 0
        %4007 = vmatprep.subr.bf16.mxu0 0
        %4008 = vmatpush2.bf16.msra.mxu0 0
        %4009 = vmatprep.subr.bf16.mxu0 0
        %4010 = vmatpush2.bf16.msra.mxu0 0
        %4011 = vmatprep.subr.bf16.mxu0 0
        %4012 = vmatpush2.bf16.msra.mxu0 0
        %4013 = vmatprep.subr.bf16.mxu0 0
        %4014 = vmatpush2.bf16.msra.mxu0 0
        %4015 = vmatprep.subr.bf16.mxu0 0
        %4016 = vmatpush2.bf16.msra.mxu0 0
        %4017 = vmatprep.subr.bf16.mxu0 0
        %4018 = vmatpush2.bf16.msra.mxu0 0
        %4019 = vmatprep.mubr.bf16.mxu0 0
        %4020 = vmatmul.mubr.bf16.gmra.mxu0 %v3429
        %v4021 = vpop.f32.mrf.mxu0
        %v4022 = vadd.f32 %v3910, %v4021
        %v4023 = vpop.f32.mrf.mxu0
        %v4024 = vpop.f32.mrf.mxu0
        %v4025 = vpop.f32.mrf.mxu0
        %4026 = vdwg.mxu0
        %v4031 = vunpack.c.l.b16 %v3887
        %v4032 = vunpack.c.l.b16 %v3888
        %v4033 = vunpack.c.l.b16 %v3889
        %v4034 = vunpack.c.l.b16 %v3890
        %v4035 = vpack.c.b16 %v4032, %v4031
        %v4036 = vpack.c.b16 %v4034, %v4033
        %4039 = vmatprep.subr.bf16.mxu0 0
        %4040 = vmatpush1.bf16.msra.mxu0 0
        %4041 = vmatprep.subr.bf16.mxu0 0
        %4042 = vmatpush1.bf16.msra.mxu0 0
        %4043 = vmatprep.subr.bf16.mxu0 0
        %4044 = vmatpush1.bf16.msra.mxu0 0
        %4045 = vmatprep.subr.bf16.mxu0 0
        %4046 = vmatpush1.bf16.msra.mxu0 0
        %4047 = vmatprep.subr.bf16.mxu0 0
        %4048 = vmatpush1.bf16.msra.mxu0 0
        %4049 = vmatprep.subr.bf16.mxu0 0
        %4050 = vmatpush1.bf16.msra.mxu0 0
        %4051 = vmatprep.subr.bf16.mxu0 0
        %4052 = vmatpush1.bf16.msra.mxu0 %v4036
        %4053 = vmatprep.subr.bf16.mxu0 0
        %4054 = vmatpush1.bf16.msra.mxu0 %v4035
        %4055 = vmatprep.subr.bf16.mxu0 0
        %4056 = vmatpush2.bf16.msra.mxu0 0
        %4057 = vmatprep.subr.bf16.mxu0 0
        %4058 = vmatpush2.bf16.msra.mxu0 0
        %4059 = vmatprep.subr.bf16.mxu0 0
        %4060 = vmatpush2.bf16.msra.mxu0 0
        %4061 = vmatprep.subr.bf16.mxu0 0
        %4062 = vmatpush2.bf16.msra.mxu0 0
        %4063 = vmatprep.subr.bf16.mxu0 0
        %4064 = vmatpush2.bf16.msra.mxu0 0
        %4065 = vmatprep.subr.bf16.mxu0 0
        %4066 = vmatpush2.bf16.msra.mxu0 0
        %4067 = vmatprep.subr.bf16.mxu0 0
        %4068 = vmatpush2.bf16.msra.mxu0 0
        %4069 = vmatprep.subr.bf16.mxu0 0
        %4070 = vmatpush2.bf16.msra.mxu0 0
        %4071 = vmatprep.mubr.bf16.mxu0 0
        %4072 = vmatmul.mubr.bf16.gmra.mxu0 %v3429
        %v4073 = vpop.f32.mrf.mxu0
        %v4074 = vadd.f32 %v3914, %v4073
        %v4075 = vpop.f32.mrf.mxu0
        %v4076 = vpop.f32.mrf.mxu0
        %v4077 = vpop.f32.mrf.mxu0
        %4078 = vdwg.mxu0
        %v4083 = vunpack.c.l.b16 %v3891
        %v4084 = vunpack.c.l.b16 %v3892
        %v4085 = vunpack.c.l.b16 %v3893
        %v4086 = vunpack.c.l.b16 %v3894
        %v4087 = vpack.c.b16 %v4084, %v4083
        %v4088 = vpack.c.b16 %v4086, %v4085
        %4091 = vmatprep.subr.bf16.mxu0 0
        %4092 = vmatpush1.bf16.msra.mxu0 0
        %4093 = vmatprep.subr.bf16.mxu0 0
        %4094 = vmatpush1.bf16.msra.mxu0 0
        %4095 = vmatprep.subr.bf16.mxu0 0
        %4096 = vmatpush1.bf16.msra.mxu0 0
        %4097 = vmatprep.subr.bf16.mxu0 0
        %4098 = vmatpush1.bf16.msra.mxu0 0
        %4099 = vmatprep.subr.bf16.mxu0 0
        %4100 = vmatpush1.bf16.msra.mxu0 0
        %4101 = vmatprep.subr.bf16.mxu0 0
        %4102 = vmatpush1.bf16.msra.mxu0 0
        %4103 = vmatprep.subr.bf16.mxu0 0
        %4104 = vmatpush1.bf16.msra.mxu0 %v4088
        %4105 = vmatprep.subr.bf16.mxu0 0
        %4106 = vmatpush1.bf16.msra.mxu0 %v4087
        %4107 = vmatprep.subr.bf16.mxu0 0
        %4108 = vmatpush2.bf16.msra.mxu0 0
        %4109 = vmatprep.subr.bf16.mxu0 0
        %4110 = vmatpush2.bf16.msra.mxu0 0
        %4111 = vmatprep.subr.bf16.mxu0 0
        %4112 = vmatpush2.bf16.msra.mxu0 0
        %4113 = vmatprep.subr.bf16.mxu0 0
        %4114 = vmatpush2.bf16.msra.mxu0 0
        %4115 = vmatprep.subr.bf16.mxu0 0
        %4116 = vmatpush2.bf16.msra.mxu0 0
        %4117 = vmatprep.subr.bf16.mxu0 0
        %4118 = vmatpush2.bf16.msra.mxu0 0
        %4119 = vmatprep.subr.bf16.mxu0 0
        %4120 = vmatpush2.bf16.msra.mxu0 0
        %4121 = vmatprep.subr.bf16.mxu0 0
        %4122 = vmatpush2.bf16.msra.mxu0 0
        %4123 = vmatprep.mubr.bf16.mxu0 0
        %4124 = vmatmul.mubr.bf16.gmra.mxu0 %v3429
        %v4125 = vpop.f32.mrf.mxu0
        %v4126 = vadd.f32 %v3918, %v4125
        %v4127 = vpop.f32.mrf.mxu0
        %v4128 = vpop.f32.mrf.mxu0
        %v4129 = vpop.f32.mrf.mxu0
        %4130 = vdwg.mxu0
        %v4131 = vpack.c.bf16 %v3466, %v3466
        %v4132 = vpack.c.bf16 %v3518, %v3518
        %v4133 = vpack.c.bf16 %v3570, %v3570
        %v4134 = vpack.c.bf16 %v3622, %v3622
        %v4135 = vpack.c.bf16 %v3718, %v3718
        %v4136 = vpack.c.bf16 %v3770, %v3770
        %v4137 = vpack.c.bf16 %v3822, %v3822
        %v4138 = vpack.c.bf16 %v3874, %v3874
        %v4140 = vsel %vm2497, %v4131, 0
        %v4143 = vsel %vm2497, %v4135, 0
        %4145 = vmatprep.subr.bf16.mxu0 0
        %4146 = vmatpush1.bf16.xpose.msra.mxu0 0
        %4147 = vmatprep.subr.bf16.mxu0 0
        %4148 = vmatpush1.bf16.xpose.msra.mxu0 0
        %4149 = vmatprep.subr.bf16.mxu0 0
        %4150 = vmatpush1.bf16.xpose.msra.mxu0 0
        %4151 = vmatprep.subr.bf16.mxu0 0
        %4152 = vmatpush1.bf16.xpose.msra.mxu0 0
        %4153 = vmatprep.subr.bf16.mxu0 0
        %4154 = vmatpush1.bf16.xpose.msra.mxu0 0
        %4155 = vmatprep.subr.bf16.mxu0 0
        %4156 = vmatpush1.bf16.xpose.msra.mxu0 0
        %4157 = vmatprep.subr.bf16.mxu0 0
        %4158 = vmatpush1.bf16.xpose.msra.mxu0 0
        %4159 = vmatprep.subr.bf16.mxu0 0
        %4160 = vmatpush1.bf16.xpose.msra.mxu0 %v4143
        %4161 = vmatprep.subr.bf16.mxu0 0
        %4162 = vmatpush2.bf16.xpose.msra.mxu0 0
        %4163 = vmatprep.subr.bf16.mxu0 0
        %4164 = vmatpush2.bf16.xpose.msra.mxu0 0
        %4165 = vmatprep.subr.bf16.mxu0 0
        %4166 = vmatpush2.bf16.xpose.msra.mxu0 0
        %4167 = vmatprep.subr.bf16.mxu0 0
        %4168 = vmatpush2.bf16.xpose.msra.mxu0 0
        %4169 = vmatprep.subr.bf16.mxu0 0
        %4170 = vmatpush2.bf16.xpose.msra.mxu0 0
        %4171 = vmatprep.subr.bf16.mxu0 0
        %4172 = vmatpush2.bf16.xpose.msra.mxu0 0
        %4173 = vmatprep.subr.bf16.mxu0 0
        %4174 = vmatpush2.bf16.xpose.msra.mxu0 0
        %4175 = vmatprep.subr.bf16.mxu0 0
        %4176 = vmatpush2.bf16.xpose.msra.mxu0 0
        %4177 = vmatprep.mubr.bf16.mxu0 0
        %4178 = vmatmul.mubr.bf16.gmra.mxu0 %v4140
        %v4179 = vpop.f32.mrf.mxu0
        %v4180 = vadd.f32 0.0, %v4179
        %v4181 = vpop.f32.mrf.mxu0
        %v4182 = vpop.f32.mrf.mxu0
        %v4183 = vpop.f32.mrf.mxu0
        %4184 = vdwg.mxu0
        %v4186 = vsel %vm2497, %v4132, 0
        %v4189 = vsel %vm2497, %v4136, 0
        %4191 = vmatprep.subr.bf16.mxu0 0
        %4192 = vmatpush1.bf16.xpose.msra.mxu0 0
        %4193 = vmatprep.subr.bf16.mxu0 0
        %4194 = vmatpush1.bf16.xpose.msra.mxu0 0
        %4195 = vmatprep.subr.bf16.mxu0 0
        %4196 = vmatpush1.bf16.xpose.msra.mxu0 0
        %4197 = vmatprep.subr.bf16.mxu0 0
        %4198 = vmatpush1.bf16.xpose.msra.mxu0 0
        %4199 = vmatprep.subr.bf16.mxu0 0
        %4200 = vmatpush1.bf16.xpose.msra.mxu0 0
        %4201 = vmatprep.subr.bf16.mxu0 0
        %4202 = vmatpush1.bf16.xpose.msra.mxu0 0
        %4203 = vmatprep.subr.bf16.mxu0 0
        %4204 = vmatpush1.bf16.xpose.msra.mxu0 0
        %4205 = vmatprep.subr.bf16.mxu0 0
        %4206 = vmatpush1.bf16.xpose.msra.mxu0 %v4189
        %4207 = vmatprep.subr.bf16.mxu0 0
        %4208 = vmatpush2.bf16.xpose.msra.mxu0 0
        %4209 = vmatprep.subr.bf16.mxu0 0
        %4210 = vmatpush2.bf16.xpose.msra.mxu0 0
        %4211 = vmatprep.subr.bf16.mxu0 0
        %4212 = vmatpush2.bf16.xpose.msra.mxu0 0
        %4213 = vmatprep.subr.bf16.mxu0 0
        %4214 = vmatpush2.bf16.xpose.msra.mxu0 0
        %4215 = vmatprep.subr.bf16.mxu0 0
        %4216 = vmatpush2.bf16.xpose.msra.mxu0 0
        %4217 = vmatprep.subr.bf16.mxu0 0
        %4218 = vmatpush2.bf16.xpose.msra.mxu0 0
        %4219 = vmatprep.subr.bf16.mxu0 0
        %4220 = vmatpush2.bf16.xpose.msra.mxu0 0
        %4221 = vmatprep.subr.bf16.mxu0 0
        %4222 = vmatpush2.bf16.xpose.msra.mxu0 0
        %4223 = vmatprep.mubr.bf16.mxu0 0
        %4224 = vmatmul.mubr.bf16.gmra.mxu0 %v4186
        %v4225 = vpop.f32.mrf.mxu0
        %v4226 = vadd.f32 0.0, %v4225
        %v4227 = vpop.f32.mrf.mxu0
        %v4228 = vpop.f32.mrf.mxu0
        %v4229 = vpop.f32.mrf.mxu0
        %4230 = vdwg.mxu0
        %v4232 = vsel %vm2497, %v4133, 0
        %v4235 = vsel %vm2497, %v4137, 0
        %4237 = vmatprep.subr.bf16.mxu0 0
        %4238 = vmatpush1.bf16.xpose.msra.mxu0 0
        %4239 = vmatprep.subr.bf16.mxu0 0
        %4240 = vmatpush1.bf16.xpose.msra.mxu0 0
        %4241 = vmatprep.subr.bf16.mxu0 0
        %4242 = vmatpush1.bf16.xpose.msra.mxu0 0
        %4243 = vmatprep.subr.bf16.mxu0 0
        %4244 = vmatpush1.bf16.xpose.msra.mxu0 0
        %4245 = vmatprep.subr.bf16.mxu0 0
        %4246 = vmatpush1.bf16.xpose.msra.mxu0 0
        %4247 = vmatprep.subr.bf16.mxu0 0
        %4248 = vmatpush1.bf16.xpose.msra.mxu0 0
        %4249 = vmatprep.subr.bf16.mxu0 0
        %4250 = vmatpush1.bf16.xpose.msra.mxu0 0
        %4251 = vmatprep.subr.bf16.mxu0 0
        %4252 = vmatpush1.bf16.xpose.msra.mxu0 %v4235
        %4253 = vmatprep.subr.bf16.mxu0 0
        %4254 = vmatpush2.bf16.xpose.msra.mxu0 0
        %4255 = vmatprep.subr.bf16.mxu0 0
        %4256 = vmatpush2.bf16.xpose.msra.mxu0 0
        %4257 = vmatprep.subr.bf16.mxu0 0
        %4258 = vmatpush2.bf16.xpose.msra.mxu0 0
        %4259 = vmatprep.subr.bf16.mxu0 0
        %4260 = vmatpush2.bf16.xpose.msra.mxu0 0
        %4261 = vmatprep.subr.bf16.mxu0 0
        %4262 = vmatpush2.bf16.xpose.msra.mxu0 0
        %4263 = vmatprep.subr.bf16.mxu0 0
        %4264 = vmatpush2.bf16.xpose.msra.mxu0 0
        %4265 = vmatprep.subr.bf16.mxu0 0
        %4266 = vmatpush2.bf16.xpose.msra.mxu0 0
        %4267 = vmatprep.subr.bf16.mxu0 0
        %4268 = vmatpush2.bf16.xpose.msra.mxu0 0
        %4269 = vmatprep.mubr.bf16.mxu0 0
        %4270 = vmatmul.mubr.bf16.gmra.mxu0 %v4232
        %v4271 = vpop.f32.mrf.mxu0
        %v4272 = vadd.f32 0.0, %v4271
        %v4273 = vpop.f32.mrf.mxu0
        %v4274 = vpop.f32.mrf.mxu0
        %v4275 = vpop.f32.mrf.mxu0
        %4276 = vdwg.mxu0
        %v4278 = vsel %vm2497, %v4134, 0
        %v4281 = vsel %vm2497, %v4138, 0
        %4283 = vmatprep.subr.bf16.mxu0 0
        %4284 = vmatpush1.bf16.xpose.msra.mxu0 0
        %4285 = vmatprep.subr.bf16.mxu0 0
        %4286 = vmatpush1.bf16.xpose.msra.mxu0 0
        %4287 = vmatprep.subr.bf16.mxu0 0
        %4288 = vmatpush1.bf16.xpose.msra.mxu0 0
        %4289 = vmatprep.subr.bf16.mxu0 0
        %4290 = vmatpush1.bf16.xpose.msra.mxu0 0
        %4291 = vmatprep.subr.bf16.mxu0 0
        %4292 = vmatpush1.bf16.xpose.msra.mxu0 0
        %4293 = vmatprep.subr.bf16.mxu0 0
        %4294 = vmatpush1.bf16.xpose.msra.mxu0 0
        %4295 = vmatprep.subr.bf16.mxu0 0
        %4296 = vmatpush1.bf16.xpose.msra.mxu0 0
        %4297 = vmatprep.subr.bf16.mxu0 0
        %4298 = vmatpush1.bf16.xpose.msra.mxu0 %v4281
        %4299 = vmatprep.subr.bf16.mxu0 0
        %4300 = vmatpush2.bf16.xpose.msra.mxu0 0
        %4301 = vmatprep.subr.bf16.mxu0 0
        %4302 = vmatpush2.bf16.xpose.msra.mxu0 0
        %4303 = vmatprep.subr.bf16.mxu0 0
        %4304 = vmatpush2.bf16.xpose.msra.mxu0 0
        %4305 = vmatprep.subr.bf16.mxu0 0
        %4306 = vmatpush2.bf16.xpose.msra.mxu0 0
        %4307 = vmatprep.subr.bf16.mxu0 0
        %4308 = vmatpush2.bf16.xpose.msra.mxu0 0
        %4309 = vmatprep.subr.bf16.mxu0 0
        %4310 = vmatpush2.bf16.xpose.msra.mxu0 0
        %4311 = vmatprep.subr.bf16.mxu0 0
        %4312 = vmatpush2.bf16.xpose.msra.mxu0 0
        %4313 = vmatprep.subr.bf16.mxu0 0
        %4314 = vmatpush2.bf16.xpose.msra.mxu0 0
        %4315 = vmatprep.mubr.bf16.mxu0 0
        %4316 = vmatmul.mubr.bf16.gmra.mxu0 %v4278
        %v4317 = vpop.f32.mrf.mxu0
        %v4318 = vadd.f32 0.0, %v4317
        %v4319 = vpop.f32.mrf.mxu0
        %v4320 = vpop.f32.mrf.mxu0
        %v4321 = vpop.f32.mrf.mxu0
        %4322 = vdwg.mxu0
        %v4323 = vmul.f32 %v4180, 0.35355338
        %v4324 = vmul.f32 %v4226, 0.35355338
        %v4325 = vmul.f32 %v4272, 0.35355338
        %v4326 = vmul.f32 %v4318, 0.35355338
        %v4327 = vlaneseq
        %v4328 = vshrl.u32 %v4327, 7
        %v4329 = vlaneseq
        %v4330 = vand.u32 %v4329, 127
        %vm4331 = vcmp.le.s32.totalorder %v4330, %v4328
        %v4332 = vsel %vm4331, %v4323, -1e+09
        %v4333 = vsel %vm4331, %v4324, -1e+09
        %v4334 = vsel %vm4331, %v4325, -1e+09
        %v4335 = vsel %vm4331, %v4326, -1e+09
        %v4336 = vsel %vm2497, %v4332, -inf
        %4337 = vmax.xlane.f32.xlu0 %v4336
        %v4338 = vpop.xlane.xlu0 %4337
        %v4339 = vsel %vm2497, %v4333, -inf
        %4340 = vmax.xlane.f32.xlu0 %v4339
        %v4341 = vpop.xlane.xlu0 %4340
        %v4342 = vsel %vm2497, %v4334, -inf
        %4343 = vmax.xlane.f32.xlu0 %v4342
        %v4344 = vpop.xlane.xlu0 %4343
        %v4345 = vsel %vm2497, %v4335, -inf
        %4346 = vmax.xlane.f32.xlu0 %v4345
        %v4347 = vpop.xlane.xlu0 %4346
        %v4348 = vsub.f32 %v4332, %v4338
        %v4349 = vsub.f32 %v4333, %v4341
        %v4350 = vsub.f32 %v4334, %v4344
        %v4351 = vsub.f32 %v4335, %v4347
        %v4352 = vmul.f32 %v4348, 1.442695
        %v4353 = vpow.pop %v4352
        %v4354 = vmul.f32 %v4349, 1.442695
        %v4355 = vpow.pop %v4354
        %v4356 = vmul.f32 %v4350, 1.442695
        %v4357 = vpow.pop %v4356
        %v4358 = vmul.f32 %v4351, 1.442695
        %v4359 = vpow.pop %v4358
        %v4360 = vsel %vm2497, %v4353, 0.0
        %4361 = vadd.xlane.f32.xlu0 %v4360
        %v4362 = vpop.xlane.xlu0 %4361
        %v4363 = vsel %vm2497, %v4355, 0.0
        %4364 = vadd.xlane.f32.xlu0 %v4363
        %v4365 = vpop.xlane.xlu0 %4364
        %v4366 = vsel %vm2497, %v4357, 0.0
        %4367 = vadd.xlane.f32.xlu0 %v4366
        %v4368 = vpop.xlane.xlu0 %4367
        %v4369 = vsel %vm2497, %v4359, 0.0
        %4370 = vadd.xlane.f32.xlu0 %v4369
        %v4371 = vpop.xlane.xlu0 %4370
        %v4372 = vrcp.pop %v4362
        %v4373 = vrcp.pop %v4365
        %v4374 = vrcp.pop %v4368
        %v4375 = vrcp.pop %v4371
        %v4376 = vmul.f32 %v4353, %v4372
        %v4377 = vmul.f32 %v4355, %v4373
        %v4378 = vmul.f32 %v4357, %v4374
        %v4379 = vmul.f32 %v4359, %v4375
        %v4380 = vpack.c.bf16 %v4376, %v4376
        %v4381 = vpack.c.bf16 %v4377, %v4377
        %v4382 = vpack.c.bf16 %v4378, %v4378
        %v4383 = vpack.c.bf16 %v4379, %v4379
        %v4384 = vpack.c.bf16 %v3970, %v3970
        %v4385 = vpack.c.bf16 %v4022, %v4022
        %v4386 = vpack.c.bf16 %v4074, %v4074
        %v4387 = vpack.c.bf16 %v4126, %v4126
        %v4389 = vsel %vm2497, %v4380, 0
        %v4392 = vsel %vm2741, %v4384, 0
        %4394 = vmatprep.subr.bf16.mxu0 0
        %4395 = vmatpush1.bf16.msra.mxu0 0
        %4396 = vmatprep.subr.bf16.mxu0 0
        %4397 = vmatpush1.bf16.msra.mxu0 0
        %4398 = vmatprep.subr.bf16.mxu0 0
        %4399 = vmatpush1.bf16.msra.mxu0 0
        %4400 = vmatprep.subr.bf16.mxu0 0
        %4401 = vmatpush1.bf16.msra.mxu0 0
        %4402 = vmatprep.subr.bf16.mxu0 0
        %4403 = vmatpush1.bf16.msra.mxu0 0
        %4404 = vmatprep.subr.bf16.mxu0 0
        %4405 = vmatpush1.bf16.msra.mxu0 0
        %4406 = vmatprep.subr.bf16.mxu0 0
        %4407 = vmatpush1.bf16.msra.mxu0 0
        %4408 = vmatprep.subr.bf16.mxu0 0
        %4409 = vmatpush1.bf16.msra.mxu0 %v4392
        %4410 = vmatprep.subr.bf16.mxu0 0
        %4411 = vmatpush2.bf16.msra.mxu0 0
        %4412 = vmatprep.subr.bf16.mxu0 0
        %4413 = vmatpush2.bf16.msra.mxu0 0
        %4414 = vmatprep.subr.bf16.mxu0 0
        %4415 = vmatpush2.bf16.msra.mxu0 0
        %4416 = vmatprep.subr.bf16.mxu0 0
        %4417 = vmatpush2.bf16.msra.mxu0 0
        %4418 = vmatprep.subr.bf16.mxu0 0
        %4419 = vmatpush2.bf16.msra.mxu0 0
        %4420 = vmatprep.subr.bf16.mxu0 0
        %4421 = vmatpush2.bf16.msra.mxu0 0
        %4422 = vmatprep.subr.bf16.mxu0 0
        %4423 = vmatpush2.bf16.msra.mxu0 0
        %4424 = vmatprep.subr.bf16.mxu0 0
        %4425 = vmatpush2.bf16.msra.mxu0 0
        %4426 = vmatprep.mubr.bf16.mxu0 0
        %4427 = vmatmul.mubr.bf16.gmra.mxu0 %v4389
        %v4428 = vpop.f32.mrf.mxu0
        %v4429 = vadd.f32 0.0, %v4428
        %v4430 = vpop.f32.mrf.mxu0
        %v4431 = vpop.f32.mrf.mxu0
        %v4432 = vpop.f32.mrf.mxu0
        %4433 = vdwg.mxu0
        %v4435 = vsel %vm2497, %v4381, 0
        %v4438 = vsel %vm2741, %v4385, 0
        %4440 = vmatprep.subr.bf16.mxu0 0
        %4441 = vmatpush1.bf16.msra.mxu0 0
        %4442 = vmatprep.subr.bf16.mxu0 0
        %4443 = vmatpush1.bf16.msra.mxu0 0
        %4444 = vmatprep.subr.bf16.mxu0 0
        %4445 = vmatpush1.bf16.msra.mxu0 0
        %4446 = vmatprep.subr.bf16.mxu0 0
        %4447 = vmatpush1.bf16.msra.mxu0 0
        %4448 = vmatprep.subr.bf16.mxu0 0
        %4449 = vmatpush1.bf16.msra.mxu0 0
        %4450 = vmatprep.subr.bf16.mxu0 0
        %4451 = vmatpush1.bf16.msra.mxu0 0
        %4452 = vmatprep.subr.bf16.mxu0 0
        %4453 = vmatpush1.bf16.msra.mxu0 0
        %4454 = vmatprep.subr.bf16.mxu0 0
        %4455 = vmatpush1.bf16.msra.mxu0 %v4438
        %4456 = vmatprep.subr.bf16.mxu0 0
        %4457 = vmatpush2.bf16.msra.mxu0 0
        %4458 = vmatprep.subr.bf16.mxu0 0
        %4459 = vmatpush2.bf16.msra.mxu0 0
        %4460 = vmatprep.subr.bf16.mxu0 0
        %4461 = vmatpush2.bf16.msra.mxu0 0
        %4462 = vmatprep.subr.bf16.mxu0 0
        %4463 = vmatpush2.bf16.msra.mxu0 0
        %4464 = vmatprep.subr.bf16.mxu0 0
        %4465 = vmatpush2.bf16.msra.mxu0 0
        %4466 = vmatprep.subr.bf16.mxu0 0
        %4467 = vmatpush2.bf16.msra.mxu0 0
        %4468 = vmatprep.subr.bf16.mxu0 0
        %4469 = vmatpush2.bf16.msra.mxu0 0
        %4470 = vmatprep.subr.bf16.mxu0 0
        %4471 = vmatpush2.bf16.msra.mxu0 0
        %4472 = vmatprep.mubr.bf16.mxu0 0
        %4473 = vmatmul.mubr.bf16.gmra.mxu0 %v4435
        %v4474 = vpop.f32.mrf.mxu0
        %v4475 = vadd.f32 0.0, %v4474
        %v4476 = vpop.f32.mrf.mxu0
        %v4477 = vpop.f32.mrf.mxu0
        %v4478 = vpop.f32.mrf.mxu0
        %4479 = vdwg.mxu0
        %v4481 = vsel %vm2497, %v4382, 0
        %v4484 = vsel %vm2741, %v4386, 0
        %4486 = vmatprep.subr.bf16.mxu0 0
        %4487 = vmatpush1.bf16.msra.mxu0 0
        %4488 = vmatprep.subr.bf16.mxu0 0
        %4489 = vmatpush1.bf16.msra.mxu0 0
        %4490 = vmatprep.subr.bf16.mxu0 0
        %4491 = vmatpush1.bf16.msra.mxu0 0
        %4492 = vmatprep.subr.bf16.mxu0 0
        %4493 = vmatpush1.bf16.msra.mxu0 0
        %4494 = vmatprep.subr.bf16.mxu0 0
        %4495 = vmatpush1.bf16.msra.mxu0 0
        %4496 = vmatprep.subr.bf16.mxu0 0
        %4497 = vmatpush1.bf16.msra.mxu0 0
        %4498 = vmatprep.subr.bf16.mxu0 0
        %4499 = vmatpush1.bf16.msra.mxu0 0
        %4500 = vmatprep.subr.bf16.mxu0 0
        %4501 = vmatpush1.bf16.msra.mxu0 %v4484
        %4502 = vmatprep.subr.bf16.mxu0 0
        %4503 = vmatpush2.bf16.msra.mxu0 0
        %4504 = vmatprep.subr.bf16.mxu0 0
        %4505 = vmatpush2.bf16.msra.mxu0 0
        %4506 = vmatprep.subr.bf16.mxu0 0
        %4507 = vmatpush2.bf16.msra.mxu0 0
        %4508 = vmatprep.subr.bf16.mxu0 0
        %4509 = vmatpush2.bf16.msra.mxu0 0
        %4510 = vmatprep.subr.bf16.mxu0 0
        %4511 = vmatpush2.bf16.msra.mxu0 0
        %4512 = vmatprep.subr.bf16.mxu0 0
        %4513 = vmatpush2.bf16.msra.mxu0 0
        %4514 = vmatprep.subr.bf16.mxu0 0
        %4515 = vmatpush2.bf16.msra.mxu0 0
        %4516 = vmatprep.subr.bf16.mxu0 0
        %4517 = vmatpush2.bf16.msra.mxu0 0
        %4518 = vmatprep.mubr.bf16.mxu0 0
        %4519 = vmatmul.mubr.bf16.gmra.mxu0 %v4481
        %v4520 = vpop.f32.mrf.mxu0
        %v4521 = vadd.f32 0.0, %v4520
        %v4522 = vpop.f32.mrf.mxu0
        %v4523 = vpop.f32.mrf.mxu0
        %v4524 = vpop.f32.mrf.mxu0
        %4525 = vdwg.mxu0
        %v4527 = vsel %vm2497, %v4383, 0
        %v4530 = vsel %vm2741, %v4387, 0
        %4532 = vmatprep.subr.bf16.mxu0 0
        %4533 = vmatpush1.bf16.msra.mxu0 0
        %4534 = vmatprep.subr.bf16.mxu0 0
        %4535 = vmatpush1.bf16.msra.mxu0 0
        %4536 = vmatprep.subr.bf16.mxu0 0
        %4537 = vmatpush1.bf16.msra.mxu0 0
        %4538 = vmatprep.subr.bf16.mxu0 0
        %4539 = vmatpush1.bf16.msra.mxu0 0
        %4540 = vmatprep.subr.bf16.mxu0 0
        %4541 = vmatpush1.bf16.msra.mxu0 0
        %4542 = vmatprep.subr.bf16.mxu0 0
        %4543 = vmatpush1.bf16.msra.mxu0 0
        %4544 = vmatprep.subr.bf16.mxu0 0
        %4545 = vmatpush1.bf16.msra.mxu0 0
        %4546 = vmatprep.subr.bf16.mxu0 0
        %4547 = vmatpush1.bf16.msra.mxu0 %v4530
        %4548 = vmatprep.subr.bf16.mxu0 0
        %4549 = vmatpush2.bf16.msra.mxu0 0
        %4550 = vmatprep.subr.bf16.mxu0 0
        %4551 = vmatpush2.bf16.msra.mxu0 0
        %4552 = vmatprep.subr.bf16.mxu0 0
        %4553 = vmatpush2.bf16.msra.mxu0 0
        %4554 = vmatprep.subr.bf16.mxu0 0
        %4555 = vmatpush2.bf16.msra.mxu0 0
        %4556 = vmatprep.subr.bf16.mxu0 0
        %4557 = vmatpush2.bf16.msra.mxu0 0
        %4558 = vmatprep.subr.bf16.mxu0 0
        %4559 = vmatpush2.bf16.msra.mxu0 0
        %4560 = vmatprep.subr.bf16.mxu0 0
        %4561 = vmatpush2.bf16.msra.mxu0 0
        %4562 = vmatprep.subr.bf16.mxu0 0
        %4563 = vmatpush2.bf16.msra.mxu0 0
        %4564 = vmatprep.mubr.bf16.mxu0 0
        %4565 = vmatmul.mubr.bf16.gmra.mxu0 %v4527
        %v4566 = vpop.f32.mrf.mxu0
        %v4567 = vadd.f32 0.0, %v4566
        %v4568 = vpop.f32.mrf.mxu0
        %v4569 = vpop.f32.mrf.mxu0
        %v4570 = vpop.f32.mrf.mxu0
        %4571 = vdwg.mxu0
        %v4572 = vpack.c.bf16 %v4429, %v4429
        %v4573 = vpack.c.bf16 %v4475, %v4475
        %v4574 = vpack.c.bf16 %v4521, %v4521
        %v4575 = vpack.c.bf16 %v4567, %v4567
        %v4576 = vld [vmem:[%s63] sm:$0xf]
        %v4577 = vld [vmem:[%s63 + $0x4] sm:$0xf]
        %v4578 = vld [vmem:[%s63 + $0x8] sm:$0xf]
        %v4579 = vld [vmem:[%s63 + $0xc] sm:$0xf]
        %v4581 = vsel %vm2497, %v4572, 0
        %v4584 = vsel %vm2741, %v4576, 0
        %4586 = vmatprep.subr.bf16.mxu0 0
        %4587 = vmatpush1.bf16.msra.mxu0 0
        %4588 = vmatprep.subr.bf16.mxu0 0
        %4589 = vmatpush1.bf16.msra.mxu0 0
        %4590 = vmatprep.subr.bf16.mxu0 0
        %4591 = vmatpush1.bf16.msra.mxu0 0
        %4592 = vmatprep.subr.bf16.mxu0 0
        %4593 = vmatpush1.bf16.msra.mxu0 0
        %4594 = vmatprep.subr.bf16.mxu0 0
        %4595 = vmatpush1.bf16.msra.mxu0 0
        %4596 = vmatprep.subr.bf16.mxu0 0
        %4597 = vmatpush1.bf16.msra.mxu0 0
        %4598 = vmatprep.subr.bf16.mxu0 0
        %4599 = vmatpush1.bf16.msra.mxu0 0
        %4600 = vmatprep.subr.bf16.mxu0 0
        %4601 = vmatpush1.bf16.msra.mxu0 %v4584
        %4602 = vmatprep.subr.bf16.mxu0 0
        %4603 = vmatpush2.bf16.msra.mxu0 0
        %4604 = vmatprep.subr.bf16.mxu0 0
        %4605 = vmatpush2.bf16.msra.mxu0 0
        %4606 = vmatprep.subr.bf16.mxu0 0
        %4607 = vmatpush2.bf16.msra.mxu0 0
        %4608 = vmatprep.subr.bf16.mxu0 0
        %4609 = vmatpush2.bf16.msra.mxu0 0
        %4610 = vmatprep.subr.bf16.mxu0 0
        %4611 = vmatpush2.bf16.msra.mxu0 0
        %4612 = vmatprep.subr.bf16.mxu0 0
        %4613 = vmatpush2.bf16.msra.mxu0 0
        %4614 = vmatprep.subr.bf16.mxu0 0
        %4615 = vmatpush2.bf16.msra.mxu0 0
        %4616 = vmatprep.subr.bf16.mxu0 0
        %4617 = vmatpush2.bf16.msra.mxu0 0
        %4618 = vmatprep.mubr.bf16.mxu0 0
        %4619 = vmatmul.mubr.bf16.gmra.mxu0 %v4581
        %v4620 = vpop.f32.mrf.mxu0
        %v4621 = vadd.f32 0.0, %v4620
        %v4622 = vpop.f32.mrf.mxu0
        %v4623 = vpop.f32.mrf.mxu0
        %v4624 = vpop.f32.mrf.mxu0
        %4625 = vdwg.mxu0
        %v4627 = vsel %vm2497, %v4573, 0
        %v4630 = vsel %vm2741, %v4577, 0
        %4632 = vmatprep.subr.bf16.mxu0 0
        %4633 = vmatpush1.bf16.msra.mxu0 0
        %4634 = vmatprep.subr.bf16.mxu0 0
        %4635 = vmatpush1.bf16.msra.mxu0 0
        %4636 = vmatprep.subr.bf16.mxu0 0
        %4637 = vmatpush1.bf16.msra.mxu0 0
        %4638 = vmatprep.subr.bf16.mxu0 0
        %4639 = vmatpush1.bf16.msra.mxu0 0
        %4640 = vmatprep.subr.bf16.mxu0 0
        %4641 = vmatpush1.bf16.msra.mxu0 0
        %4642 = vmatprep.subr.bf16.mxu0 0
        %4643 = vmatpush1.bf16.msra.mxu0 0
        %4644 = vmatprep.subr.bf16.mxu0 0
        %4645 = vmatpush1.bf16.msra.mxu0 0
        %4646 = vmatprep.subr.bf16.mxu0 0
        %4647 = vmatpush1.bf16.msra.mxu0 %v4630
        %4648 = vmatprep.subr.bf16.mxu0 0
        %4649 = vmatpush2.bf16.msra.mxu0 0
        %4650 = vmatprep.subr.bf16.mxu0 0
        %4651 = vmatpush2.bf16.msra.mxu0 0
        %4652 = vmatprep.subr.bf16.mxu0 0
        %4653 = vmatpush2.bf16.msra.mxu0 0
        %4654 = vmatprep.subr.bf16.mxu0 0
        %4655 = vmatpush2.bf16.msra.mxu0 0
        %4656 = vmatprep.subr.bf16.mxu0 0
        %4657 = vmatpush2.bf16.msra.mxu0 0
        %4658 = vmatprep.subr.bf16.mxu0 0
        %4659 = vmatpush2.bf16.msra.mxu0 0
        %4660 = vmatprep.subr.bf16.mxu0 0
        %4661 = vmatpush2.bf16.msra.mxu0 0
        %4662 = vmatprep.subr.bf16.mxu0 0
        %4663 = vmatpush2.bf16.msra.mxu0 0
        %4664 = vmatprep.mubr.bf16.mxu0 0
        %4665 = vmatmul.mubr.bf16.gmra.mxu0 %v4627
        %v4666 = vpop.f32.mrf.mxu0
        %v4667 = vadd.f32 0.0, %v4666
        %v4668 = vpop.f32.mrf.mxu0
        %v4669 = vpop.f32.mrf.mxu0
        %v4670 = vpop.f32.mrf.mxu0
        %4671 = vdwg.mxu0
        %v4673 = vsel %vm2497, %v4574, 0
        %v4676 = vsel %vm2741, %v4578, 0
        %4678 = vmatprep.subr.bf16.mxu0 0
        %4679 = vmatpush1.bf16.msra.mxu0 0
        %4680 = vmatprep.subr.bf16.mxu0 0
        %4681 = vmatpush1.bf16.msra.mxu0 0
        %4682 = vmatprep.subr.bf16.mxu0 0
        %4683 = vmatpush1.bf16.msra.mxu0 0
        %4684 = vmatprep.subr.bf16.mxu0 0
        %4685 = vmatpush1.bf16.msra.mxu0 0
        %4686 = vmatprep.subr.bf16.mxu0 0
        %4687 = vmatpush1.bf16.msra.mxu0 0
        %4688 = vmatprep.subr.bf16.mxu0 0
        %4689 = vmatpush1.bf16.msra.mxu0 0
        %4690 = vmatprep.subr.bf16.mxu0 0
        %4691 = vmatpush1.bf16.msra.mxu0 0
        %4692 = vmatprep.subr.bf16.mxu0 0
        %4693 = vmatpush1.bf16.msra.mxu0 %v4676
        %4694 = vmatprep.subr.bf16.mxu0 0
        %4695 = vmatpush2.bf16.msra.mxu0 0
        %4696 = vmatprep.subr.bf16.mxu0 0
        %4697 = vmatpush2.bf16.msra.mxu0 0
        %4698 = vmatprep.subr.bf16.mxu0 0
        %4699 = vmatpush2.bf16.msra.mxu0 0
        %4700 = vmatprep.subr.bf16.mxu0 0
        %4701 = vmatpush2.bf16.msra.mxu0 0
        %4702 = vmatprep.subr.bf16.mxu0 0
        %4703 = vmatpush2.bf16.msra.mxu0 0
        %4704 = vmatprep.subr.bf16.mxu0 0
        %4705 = vmatpush2.bf16.msra.mxu0 0
        %4706 = vmatprep.subr.bf16.mxu0 0
        %4707 = vmatpush2.bf16.msra.mxu0 0
        %4708 = vmatprep.subr.bf16.mxu0 0
        %4709 = vmatpush2.bf16.msra.mxu0 0
        %4710 = vmatprep.mubr.bf16.mxu0 0
        %4711 = vmatmul.mubr.bf16.gmra.mxu0 %v4673
        %v4712 = vpop.f32.mrf.mxu0
        %v4713 = vadd.f32 0.0, %v4712
        %v4714 = vpop.f32.mrf.mxu0
        %v4715 = vpop.f32.mrf.mxu0
        %v4716 = vpop.f32.mrf.mxu0
        %4717 = vdwg.mxu0
        %v4719 = vsel %vm2497, %v4575, 0
        %v4722 = vsel %vm2741, %v4579, 0
        %4724 = vmatprep.subr.bf16.mxu0 0
        %4725 = vmatpush1.bf16.msra.mxu0 0
        %4726 = vmatprep.subr.bf16.mxu0 0
        %4727 = vmatpush1.bf16.msra.mxu0 0
        %4728 = vmatprep.subr.bf16.mxu0 0
        %4729 = vmatpush1.bf16.msra.mxu0 0
        %4730 = vmatprep.subr.bf16.mxu0 0
        %4731 = vmatpush1.bf16.msra.mxu0 0
        %4732 = vmatprep.subr.bf16.mxu0 0
        %4733 = vmatpush1.bf16.msra.mxu0 0
        %4734 = vmatprep.subr.bf16.mxu0 0
        %4735 = vmatpush1.bf16.msra.mxu0 0
        %4736 = vmatprep.subr.bf16.mxu0 0
        %4737 = vmatpush1.bf16.msra.mxu0 0
        %4738 = vmatprep.subr.bf16.mxu0 0
        %4739 = vmatpush1.bf16.msra.mxu0 %v4722
        %4740 = vmatprep.subr.bf16.mxu0 0
        %4741 = vmatpush2.bf16.msra.mxu0 0
        %4742 = vmatprep.subr.bf16.mxu0 0
        %4743 = vmatpush2.bf16.msra.mxu0 0
        %4744 = vmatprep.subr.bf16.mxu0 0
        %4745 = vmatpush2.bf16.msra.mxu0 0
        %4746 = vmatprep.subr.bf16.mxu0 0
        %4747 = vmatpush2.bf16.msra.mxu0 0
        %4748 = vmatprep.subr.bf16.mxu0 0
        %4749 = vmatpush2.bf16.msra.mxu0 0
        %4750 = vmatprep.subr.bf16.mxu0 0
        %4751 = vmatpush2.bf16.msra.mxu0 0
        %4752 = vmatprep.subr.bf16.mxu0 0
        %4753 = vmatpush2.bf16.msra.mxu0 0
        %4754 = vmatprep.subr.bf16.mxu0 0
        %4755 = vmatpush2.bf16.msra.mxu0 0
        %4756 = vmatprep.mubr.bf16.mxu0 0
        %4757 = vmatmul.mubr.bf16.gmra.mxu0 %v4719
        %v4758 = vpop.f32.mrf.mxu0
        %v4759 = vadd.f32 0.0, %v4758
        %v4760 = vpop.f32.mrf.mxu0
        %v4761 = vpop.f32.mrf.mxu0
        %v4762 = vpop.f32.mrf.mxu0
        %4763 = vdwg.mxu0
        %v4764 = vsel %vm1785, %v4621, 0.0
        %v4765 = vsel %vm1785, %v4667, 0.0
        %v4766 = vadd.f32 %v4764, %v4765
        %v4767 = vsel %vm1785, %v4713, 0.0
        %v4768 = vadd.f32 %v4766, %v4767
        %v4769 = vsel %vm1785, %v4759, 0.0
        %v4770 = vadd.f32 %v4768, %v4769
        %v4771 = vld [vmem:[%s65] sm:$0x1]
        %v4773 = vlaneseq
        %v4774 = vshrl.u32 %v4773, 7
        %v4775 = vsub.s32 0, %v4774
        %v4776 = vrot.slane %v4771, %v4775
        %v4778 = vadd.f32 %v4770, %v4776
        %v4779 = vadd.f32 %v1723, %v4778
        %v4780 = vsel %vm1785, %v4779, 0.0
        %4781 = vadd.xlane.f32.xlu0 %v4780
        %v4782 = vpop.xlane.xlu0 %4781
        %v4783 = vmul.f32 %v4782, %v3134
        %v4784 = vsub.f32 %v4779, %v4783
        %v4785 = vmul.f32 %v4784, %v4784
        %v4786 = vsel %vm1785, %v4785, 0.0
        %4787 = vadd.xlane.f32.xlu0 %v4786
        %v4788 = vpop.xlane.xlu0 %4787
        %v4789 = vmul.f32 %v4788, %v3134
        %v4790 = vadd.f32 %v4789, 1e-05
        %v4791 = vrsqrt.pop %v4790
        %v4792 = vmul.f32 %v4784, %v4791
        %v4793 = vld [vmem:[%s67] sm:$0x1]
        %v4795 = vlaneseq
        %v4796 = vshrl.u32 %v4795, 7
        %v4797 = vsub.s32 0, %v4796
        %v4798 = vrot.slane %v4793, %v4797
        %v4800 = vmul.f32 %v4792, %v4798
        %v4801 = vld [vmem:[%s69] sm:$0x1]
        %v4803 = vlaneseq
        %v4804 = vshrl.u32 %v4803, 7
        %v4805 = vsub.s32 0, %v4804
        %v4806 = vrot.slane %v4801, %v4805
        %v4808 = vadd.f32 %v4800, %v4806
        %v4809 = vpack.c.bf16 %v4808, %v4808
        %v4810 = vld [vmem:[%s71] sm:$0xf]
        %v4811 = vld [vmem:[%s71 + $0x4] sm:$0xf]
        %v4812 = vld [vmem:[%s71 + $0x8] sm:$0xf]
        %v4813 = vld [vmem:[%s71 + $0xc] sm:$0xf]
        %v4814 = vld [vmem:[%s71 + $0x10] sm:$0xf]
        %v4815 = vld [vmem:[%s71 + $0x14] sm:$0xf]
        %v4816 = vld [vmem:[%s71 + $0x18] sm:$0xf]
        %v4817 = vld [vmem:[%s71 + $0x1c] sm:$0xf]
        %v4818 = vld [vmem:[%s71 + $0x20] sm:$0xf]
        %v4819 = vld [vmem:[%s71 + $0x24] sm:$0xf]
        %v4820 = vld [vmem:[%s71 + $0x28] sm:$0xf]
        %v4821 = vld [vmem:[%s71 + $0x2c] sm:$0xf]
        %v4822 = vld [vmem:[%s71 + $0x30] sm:$0xf]
        %v4823 = vld [vmem:[%s71 + $0x34] sm:$0xf]
        %v4824 = vld [vmem:[%s71 + $0x38] sm:$0xf]
        %v4825 = vld [vmem:[%s71 + $0x3c] sm:$0xf]
        %v4826 = vld [vmem:[%s73] sm:$0x1]
        %v4827 = vld [vmem:[%s73 + $0x1] sm:$0x1]
        %v4828 = vld [vmem:[%s73 + $0x2] sm:$0x1]
        %v4829 = vld [vmem:[%s73 + $0x3] sm:$0x1]
        %v4834 = vlaneseq
        %v4835 = vshrl.u32 %v4834, 7
        %v4836 = vsub.s32 0, %v4835
        %v4837 = vrot.slane %v4826, %v4836
        %v4838 = vlaneseq
        %v4839 = vshrl.u32 %v4838, 7
        %v4840 = vsub.s32 0, %v4839
        %v4841 = vrot.slane %v4827, %v4840
        %v4842 = vlaneseq
        %v4843 = vshrl.u32 %v4842, 7
        %v4844 = vsub.s32 0, %v4843
        %v4845 = vrot.slane %v4828, %v4844
        %v4846 = vlaneseq
        %v4847 = vshrl.u32 %v4846, 7
        %v4848 = vsub.s32 0, %v4847
        %v4849 = vrot.slane %v4829, %v4848
        %v4858 = vunpack.c.l.b16 %v4810
        %v4859 = vunpack.c.l.b16 %v4811
        %v4860 = vunpack.c.l.b16 %v4812
        %v4861 = vunpack.c.l.b16 %v4813
        %v4862 = vpack.c.b16 %v4859, %v4858
        %v4863 = vpack.c.b16 %v4861, %v4860
        %v4867 = vsel %vm1785, %v4809, 0
        %4869 = vmatprep.subr.bf16.mxu0 0
        %4870 = vmatpush1.bf16.msra.mxu0 0
        %4871 = vmatprep.subr.bf16.mxu0 0
        %4872 = vmatpush1.bf16.msra.mxu0 0
        %4873 = vmatprep.subr.bf16.mxu0 0
        %4874 = vmatpush1.bf16.msra.mxu0 0
        %4875 = vmatprep.subr.bf16.mxu0 0
        %4876 = vmatpush1.bf16.msra.mxu0 0
        %4877 = vmatprep.subr.bf16.mxu0 0
        %4878 = vmatpush1.bf16.msra.mxu0 0
        %4879 = vmatprep.subr.bf16.mxu0 0
        %4880 = vmatpush1.bf16.msra.mxu0 0
        %4881 = vmatprep.subr.bf16.mxu0 0
        %4882 = vmatpush1.bf16.msra.mxu0 %v4863
        %4883 = vmatprep.subr.bf16.mxu0 0
        %4884 = vmatpush1.bf16.msra.mxu0 %v4862
        %4885 = vmatprep.subr.bf16.mxu0 0
        %4886 = vmatpush2.bf16.msra.mxu0 0
        %4887 = vmatprep.subr.bf16.mxu0 0
        %4888 = vmatpush2.bf16.msra.mxu0 0
        %4889 = vmatprep.subr.bf16.mxu0 0
        %4890 = vmatpush2.bf16.msra.mxu0 0
        %4891 = vmatprep.subr.bf16.mxu0 0
        %4892 = vmatpush2.bf16.msra.mxu0 0
        %4893 = vmatprep.subr.bf16.mxu0 0
        %4894 = vmatpush2.bf16.msra.mxu0 0
        %4895 = vmatprep.subr.bf16.mxu0 0
        %4896 = vmatpush2.bf16.msra.mxu0 0
        %4897 = vmatprep.subr.bf16.mxu0 0
        %4898 = vmatpush2.bf16.msra.mxu0 0
        %4899 = vmatprep.subr.bf16.mxu0 0
        %4900 = vmatpush2.bf16.msra.mxu0 0
        %4901 = vmatprep.mubr.bf16.mxu0 0
        %4902 = vmatmul.mubr.bf16.gmra.mxu0 %v4867
        %v4903 = vpop.f32.mrf.mxu0
        %v4904 = vadd.f32 %v4837, %v4903
        %v4905 = vpop.f32.mrf.mxu0
        %v4906 = vpop.f32.mrf.mxu0
        %v4907 = vpop.f32.mrf.mxu0
        %4908 = vdwg.mxu0
        %v4913 = vunpack.c.l.b16 %v4814
        %v4914 = vunpack.c.l.b16 %v4815
        %v4915 = vunpack.c.l.b16 %v4816
        %v4916 = vunpack.c.l.b16 %v4817
        %v4917 = vpack.c.b16 %v4914, %v4913
        %v4918 = vpack.c.b16 %v4916, %v4915
        %4921 = vmatprep.subr.bf16.mxu0 0
        %4922 = vmatpush1.bf16.msra.mxu0 0
        %4923 = vmatprep.subr.bf16.mxu0 0
        %4924 = vmatpush1.bf16.msra.mxu0 0
        %4925 = vmatprep.subr.bf16.mxu0 0
        %4926 = vmatpush1.bf16.msra.mxu0 0
        %4927 = vmatprep.subr.bf16.mxu0 0
        %4928 = vmatpush1.bf16.msra.mxu0 0
        %4929 = vmatprep.subr.bf16.mxu0 0
        %4930 = vmatpush1.bf16.msra.mxu0 0
        %4931 = vmatprep.subr.bf16.mxu0 0
        %4932 = vmatpush1.bf16.msra.mxu0 0
        %4933 = vmatprep.subr.bf16.mxu0 0
        %4934 = vmatpush1.bf16.msra.mxu0 %v4918
        %4935 = vmatprep.subr.bf16.mxu0 0
        %4936 = vmatpush1.bf16.msra.mxu0 %v4917
        %4937 = vmatprep.subr.bf16.mxu0 0
        %4938 = vmatpush2.bf16.msra.mxu0 0
        %4939 = vmatprep.subr.bf16.mxu0 0
        %4940 = vmatpush2.bf16.msra.mxu0 0
        %4941 = vmatprep.subr.bf16.mxu0 0
        %4942 = vmatpush2.bf16.msra.mxu0 0
        %4943 = vmatprep.subr.bf16.mxu0 0
        %4944 = vmatpush2.bf16.msra.mxu0 0
        %4945 = vmatprep.subr.bf16.mxu0 0
        %4946 = vmatpush2.bf16.msra.mxu0 0
        %4947 = vmatprep.subr.bf16.mxu0 0
        %4948 = vmatpush2.bf16.msra.mxu0 0
        %4949 = vmatprep.subr.bf16.mxu0 0
        %4950 = vmatpush2.bf16.msra.mxu0 0
        %4951 = vmatprep.subr.bf16.mxu0 0
        %4952 = vmatpush2.bf16.msra.mxu0 0
        %4953 = vmatprep.mubr.bf16.mxu0 0
        %4954 = vmatmul.mubr.bf16.gmra.mxu0 %v4867
        %v4955 = vpop.f32.mrf.mxu0
        %v4956 = vadd.f32 %v4841, %v4955
        %v4957 = vpop.f32.mrf.mxu0
        %v4958 = vpop.f32.mrf.mxu0
        %v4959 = vpop.f32.mrf.mxu0
        %4960 = vdwg.mxu0
        %v4965 = vunpack.c.l.b16 %v4818
        %v4966 = vunpack.c.l.b16 %v4819
        %v4967 = vunpack.c.l.b16 %v4820
        %v4968 = vunpack.c.l.b16 %v4821
        %v4969 = vpack.c.b16 %v4966, %v4965
        %v4970 = vpack.c.b16 %v4968, %v4967
        %4973 = vmatprep.subr.bf16.mxu0 0
        %4974 = vmatpush1.bf16.msra.mxu0 0
        %4975 = vmatprep.subr.bf16.mxu0 0
        %4976 = vmatpush1.bf16.msra.mxu0 0
        %4977 = vmatprep.subr.bf16.mxu0 0
        %4978 = vmatpush1.bf16.msra.mxu0 0
        %4979 = vmatprep.subr.bf16.mxu0 0
        %4980 = vmatpush1.bf16.msra.mxu0 0
        %4981 = vmatprep.subr.bf16.mxu0 0
        %4982 = vmatpush1.bf16.msra.mxu0 0
        %4983 = vmatprep.subr.bf16.mxu0 0
        %4984 = vmatpush1.bf16.msra.mxu0 0
        %4985 = vmatprep.subr.bf16.mxu0 0
        %4986 = vmatpush1.bf16.msra.mxu0 %v4970
        %4987 = vmatprep.subr.bf16.mxu0 0
        %4988 = vmatpush1.bf16.msra.mxu0 %v4969
        %4989 = vmatprep.subr.bf16.mxu0 0
        %4990 = vmatpush2.bf16.msra.mxu0 0
        %4991 = vmatprep.subr.bf16.mxu0 0
        %4992 = vmatpush2.bf16.msra.mxu0 0
        %4993 = vmatprep.subr.bf16.mxu0 0
        %4994 = vmatpush2.bf16.msra.mxu0 0
        %4995 = vmatprep.subr.bf16.mxu0 0
        %4996 = vmatpush2.bf16.msra.mxu0 0
        %4997 = vmatprep.subr.bf16.mxu0 0
        %4998 = vmatpush2.bf16.msra.mxu0 0
        %4999 = vmatprep.subr.bf16.mxu0 0
        %5000 = vmatpush2.bf16.msra.mxu0 0
        %5001 = vmatprep.subr.bf16.mxu0 0
        %5002 = vmatpush2.bf16.msra.mxu0 0
        %5003 = vmatprep.subr.bf16.mxu0 0
        %5004 = vmatpush2.bf16.msra.mxu0 0
        %5005 = vmatprep.mubr.bf16.mxu0 0
        %5006 = vmatmul.mubr.bf16.gmra.mxu0 %v4867
        %v5007 = vpop.f32.mrf.mxu0
        %v5008 = vadd.f32 %v4845, %v5007
        %v5009 = vpop.f32.mrf.mxu0
        %v5010 = vpop.f32.mrf.mxu0
        %v5011 = vpop.f32.mrf.mxu0
        %5012 = vdwg.mxu0
        %v5017 = vunpack.c.l.b16 %v4822
        %v5018 = vunpack.c.l.b16 %v4823
        %v5019 = vunpack.c.l.b16 %v4824
        %v5020 = vunpack.c.l.b16 %v4825
        %v5021 = vpack.c.b16 %v5018, %v5017
        %v5022 = vpack.c.b16 %v5020, %v5019
        %5025 = vmatprep.subr.bf16.mxu0 0
        %5026 = vmatpush1.bf16.msra.mxu0 0
        %5027 = vmatprep.subr.bf16.mxu0 0
        %5028 = vmatpush1.bf16.msra.mxu0 0
        %5029 = vmatprep.subr.bf16.mxu0 0
        %5030 = vmatpush1.bf16.msra.mxu0 0
        %5031 = vmatprep.subr.bf16.mxu0 0
        %5032 = vmatpush1.bf16.msra.mxu0 0
        %5033 = vmatprep.subr.bf16.mxu0 0
        %5034 = vmatpush1.bf16.msra.mxu0 0
        %5035 = vmatprep.subr.bf16.mxu0 0
        %5036 = vmatpush1.bf16.msra.mxu0 0
        %5037 = vmatprep.subr.bf16.mxu0 0
        %5038 = vmatpush1.bf16.msra.mxu0 %v5022
        %5039 = vmatprep.subr.bf16.mxu0 0
        %5040 = vmatpush1.bf16.msra.mxu0 %v5021
        %5041 = vmatprep.subr.bf16.mxu0 0
        %5042 = vmatpush2.bf16.msra.mxu0 0
        %5043 = vmatprep.subr.bf16.mxu0 0
        %5044 = vmatpush2.bf16.msra.mxu0 0
        %5045 = vmatprep.subr.bf16.mxu0 0
        %5046 = vmatpush2.bf16.msra.mxu0 0
        %5047 = vmatprep.subr.bf16.mxu0 0
        %5048 = vmatpush2.bf16.msra.mxu0 0
        %5049 = vmatprep.subr.bf16.mxu0 0
        %5050 = vmatpush2.bf16.msra.mxu0 0
        %5051 = vmatprep.subr.bf16.mxu0 0
        %5052 = vmatpush2.bf16.msra.mxu0 0
        %5053 = vmatprep.subr.bf16.mxu0 0
        %5054 = vmatpush2.bf16.msra.mxu0 0
        %5055 = vmatprep.subr.bf16.mxu0 0
        %5056 = vmatpush2.bf16.msra.mxu0 0
        %5057 = vmatprep.mubr.bf16.mxu0 0
        %5058 = vmatmul.mubr.bf16.gmra.mxu0 %v4867
        %v5059 = vpop.f32.mrf.mxu0
        %v5060 = vadd.f32 %v4849, %v5059
        %v5061 = vpop.f32.mrf.mxu0
        %v5062 = vpop.f32.mrf.mxu0
        %v5063 = vpop.f32.mrf.mxu0
        %5064 = vdwg.mxu0
        %v5065 = vpack.c.bf16 %v3370, %v3370
        %v5066 = vld [vmem:[%s75] sm:$0xf]
        %v5067 = vld [vmem:[%s75 + $0x4] sm:$0xf]
        %v5068 = vld [vmem:[%s75 + $0x8] sm:$0xf]
        %v5069 = vld [vmem:[%s75 + $0xc] sm:$0xf]
        %v5070 = vld [vmem:[%s75 + $0x10] sm:$0xf]
        %v5071 = vld [vmem:[%s75 + $0x14] sm:$0xf]
        %v5072 = vld [vmem:[%s75 + $0x18] sm:$0xf]
        %v5073 = vld [vmem:[%s75 + $0x1c] sm:$0xf]
        %v5074 = vld [vmem:[%s75 + $0x20] sm:$0xf]
        %v5075 = vld [vmem:[%s75 + $0x24] sm:$0xf]
        %v5076 = vld [vmem:[%s75 + $0x28] sm:$0xf]
        %v5077 = vld [vmem:[%s75 + $0x2c] sm:$0xf]
        %v5078 = vld [vmem:[%s75 + $0x30] sm:$0xf]
        %v5079 = vld [vmem:[%s75 + $0x34] sm:$0xf]
        %v5080 = vld [vmem:[%s75 + $0x38] sm:$0xf]
        %v5081 = vld [vmem:[%s75 + $0x3c] sm:$0xf]
        %v5082 = vld [vmem:[%s77] sm:$0x1]
        %v5083 = vld [vmem:[%s77 + $0x1] sm:$0x1]
        %v5084 = vld [vmem:[%s77 + $0x2] sm:$0x1]
        %v5085 = vld [vmem:[%s77 + $0x3] sm:$0x1]
        %v5090 = vlaneseq
        %v5091 = vshrl.u32 %v5090, 7
        %v5092 = vsub.s32 0, %v5091
        %v5093 = vrot.slane %v5082, %v5092
        %v5094 = vlaneseq
        %v5095 = vshrl.u32 %v5094, 7
        %v5096 = vsub.s32 0, %v5095
        %v5097 = vrot.slane %v5083, %v5096
        %v5098 = vlaneseq
        %v5099 = vshrl.u32 %v5098, 7
        %v5100 = vsub.s32 0, %v5099
        %v5101 = vrot.slane %v5084, %v5100
        %v5102 = vlaneseq
        %v5103 = vshrl.u32 %v5102, 7
        %v5104 = vsub.s32 0, %v5103
        %v5105 = vrot.slane %v5085, %v5104
        %v5114 = vunpack.c.l.b16 %v5066
        %v5115 = vunpack.c.l.b16 %v5067
        %v5116 = vunpack.c.l.b16 %v5068
        %v5117 = vunpack.c.l.b16 %v5069
        %v5118 = vpack.c.b16 %v5115, %v5114
        %v5119 = vpack.c.b16 %v5117, %v5116
        %v5123 = vsel %vm1785, %v5065, 0
        %5125 = vmatprep.subr.bf16.mxu0 0
        %5126 = vmatpush1.bf16.msra.mxu0 0
        %5127 = vmatprep.subr.bf16.mxu0 0
        %5128 = vmatpush1.bf16.msra.mxu0 0
        %5129 = vmatprep.subr.bf16.mxu0 0
        %5130 = vmatpush1.bf16.msra.mxu0 0
        %5131 = vmatprep.subr.bf16.mxu0 0
        %5132 = vmatpush1.bf16.msra.mxu0 0
        %5133 = vmatprep.subr.bf16.mxu0 0
        %5134 = vmatpush1.bf16.msra.mxu0 0
        %5135 = vmatprep.subr.bf16.mxu0 0
        %5136 = vmatpush1.bf16.msra.mxu0 0
        %5137 = vmatprep.subr.bf16.mxu0 0
        %5138 = vmatpush1.bf16.msra.mxu0 %v5119
        %5139 = vmatprep.subr.bf16.mxu0 0
        %5140 = vmatpush1.bf16.msra.mxu0 %v5118
        %5141 = vmatprep.subr.bf16.mxu0 0
        %5142 = vmatpush2.bf16.msra.mxu0 0
        %5143 = vmatprep.subr.bf16.mxu0 0
        %5144 = vmatpush2.bf16.msra.mxu0 0
        %5145 = vmatprep.subr.bf16.mxu0 0
        %5146 = vmatpush2.bf16.msra.mxu0 0
        %5147 = vmatprep.subr.bf16.mxu0 0
        %5148 = vmatpush2.bf16.msra.mxu0 0
        %5149 = vmatprep.subr.bf16.mxu0 0
        %5150 = vmatpush2.bf16.msra.mxu0 0
        %5151 = vmatprep.subr.bf16.mxu0 0
        %5152 = vmatpush2.bf16.msra.mxu0 0
        %5153 = vmatprep.subr.bf16.mxu0 0
        %5154 = vmatpush2.bf16.msra.mxu0 0
        %5155 = vmatprep.subr.bf16.mxu0 0
        %5156 = vmatpush2.bf16.msra.mxu0 0
        %5157 = vmatprep.mubr.bf16.mxu0 0
        %5158 = vmatmul.mubr.bf16.gmra.mxu0 %v5123
        %v5159 = vpop.f32.mrf.mxu0
        %v5160 = vadd.f32 %v5093, %v5159
        %v5161 = vpop.f32.mrf.mxu0
        %v5162 = vpop.f32.mrf.mxu0
        %v5163 = vpop.f32.mrf.mxu0
        %5164 = vdwg.mxu0
        %v5169 = vunpack.c.l.b16 %v5070
        %v5170 = vunpack.c.l.b16 %v5071
        %v5171 = vunpack.c.l.b16 %v5072
        %v5172 = vunpack.c.l.b16 %v5073
        %v5173 = vpack.c.b16 %v5170, %v5169
        %v5174 = vpack.c.b16 %v5172, %v5171
        %5177 = vmatprep.subr.bf16.mxu0 0
        %5178 = vmatpush1.bf16.msra.mxu0 0
        %5179 = vmatprep.subr.bf16.mxu0 0
        %5180 = vmatpush1.bf16.msra.mxu0 0
        %5181 = vmatprep.subr.bf16.mxu0 0
        %5182 = vmatpush1.bf16.msra.mxu0 0
        %5183 = vmatprep.subr.bf16.mxu0 0
        %5184 = vmatpush1.bf16.msra.mxu0 0
        %5185 = vmatprep.subr.bf16.mxu0 0
        %5186 = vmatpush1.bf16.msra.mxu0 0
        %5187 = vmatprep.subr.bf16.mxu0 0
        %5188 = vmatpush1.bf16.msra.mxu0 0
        %5189 = vmatprep.subr.bf16.mxu0 0
        %5190 = vmatpush1.bf16.msra.mxu0 %v5174
        %5191 = vmatprep.subr.bf16.mxu0 0
        %5192 = vmatpush1.bf16.msra.mxu0 %v5173
        %5193 = vmatprep.subr.bf16.mxu0 0
        %5194 = vmatpush2.bf16.msra.mxu0 0
        %5195 = vmatprep.subr.bf16.mxu0 0
        %5196 = vmatpush2.bf16.msra.mxu0 0
        %5197 = vmatprep.subr.bf16.mxu0 0
        %5198 = vmatpush2.bf16.msra.mxu0 0
        %5199 = vmatprep.subr.bf16.mxu0 0
        %5200 = vmatpush2.bf16.msra.mxu0 0
        %5201 = vmatprep.subr.bf16.mxu0 0
        %5202 = vmatpush2.bf16.msra.mxu0 0
        %5203 = vmatprep.subr.bf16.mxu0 0
        %5204 = vmatpush2.bf16.msra.mxu0 0
        %5205 = vmatprep.subr.bf16.mxu0 0
        %5206 = vmatpush2.bf16.msra.mxu0 0
        %5207 = vmatprep.subr.bf16.mxu0 0
        %5208 = vmatpush2.bf16.msra.mxu0 0
        %5209 = vmatprep.mubr.bf16.mxu0 0
        %5210 = vmatmul.mubr.bf16.gmra.mxu0 %v5123
        %v5211 = vpop.f32.mrf.mxu0
        %v5212 = vadd.f32 %v5097, %v5211
        %v5213 = vpop.f32.mrf.mxu0
        %v5214 = vpop.f32.mrf.mxu0
        %v5215 = vpop.f32.mrf.mxu0
        %5216 = vdwg.mxu0
        %v5221 = vunpack.c.l.b16 %v5074
        %v5222 = vunpack.c.l.b16 %v5075
        %v5223 = vunpack.c.l.b16 %v5076
        %v5224 = vunpack.c.l.b16 %v5077
        %v5225 = vpack.c.b16 %v5222, %v5221
        %v5226 = vpack.c.b16 %v5224, %v5223
        %5229 = vmatprep.subr.bf16.mxu0 0
        %5230 = vmatpush1.bf16.msra.mxu0 0
        %5231 = vmatprep.subr.bf16.mxu0 0
        %5232 = vmatpush1.bf16.msra.mxu0 0
        %5233 = vmatprep.subr.bf16.mxu0 0
        %5234 = vmatpush1.bf16.msra.mxu0 0
        %5235 = vmatprep.subr.bf16.mxu0 0
        %5236 = vmatpush1.bf16.msra.mxu0 0
        %5237 = vmatprep.subr.bf16.mxu0 0
        %5238 = vmatpush1.bf16.msra.mxu0 0
        %5239 = vmatprep.subr.bf16.mxu0 0
        %5240 = vmatpush1.bf16.msra.mxu0 0
        %5241 = vmatprep.subr.bf16.mxu0 0
        %5242 = vmatpush1.bf16.msra.mxu0 %v5226
        %5243 = vmatprep.subr.bf16.mxu0 0
        %5244 = vmatpush1.bf16.msra.mxu0 %v5225
        %5245 = vmatprep.subr.bf16.mxu0 0
        %5246 = vmatpush2.bf16.msra.mxu0 0
        %5247 = vmatprep.subr.bf16.mxu0 0
        %5248 = vmatpush2.bf16.msra.mxu0 0
        %5249 = vmatprep.subr.bf16.mxu0 0
        %5250 = vmatpush2.bf16.msra.mxu0 0
        %5251 = vmatprep.subr.bf16.mxu0 0
        %5252 = vmatpush2.bf16.msra.mxu0 0
        %5253 = vmatprep.subr.bf16.mxu0 0
        %5254 = vmatpush2.bf16.msra.mxu0 0
        %5255 = vmatprep.subr.bf16.mxu0 0
        %5256 = vmatpush2.bf16.msra.mxu0 0
        %5257 = vmatprep.subr.bf16.mxu0 0
        %5258 = vmatpush2.bf16.msra.mxu0 0
        %5259 = vmatprep.subr.bf16.mxu0 0
        %5260 = vmatpush2.bf16.msra.mxu0 0
        %5261 = vmatprep.mubr.bf16.mxu0 0
        %5262 = vmatmul.mubr.bf16.gmra.mxu0 %v5123
        %v5263 = vpop.f32.mrf.mxu0
        %v5264 = vadd.f32 %v5101, %v5263
        %v5265 = vpop.f32.mrf.mxu0
        %v5266 = vpop.f32.mrf.mxu0
        %v5267 = vpop.f32.mrf.mxu0
        %5268 = vdwg.mxu0
        %v5273 = vunpack.c.l.b16 %v5078
        %v5274 = vunpack.c.l.b16 %v5079
        %v5275 = vunpack.c.l.b16 %v5080
        %v5276 = vunpack.c.l.b16 %v5081
        %v5277 = vpack.c.b16 %v5274, %v5273
        %v5278 = vpack.c.b16 %v5276, %v5275
        %5281 = vmatprep.subr.bf16.mxu0 0
        %5282 = vmatpush1.bf16.msra.mxu0 0
        %5283 = vmatprep.subr.bf16.mxu0 0
        %5284 = vmatpush1.bf16.msra.mxu0 0
        %5285 = vmatprep.subr.bf16.mxu0 0
        %5286 = vmatpush1.bf16.msra.mxu0 0
        %5287 = vmatprep.subr.bf16.mxu0 0
        %5288 = vmatpush1.bf16.msra.mxu0 0
        %5289 = vmatprep.subr.bf16.mxu0 0
        %5290 = vmatpush1.bf16.msra.mxu0 0
        %5291 = vmatprep.subr.bf16.mxu0 0
        %5292 = vmatpush1.bf16.msra.mxu0 0
        %5293 = vmatprep.subr.bf16.mxu0 0
        %5294 = vmatpush1.bf16.msra.mxu0 %v5278
        %5295 = vmatprep.subr.bf16.mxu0 0
        %5296 = vmatpush1.bf16.msra.mxu0 %v5277
        %5297 = vmatprep.subr.bf16.mxu0 0
        %5298 = vmatpush2.bf16.msra.mxu0 0
        %5299 = vmatprep.subr.bf16.mxu0 0
        %5300 = vmatpush2.bf16.msra.mxu0 0
        %5301 = vmatprep.subr.bf16.mxu0 0
        %5302 = vmatpush2.bf16.msra.mxu0 0
        %5303 = vmatprep.subr.bf16.mxu0 0
        %5304 = vmatpush2.bf16.msra.mxu0 0
        %5305 = vmatprep.subr.bf16.mxu0 0
        %5306 = vmatpush2.bf16.msra.mxu0 0
        %5307 = vmatprep.subr.bf16.mxu0 0
        %5308 = vmatpush2.bf16.msra.mxu0 0
        %5309 = vmatprep.subr.bf16.mxu0 0
        %5310 = vmatpush2.bf16.msra.mxu0 0
        %5311 = vmatprep.subr.bf16.mxu0 0
        %5312 = vmatpush2.bf16.msra.mxu0 0
        %5313 = vmatprep.mubr.bf16.mxu0 0
        %5314 = vmatmul.mubr.bf16.gmra.mxu0 %v5123
        %v5315 = vpop.f32.mrf.mxu0
        %v5316 = vadd.f32 %v5105, %v5315
        %v5317 = vpop.f32.mrf.mxu0
        %v5318 = vpop.f32.mrf.mxu0
        %v5319 = vpop.f32.mrf.mxu0
        %5320 = vdwg.mxu0
        %v5321 = vld [vmem:[%s79] sm:$0xf]
        %v5322 = vld [vmem:[%s79 + $0x4] sm:$0xf]
        %v5323 = vld [vmem:[%s79 + $0x8] sm:$0xf]
        %v5324 = vld [vmem:[%s79 + $0xc] sm:$0xf]
        %v5325 = vld [vmem:[%s79 + $0x10] sm:$0xf]
        %v5326 = vld [vmem:[%s79 + $0x14] sm:$0xf]
        %v5327 = vld [vmem:[%s79 + $0x18] sm:$0xf]
        %v5328 = vld [vmem:[%s79 + $0x1c] sm:$0xf]
        %v5329 = vld [vmem:[%s79 + $0x20] sm:$0xf]
        %v5330 = vld [vmem:[%s79 + $0x24] sm:$0xf]
        %v5331 = vld [vmem:[%s79 + $0x28] sm:$0xf]
        %v5332 = vld [vmem:[%s79 + $0x2c] sm:$0xf]
        %v5333 = vld [vmem:[%s79 + $0x30] sm:$0xf]
        %v5334 = vld [vmem:[%s79 + $0x34] sm:$0xf]
        %v5335 = vld [vmem:[%s79 + $0x38] sm:$0xf]
        %v5336 = vld [vmem:[%s79 + $0x3c] sm:$0xf]
        %v5337 = vld [vmem:[%s81] sm:$0x1]
        %v5338 = vld [vmem:[%s81 + $0x1] sm:$0x1]
        %v5339 = vld [vmem:[%s81 + $0x2] sm:$0x1]
        %v5340 = vld [vmem:[%s81 + $0x3] sm:$0x1]
        %v5345 = vlaneseq
        %v5346 = vshrl.u32 %v5345, 7
        %v5347 = vsub.s32 0, %v5346
        %v5348 = vrot.slane %v5337, %v5347
        %v5349 = vlaneseq
        %v5350 = vshrl.u32 %v5349, 7
        %v5351 = vsub.s32 0, %v5350
        %v5352 = vrot.slane %v5338, %v5351
        %v5353 = vlaneseq
        %v5354 = vshrl.u32 %v5353, 7
        %v5355 = vsub.s32 0, %v5354
        %v5356 = vrot.slane %v5339, %v5355
        %v5357 = vlaneseq
        %v5358 = vshrl.u32 %v5357, 7
        %v5359 = vsub.s32 0, %v5358
        %v5360 = vrot.slane %v5340, %v5359
        %v5369 = vunpack.c.l.b16 %v5321
        %v5370 = vunpack.c.l.b16 %v5322
        %v5371 = vunpack.c.l.b16 %v5323
        %v5372 = vunpack.c.l.b16 %v5324
        %v5373 = vpack.c.b16 %v5370, %v5369
        %v5374 = vpack.c.b16 %v5372, %v5371
        %5377 = vmatprep.subr.bf16.mxu0 0
        %5378 = vmatpush1.bf16.msra.mxu0 0
        %5379 = vmatprep.subr.bf16.mxu0 0
        %5380 = vmatpush1.bf16.msra.mxu0 0
        %5381 = vmatprep.subr.bf16.mxu0 0
        %5382 = vmatpush1.bf16.msra.mxu0 0
        %5383 = vmatprep.subr.bf16.mxu0 0
        %5384 = vmatpush1.bf16.msra.mxu0 0
        %5385 = vmatprep.subr.bf16.mxu0 0
        %5386 = vmatpush1.bf16.msra.mxu0 0
        %5387 = vmatprep.subr.bf16.mxu0 0
        %5388 = vmatpush1.bf16.msra.mxu0 0
        %5389 = vmatprep.subr.bf16.mxu0 0
        %5390 = vmatpush1.bf16.msra.mxu0 %v5374
        %5391 = vmatprep.subr.bf16.mxu0 0
        %5392 = vmatpush1.bf16.msra.mxu0 %v5373
        %5393 = vmatprep.subr.bf16.mxu0 0
        %5394 = vmatpush2.bf16.msra.mxu0 0
        %5395 = vmatprep.subr.bf16.mxu0 0
        %5396 = vmatpush2.bf16.msra.mxu0 0
        %5397 = vmatprep.subr.bf16.mxu0 0
        %5398 = vmatpush2.bf16.msra.mxu0 0
        %5399 = vmatprep.subr.bf16.mxu0 0
        %5400 = vmatpush2.bf16.msra.mxu0 0
        %5401 = vmatprep.subr.bf16.mxu0 0
        %5402 = vmatpush2.bf16.msra.mxu0 0
        %5403 = vmatprep.subr.bf16.mxu0 0
        %5404 = vmatpush2.bf16.msra.mxu0 0
        %5405 = vmatprep.subr.bf16.mxu0 0
        %5406 = vmatpush2.bf16.msra.mxu0 0
        %5407 = vmatprep.subr.bf16.mxu0 0
        %5408 = vmatpush2.bf16.msra.mxu0 0
        %5409 = vmatprep.mubr.bf16.mxu0 0
        %5410 = vmatmul.mubr.bf16.gmra.mxu0 %v5123
        %v5411 = vpop.f32.mrf.mxu0
        %v5412 = vadd.f32 %v5348, %v5411
        %v5413 = vpop.f32.mrf.mxu0
        %v5414 = vpop.f32.mrf.mxu0
        %v5415 = vpop.f32.mrf.mxu0
        %5416 = vdwg.mxu0
        %v5421 = vunpack.c.l.b16 %v5325
        %v5422 = vunpack.c.l.b16 %v5326
        %v5423 = vunpack.c.l.b16 %v5327
        %v5424 = vunpack.c.l.b16 %v5328
        %v5425 = vpack.c.b16 %v5422, %v5421
        %v5426 = vpack.c.b16 %v5424, %v5423
        %5429 = vmatprep.subr.bf16.mxu0 0
        %5430 = vmatpush1.bf16.msra.mxu0 0
        %5431 = vmatprep.subr.bf16.mxu0 0
        %5432 = vmatpush1.bf16.msra.mxu0 0
        %5433 = vmatprep.subr.bf16.mxu0 0
        %5434 = vmatpush1.bf16.msra.mxu0 0
        %5435 = vmatprep.subr.bf16.mxu0 0
        %5436 = vmatpush1.bf16.msra.mxu0 0
        %5437 = vmatprep.subr.bf16.mxu0 0
        %5438 = vmatpush1.bf16.msra.mxu0 0
        %5439 = vmatprep.subr.bf16.mxu0 0
        %5440 = vmatpush1.bf16.msra.mxu0 0
        %5441 = vmatprep.subr.bf16.mxu0 0
        %5442 = vmatpush1.bf16.msra.mxu0 %v5426
        %5443 = vmatprep.subr.bf16.mxu0 0
        %5444 = vmatpush1.bf16.msra.mxu0 %v5425
        %5445 = vmatprep.subr.bf16.mxu0 0
        %5446 = vmatpush2.bf16.msra.mxu0 0
        %5447 = vmatprep.subr.bf16.mxu0 0
        %5448 = vmatpush2.bf16.msra.mxu0 0
        %5449 = vmatprep.subr.bf16.mxu0 0
        %5450 = vmatpush2.bf16.msra.mxu0 0
        %5451 = vmatprep.subr.bf16.mxu0 0
        %5452 = vmatpush2.bf16.msra.mxu0 0
        %5453 = vmatprep.subr.bf16.mxu0 0
        %5454 = vmatpush2.bf16.msra.mxu0 0
        %5455 = vmatprep.subr.bf16.mxu0 0
        %5456 = vmatpush2.bf16.msra.mxu0 0
        %5457 = vmatprep.subr.bf16.mxu0 0
        %5458 = vmatpush2.bf16.msra.mxu0 0
        %5459 = vmatprep.subr.bf16.mxu0 0
        %5460 = vmatpush2.bf16.msra.mxu0 0
        %5461 = vmatprep.mubr.bf16.mxu0 0
        %5462 = vmatmul.mubr.bf16.gmra.mxu0 %v5123
        %v5463 = vpop.f32.mrf.mxu0
        %v5464 = vadd.f32 %v5352, %v5463
        %v5465 = vpop.f32.mrf.mxu0
        %v5466 = vpop.f32.mrf.mxu0
        %v5467 = vpop.f32.mrf.mxu0
        %5468 = vdwg.mxu0
        %v5473 = vunpack.c.l.b16 %v5329
        %v5474 = vunpack.c.l.b16 %v5330
        %v5475 = vunpack.c.l.b16 %v5331
        %v5476 = vunpack.c.l.b16 %v5332
        %v5477 = vpack.c.b16 %v5474, %v5473
        %v5478 = vpack.c.b16 %v5476, %v5475
        %5481 = vmatprep.subr.bf16.mxu0 0
        %5482 = vmatpush1.bf16.msra.mxu0 0
        %5483 = vmatprep.subr.bf16.mxu0 0
        %5484 = vmatpush1.bf16.msra.mxu0 0
        %5485 = vmatprep.subr.bf16.mxu0 0
        %5486 = vmatpush1.bf16.msra.mxu0 0
        %5487 = vmatprep.subr.bf16.mxu0 0
        %5488 = vmatpush1.bf16.msra.mxu0 0
        %5489 = vmatprep.subr.bf16.mxu0 0
        %5490 = vmatpush1.bf16.msra.mxu0 0
        %5491 = vmatprep.subr.bf16.mxu0 0
        %5492 = vmatpush1.bf16.msra.mxu0 0
        %5493 = vmatprep.subr.bf16.mxu0 0
        %5494 = vmatpush1.bf16.msra.mxu0 %v5478
        %5495 = vmatprep.subr.bf16.mxu0 0
        %5496 = vmatpush1.bf16.msra.mxu0 %v5477
        %5497 = vmatprep.subr.bf16.mxu0 0
        %5498 = vmatpush2.bf16.msra.mxu0 0
        %5499 = vmatprep.subr.bf16.mxu0 0
        %5500 = vmatpush2.bf16.msra.mxu0 0
        %5501 = vmatprep.subr.bf16.mxu0 0
        %5502 = vmatpush2.bf16.msra.mxu0 0
        %5503 = vmatprep.subr.bf16.mxu0 0
        %5504 = vmatpush2.bf16.msra.mxu0 0
        %5505 = vmatprep.subr.bf16.mxu0 0
        %5506 = vmatpush2.bf16.msra.mxu0 0
        %5507 = vmatprep.subr.bf16.mxu0 0
        %5508 = vmatpush2.bf16.msra.mxu0 0
        %5509 = vmatprep.subr.bf16.mxu0 0
        %5510 = vmatpush2.bf16.msra.mxu0 0
        %5511 = vmatprep.subr.bf16.mxu0 0
        %5512 = vmatpush2.bf16.msra.mxu0 0
        %5513 = vmatprep.mubr.bf16.mxu0 0
        %5514 = vmatmul.mubr.bf16.gmra.mxu0 %v5123
        %v5515 = vpop.f32.mrf.mxu0
        %v5516 = vadd.f32 %v5356, %v5515
        %v5517 = vpop.f32.mrf.mxu0
        %v5518 = vpop.f32.mrf.mxu0
        %v5519 = vpop.f32.mrf.mxu0
        %5520 = vdwg.mxu0
        %v5525 = vunpack.c.l.b16 %v5333
        %v5526 = vunpack.c.l.b16 %v5334
        %v5527 = vunpack.c.l.b16 %v5335
        %v5528 = vunpack.c.l.b16 %v5336
        %v5529 = vpack.c.b16 %v5526, %v5525
        %v5530 = vpack.c.b16 %v5528, %v5527
        %5533 = vmatprep.subr.bf16.mxu0 0
        %5534 = vmatpush1.bf16.msra.mxu0 0
        %5535 = vmatprep.subr.bf16.mxu0 0
        %5536 = vmatpush1.bf16.msra.mxu0 0
        %5537 = vmatprep.subr.bf16.mxu0 0
        %5538 = vmatpush1.bf16.msra.mxu0 0
        %5539 = vmatprep.subr.bf16.mxu0 0
        %5540 = vmatpush1.bf16.msra.mxu0 0
        %5541 = vmatprep.subr.bf16.mxu0 0
        %5542 = vmatpush1.bf16.msra.mxu0 0
        %5543 = vmatprep.subr.bf16.mxu0 0
        %5544 = vmatpush1.bf16.msra.mxu0 0
        %5545 = vmatprep.subr.bf16.mxu0 0
        %5546 = vmatpush1.bf16.msra.mxu0 %v5530
        %5547 = vmatprep.subr.bf16.mxu0 0
        %5548 = vmatpush1.bf16.msra.mxu0 %v5529
        %5549 = vmatprep.subr.bf16.mxu0 0
        %5550 = vmatpush2.bf16.msra.mxu0 0
        %5551 = vmatprep.subr.bf16.mxu0 0
        %5552 = vmatpush2.bf16.msra.mxu0 0
        %5553 = vmatprep.subr.bf16.mxu0 0
        %5554 = vmatpush2.bf16.msra.mxu0 0
        %5555 = vmatprep.subr.bf16.mxu0 0
        %5556 = vmatpush2.bf16.msra.mxu0 0
        %5557 = vmatprep.subr.bf16.mxu0 0
        %5558 = vmatpush2.bf16.msra.mxu0 0
        %5559 = vmatprep.subr.bf16.mxu0 0
        %5560 = vmatpush2.bf16.msra.mxu0 0
        %5561 = vmatprep.subr.bf16.mxu0 0
        %5562 = vmatpush2.bf16.msra.mxu0 0
        %5563 = vmatprep.subr.bf16.mxu0 0
        %5564 = vmatpush2.bf16.msra.mxu0 0
        %5565 = vmatprep.mubr.bf16.mxu0 0
        %5566 = vmatmul.mubr.bf16.gmra.mxu0 %v5123
        %v5567 = vpop.f32.mrf.mxu0
        %v5568 = vadd.f32 %v5360, %v5567
        %v5569 = vpop.f32.mrf.mxu0
        %v5570 = vpop.f32.mrf.mxu0
        %v5571 = vpop.f32.mrf.mxu0
        %5572 = vdwg.mxu0
        %v5573 = vpack.c.bf16 %v4904, %v4904
        %v5574 = vpack.c.bf16 %v4956, %v4956
        %v5575 = vpack.c.bf16 %v5008, %v5008
        %v5576 = vpack.c.bf16 %v5060, %v5060
        %v5577 = vpack.c.bf16 %v5160, %v5160
        %v5578 = vpack.c.bf16 %v5212, %v5212
        %v5579 = vpack.c.bf16 %v5264, %v5264
        %v5580 = vpack.c.bf16 %v5316, %v5316
        %v5582 = vsel %vm2497, %v5573, 0
        %v5585 = vsel %vm2497, %v5577, 0
        %5587 = vmatprep.subr.bf16.mxu0 0
        %5588 = vmatpush1.bf16.xpose.msra.mxu0 0
        %5589 = vmatprep.subr.bf16.mxu0 0
        %5590 = vmatpush1.bf16.xpose.msra.mxu0 0
        %5591 = vmatprep.subr.bf16.mxu0 0
        %5592 = vmatpush1.bf16.xpose.msra.mxu0 0
        %5593 = vmatprep.subr.bf16.mxu0 0
        %5594 = vmatpush1.bf16.xpose.msra.mxu0 0
        %5595 = vmatprep.subr.bf16.mxu0 0
        %5596 = vmatpush1.bf16.xpose.msra.mxu0 0
        %5597 = vmatprep.subr.bf16.mxu0 0
        %5598 = vmatpush1.bf16.xpose.msra.mxu0 0
        %5599 = vmatprep.subr.bf16.mxu0 0
        %5600 = vmatpush1.bf16.xpose.msra.mxu0 0
        %5601 = vmatprep.subr.bf16.mxu0 0
        %5602 = vmatpush1.bf16.xpose.msra.mxu0 %v5585
        %5603 = vmatprep.subr.bf16.mxu0 0
        %5604 = vmatpush2.bf16.xpose.msra.mxu0 0
        %5605 = vmatprep.subr.bf16.mxu0 0
        %5606 = vmatpush2.bf16.xpose.msra.mxu0 0
        %5607 = vmatprep.subr.bf16.mxu0 0
        %5608 = vmatpush2.bf16.xpose.msra.mxu0 0
        %5609 = vmatprep.subr.bf16.mxu0 0
        %5610 = vmatpush2.bf16.xpose.msra.mxu0 0
        %5611 = vmatprep.subr.bf16.mxu0 0
        %5612 = vmatpush2.bf16.xpose.msra.mxu0 0
        %5613 = vmatprep.subr.bf16.mxu0 0
        %5614 = vmatpush2.bf16.xpose.msra.mxu0 0
        %5615 = vmatprep.subr.bf16.mxu0 0
        %5616 = vmatpush2.bf16.xpose.msra.mxu0 0
        %5617 = vmatprep.subr.bf16.mxu0 0
        %5618 = vmatpush2.bf16.xpose.msra.mxu0 0
        %5619 = vmatprep.mubr.bf16.mxu0 0
        %5620 = vmatmul.mubr.bf16.gmra.mxu0 %v5582
        %v5621 = vpop.f32.mrf.mxu0
        %v5622 = vadd.f32 0.0, %v5621
        %v5623 = vpop.f32.mrf.mxu0
        %v5624 = vpop.f32.mrf.mxu0
        %v5625 = vpop.f32.mrf.mxu0
        %5626 = vdwg.mxu0
        %v5628 = vsel %vm2497, %v5574, 0
        %v5631 = vsel %vm2497, %v5578, 0
        %5633 = vmatprep.subr.bf16.mxu0 0
        %5634 = vmatpush1.bf16.xpose.msra.mxu0 0
        %5635 = vmatprep.subr.bf16.mxu0 0
        %5636 = vmatpush1.bf16.xpose.msra.mxu0 0
        %5637 = vmatprep.subr.bf16.mxu0 0
        %5638 = vmatpush1.bf16.xpose.msra.mxu0 0
        %5639 = vmatprep.subr.bf16.mxu0 0
        %5640 = vmatpush1.bf16.xpose.msra.mxu0 0
        %5641 = vmatprep.subr.bf16.mxu0 0
        %5642 = vmatpush1.bf16.xpose.msra.mxu0 0
        %5643 = vmatprep.subr.bf16.mxu0 0
        %5644 = vmatpush1.bf16.xpose.msra.mxu0 0
        %5645 = vmatprep.subr.bf16.mxu0 0
        %5646 = vmatpush1.bf16.xpose.msra.mxu0 0
        %5647 = vmatprep.subr.bf16.mxu0 0
        %5648 = vmatpush1.bf16.xpose.msra.mxu0 %v5631
        %5649 = vmatprep.subr.bf16.mxu0 0
        %5650 = vmatpush2.bf16.xpose.msra.mxu0 0
        %5651 = vmatprep.subr.bf16.mxu0 0
        %5652 = vmatpush2.bf16.xpose.msra.mxu0 0
        %5653 = vmatprep.subr.bf16.mxu0 0
        %5654 = vmatpush2.bf16.xpose.msra.mxu0 0
        %5655 = vmatprep.subr.bf16.mxu0 0
        %5656 = vmatpush2.bf16.xpose.msra.mxu0 0
        %5657 = vmatprep.subr.bf16.mxu0 0
        %5658 = vmatpush2.bf16.xpose.msra.mxu0 0
        %5659 = vmatprep.subr.bf16.mxu0 0
        %5660 = vmatpush2.bf16.xpose.msra.mxu0 0
        %5661 = vmatprep.subr.bf16.mxu0 0
        %5662 = vmatpush2.bf16.xpose.msra.mxu0 0
        %5663 = vmatprep.subr.bf16.mxu0 0
        %5664 = vmatpush2.bf16.xpose.msra.mxu0 0
        %5665 = vmatprep.mubr.bf16.mxu0 0
        %5666 = vmatmul.mubr.bf16.gmra.mxu0 %v5628
        %v5667 = vpop.f32.mrf.mxu0
        %v5668 = vadd.f32 0.0, %v5667
        %v5669 = vpop.f32.mrf.mxu0
        %v5670 = vpop.f32.mrf.mxu0
        %v5671 = vpop.f32.mrf.mxu0
        %5672 = vdwg.mxu0
        %v5674 = vsel %vm2497, %v5575, 0
        %v5677 = vsel %vm2497, %v5579, 0
        %5679 = vmatprep.subr.bf16.mxu0 0
        %5680 = vmatpush1.bf16.xpose.msra.mxu0 0
        %5681 = vmatprep.subr.bf16.mxu0 0
        %5682 = vmatpush1.bf16.xpose.msra.mxu0 0
        %5683 = vmatprep.subr.bf16.mxu0 0
        %5684 = vmatpush1.bf16.xpose.msra.mxu0 0
        %5685 = vmatprep.subr.bf16.mxu0 0
        %5686 = vmatpush1.bf16.xpose.msra.mxu0 0
        %5687 = vmatprep.subr.bf16.mxu0 0
        %5688 = vmatpush1.bf16.xpose.msra.mxu0 0
        %5689 = vmatprep.subr.bf16.mxu0 0
        %5690 = vmatpush1.bf16.xpose.msra.mxu0 0
        %5691 = vmatprep.subr.bf16.mxu0 0
        %5692 = vmatpush1.bf16.xpose.msra.mxu0 0
        %5693 = vmatprep.subr.bf16.mxu0 0
        %5694 = vmatpush1.bf16.xpose.msra.mxu0 %v5677
        %5695 = vmatprep.subr.bf16.mxu0 0
        %5696 = vmatpush2.bf16.xpose.msra.mxu0 0
        %5697 = vmatprep.subr.bf16.mxu0 0
        %5698 = vmatpush2.bf16.xpose.msra.mxu0 0
        %5699 = vmatprep.subr.bf16.mxu0 0
        %5700 = vmatpush2.bf16.xpose.msra.mxu0 0
        %5701 = vmatprep.subr.bf16.mxu0 0
        %5702 = vmatpush2.bf16.xpose.msra.mxu0 0
        %5703 = vmatprep.subr.bf16.mxu0 0
        %5704 = vmatpush2.bf16.xpose.msra.mxu0 0
        %5705 = vmatprep.subr.bf16.mxu0 0
        %5706 = vmatpush2.bf16.xpose.msra.mxu0 0
        %5707 = vmatprep.subr.bf16.mxu0 0
        %5708 = vmatpush2.bf16.xpose.msra.mxu0 0
        %5709 = vmatprep.subr.bf16.mxu0 0
        %5710 = vmatpush2.bf16.xpose.msra.mxu0 0
        %5711 = vmatprep.mubr.bf16.mxu0 0
        %5712 = vmatmul.mubr.bf16.gmra.mxu0 %v5674
        %v5713 = vpop.f32.mrf.mxu0
        %v5714 = vadd.f32 0.0, %v5713
        %v5715 = vpop.f32.mrf.mxu0
        %v5716 = vpop.f32.mrf.mxu0
        %v5717 = vpop.f32.mrf.mxu0
        %5718 = vdwg.mxu0
        %v5720 = vsel %vm2497, %v5576, 0
        %v5723 = vsel %vm2497, %v5580, 0
        %5725 = vmatprep.subr.bf16.mxu0 0
        %5726 = vmatpush1.bf16.xpose.msra.mxu0 0
        %5727 = vmatprep.subr.bf16.mxu0 0
        %5728 = vmatpush1.bf16.xpose.msra.mxu0 0
        %5729 = vmatprep.subr.bf16.mxu0 0
        %5730 = vmatpush1.bf16.xpose.msra.mxu0 0
        %5731 = vmatprep.subr.bf16.mxu0 0
        %5732 = vmatpush1.bf16.xpose.msra.mxu0 0
        %5733 = vmatprep.subr.bf16.mxu0 0
        %5734 = vmatpush1.bf16.xpose.msra.mxu0 0
        %5735 = vmatprep.subr.bf16.mxu0 0
        %5736 = vmatpush1.bf16.xpose.msra.mxu0 0
        %5737 = vmatprep.subr.bf16.mxu0 0
        %5738 = vmatpush1.bf16.xpose.msra.mxu0 0
        %5739 = vmatprep.subr.bf16.mxu0 0
        %5740 = vmatpush1.bf16.xpose.msra.mxu0 %v5723
        %5741 = vmatprep.subr.bf16.mxu0 0
        %5742 = vmatpush2.bf16.xpose.msra.mxu0 0
        %5743 = vmatprep.subr.bf16.mxu0 0
        %5744 = vmatpush2.bf16.xpose.msra.mxu0 0
        %5745 = vmatprep.subr.bf16.mxu0 0
        %5746 = vmatpush2.bf16.xpose.msra.mxu0 0
        %5747 = vmatprep.subr.bf16.mxu0 0
        %5748 = vmatpush2.bf16.xpose.msra.mxu0 0
        %5749 = vmatprep.subr.bf16.mxu0 0
        %5750 = vmatpush2.bf16.xpose.msra.mxu0 0
        %5751 = vmatprep.subr.bf16.mxu0 0
        %5752 = vmatpush2.bf16.xpose.msra.mxu0 0
        %5753 = vmatprep.subr.bf16.mxu0 0
        %5754 = vmatpush2.bf16.xpose.msra.mxu0 0
        %5755 = vmatprep.subr.bf16.mxu0 0
        %5756 = vmatpush2.bf16.xpose.msra.mxu0 0
        %5757 = vmatprep.mubr.bf16.mxu0 0
        %5758 = vmatmul.mubr.bf16.gmra.mxu0 %v5720
        %v5759 = vpop.f32.mrf.mxu0
        %v5760 = vadd.f32 0.0, %v5759
        %v5761 = vpop.f32.mrf.mxu0
        %v5762 = vpop.f32.mrf.mxu0
        %v5763 = vpop.f32.mrf.mxu0
        %5764 = vdwg.mxu0
        %v5765 = vmul.f32 %v5622, 0.35355338
        %v5766 = vmul.f32 %v5668, 0.35355338
        %v5767 = vmul.f32 %v5714, 0.35355338
        %v5768 = vmul.f32 %v5760, 0.35355338
        %v5769 = vsel %vm2497, %v5765, -inf
        %5770 = vmax.xlane.f32.xlu0 %v5769
        %v5771 = vpop.xlane.xlu0 %5770
        %v5772 = vsel %vm2497, %v5766, -inf
        %5773 = vmax.xlane.f32.xlu0 %v5772
        %v5774 = vpop.xlane.xlu0 %5773
        %v5775 = vsel %vm2497, %v5767, -inf
        %5776 = vmax.xlane.f32.xlu0 %v5775
        %v5777 = vpop.xlane.xlu0 %5776
        %v5778 = vsel %vm2497, %v5768, -inf
        %5779 = vmax.xlane.f32.xlu0 %v5778
        %v5780 = vpop.xlane.xlu0 %5779
        %v5781 = vsub.f32 %v5765, %v5771
        %v5782 = vsub.f32 %v5766, %v5774
        %v5783 = vsub.f32 %v5767, %v5777
        %v5784 = vsub.f32 %v5768, %v5780
        %v5785 = vmul.f32 %v5781, 1.442695
        %v5786 = vpow.pop %v5785
        %v5787 = vmul.f32 %v5782, 1.442695
        %v5788 = vpow.pop %v5787
        %v5789 = vmul.f32 %v5783, 1.442695
        %v5790 = vpow.pop %v5789
        %v5791 = vmul.f32 %v5784, 1.442695
        %v5792 = vpow.pop %v5791
        %v5793 = vsel %vm2497, %v5786, 0.0
        %5794 = vadd.xlane.f32.xlu0 %v5793
        %v5795 = vpop.xlane.xlu0 %5794
        %v5796 = vsel %vm2497, %v5788, 0.0
        %5797 = vadd.xlane.f32.xlu0 %v5796
        %v5798 = vpop.xlane.xlu0 %5797
        %v5799 = vsel %vm2497, %v5790, 0.0
        %5800 = vadd.xlane.f32.xlu0 %v5799
        %v5801 = vpop.xlane.xlu0 %5800
        %v5802 = vsel %vm2497, %v5792, 0.0
        %5803 = vadd.xlane.f32.xlu0 %v5802
        %v5804 = vpop.xlane.xlu0 %5803
        %v5805 = vrcp.pop %v5795
        %v5806 = vrcp.pop %v5798
        %v5807 = vrcp.pop %v5801
        %v5808 = vrcp.pop %v5804
        %v5809 = vmul.f32 %v5786, %v5805
        %v5810 = vmul.f32 %v5788, %v5806
        %v5811 = vmul.f32 %v5790, %v5807
        %v5812 = vmul.f32 %v5792, %v5808
        %v5813 = vpack.c.bf16 %v5809, %v5809
        %v5814 = vpack.c.bf16 %v5810, %v5810
        %v5815 = vpack.c.bf16 %v5811, %v5811
        %v5816 = vpack.c.bf16 %v5812, %v5812
        %v5817 = vpack.c.bf16 %v5412, %v5412
        %v5818 = vpack.c.bf16 %v5464, %v5464
        %v5819 = vpack.c.bf16 %v5516, %v5516
        %v5820 = vpack.c.bf16 %v5568, %v5568
        %v5822 = vsel %vm2497, %v5813, 0
        %v5825 = vsel %vm2741, %v5817, 0
        %5827 = vmatprep.subr.bf16.mxu0 0
        %5828 = vmatpush1.bf16.msra.mxu0 0
        %5829 = vmatprep.subr.bf16.mxu0 0
        %5830 = vmatpush1.bf16.msra.mxu0 0
        %5831 = vmatprep.subr.bf16.mxu0 0
        %5832 = vmatpush1.bf16.msra.mxu0 0
        %5833 = vmatprep.subr.bf16.mxu0 0
        %5834 = vmatpush1.bf16.msra.mxu0 0
        %5835 = vmatprep.subr.bf16.mxu0 0
        %5836 = vmatpush1.bf16.msra.mxu0 0
        %5837 = vmatprep.subr.bf16.mxu0 0
        %5838 = vmatpush1.bf16.msra.mxu0 0
        %5839 = vmatprep.subr.bf16.mxu0 0
        %5840 = vmatpush1.bf16.msra.mxu0 0
        %5841 = vmatprep.subr.bf16.mxu0 0
        %5842 = vmatpush1.bf16.msra.mxu0 %v5825
        %5843 = vmatprep.subr.bf16.mxu0 0
        %5844 = vmatpush2.bf16.msra.mxu0 0
        %5845 = vmatprep.subr.bf16.mxu0 0
        %5846 = vmatpush2.bf16.msra.mxu0 0
        %5847 = vmatprep.subr.bf16.mxu0 0
        %5848 = vmatpush2.bf16.msra.mxu0 0
        %5849 = vmatprep.subr.bf16.mxu0 0
        %5850 = vmatpush2.bf16.msra.mxu0 0
        %5851 = vmatprep.subr.bf16.mxu0 0
        %5852 = vmatpush2.bf16.msra.mxu0 0
        %5853 = vmatprep.subr.bf16.mxu0 0
        %5854 = vmatpush2.bf16.msra.mxu0 0
        %5855 = vmatprep.subr.bf16.mxu0 0
        %5856 = vmatpush2.bf16.msra.mxu0 0
        %5857 = vmatprep.subr.bf16.mxu0 0
        %5858 = vmatpush2.bf16.msra.mxu0 0
        %5859 = vmatprep.mubr.bf16.mxu0 0
        %5860 = vmatmul.mubr.bf16.gmra.mxu0 %v5822
        %v5861 = vpop.f32.mrf.mxu0
        %v5862 = vadd.f32 0.0, %v5861
        %v5863 = vpop.f32.mrf.mxu0
        %v5864 = vpop.f32.mrf.mxu0
        %v5865 = vpop.f32.mrf.mxu0
        %5866 = vdwg.mxu0
        %v5868 = vsel %vm2497, %v5814, 0
        %v5871 = vsel %vm2741, %v5818, 0
        %5873 = vmatprep.subr.bf16.mxu0 0
        %5874 = vmatpush1.bf16.msra.mxu0 0
        %5875 = vmatprep.subr.bf16.mxu0 0
        %5876 = vmatpush1.bf16.msra.mxu0 0
        %5877 = vmatprep.subr.bf16.mxu0 0
        %5878 = vmatpush1.bf16.msra.mxu0 0
        %5879 = vmatprep.subr.bf16.mxu0 0
        %5880 = vmatpush1.bf16.msra.mxu0 0
        %5881 = vmatprep.subr.bf16.mxu0 0
        %5882 = vmatpush1.bf16.msra.mxu0 0
        %5883 = vmatprep.subr.bf16.mxu0 0
        %5884 = vmatpush1.bf16.msra.mxu0 0
        %5885 = vmatprep.subr.bf16.mxu0 0
        %5886 = vmatpush1.bf16.msra.mxu0 0
        %5887 = vmatprep.subr.bf16.mxu0 0
        %5888 = vmatpush1.bf16.msra.mxu0 %v5871
        %5889 = vmatprep.subr.bf16.mxu0 0
        %5890 = vmatpush2.bf16.msra.mxu0 0
        %5891 = vmatprep.subr.bf16.mxu0 0
        %5892 = vmatpush2.bf16.msra.mxu0 0
        %5893 = vmatprep.subr.bf16.mxu0 0
        %5894 = vmatpush2.bf16.msra.mxu0 0
        %5895 = vmatprep.subr.bf16.mxu0 0
        %5896 = vmatpush2.bf16.msra.mxu0 0
        %5897 = vmatprep.subr.bf16.mxu0 0
        %5898 = vmatpush2.bf16.msra.mxu0 0
        %5899 = vmatprep.subr.bf16.mxu0 0
        %5900 = vmatpush2.bf16.msra.mxu0 0
        %5901 = vmatprep.subr.bf16.mxu0 0
        %5902 = vmatpush2.bf16.msra.mxu0 0
        %5903 = vmatprep.subr.bf16.mxu0 0
        %5904 = vmatpush2.bf16.msra.mxu0 0
        %5905 = vmatprep.mubr.bf16.mxu0 0
        %5906 = vmatmul.mubr.bf16.gmra.mxu0 %v5868
        %v5907 = vpop.f32.mrf.mxu0
        %v5908 = vadd.f32 0.0, %v5907
        %v5909 = vpop.f32.mrf.mxu0
        %v5910 = vpop.f32.mrf.mxu0
        %v5911 = vpop.f32.mrf.mxu0
        %5912 = vdwg.mxu0
        %v5914 = vsel %vm2497, %v5815, 0
        %v5917 = vsel %vm2741, %v5819, 0
        %5919 = vmatprep.subr.bf16.mxu0 0
        %5920 = vmatpush1.bf16.msra.mxu0 0
        %5921 = vmatprep.subr.bf16.mxu0 0
        %5922 = vmatpush1.bf16.msra.mxu0 0
        %5923 = vmatprep.subr.bf16.mxu0 0
        %5924 = vmatpush1.bf16.msra.mxu0 0
        %5925 = vmatprep.subr.bf16.mxu0 0
        %5926 = vmatpush1.bf16.msra.mxu0 0
        %5927 = vmatprep.subr.bf16.mxu0 0
        %5928 = vmatpush1.bf16.msra.mxu0 0
        %5929 = vmatprep.subr.bf16.mxu0 0
        %5930 = vmatpush1.bf16.msra.mxu0 0
        %5931 = vmatprep.subr.bf16.mxu0 0
        %5932 = vmatpush1.bf16.msra.mxu0 0
        %5933 = vmatprep.subr.bf16.mxu0 0
        %5934 = vmatpush1.bf16.msra.mxu0 %v5917
        %5935 = vmatprep.subr.bf16.mxu0 0
        %5936 = vmatpush2.bf16.msra.mxu0 0
        %5937 = vmatprep.subr.bf16.mxu0 0
        %5938 = vmatpush2.bf16.msra.mxu0 0
        %5939 = vmatprep.subr.bf16.mxu0 0
        %5940 = vmatpush2.bf16.msra.mxu0 0
        %5941 = vmatprep.subr.bf16.mxu0 0
        %5942 = vmatpush2.bf16.msra.mxu0 0
        %5943 = vmatprep.subr.bf16.mxu0 0
        %5944 = vmatpush2.bf16.msra.mxu0 0
        %5945 = vmatprep.subr.bf16.mxu0 0
        %5946 = vmatpush2.bf16.msra.mxu0 0
        %5947 = vmatprep.subr.bf16.mxu0 0
        %5948 = vmatpush2.bf16.msra.mxu0 0
        %5949 = vmatprep.subr.bf16.mxu0 0
        %5950 = vmatpush2.bf16.msra.mxu0 0
        %5951 = vmatprep.mubr.bf16.mxu0 0
        %5952 = vmatmul.mubr.bf16.gmra.mxu0 %v5914
        %v5953 = vpop.f32.mrf.mxu0
        %v5954 = vadd.f32 0.0, %v5953
        %v5955 = vpop.f32.mrf.mxu0
        %v5956 = vpop.f32.mrf.mxu0
        %v5957 = vpop.f32.mrf.mxu0
        %5958 = vdwg.mxu0
        %v5960 = vsel %vm2497, %v5816, 0
        %v5963 = vsel %vm2741, %v5820, 0
        %5965 = vmatprep.subr.bf16.mxu0 0
        %5966 = vmatpush1.bf16.msra.mxu0 0
        %5967 = vmatprep.subr.bf16.mxu0 0
        %5968 = vmatpush1.bf16.msra.mxu0 0
        %5969 = vmatprep.subr.bf16.mxu0 0
        %5970 = vmatpush1.bf16.msra.mxu0 0
        %5971 = vmatprep.subr.bf16.mxu0 0
        %5972 = vmatpush1.bf16.msra.mxu0 0
        %5973 = vmatprep.subr.bf16.mxu0 0
        %5974 = vmatpush1.bf16.msra.mxu0 0
        %5975 = vmatprep.subr.bf16.mxu0 0
        %5976 = vmatpush1.bf16.msra.mxu0 0
        %5977 = vmatprep.subr.bf16.mxu0 0
        %5978 = vmatpush1.bf16.msra.mxu0 0
        %5979 = vmatprep.subr.bf16.mxu0 0
        %5980 = vmatpush1.bf16.msra.mxu0 %v5963
        %5981 = vmatprep.subr.bf16.mxu0 0
        %5982 = vmatpush2.bf16.msra.mxu0 0
        %5983 = vmatprep.subr.bf16.mxu0 0
        %5984 = vmatpush2.bf16.msra.mxu0 0
        %5985 = vmatprep.subr.bf16.mxu0 0
        %5986 = vmatpush2.bf16.msra.mxu0 0
        %5987 = vmatprep.subr.bf16.mxu0 0
        %5988 = vmatpush2.bf16.msra.mxu0 0
        %5989 = vmatprep.subr.bf16.mxu0 0
        %5990 = vmatpush2.bf16.msra.mxu0 0
        %5991 = vmatprep.subr.bf16.mxu0 0
        %5992 = vmatpush2.bf16.msra.mxu0 0
        %5993 = vmatprep.subr.bf16.mxu0 0
        %5994 = vmatpush2.bf16.msra.mxu0 0
        %5995 = vmatprep.subr.bf16.mxu0 0
        %5996 = vmatpush2.bf16.msra.mxu0 0
        %5997 = vmatprep.mubr.bf16.mxu0 0
        %5998 = vmatmul.mubr.bf16.gmra.mxu0 %v5960
        %v5999 = vpop.f32.mrf.mxu0
        %v6000 = vadd.f32 0.0, %v5999
        %v6001 = vpop.f32.mrf.mxu0
        %v6002 = vpop.f32.mrf.mxu0
        %v6003 = vpop.f32.mrf.mxu0
        %6004 = vdwg.mxu0
        %v6005 = vpack.c.bf16 %v5862, %v5862
        %v6006 = vpack.c.bf16 %v5908, %v5908
        %v6007 = vpack.c.bf16 %v5954, %v5954
        %v6008 = vpack.c.bf16 %v6000, %v6000
        %v6009 = vld [vmem:[%s83] sm:$0xf]
        %v6010 = vld [vmem:[%s83 + $0x4] sm:$0xf]
        %v6011 = vld [vmem:[%s83 + $0x8] sm:$0xf]
        %v6012 = vld [vmem:[%s83 + $0xc] sm:$0xf]
        %v6014 = vsel %vm2497, %v6005, 0
        %v6017 = vsel %vm2741, %v6009, 0
        %6019 = vmatprep.subr.bf16.mxu0 0
        %6020 = vmatpush1.bf16.msra.mxu0 0
        %6021 = vmatprep.subr.bf16.mxu0 0
        %6022 = vmatpush1.bf16.msra.mxu0 0
        %6023 = vmatprep.subr.bf16.mxu0 0
        %6024 = vmatpush1.bf16.msra.mxu0 0
        %6025 = vmatprep.subr.bf16.mxu0 0
        %6026 = vmatpush1.bf16.msra.mxu0 0
        %6027 = vmatprep.subr.bf16.mxu0 0
        %6028 = vmatpush1.bf16.msra.mxu0 0
        %6029 = vmatprep.subr.bf16.mxu0 0
        %6030 = vmatpush1.bf16.msra.mxu0 0
        %6031 = vmatprep.subr.bf16.mxu0 0
        %6032 = vmatpush1.bf16.msra.mxu0 0
        %6033 = vmatprep.subr.bf16.mxu0 0
        %6034 = vmatpush1.bf16.msra.mxu0 %v6017
        %6035 = vmatprep.subr.bf16.mxu0 0
        %6036 = vmatpush2.bf16.msra.mxu0 0
        %6037 = vmatprep.subr.bf16.mxu0 0
        %6038 = vmatpush2.bf16.msra.mxu0 0
        %6039 = vmatprep.subr.bf16.mxu0 0
        %6040 = vmatpush2.bf16.msra.mxu0 0
        %6041 = vmatprep.subr.bf16.mxu0 0
        %6042 = vmatpush2.bf16.msra.mxu0 0
        %6043 = vmatprep.subr.bf16.mxu0 0
        %6044 = vmatpush2.bf16.msra.mxu0 0
        %6045 = vmatprep.subr.bf16.mxu0 0
        %6046 = vmatpush2.bf16.msra.mxu0 0
        %6047 = vmatprep.subr.bf16.mxu0 0
        %6048 = vmatpush2.bf16.msra.mxu0 0
        %6049 = vmatprep.subr.bf16.mxu0 0
        %6050 = vmatpush2.bf16.msra.mxu0 0
        %6051 = vmatprep.mubr.bf16.mxu0 0
        %6052 = vmatmul.mubr.bf16.gmra.mxu0 %v6014
        %v6053 = vpop.f32.mrf.mxu0
        %v6054 = vadd.f32 0.0, %v6053
        %v6055 = vpop.f32.mrf.mxu0
        %v6056 = vpop.f32.mrf.mxu0
        %v6057 = vpop.f32.mrf.mxu0
        %6058 = vdwg.mxu0
        %v6060 = vsel %vm2497, %v6006, 0
        %v6063 = vsel %vm2741, %v6010, 0
        %6065 = vmatprep.subr.bf16.mxu0 0
        %6066 = vmatpush1.bf16.msra.mxu0 0
        %6067 = vmatprep.subr.bf16.mxu0 0
        %6068 = vmatpush1.bf16.msra.mxu0 0
        %6069 = vmatprep.subr.bf16.mxu0 0
        %6070 = vmatpush1.bf16.msra.mxu0 0
        %6071 = vmatprep.subr.bf16.mxu0 0
        %6072 = vmatpush1.bf16.msra.mxu0 0
        %6073 = vmatprep.subr.bf16.mxu0 0
        %6074 = vmatpush1.bf16.msra.mxu0 0
        %6075 = vmatprep.subr.bf16.mxu0 0
        %6076 = vmatpush1.bf16.msra.mxu0 0
        %6077 = vmatprep.subr.bf16.mxu0 0
        %6078 = vmatpush1.bf16.msra.mxu0 0
        %6079 = vmatprep.subr.bf16.mxu0 0
        %6080 = vmatpush1.bf16.msra.mxu0 %v6063
        %6081 = vmatprep.subr.bf16.mxu0 0
        %6082 = vmatpush2.bf16.msra.mxu0 0
        %6083 = vmatprep.subr.bf16.mxu0 0
        %6084 = vmatpush2.bf16.msra.mxu0 0
        %6085 = vmatprep.subr.bf16.mxu0 0
        %6086 = vmatpush2.bf16.msra.mxu0 0
        %6087 = vmatprep.subr.bf16.mxu0 0
        %6088 = vmatpush2.bf16.msra.mxu0 0
        %6089 = vmatprep.subr.bf16.mxu0 0
        %6090 = vmatpush2.bf16.msra.mxu0 0
        %6091 = vmatprep.subr.bf16.mxu0 0
        %6092 = vmatpush2.bf16.msra.mxu0 0
        %6093 = vmatprep.subr.bf16.mxu0 0
        %6094 = vmatpush2.bf16.msra.mxu0 0
        %6095 = vmatprep.subr.bf16.mxu0 0
        %6096 = vmatpush2.bf16.msra.mxu0 0
        %6097 = vmatprep.mubr.bf16.mxu0 0
        %6098 = vmatmul.mubr.bf16.gmra.mxu0 %v6060
        %v6099 = vpop.f32.mrf.mxu0
        %v6100 = vadd.f32 0.0, %v6099
        %v6101 = vpop.f32.mrf.mxu0
        %v6102 = vpop.f32.mrf.mxu0
        %v6103 = vpop.f32.mrf.mxu0
        %6104 = vdwg.mxu0
        %v6106 = vsel %vm2497, %v6007, 0
        %v6109 = vsel %vm2741, %v6011, 0
        %6111 = vmatprep.subr.bf16.mxu0 0
        %6112 = vmatpush1.bf16.msra.mxu0 0
        %6113 = vmatprep.subr.bf16.mxu0 0
        %6114 = vmatpush1.bf16.msra.mxu0 0
        %6115 = vmatprep.subr.bf16.mxu0 0
        %6116 = vmatpush1.bf16.msra.mxu0 0
        %6117 = vmatprep.subr.bf16.mxu0 0
        %6118 = vmatpush1.bf16.msra.mxu0 0
        %6119 = vmatprep.subr.bf16.mxu0 0
        %6120 = vmatpush1.bf16.msra.mxu0 0
        %6121 = vmatprep.subr.bf16.mxu0 0
        %6122 = vmatpush1.bf16.msra.mxu0 0
        %6123 = vmatprep.subr.bf16.mxu0 0
        %6124 = vmatpush1.bf16.msra.mxu0 0
        %6125 = vmatprep.subr.bf16.mxu0 0
        %6126 = vmatpush1.bf16.msra.mxu0 %v6109
        %6127 = vmatprep.subr.bf16.mxu0 0
        %6128 = vmatpush2.bf16.msra.mxu0 0
        %6129 = vmatprep.subr.bf16.mxu0 0
        %6130 = vmatpush2.bf16.msra.mxu0 0
        %6131 = vmatprep.subr.bf16.mxu0 0
        %6132 = vmatpush2.bf16.msra.mxu0 0
        %6133 = vmatprep.subr.bf16.mxu0 0
        %6134 = vmatpush2.bf16.msra.mxu0 0
        %6135 = vmatprep.subr.bf16.mxu0 0
        %6136 = vmatpush2.bf16.msra.mxu0 0
        %6137 = vmatprep.subr.bf16.mxu0 0
        %6138 = vmatpush2.bf16.msra.mxu0 0
        %6139 = vmatprep.subr.bf16.mxu0 0
        %6140 = vmatpush2.bf16.msra.mxu0 0
        %6141 = vmatprep.subr.bf16.mxu0 0
        %6142 = vmatpush2.bf16.msra.mxu0 0
        %6143 = vmatprep.mubr.bf16.mxu0 0
        %6144 = vmatmul.mubr.bf16.gmra.mxu0 %v6106
        %v6145 = vpop.f32.mrf.mxu0
        %v6146 = vadd.f32 0.0, %v6145
        %v6147 = vpop.f32.mrf.mxu0
        %v6148 = vpop.f32.mrf.mxu0
        %v6149 = vpop.f32.mrf.mxu0
        %6150 = vdwg.mxu0
        %v6152 = vsel %vm2497, %v6008, 0
        %v6155 = vsel %vm2741, %v6012, 0
        %6157 = vmatprep.subr.bf16.mxu0 0
        %6158 = vmatpush1.bf16.msra.mxu0 0
        %6159 = vmatprep.subr.bf16.mxu0 0
        %6160 = vmatpush1.bf16.msra.mxu0 0
        %6161 = vmatprep.subr.bf16.mxu0 0
        %6162 = vmatpush1.bf16.msra.mxu0 0
        %6163 = vmatprep.subr.bf16.mxu0 0
        %6164 = vmatpush1.bf16.msra.mxu0 0
        %6165 = vmatprep.subr.bf16.mxu0 0
        %6166 = vmatpush1.bf16.msra.mxu0 0
        %6167 = vmatprep.subr.bf16.mxu0 0
        %6168 = vmatpush1.bf16.msra.mxu0 0
        %6169 = vmatprep.subr.bf16.mxu0 0
        %6170 = vmatpush1.bf16.msra.mxu0 0
        %6171 = vmatprep.subr.bf16.mxu0 0
        %6172 = vmatpush1.bf16.msra.mxu0 %v6155
        %6173 = vmatprep.subr.bf16.mxu0 0
        %6174 = vmatpush2.bf16.msra.mxu0 0
        %6175 = vmatprep.subr.bf16.mxu0 0
        %6176 = vmatpush2.bf16.msra.mxu0 0
        %6177 = vmatprep.subr.bf16.mxu0 0
        %6178 = vmatpush2.bf16.msra.mxu0 0
        %6179 = vmatprep.subr.bf16.mxu0 0
        %6180 = vmatpush2.bf16.msra.mxu0 0
        %6181 = vmatprep.subr.bf16.mxu0 0
        %6182 = vmatpush2.bf16.msra.mxu0 0
        %6183 = vmatprep.subr.bf16.mxu0 0
        %6184 = vmatpush2.bf16.msra.mxu0 0
        %6185 = vmatprep.subr.bf16.mxu0 0
        %6186 = vmatpush2.bf16.msra.mxu0 0
        %6187 = vmatprep.subr.bf16.mxu0 0
        %6188 = vmatpush2.bf16.msra.mxu0 0
        %6189 = vmatprep.mubr.bf16.mxu0 0
        %6190 = vmatmul.mubr.bf16.gmra.mxu0 %v6152
        %v6191 = vpop.f32.mrf.mxu0
        %v6192 = vadd.f32 0.0, %v6191
        %v6193 = vpop.f32.mrf.mxu0
        %v6194 = vpop.f32.mrf.mxu0
        %v6195 = vpop.f32.mrf.mxu0
        %6196 = vdwg.mxu0
        %v6197 = vsel %vm1785, %v6054, 0.0
        %v6198 = vsel %vm1785, %v6100, 0.0
        %v6199 = vadd.f32 %v6197, %v6198
        %v6200 = vsel %vm1785, %v6146, 0.0
        %v6201 = vadd.f32 %v6199, %v6200
        %v6202 = vsel %vm1785, %v6192, 0.0
        %v6203 = vadd.f32 %v6201, %v6202
        %v6204 = vld [vmem:[%s85] sm:$0x1]
        %v6206 = vlaneseq
        %v6207 = vshrl.u32 %v6206, 7
        %v6208 = vsub.s32 0, %v6207
        %v6209 = vrot.slane %v6204, %v6208
        %v6211 = vadd.f32 %v6203, %v6209
        %v6212 = vadd.f32 %v4808, %v6211
        %v6213 = vsel %vm1785, %v6212, 0.0
        %6214 = vadd.xlane.f32.xlu0 %v6213
        %v6215 = vpop.xlane.xlu0 %6214
        %v6216 = vmul.f32 %v6215, %v3134
        %v6217 = vsub.f32 %v6212, %v6216
        %v6218 = vmul.f32 %v6217, %v6217
        %v6219 = vsel %vm1785, %v6218, 0.0
        %6220 = vadd.xlane.f32.xlu0 %v6219
        %v6221 = vpop.xlane.xlu0 %6220
        %v6222 = vmul.f32 %v6221, %v3134
        %v6223 = vadd.f32 %v6222, 1e-05
        %v6224 = vrsqrt.pop %v6223
        %v6225 = vmul.f32 %v6217, %v6224
        %v6226 = vld [vmem:[%s87] sm:$0x1]
        %v6228 = vlaneseq
        %v6229 = vshrl.u32 %v6228, 7
        %v6230 = vsub.s32 0, %v6229
        %v6231 = vrot.slane %v6226, %v6230
        %v6233 = vmul.f32 %v6225, %v6231
        %v6234 = vld [vmem:[%s89] sm:$0x1]
        %v6236 = vlaneseq
        %v6237 = vshrl.u32 %v6236, 7
        %v6238 = vsub.s32 0, %v6237
        %v6239 = vrot.slane %v6234, %v6238
        %v6241 = vadd.f32 %v6233, %v6239
        %v6242 = vpack.c.bf16 %v6241, %v6241
        %v6243 = vld [vmem:[%s91] sm:$0xf]
        %v6244 = vld [vmem:[%s91 + $0x4] sm:$0xf]
        %v6245 = vld [vmem:[%s91 + $0x8] sm:$0xf]
        %v6246 = vld [vmem:[%s91 + $0xc] sm:$0xf]
        %v6247 = vld [vmem:[%s93] sm:$0x1]
        %v6249 = vlaneseq
        %v6250 = vshrl.u32 %v6249, 7
        %v6251 = vsub.s32 0, %v6250
        %v6252 = vrot.slane %v6247, %v6251
        %v6258 = vunpack.c.l.b16 %v6243
        %v6259 = vunpack.c.l.b16 %v6244
        %v6260 = vunpack.c.l.b16 %v6245
        %v6261 = vunpack.c.l.b16 %v6246
        %v6262 = vpack.c.b16 %v6259, %v6258
        %v6263 = vpack.c.b16 %v6261, %v6260
        %v6267 = vsel %vm1785, %v6242, 0
        %6269 = vmatprep.subr.bf16.mxu0 0
        %6270 = vmatpush1.bf16.msra.mxu0 0
        %6271 = vmatprep.subr.bf16.mxu0 0
        %6272 = vmatpush1.bf16.msra.mxu0 0
        %6273 = vmatprep.subr.bf16.mxu0 0
        %6274 = vmatpush1.bf16.msra.mxu0 0
        %6275 = vmatprep.subr.bf16.mxu0 0
        %6276 = vmatpush1.bf16.msra.mxu0 0
        %6277 = vmatprep.subr.bf16.mxu0 0
        %6278 = vmatpush1.bf16.msra.mxu0 0
        %6279 = vmatprep.subr.bf16.mxu0 0
        %6280 = vmatpush1.bf16.msra.mxu0 0
        %6281 = vmatprep.subr.bf16.mxu0 0
        %6282 = vmatpush1.bf16.msra.mxu0 %v6263
        %6283 = vmatprep.subr.bf16.mxu0 0
        %6284 = vmatpush1.bf16.msra.mxu0 %v6262
        %6285 = vmatprep.subr.bf16.mxu0 0
        %6286 = vmatpush2.bf16.msra.mxu0 0
        %6287 = vmatprep.subr.bf16.mxu0 0
        %6288 = vmatpush2.bf16.msra.mxu0 0
        %6289 = vmatprep.subr.bf16.mxu0 0
        %6290 = vmatpush2.bf16.msra.mxu0 0
        %6291 = vmatprep.subr.bf16.mxu0 0
        %6292 = vmatpush2.bf16.msra.mxu0 0
        %6293 = vmatprep.subr.bf16.mxu0 0
        %6294 = vmatpush2.bf16.msra.mxu0 0
        %6295 = vmatprep.subr.bf16.mxu0 0
        %6296 = vmatpush2.bf16.msra.mxu0 0
        %6297 = vmatprep.subr.bf16.mxu0 0
        %6298 = vmatpush2.bf16.msra.mxu0 0
        %6299 = vmatprep.subr.bf16.mxu0 0
        %6300 = vmatpush2.bf16.msra.mxu0 0
        %6301 = vmatprep.mubr.bf16.mxu0 0
        %6302 = vmatmul.mubr.bf16.gmra.mxu0 %v6267
        %v6303 = vpop.f32.mrf.mxu0
        %v6304 = vadd.f32 %v6252, %v6303
        %v6305 = vpop.f32.mrf.mxu0
        %v6306 = vpop.f32.mrf.mxu0
        %v6307 = vpop.f32.mrf.mxu0
        %6308 = vdwg.mxu0
        %v6309 = vmax.f32 %v6304, 0.0
        %v6310 = vpack.c.bf16 %v6309, %v6309
        %v6311 = vld [vmem:[%s95] sm:$0xf]
        %v6312 = vld [vmem:[%s95 + $0x4] sm:$0xf]
        %v6313 = vld [vmem:[%s95 + $0x8] sm:$0xf]
        %v6314 = vld [vmem:[%s95 + $0xc] sm:$0xf]
        %v6315 = vld [vmem:[%s95 + $0x10] sm:$0xf]
        %v6316 = vld [vmem:[%s95 + $0x14] sm:$0xf]
        %v6317 = vld [vmem:[%s95 + $0x18] sm:$0xf]
        %v6318 = vld [vmem:[%s95 + $0x1c] sm:$0xf]
        %v6319 = vld [vmem:[%s95 + $0x20] sm:$0xf]
        %v6320 = vld [vmem:[%s95 + $0x24] sm:$0xf]
        %v6321 = vld [vmem:[%s95 + $0x28] sm:$0xf]
        %v6322 = vld [vmem:[%s95 + $0x2c] sm:$0xf]
        %v6323 = vld [vmem:[%s95 + $0x30] sm:$0xf]
        %v6324 = vld [vmem:[%s95 + $0x34] sm:$0xf]
        %v6325 = vld [vmem:[%s95 + $0x38] sm:$0xf]
        %v6326 = vld [vmem:[%s95 + $0x3c] sm:$0xf]
        %v6327 = vld [vmem:[%s97] sm:$0x1]
        %v6329 = vlaneseq
        %v6330 = vshrl.u32 %v6329, 7
        %v6331 = vsub.s32 0, %v6330
        %v6332 = vrot.slane %v6327, %v6331
        %v6350 = vunpack.c.l.b16 %v6311
        %v6351 = vunpack.c.l.b16 %v6312
        %v6352 = vunpack.c.l.b16 %v6313
        %v6353 = vunpack.c.l.b16 %v6314
        %v6354 = vunpack.c.l.b16 %v6315
        %v6355 = vunpack.c.l.b16 %v6316
        %v6356 = vunpack.c.l.b16 %v6317
        %v6357 = vunpack.c.l.b16 %v6318
        %v6358 = vunpack.c.l.b16 %v6319
        %v6359 = vunpack.c.l.b16 %v6320
        %v6360 = vunpack.c.l.b16 %v6321
        %v6361 = vunpack.c.l.b16 %v6322
        %v6362 = vunpack.c.l.b16 %v6323
        %v6363 = vunpack.c.l.b16 %v6324
        %v6364 = vunpack.c.l.b16 %v6325
        %v6365 = vunpack.c.l.b16 %v6326
        %v6366 = vpack.c.b16 %v6351, %v6350
        %v6367 = vpack.c.b16 %v6353, %v6352
        %v6368 = vpack.c.b16 %v6355, %v6354
        %v6369 = vpack.c.b16 %v6357, %v6356
        %v6370 = vpack.c.b16 %v6359, %v6358
        %v6371 = vpack.c.b16 %v6361, %v6360
        %v6372 = vpack.c.b16 %v6363, %v6362
        %v6373 = vpack.c.b16 %v6365, %v6364
        %6382 = vmatprep.subr.bf16.mxu0 0
        %6383 = vmatpush1.bf16.msra.mxu0 %v6373
        %6384 = vmatprep.subr.bf16.mxu0 0
        %6385 = vmatpush1.bf16.msra.mxu0 %v6372
        %6386 = vmatprep.subr.bf16.mxu0 0
        %6387 = vmatpush1.bf16.msra.mxu0 %v6371
        %6388 = vmatprep.subr.bf16.mxu0 0
        %6389 = vmatpush1.bf16.msra.mxu0 %v6370
        %6390 = vmatprep.subr.bf16.mxu0 0
        %6391 = vmatpush1.bf16.msra.mxu0 %v6369
        %6392 = vmatprep.subr.bf16.mxu0 0
        %6393 = vmatpush1.bf16.msra.mxu0 %v6368
        %6394 = vmatprep.subr.bf16.mxu0 0
        %6395 = vmatpush1.bf16.msra.mxu0 %v6367
        %6396 = vmatprep.subr.bf16.mxu0 0
        %6397 = vmatpush1.bf16.msra.mxu0 %v6366
        %6398 = vmatprep.subr.bf16.mxu0 0
        %6399 = vmatpush2.bf16.msra.mxu0 0
        %6400 = vmatprep.subr.bf16.mxu0 0
        %6401 = vmatpush2.bf16.msra.mxu0 0
        %6402 = vmatprep.subr.bf16.mxu0 0
        %6403 = vmatpush2.bf16.msra.mxu0 0
        %6404 = vmatprep.subr.bf16.mxu0 0
        %6405 = vmatpush2.bf16.msra.mxu0 0
        %6406 = vmatprep.subr.bf16.mxu0 0
        %6407 = vmatpush2.bf16.msra.mxu0 0
        %6408 = vmatprep.subr.bf16.mxu0 0
        %6409 = vmatpush2.bf16.msra.mxu0 0
        %6410 = vmatprep.subr.bf16.mxu0 0
        %6411 = vmatpush2.bf16.msra.mxu0 0
        %6412 = vmatprep.subr.bf16.mxu0 0
        %6413 = vmatpush2.bf16.msra.mxu0 0
        %6414 = vmatprep.mubr.bf16.mxu0 0
        %6415 = vmatmul.mubr.bf16.gmra.mxu0 %v6310
        %v6416 = vpop.f32.mrf.mxu0
        %v6417 = vadd.f32 %v6332, %v6416
        %v6418 = vpop.f32.mrf.mxu0
        %v6419 = vpop.f32.mrf.mxu0
        %v6420 = vpop.f32.mrf.mxu0
        %6421 = vdwg.mxu0
        %v6422 = vadd.f32 %v6241, %v6417
        %v6423 = vsel %vm1785, %v6422, 0.0
        %6424 = vadd.xlane.f32.xlu0 %v6423
        %v6425 = vpop.xlane.xlu0 %6424
        %v6426 = vmul.f32 %v6425, %v3134
        %v6427 = vsub.f32 %v6422, %v6426
        %v6428 = vmul.f32 %v6427, %v6427
        %v6429 = vsel %vm1785, %v6428, 0.0
        %6430 = vadd.xlane.f32.xlu0 %v6429
        %v6431 = vpop.xlane.xlu0 %6430
        %v6432 = vmul.f32 %v6431, %v3134
        %v6433 = vadd.f32 %v6432, 1e-05
        %v6434 = vrsqrt.pop %v6433
        %v6435 = vmul.f32 %v6427, %v6434
        %v6436 = vld [vmem:[#allocation3] sm:$0x1]
        %v6438 = vlaneseq
        %v6439 = vshrl.u32 %v6438, 7
        %v6440 = vsub.s32 0, %v6439
        %v6441 = vrot.slane %v6436, %v6440
        %v6443 = vmul.f32 %v6435, %v6441
        %v6444 = vld [vmem:[#allocation5] sm:$0x1]
        %v6446 = vlaneseq
        %v6447 = vshrl.u32 %v6446, 7
        %v6448 = vsub.s32 0, %v6447
        %v6449 = vrot.slane %v6444, %v6448
        %v6451 = vadd.f32 %v6443, %v6449
        %v6452 = vld [vmem:[%s15] sm:$0x1]
        %v6454 = vlaneseq
        %v6455 = vshrl.u32 %v6454, 7
        %v6456 = vsub.s32 0, %v6455
        %v6457 = vrot.slane %v6452, %v6456
        %v6459 = vmul.f32 %v6451, %v6457
        %vm6460 = vcmask 261124
        %v6461 = vsel %vm6460, %v6459, 0.0
        %6462 = vadd.xlane.f32.xlu0 %v6461
        %v6463 = vpop.xlane.xlu0 %6462
        %v6464 = vld [vmem:[#allocation2] sm:$0x1]
        %v6466 = vlaneseq
        %v6467 = vshrl.u32 %v6466, 7
        %v6468 = vsub.s32 0, %v6467
        %v6469 = vrot.slane %v6464, %v6468
        %v6471 = vadd.f32 %v6463, %v6469
        %vm6472 = vcmask 7172
        %6473 = vst.msk [vmem:[%s1609 - $0x4] sm:$0xf0] %vm6472, %v6471
        %v6474 = vld [vmem:[%s1605] sm:$0xf]
        %v6476 = vrot.slane %v6471, 4
        %v6478 = vsub.f32 %v6474, %v6476
        %vm6479 = vcmask 0
        %6480 = vst.msk [vmem:[%s1612] sm:$0x1] %vm6479, 0.0
        %v6481 = vld [vmem:[%s1612] sm:$0x1]
        %v6482 = vmul.f32 %v6478, %v6478
        %vm6483 = vcmask 3072
        %v6484 = vsel %vm6483, %v6482, 0.0
        %6485 = vadd.xlane.f32.xlu0 %v6484
        %v6486 = vpop.xlane.xlu0 %6485
        %v6487 = vrot.slane %v6486, 4
        %v6488 = vadd.f32 %v6486, %v6487
        %v6489 = vrot.slane %v6488, 2
        %v6490 = vadd.f32 %v6488, %v6489
        %v6491 = vrot.slane %v6490, 1
        %v6492 = vadd.f32 %v6490, %v6491
        %s6493 = vtos %v6492
        %v6494 = vstv %s6493
        %v6495 = vadd.f32 %v6481, %v6494
        %6496 = vst.msk [vmem:[%s1612] sm:$0x1] %vm6479, %v6495
        %p6497 = scmp.lt.s32.totalorder %s121, 1
        %s6498 = scalar_select %p6497, %s121, 1
        %s6499 = smul.addr %s6498, 4
        %s6500 = scalar_lea.vmem %s103, %s6499
        %p6501 = scmp.lt.s32.totalorder %s121, 1
        %s6502 = scalar_select %p6501, %s121, 1
        %s6503 = scalar_lea.vmem %s105, %s6502
        // Predicated region
        $region233: #{forecast_denoising_forward.1} parent=223 // pred_check
          %p6504 = pneg %p1225
        $region234: #{forecast_denoising_forward.1} parent=223 // pred_check_branch
          %6506 = sbr.rel (%p6504) target = $region236
        $region235: #{forecast_denoising_forward.1} parent=223 // pred_region
          _
        $region236: #{forecast_denoising_forward.1} parent=223 // pred_fallthru
          _
        // Predicated region
        $region237: #{forecast_denoising_forward.1} parent=223 // pred_check
          %p6507 = pneg %p1251
        $region238: #{forecast_denoising_forward.1} parent=223 // pred_check_branch
          %6509 = sbr.rel (%p6507) target = $region240
        $region239: #{forecast_denoising_forward.1} parent=223 // pred_region
          _
        $region240: #{forecast_denoising_forward.1} parent=223 // pred_fallthru
          _
      $region224: #{forecast_denoising_forward.1} parent=5 // pred_fallthru
        _
      %p6510 = scmp.le.s32.totalorder 2, %s116
      // Predicated region
      $region241: #{forecast_denoising_forward.1} parent=5 // pred_check
        %p6511 = pneg %p6510
      $region242: #{forecast_denoising_forward.1} parent=5 // pred_check_branch
        %6513 = sbr.rel (%p6511) target = $region244
      $region243: #{forecast_denoising_forward.1} parent=5 // pred_region
        %s6514 = ssub.s32 %s116, 2
        // Predicated region
        $region245: #{forecast_denoising_forward.1} parent=243 // pred_check
          %p6515 = pneg %p1231
        $region246: #{forecast_denoising_forward.1} parent=243 // pred_check_branch
          %6517 = sbr.rel (%p6515) target = $region248
        $region247: #{forecast_denoising_forward.1} parent=243 // pred_region
          %p6518 = scmp.lt.s32.totalorder %s122, 1
          %s6519 = scalar_select %p6518, %s122, 1
          %s6520 = smul.addr %s6519, 4
          %s6521 = scalar_lea.vmem %s103, %s6520
        $region248: #{forecast_denoising_forward.1} parent=243 // pred_fallthru
          _
        // Predicated region
        $region249: #{forecast_denoising_forward.1} parent=243 // pred_check
          %p6522 = pneg %p1257
        $region250: #{forecast_denoising_forward.1} parent=243 // pred_check_branch
          %6524 = sbr.rel (%p6522) target = $region252
        $region251: #{forecast_denoising_forward.1} parent=243 // pred_region
          %p6525 = scmp.lt.s32.totalorder %s122, 1
          %s6526 = scalar_select %p6525, %s122, 1
          %s6527 = scalar_lea.vmem %s105, %s6526
        $region252: #{forecast_denoising_forward.1} parent=243 // pred_fallthru
          _
      $region244: #{forecast_denoising_forward.1} parent=5 // pred_fallthru
        _
    $region6: #{forecast_denoising_forward.1} parent=1 // loop_footer
      %s120 = sadd.s32 1, %s116
    $region7: #{forecast_denoising_forward.1} parent=1 // loop_footer_branch
      %115 = sbr.rel target = $region3
    $region8: #{forecast_denoising_forward.1} parent=1 // loop_exit
      _
    %6528 = vsyncpa [#allocation4], 1
    %s6529 = scalar_lea.sflag [#allocation4], 1
    %6530 = vsyncpa %s6529, 1
    %6531 = vsyncpa [#allocation6], 1

</llo_original>
